<compile_context>
chip_gen: v7x
topology: tpu7x:2x2x1
jax: 0.10.0
libtpu: 0.0.40
codegen_flags: <defaults>
</compile_context>

<pallas_src>
import functools
import math

import jax
import jax.numpy as jnp
import numpy as np
from jax.experimental import pallas as pl
from jax.experimental.pallas import tpu as pltpu


# --------------------------------------------------------------------------- #
# Kernel 1: LayerNorm1 + fused Q/K/V projection, head-major bf16 outputs.
# Grid: (B, S // TS), both axes "parallel".
# --------------------------------------------------------------------------- #
def qkv_proj_kernel(x_ref, vec_ref, wq_ref, wk_ref, wv_ref,
                    q_ref, k_ref, v_ref, *, eps, scale, num_heads):
    ts, emb = x_ref.shape[1], x_ref.shape[2]
    head_dim = emb // num_heads

    x = x_ref[0]                                   # (TS, E) f32
    vec = vec_ref[...]                             # (5, E)  f32
    ln_g, ln_b = vec[0:1], vec[1:2]
    bq, bk, bv = vec[2:3], vec[3:4], vec[4:5]

    # two-pass LayerNorm stats in f32 (no E[x^2]-mean^2 cancellation)
    mean = jnp.mean(x, axis=-1, keepdims=True)
    xc = x - mean
    var = jnp.mean(xc * xc, axis=-1, keepdims=True)
    xn = (xc * jax.lax.rsqrt(var + eps) * ln_g + ln_b).astype(jnp.bfloat16)

    q = jnp.dot(xn, wq_ref[...], preferred_element_type=jnp.float32) + bq
    k = jnp.dot(xn, wk_ref[...], preferred_element_type=jnp.float32) + bk
    v = jnp.dot(xn, wv_ref[...], preferred_element_type=jnp.float32) + bv

    def headify(t):                                # (TS, E) f32 -> (H, TS, D) bf16
        return (t.reshape(ts, num_heads, head_dim)
                  .transpose(1, 0, 2).astype(jnp.bfloat16))

    q_ref[0] = headify(q * scale)                  # fold 1/sqrt(D) into q
    k_ref[0] = headify(k)
    v_ref[0] = headify(v)


# --------------------------------------------------------------------------- #
# Kernel 2: flash attention (online softmax over KV tiles) + output projection
# + residual + LayerNorm2 + MLP + residual.
# Grid: (B, S // TQ, S // TK) with ("parallel", "parallel", "arbitrary").
# --------------------------------------------------------------------------- #
def attn_mlp_kernel(x_ref, q_ref, k_ref, v_ref,
                    wo_ref, w1_ref, b1_ref, w2_ref, vec_ref,
                    o_ref,
                    m_sc, l_sc, acc_sc,
                    *, eps):
    kv = pl.program_id(2)

    @pl.when(kv == 0)
    def _init():
        m_sc[...] = jnp.full(m_sc.shape, -jnp.inf, m_sc.dtype)
        l_sc[...] = jnp.zeros(l_sc.shape, l_sc.dtype)
        acc_sc[...] = jnp.zeros(acc_sc.shape, acc_sc.dtype)

    qh = q_ref[0]          # (H, TQ, D) bf16, already scaled by 1/sqrt(D)
    kh = k_ref[0]          # (H, TK, D) bf16
    vh = v_ref[0]          # (H, TK, D) bf16

    s = jnp.einsum("hqd,hkd->hqk", qh, kh,
                   preferred_element_type=jnp.float32)           # (H, TQ, TK) f32

    # online-softmax update (f32)
    m_prev = m_sc[...]
    m_new = jnp.maximum(m_prev, jnp.max(s, axis=-1, keepdims=True))
    alpha = jnp.exp(m_prev - m_new)
    p = jnp.exp(s - m_new)
    l_sc[...] = alpha * l_sc[...] + jnp.sum(p, axis=-1, keepdims=True)
    acc_sc[...] = alpha * acc_sc[...] + jnp.einsum(
        "hqk,hkd->hqd", p.astype(jnp.bfloat16), vh,
        preferred_element_type=jnp.float32)
    m_sc[...] = m_new

    @pl.when(kv == pl.num_programs(2) - 1)
    def _epilogue():
        num_heads, tq, head_dim = acc_sc.shape
        vec = vec_ref[...]                                       # (4, E) f32
        bo, ln2_g, ln2_b, b2 = vec[0:1], vec[1:2], vec[2:3], vec[3:4]

        # normalize and fold heads back to (TQ, E)
        ctx = acc_sc[...] * pl.reciprocal(l_sc[...], approx=True)   # (H, TQ, D)
        attn_cat = ctx.transpose(1, 0, 2).reshape(tq, num_heads * head_dim)
        attn_out = jnp.dot(attn_cat.astype(jnp.bfloat16), wo_ref[...],
                           preferred_element_type=jnp.float32) + bo
        x1 = x_ref[0] + attn_out                                 # residual 1 (f32)

        # LayerNorm2 (two-pass, f32)
        mean = jnp.mean(x1, axis=-1, keepdims=True)
        xc = x1 - mean
        var = jnp.mean(xc * xc, axis=-1, keepdims=True)
        x1n = (xc * jax.lax.rsqrt(var + eps) * ln2_g + ln2_b).astype(jnp.bfloat16)

        # MLP: Linear -> exact (erf) GELU -> Linear
        h1 = jnp.dot(x1n, w1_ref[...],
                     preferred_element_type=jnp.float32) + b1_ref[...]
        h1 = 0.5 * h1 * (1.0 + jax.lax.erf(h1 * (1.0 / math.sqrt(2.0))))
        ff = jnp.dot(h1.astype(jnp.bfloat16), w2_ref[...],
                     preferred_element_type=jnp.float32) + b2
        o_ref[0] = (x1 + ff).astype(o_ref.dtype)                 # residual 2


# ------------------------------ wrapper ------------------------------------ #
def prepare_transformer_params(p):
    """One-time prep outside the per-call path: cast matmul weights to bf16 and
    pack the small per-channel vectors into single lane-dense arrays."""
    bf = jnp.bfloat16
    return {
        "wq": p["wq"].astype(bf), "wk": p["wk"].astype(bf), "wv": p["wv"].astype(bf),
        "wo": p["wo"].astype(bf), "w1": p["w1"].astype(bf), "w2": p["w2"].astype(bf),
        "b1": p["b1"].astype(jnp.float32),
        # kernel-1 vectors: [ln1_g, ln1_b, bq, bk, bv] -> (5, E)
        "vec_qkv": jnp.concatenate(
            [p["ln1_g"], p["ln1_b"], p["bq"], p["bk"], p["bv"]], axis=0
        ).astype(jnp.float32),
        # kernel-2 vectors: [bo, ln2_g, ln2_b, b2] -> (4, E)
        "vec_out": jnp.concatenate(
            [p["bo"], p["ln2_g"], p["ln2_b"], p["b2"]], axis=0
        ).astype(jnp.float32),
    }


def _vmem_capacity_bytes():
    try:
        cap = getattr(pltpu.get_tpu_info(), "vmem_capacity_bytes", None)
        if cap:
            return int(cap)
    except Exception:
        pass
    return 64 * 1024 * 1024          # conservative default (v7x per-core VMEM)


def _clamp_vmem(est_bytes):
    cap = _vmem_capacity_bytes()
    return int(min(max(int(est_bytes * 1.3), 32 << 20), int(0.85 * cap)))


def transformer_block(x, prep, *, num_heads, ts=256, tq=256, tk=256):
    """Forward pass of the ViT TransformerBlock (inference path, dropout=0)."""
    B, S, E = x.shape
    assert E % num_heads == 0
    head_dim = E // num_heads
    H_ff = prep["w1"].shape[1]
    ts, tq, tk = min(ts, S), min(tq, S), min(tk, S)
    assert S % ts == 0 and S % tq == 0 and S % tk == 0

    f32, bf16 = 4, 2

    def const(shape):
        # grid-invariant operand: constant index_map + single buffering
        return pl.BlockSpec(shape, lambda *_: (0,) * len(shape),
                            pipeline_mode=pl.Buffered(1))

    # ------------------- kernel 1: LN1 + QKV projection ------------------- #
    est1 = (2 * ts * E * f32               # x tiles (double-buffered)
            + 3 * E * E * bf16             # wq/wk/wv (single-buffered)
            + 8 * E * f32                  # packed vectors
            + 3 * 2 * ts * E * bf16        # q/k/v out tiles
            + 8 * ts * E * f32)            # live f32 activations
    qkv = pl.pallas_call(
        functools.partial(qkv_proj_kernel, eps=1e-5,
                          scale=1.0 / math.sqrt(head_dim), num_heads=num_heads),
        out_shape=(
            jax.ShapeDtypeStruct((B, num_heads, S, head_dim), jnp.bfloat16),
            jax.ShapeDtypeStruct((B, num_heads, S, head_dim), jnp.bfloat16),
            jax.ShapeDtypeStruct((B, num_heads, S, head_dim), jnp.bfloat16),
        ),
        grid_spec=pltpu.PrefetchScalarGridSpec(
            num_scalar_prefetch=0,
            grid=(B, S // ts),
            in_specs=[
                pl.BlockSpec((1, ts, E), lambda b, si: (b, si, 0)),
                const((5, E)),
                const((E, E)), const((E, E)), const((E, E)),
            ],
            out_specs=[
                pl.BlockSpec((1, num_heads, ts, head_dim),
                             lambda b, si: (b, 0, si, 0)),
                pl.BlockSpec((1, num_heads, ts, head_dim),
                             lambda b, si: (b, 0, si, 0)),
                pl.BlockSpec((1, num_heads, ts, head_dim),
                             lambda b, si: (b, 0, si, 0)),
            ],
        ),
        compiler_params=pltpu.CompilerParams(
            dimension_semantics=("parallel", "parallel"),
            vmem_limit_bytes=_clamp_vmem(est1),
        ),
    )
    q, k, v = qkv(x, prep["vec_qkv"], prep["wq"], prep["wk"], prep["wv"])

    # -------- kernel 2: flash attention + out proj + LN2 + MLP ------------ #
    H = num_heads
    est2 = (2 * tq * E * f32                        # x residual tile
            + 2 * tq * E * bf16 + 4 * tk * E * bf16 # q / k / v tiles
            + (E * E + 2 * E * H_ff) * bf16         # wo / w1 / w2
            + (8 * E + 8 * H_ff) * f32              # packed vectors + b1
            + 2 * tq * E * f32                      # out tile
            + (2 * H * tq + H * tq * head_dim) * f32        # m / l / acc scratch
            + 2 * H * tq * tk * f32                 # s / p
            + 2 * tq * H_ff * f32                   # MLP hidden
            + 6 * tq * E * f32)                     # misc f32 temporaries
    attn_mlp = pl.pallas_call(
        functools.partial(attn_mlp_kernel, eps=1e-5),
        out_shape=jax.ShapeDtypeStruct((B, S, E), x.dtype),
        grid_spec=pltpu.PrefetchScalarGridSpec(
            num_scalar_prefetch=0,
            grid=(B, S // tq, S // tk),
            in_specs=[
                pl.BlockSpec((1, tq, E), lambda b, qi, ki: (b, qi, 0)),      # x
                pl.BlockSpec((1, H, tq, head_dim),
                             lambda b, qi, ki: (b, 0, qi, 0)),               # q
                pl.BlockSpec((1, H, tk, head_dim),
                             lambda b, qi, ki: (b, 0, ki, 0)),               # k
                pl.BlockSpec((1, H, tk, head_dim),
                             lambda b, qi, ki: (b, 0, ki, 0)),               # v
                const((E, E)),          # wo
                const((E, H_ff)),       # w1
                const((1, H_ff)),       # b1
                const((H_ff, E)),       # w2
                const((4, E)),          # [bo, ln2_g, ln2_b, b2]
            ],
            out_specs=pl.BlockSpec((1, tq, E), lambda b, qi, ki: (b, qi, 0)),
            scratch_shapes=[
                pltpu.VMEM((H, tq, 1), jnp.float32),           # running max
                pltpu.VMEM((H, tq, 1), jnp.float32),           # running sum
                pltpu.VMEM((H, tq, head_dim), jnp.float32),    # output acc
            ],
        ),
        compiler_params=pltpu.CompilerParams(
            dimension_semantics=("parallel", "parallel", "arbitrary"),
            vmem_limit_bytes=_clamp_vmem(est2),
        ),
    )
    return attn_mlp(x, q, k, v, prep["wo"], prep["w1"], prep["b1"], prep["w2"],
                    prep["vec_out"])


# -------------------------- pure-JAX reference ----------------------------- #
def transformer_block_ref(x, p, *, num_heads):
    B, S, E = x.shape
    D = E // num_heads

    def ln(h, g, b):
        mean = jnp.mean(h, axis=-1, keepdims=True)
        var = jnp.mean((h - mean) ** 2, axis=-1, keepdims=True)
        return (h - mean) / jnp.sqrt(var + 1e-5) * g[0] + b[0]

    xn = ln(x, p["ln1_g"], p["ln1_b"])
    q = xn @ p["wq"] + p["bq"][0]
    k = xn @ p["wk"] + p["bk"][0]
    v = xn @ p["wv"] + p["bv"][0]
    q = q.reshape(B, S, num_heads, D).transpose(0, 2, 1, 3)
    k = k.reshape(B, S, num_heads, D).transpose(0, 2, 1, 3)
    v = v.reshape(B, S, num_heads, D).transpose(0, 2, 1, 3)
    energy = jnp.einsum("bhqd,bhkd->bhqk", q, k) / math.sqrt(D)
    attn = jax.nn.softmax(energy, axis=-1)
    out = jnp.einsum("bhqk,bhkd->bhqd", attn, v)
    out = out.transpose(0, 2, 1, 3).reshape(B, S, E)
    x1 = x + (out @ p["wo"] + p["bo"][0])

    x1n = ln(x1, p["ln2_g"], p["ln2_b"])
    h1 = x1n @ p["w1"] + p["b1"][0]
    h1 = 0.5 * h1 * (1.0 + jax.lax.erf(h1 / math.sqrt(2.0)))
    return x1 + (h1 @ p["w2"] + p["b2"][0])


# --------------------------------- main ------------------------------------ #
if __name__ == "__main__":
    # Tile-aligned small config (S, E, head_dim, H_ff multiples of 8/128).
    # Two tiles per S axis so the flash accumulation across KV grid steps and
    # multiple query tiles are actually exercised.
    B, S, E = 2, 256, 256
    NUM_HEADS = 2            # head_dim = 128
    H_FF = 512

    key = jax.random.PRNGKey(0)
    keys = jax.random.split(key, 13)
    std = 0.02

    params = {
        "ln1_g": jnp.ones((1, E), jnp.float32),
        "ln1_b": jnp.zeros((1, E), jnp.float32),
        "wq": std * jax.random.normal(keys[0], (E, E), jnp.float32),
        "bq": std * jax.random.normal(keys[1], (1, E), jnp.float32),
        "wk": std * jax.random.normal(keys[2], (E, E), jnp.float32),
        "bk": std * jax.random.normal(keys[3], (1, E), jnp.float32),
        "wv": std * jax.random.normal(keys[4], (E, E), jnp.float32),
        "bv": std * jax.random.normal(keys[5], (1, E), jnp.float32),
        "wo": std * jax.random.normal(keys[6], (E, E), jnp.float32),
        "bo": std * jax.random.normal(keys[7], (1, E), jnp.float32),
        "ln2_g": jnp.ones((1, E), jnp.float32),
        "ln2_b": jnp.zeros((1, E), jnp.float32),
        "w1": std * jax.random.normal(keys[8], (E, H_FF), jnp.float32),
        "b1": std * jax.random.normal(keys[9], (1, H_FF), jnp.float32),
        "w2": std * jax.random.normal(keys[10], (H_FF, E), jnp.float32),
        "b2": std * jax.random.normal(keys[11], (1, E), jnp.float32),
    }
    x = jax.random.normal(keys[12], (B, S, E), jnp.float32)

    # one-time weight prep (bf16 cast + small-vector packing) outside the call
    prepared = prepare_transformer_params(params)

    # tq/tk = 128 here to exercise multi-step flash at this small S; use
    # ts = tq = 256 (defaults) on v6e/v7x at realistic sequence lengths.
    out = transformer_block(x, prepared, num_heads=NUM_HEADS,
                            ts=128, tq=128, tk=128)
    out = jax.block_until_ready(out)

    # Reference is full f32; kernel uses bf16 MXU operands + approx softmax
    # reciprocal, so tolerance is loosened accordingly.
    ref = transformer_block_ref(x, params, num_heads=NUM_HEADS)
    np.testing.assert_allclose(np.asarray(out), np.asarray(ref),
                               rtol=2e-2, atol=2e-2)

    print("KERNEL_OK")
</pallas_src>

<mosaic_0001>
module attributes {stable_mosaic.version = 11 : i64} {
  func.func @qkv_proj_kernel(%arg0: i32, %arg1: i32, %arg2: memref<1x128x256xf32, #tpu.memory_space<vmem>>, %arg3: memref<5x256xf32, #tpu.memory_space<vmem>>, %arg4: memref<256x256xbf16, #tpu.memory_space<vmem>>, %arg5: memref<256x256xbf16, #tpu.memory_space<vmem>>, %arg6: memref<256x256xbf16, #tpu.memory_space<vmem>>, %arg7: memref<1x2x128x128xbf16, #tpu.memory_space<vmem>>, %arg8: memref<1x2x128x128xbf16, #tpu.memory_space<vmem>>, %arg9: memref<1x2x128x128xbf16, #tpu.memory_space<vmem>>) attributes {dimension_semantics = [#tpu.dimension_semantics<parallel>, #tpu.dimension_semantics<parallel>], iteration_bounds = array<i64: 2, 2>, scalar_prefetch = 0 : i64, scratch_operands = 0 : i64, tpu.core_type = #tpu.core_type<tc>, window_params = [{transform_indices = @transform_0, window_bounds = array<i64: 1, 128, 256>}, {pipeline_mode = #tpu.pipeline_mode<synchronous>, transform_indices = @transform_1, window_bounds = array<i64: 5, 256>}, {pipeline_mode = #tpu.pipeline_mode<synchronous>, transform_indices = @transform_2, window_bounds = array<i64: 256, 256>}, {pipeline_mode = #tpu.pipeline_mode<synchronous>, transform_indices = @transform_3, window_bounds = array<i64: 256, 256>}, {pipeline_mode = #tpu.pipeline_mode<synchronous>, transform_indices = @transform_4, window_bounds = array<i64: 256, 256>}, {transform_indices = @transform_5, window_bounds = array<i64: 1, 2, 128, 128>}, {transform_indices = @transform_6, window_bounds = array<i64: 1, 2, 128, 128>}, {transform_indices = @transform_7, window_bounds = array<i64: 1, 2, 128, 128>}]} {
    %c0 = arith.constant 0 : index
    %c0_0 = arith.constant 0 : index
    %c0_1 = arith.constant 0 : index
    %0 = vector.load %arg2[%c0, %c0_0, %c0_1] : memref<1x128x256xf32, #tpu.memory_space<vmem>>, vector<1x128x256xf32>
    %1 = vector.shape_cast %0 : vector<1x128x256xf32> to vector<128x256xf32>
    %c0_2 = arith.constant 0 : index
    %c0_3 = arith.constant 0 : index
    %2 = vector.load %arg3[%c0_2, %c0_3] : memref<5x256xf32, #tpu.memory_space<vmem>>, vector<5x256xf32>
    %3 = vector.extract_strided_slice %2 {offsets = [0, 0], sizes = [1, 256], strides = [1, 1]} : vector<5x256xf32> to vector<1x256xf32>
    %4 = vector.extract_strided_slice %2 {offsets = [1, 0], sizes = [1, 256], strides = [1, 1]} : vector<5x256xf32> to vector<1x256xf32>
    %5 = vector.extract_strided_slice %2 {offsets = [2, 0], sizes = [1, 256], strides = [1, 1]} : vector<5x256xf32> to vector<1x256xf32>
    %6 = vector.extract_strided_slice %2 {offsets = [3, 0], sizes = [1, 256], strides = [1, 1]} : vector<5x256xf32> to vector<1x256xf32>
    %7 = vector.extract_strided_slice %2 {offsets = [4, 0], sizes = [1, 256], strides = [1, 1]} : vector<5x256xf32> to vector<1x256xf32>
    %cst = arith.constant dense<0.000000e+00> : vector<128xf32>
    %8 = vector.multi_reduction <add>, %1, %cst [1] : vector<128x256xf32> to vector<128xf32>
    %9 = vector.shape_cast %8 : vector<128xf32> to vector<128x1xf32>
    %cst_4 = arith.constant 2.560000e+02 : f32
    %10 = vector.broadcast %cst_4 : f32 to vector<128x1xf32>
    %11 = arith.divf %9, %10 : vector<128x1xf32>
    %12 = vector.broadcast %11 : vector<128x1xf32> to vector<128x256xf32>
    %13 = arith.subf %1, %12 : vector<128x256xf32>
    %14 = arith.mulf %13, %13 : vector<128x256xf32>
    %cst_5 = arith.constant dense<0.000000e+00> : vector<128xf32>
    %15 = vector.multi_reduction <add>, %14, %cst_5 [1] : vector<128x256xf32> to vector<128xf32>
    %16 = vector.shape_cast %15 : vector<128xf32> to vector<128x1xf32>
    %cst_6 = arith.constant 2.560000e+02 : f32
    %17 = vector.broadcast %cst_6 : f32 to vector<128x1xf32>
    %18 = arith.divf %16, %17 : vector<128x1xf32>
    %cst_7 = arith.constant 9.99999974E-6 : f32
    %19 = vector.broadcast %cst_7 : f32 to vector<128x1xf32>
    %20 = arith.addf %18, %19 : vector<128x1xf32>
    %21 = math.rsqrt %20 : vector<128x1xf32>
    %22 = vector.broadcast %21 : vector<128x1xf32> to vector<128x256xf32>
    %23 = arith.mulf %13, %22 : vector<128x256xf32>
    %24 = vector.broadcast %3 : vector<1x256xf32> to vector<128x256xf32>
    %25 = arith.mulf %23, %24 : vector<128x256xf32>
    %26 = vector.broadcast %4 : vector<1x256xf32> to vector<128x256xf32>
    %27 = arith.addf %25, %26 : vector<128x256xf32>
    %28 = arith.truncf %27 : vector<128x256xf32> to vector<128x256xbf16>
    %c0_8 = arith.constant 0 : index
    %c0_9 = arith.constant 0 : index
    %29 = vector.load %arg4[%c0_8, %c0_9] : memref<256x256xbf16, #tpu.memory_space<vmem>>, vector<256x256xbf16>
    %cst_10 = arith.constant dense<0.000000e+00> : vector<128x256xf32>
    %30 = tpu.matmul %28, %29, %cst_10 {dimension_numbers = #tpu.dot_dimension_numbers<[1], [0], [0], [1], [0, 0, 1, 1], [], []>} : vector<128x256xbf16>, vector<256x256xbf16>, vector<128x256xf32> -> vector<128x256xf32>
    %31 = vector.broadcast %5 : vector<1x256xf32> to vector<128x256xf32>
    %32 = arith.addf %30, %31 : vector<128x256xf32>
    %c0_11 = arith.constant 0 : index
    %c0_12 = arith.constant 0 : index
    %33 = vector.load %arg5[%c0_11, %c0_12] : memref<256x256xbf16, #tpu.memory_space<vmem>>, vector<256x256xbf16>
    %cst_13 = arith.constant dense<0.000000e+00> : vector<128x256xf32>
    %34 = tpu.matmul %28, %33, %cst_13 {dimension_numbers = #tpu.dot_dimension_numbers<[1], [0], [0], [1], [0, 0, 1, 1], [], []>} : vector<128x256xbf16>, vector<256x256xbf16>, vector<128x256xf32> -> vector<128x256xf32>
    %35 = vector.broadcast %6 : vector<1x256xf32> to vector<128x256xf32>
    %36 = arith.addf %34, %35 : vector<128x256xf32>
    %c0_14 = arith.constant 0 : index
    %c0_15 = arith.constant 0 : index
    %37 = vector.load %arg6[%c0_14, %c0_15] : memref<256x256xbf16, #tpu.memory_space<vmem>>, vector<256x256xbf16>
    %cst_16 = arith.constant dense<0.000000e+00> : vector<128x256xf32>
    %38 = tpu.matmul %28, %37, %cst_16 {dimension_numbers = #tpu.dot_dimension_numbers<[1], [0], [0], [1], [0, 0, 1, 1], [], []>} : vector<128x256xbf16>, vector<256x256xbf16>, vector<128x256xf32> -> vector<128x256xf32>
    %39 = vector.broadcast %7 : vector<1x256xf32> to vector<128x256xf32>
    %40 = arith.addf %38, %39 : vector<128x256xf32>
    %cst_17 = arith.constant 0.0883883461 : f32
    %41 = vector.broadcast %cst_17 : f32 to vector<128x256xf32>
    %42 = arith.mulf %32, %41 : vector<128x256xf32>
    %43 = vector.shape_cast %42 : vector<128x256xf32> to vector<128x2x128xf32>
    %44 = tpu.transpose %43, [1, 0, 2] : vector<128x2x128xf32> -> vector<2x128x128xf32>
    %45 = arith.truncf %44 : vector<2x128x128xf32> to vector<2x128x128xbf16>
    %c0_18 = arith.constant 0 : index
    %c0_19 = arith.constant 0 : index
    %c0_20 = arith.constant 0 : index
    %c0_21 = arith.constant 0 : index
    %46 = vector.load %arg7[%c0_18, %c0_19, %c0_20, %c0_21] : memref<1x2x128x128xbf16, #tpu.memory_space<vmem>>, vector<1x2x128x128xbf16>
    %47 = vector.shape_cast %46 : vector<1x2x128x128xbf16> to vector<2x128x128xbf16>
    %48 = vector.shape_cast %45 : vector<2x128x128xbf16> to vector<1x2x128x128xbf16>
    tpu.vector_store %arg7[%c0_18, %c0_19, %c0_20, %c0_21], %48 {strides = array<i32>} : memref<1x2x128x128xbf16, #tpu.memory_space<vmem>>, vector<1x2x128x128xbf16>,
    %49 = vector.shape_cast %36 : vector<128x256xf32> to vector<128x2x128xf32>
    %50 = tpu.transpose %49, [1, 0, 2] : vector<128x2x128xf32> -> vector<2x128x128xf32>
    %51 = arith.truncf %50 : vector<2x128x128xf32> to vector<2x128x128xbf16>
    %c0_22 = arith.constant 0 : index
    %c0_23 = arith.constant 0 : index
    %c0_24 = arith.constant 0 : index
    %c0_25 = arith.constant 0 : index
    %52 = vector.load %arg8[%c0_22, %c0_23, %c0_24, %c0_25] : memref<1x2x128x128xbf16, #tpu.memory_space<vmem>>, vector<1x2x128x128xbf16>
    %53 = vector.shape_cast %52 : vector<1x2x128x128xbf16> to vector<2x128x128xbf16>
    %54 = vector.shape_cast %51 : vector<2x128x128xbf16> to vector<1x2x128x128xbf16>
    tpu.vector_store %arg8[%c0_22, %c0_23, %c0_24, %c0_25], %54 {strides = array<i32>} : memref<1x2x128x128xbf16, #tpu.memory_space<vmem>>, vector<1x2x128x128xbf16>,
    %55 = vector.shape_cast %40 : vector<128x256xf32> to vector<128x2x128xf32>
    %56 = tpu.transpose %55, [1, 0, 2] : vector<128x2x128xf32> -> vector<2x128x128xf32>
    %57 = arith.truncf %56 : vector<2x128x128xf32> to vector<2x128x128xbf16>
    %c0_26 = arith.constant 0 : index
    %c0_27 = arith.constant 0 : index
    %c0_28 = arith.constant 0 : index
    %c0_29 = arith.constant 0 : index
    %58 = vector.load %arg9[%c0_26, %c0_27, %c0_28, %c0_29] : memref<1x2x128x128xbf16, #tpu.memory_space<vmem>>, vector<1x2x128x128xbf16>
    %59 = vector.shape_cast %58 : vector<1x2x128x128xbf16> to vector<2x128x128xbf16>
    %60 = vector.shape_cast %57 : vector<2x128x128xbf16> to vector<1x2x128x128xbf16>
    tpu.vector_store %arg9[%c0_26, %c0_27, %c0_28, %c0_29], %60 {strides = array<i32>} : memref<1x2x128x128xbf16, #tpu.memory_space<vmem>>, vector<1x2x128x128xbf16>,
    return
  }
  func.func @transform_0(%arg0: i32, %arg1: i32) -> (i32, i32, i32) {
    %c0_i32 = arith.constant 0 : i32
    %c0_i32_0 = arith.constant 0 : i32
    return %arg0, %arg1, %c0_i32 : i32, i32, i32
  }
  func.func @transform_1(%arg0: i32, %arg1: i32) -> (i32, i32) {
    %c0_i32 = arith.constant 0 : i32
    %c0_i32_0 = arith.constant 0 : i32
    %c0_i32_1 = arith.constant 0 : i32
    return %c0_i32, %c0_i32_0 : i32, i32
  }
  func.func @transform_2(%arg0: i32, %arg1: i32) -> (i32, i32) {
    %c0_i32 = arith.constant 0 : i32
    %c0_i32_0 = arith.constant 0 : i32
    %c0_i32_1 = arith.constant 0 : i32
    return %c0_i32, %c0_i32_0 : i32, i32
  }
  func.func @transform_3(%arg0: i32, %arg1: i32) -> (i32, i32) {
    %c0_i32 = arith.constant 0 : i32
    %c0_i32_0 = arith.constant 0 : i32
    %c0_i32_1 = arith.constant 0 : i32
    return %c0_i32, %c0_i32_0 : i32, i32
  }
  func.func @transform_4(%arg0: i32, %arg1: i32) -> (i32, i32) {
    %c0_i32 = arith.constant 0 : i32
    %c0_i32_0 = arith.constant 0 : i32
    %c0_i32_1 = arith.constant 0 : i32
    return %c0_i32, %c0_i32_0 : i32, i32
  }
  func.func @transform_5(%arg0: i32, %arg1: i32) -> (i32, i32, i32, i32) {
    %c0_i32 = arith.constant 0 : i32
    %c0_i32_0 = arith.constant 0 : i32
    %c0_i32_1 = arith.constant 0 : i32
    return %arg0, %c0_i32, %arg1, %c0_i32_0 : i32, i32, i32, i32
  }
  func.func @transform_6(%arg0: i32, %arg1: i32) -> (i32, i32, i32, i32) {
    %c0_i32 = arith.constant 0 : i32
    %c0_i32_0 = arith.constant 0 : i32
    %c0_i32_1 = arith.constant 0 : i32
    return %arg0, %c0_i32, %arg1, %c0_i32_0 : i32, i32, i32, i32
  }
  func.func @transform_7(%arg0: i32, %arg1: i32) -> (i32, i32, i32, i32) {
    %c0_i32 = arith.constant 0 : i32
    %c0_i32_0 = arith.constant 0 : i32
    %c0_i32_1 = arith.constant 0 : i32
    return %arg0, %c0_i32, %arg1, %c0_i32_0 : i32, i32, i32, i32
  }
}

</mosaic_0001>

<llo_original>
// kernel: tpu_custom_call.1
$region0: #{tpu_custom_call.1}
  #allocation0 [shape = 'u32[]', space=smem, size = 0x4, offset = 0x4, fixed_abs, tag = 'smem constant byte address 0x4 - core index']
  #allocation1 [shape = 'u32[144,128]{1,0:T(1,128)}', space=vmem, size = 0x12000, scoped, tag = 'internal scratch']
  #allocation15 [shape = 's32[]', space=sflag, size = 0x4, offset = 0, fixed_abs, tag = 'sflag constant byte address 0x0 - dummy sync flag']
  #allocation17 [shape = 's32[]', space=sflag, size = 0x4, offset = 0, fixed_abs, tag = 'sflag constant byte address 0x0 - dummy sync flag']
  #allocation19 [shape = 's32[]', space=sflag, size = 0x4, offset = 0, fixed_abs, tag = 'sflag constant byte address 0x0 - dummy sync flag']
  %s0 = inlined_call_operand.hbm [shape: f32[2,256,256], index: 0, kind: input, shape index: {}]
  %s1 = inlined_call_operand.hbm [shape: f32[5,256], index: 1, kind: input, shape index: {}]
  %s2 = inlined_call_operand.hbm [shape: bf16[256,256], index: 2, kind: input, shape index: {}]
  %s3 = inlined_call_operand.hbm [shape: bf16[256,256], index: 3, kind: input, shape index: {}]
  %s4 = inlined_call_operand.hbm [shape: bf16[256,256], index: 4, kind: input, shape index: {}]
  %s5 = inlined_call_operand.hbm [shape: bf16[2,2,256,128], index: 5, kind: output, shape index: {0}]
  %s6 = inlined_call_operand.hbm [shape: bf16[2,2,256,128], index: 6, kind: output, shape index: {1}]
  %s7 = inlined_call_operand.hbm [shape: bf16[2,2,256,128], index: 7, kind: output, shape index: {2}]
  %8 = xla_tuple %s5, %s6, %s7
  %s9 = sld [smem:[#allocation0]]
  $region89: #{tpu_custom_call.1} parent=0
    _
  %s11 = ssub.s32 1, %s9
  %s12 = scalar_select 0, %s11, %s9
  $region1: #{tpu_custom_call.1} parent=0
    #allocation2 [shape = 'u8[262144]{0}', space=vmem, size = 0x40000, scoped, tag = 'input window, operand 0']
    #allocation3 [shape = 's32[2]{0}', space=sflag, size = 0x8, scoped, tag = 'scoped memory for tpu_custom_call.1']
    #allocation4 [shape = 's32[2]{0}', space=sflag, size = 0x8, scoped, tag = 'scoped memory for tpu_custom_call.1']
    #allocation5 [shape = 'u8[8192]{0}', space=vmem, size = 0x2000, scoped, tag = 'input window, operand 1, single buffered']
    #allocation6 [shape = 's32[1]{0}', space=sflag, size = 0x4, scoped, tag = 'scoped memory for tpu_custom_call.1']
    #allocation7 [shape = 'u8[131072]{0}', space=vmem, size = 0x20000, scoped, tag = 'input window, operand 2, single buffered']
    #allocation8 [shape = 'u8[131072]{0}', space=vmem, size = 0x20000, scoped, tag = 'input window, operand 3, single buffered']
    #allocation9 [shape = 's32[1]{0}', space=sflag, size = 0x4, scoped, tag = 'scoped memory for tpu_custom_call.1']
    #allocation10 [shape = 'u8[131072]{0}', space=vmem, size = 0x20000, scoped, tag = 'input window, operand 4, single buffered']
    #allocation11 [shape = 'u8[131072]{0}', space=vmem, size = 0x20000, scoped, tag = 'output window, operand 0']
    #allocation12 [shape = 'u8[131072]{0}', space=vmem, size = 0x20000, scoped, tag = 'output window, operand 1']
    #allocation13 [shape = 's32[2]{0}', space=sflag, size = 0x8, scoped, tag = 'scoped memory for tpu_custom_call.1']
    #allocation14 [shape = 'u8[131072]{0}', space=vmem, size = 0x20000, scoped, tag = 'output window, operand 2']
    %13 = vsyncpa [#allocation3], 0
    %s14 = scalar_lea.sflag [#allocation3], 1
    %15 = vsyncpa %s14, 0
    %16 = vsyncpa [#allocation6], 0
    %17 = vsyncpa [#allocation9], 0
    %18 = vsyncpa [#allocation4], 0
    %s19 = scalar_lea.sflag [#allocation4], 1
    %20 = vsyncpa %s19, 0
    %21 = vsyncpa [#allocation13], 0
    %s22 = scalar_lea.sflag [#allocation13], 1
    %23 = vsyncpa %s22, 0
    loop: start=0, step=1, limit=6
    $region2: #{tpu_custom_call.1} parent=1 // loop_pre_header
      _
    $region3: #{tpu_custom_call.1} parent=1 // loop_header
      %s25 = sphi 0, %s29
      %p26 = scmp.ge.s32.totalorder %s25, 6
      %s32 = sphi 0, %s44
      %s33 = sphi 0, %s40
      %s34 = sphi 0, %s32
      %s35 = sphi 0, %s33
      %s36 = sphi 0, %s34
      %s37 = sphi 0, %s35
      %s49 = sphi 0, %s51
      %s52 = sphi 0, %s49
      %s53 = sphi 0, %s52
      %s69 = sphi 0, %s53
      %s73 = sphi 0, %s73
      %s75 = sphi 0, %s73
      %s76 = sphi 0, %s75
      %s90 = sphi 0, %s76
      %s94 = sphi 0, %s94
      %s96 = sphi 0, %s94
      %s97 = sphi 0, %s96
      %s111 = sphi 0, %s97
      %s115 = sphi 0, %s115
      %s117 = sphi 0, %s115
      %s118 = sphi 0, %s117
      %s132 = sphi 0, %s118
      %s136 = sphi 0, %s136
      %s138 = sphi 0, %s136
      %s139 = sphi 0, %s138
      %s153 = sphi 0, %s139
      %s161 = sphi 0, %s163
      %s164 = sphi 0, %s161
      %s165 = sphi 0, %s164
      %s181 = sphi 0, %s165
      %s189 = sphi 0, %s191
      %s192 = sphi 0, %s189
      %s193 = sphi 0, %s192
      %s209 = sphi 0, %s193
      %s217 = sphi 0, %s219
      %s220 = sphi 0, %s217
      %s221 = sphi 0, %s220
      %s237 = sphi 0, %s221
    $region4: #{tpu_custom_call.1} parent=1 // loop_header_branch
      %28 = sbr.rel (%p26) target = $region8
    $region5: #{tpu_custom_call.1} parent=1 // loop_body
      %s30 = ssub.s32 %s25, 1
      %s31 = ssub.s32 %s25, 2
      %s38 = sadd.s32 1, %s33
      %p39 = scmp.ge.s32.totalorder %s38, 2
      %s40 = scalar_select %p39, 0, %s38
      %s41 = sadd.s32 1, %s32
      %s42 = scalar_select %p39, %s41, %s32
      %p43 = scmp.ge.s32.totalorder %s42, 2
      %s44 = scalar_select %p43, 0, %s42
      %s45 = ssub.s32 %s32, %s44
      %s46 = ssub.s32 %s33, %s40
      %s47 = sor.u32 %s45, %s46
      %p48 = scmp.eq.s32.totalorder %s47, 0
      %s50 = sadd.s32 %s49, 1
      %s51 = scalar_select %p48, %s49, %s50
      %p54 = pneg %p48
      %p55 = scmp.eq.s32.totalorder %s25, 3
      %p56 = por %p54, %p55
      %p57 = scmp.ne.s32.totalorder %s49, %s52
      %p58 = scmp.eq.s32.totalorder %s25, 0
      %p59 = por %p57, %p58
      %p60 = scmp.ne.s32.totalorder %s49, %s52
      %p61 = scmp.eq.s32.totalorder %s30, 3
      %p62 = por %p60, %p61
      %p63 = scmp.ne.s32.totalorder %s52, %s53
      %p64 = scmp.eq.s32.totalorder %s30, 0
      %p65 = por %p63, %p64
      %p66 = scmp.ne.s32.totalorder %s52, %s53
      %p67 = scmp.eq.s32.totalorder %s31, 3
      %p68 = por %p66, %p67
      %p70 = scmp.ne.s32.totalorder %s53, %s69
      %p71 = scmp.eq.s32.totalorder %s31, 0
      %p72 = por %p70, %p71
      %s74 = sadd.s32 %s73, 1
      %p77 = scmp.eq.s32.totalorder %s25, 3
      %p78 = scmp.ne.s32.totalorder %s73, %s75
      %p79 = scmp.eq.s32.totalorder %s25, 0
      %p80 = por %p78, %p79
      %p81 = scmp.ne.s32.totalorder %s73, %s75
      %p82 = scmp.eq.s32.totalorder %s30, 3
      %p83 = por %p81, %p82
      %p84 = scmp.ne.s32.totalorder %s75, %s76
      %p85 = scmp.eq.s32.totalorder %s30, 0
      %p86 = por %p84, %p85
      %p87 = scmp.ne.s32.totalorder %s75, %s76
      %p88 = scmp.eq.s32.totalorder %s31, 3
      %p89 = por %p87, %p88
      %p91 = scmp.ne.s32.totalorder %s76, %s90
      %p92 = scmp.eq.s32.totalorder %s31, 0
      %p93 = por %p91, %p92
      %s95 = sadd.s32 %s94, 1
      %p98 = scmp.eq.s32.totalorder %s25, 3
      %p99 = scmp.ne.s32.totalorder %s94, %s96
      %p100 = scmp.eq.s32.totalorder %s25, 0
      %p101 = por %p99, %p100
      %p102 = scmp.ne.s32.totalorder %s94, %s96
      %p103 = scmp.eq.s32.totalorder %s30, 3
      %p104 = por %p102, %p103
      %p105 = scmp.ne.s32.totalorder %s96, %s97
      %p106 = scmp.eq.s32.totalorder %s30, 0
      %p107 = por %p105, %p106
      %p108 = scmp.ne.s32.totalorder %s96, %s97
      %p109 = scmp.eq.s32.totalorder %s31, 3
      %p110 = por %p108, %p109
      %p112 = scmp.ne.s32.totalorder %s97, %s111
      %p113 = scmp.eq.s32.totalorder %s31, 0
      %p114 = por %p112, %p113
      %s116 = sadd.s32 %s115, 1
      %p119 = scmp.eq.s32.totalorder %s25, 3
      %p120 = scmp.ne.s32.totalorder %s115, %s117
      %p121 = scmp.eq.s32.totalorder %s25, 0
      %p122 = por %p120, %p121
      %p123 = scmp.ne.s32.totalorder %s115, %s117
      %p124 = scmp.eq.s32.totalorder %s30, 3
      %p125 = por %p123, %p124
      %p126 = scmp.ne.s32.totalorder %s117, %s118
      %p127 = scmp.eq.s32.totalorder %s30, 0
      %p128 = por %p126, %p127
      %p129 = scmp.ne.s32.totalorder %s117, %s118
      %p130 = scmp.eq.s32.totalorder %s31, 3
      %p131 = por %p129, %p130
      %p133 = scmp.ne.s32.totalorder %s118, %s132
      %p134 = scmp.eq.s32.totalorder %s31, 0
      %p135 = por %p133, %p134
      %s137 = sadd.s32 %s136, 1
      %p140 = scmp.eq.s32.totalorder %s25, 3
      %p141 = scmp.ne.s32.totalorder %s136, %s138
      %p142 = scmp.eq.s32.totalorder %s25, 0
      %p143 = por %p141, %p142
      %p144 = scmp.ne.s32.totalorder %s136, %s138
      %p145 = scmp.eq.s32.totalorder %s30, 3
      %p146 = por %p144, %p145
      %p147 = scmp.ne.s32.totalorder %s138, %s139
      %p148 = scmp.eq.s32.totalorder %s30, 0
      %p149 = por %p147, %p148
      %p150 = scmp.ne.s32.totalorder %s138, %s139
      %p151 = scmp.eq.s32.totalorder %s31, 3
      %p152 = por %p150, %p151
      %p154 = scmp.ne.s32.totalorder %s139, %s153
      %p155 = scmp.eq.s32.totalorder %s31, 0
      %p156 = por %p154, %p155
      %s157 = ssub.s32 %s32, %s44
      %s158 = ssub.s32 %s33, %s40
      %s159 = sor.u32 %s157, %s158
      %p160 = scmp.eq.s32.totalorder %s159, 0
      %s162 = sadd.s32 %s161, 1
      %s163 = scalar_select %p160, %s161, %s162
      %p166 = pneg %p160
      %p167 = scmp.eq.s32.totalorder %s25, 3
      %p168 = por %p166, %p167
      %p169 = scmp.ne.s32.totalorder %s161, %s164
      %p170 = scmp.eq.s32.totalorder %s25, 0
      %p171 = por %p169, %p170
      %p172 = scmp.ne.s32.totalorder %s161, %s164
      %p173 = scmp.eq.s32.totalorder %s30, 3
      %p174 = por %p172, %p173
      %p175 = scmp.ne.s32.totalorder %s164, %s165
      %p176 = scmp.eq.s32.totalorder %s30, 0
      %p177 = por %p175, %p176
      %p178 = scmp.ne.s32.totalorder %s164, %s165
      %p179 = scmp.eq.s32.totalorder %s31, 3
      %p180 = por %p178, %p179
      %p182 = scmp.ne.s32.totalorder %s165, %s181
      %p183 = scmp.eq.s32.totalorder %s31, 0
      %p184 = por %p182, %p183
      %s185 = ssub.s32 %s32, %s44
      %s186 = ssub.s32 %s33, %s40
      %s187 = sor.u32 %s185, %s186
      %p188 = scmp.eq.s32.totalorder %s187, 0
      %s190 = sadd.s32 %s189, 1
      %s191 = scalar_select %p188, %s189, %s190
      %p194 = pneg %p188
      %p195 = scmp.eq.s32.totalorder %s25, 3
      %p196 = por %p194, %p195
      %p197 = scmp.ne.s32.totalorder %s189, %s192
      %p198 = scmp.eq.s32.totalorder %s25, 0
      %p199 = por %p197, %p198
      %p200 = scmp.ne.s32.totalorder %s189, %s192
      %p201 = scmp.eq.s32.totalorder %s30, 3
      %p202 = por %p200, %p201
      %p203 = scmp.ne.s32.totalorder %s192, %s193
      %p204 = scmp.eq.s32.totalorder %s30, 0
      %p205 = por %p203, %p204
      %p206 = scmp.ne.s32.totalorder %s192, %s193
      %p207 = scmp.eq.s32.totalorder %s31, 3
      %p208 = por %p206, %p207
      %p210 = scmp.ne.s32.totalorder %s193, %s209
      %p211 = scmp.eq.s32.totalorder %s31, 0
      %p212 = por %p210, %p211
      %s213 = ssub.s32 %s32, %s44
      %s214 = ssub.s32 %s33, %s40
      %s215 = sor.u32 %s213, %s214
      %p216 = scmp.eq.s32.totalorder %s215, 0
      %s218 = sadd.s32 %s217, 1
      %s219 = scalar_select %p216, %s217, %s218
      %p222 = pneg %p216
      %p223 = scmp.eq.s32.totalorder %s25, 3
      %p224 = por %p222, %p223
      %p225 = scmp.ne.s32.totalorder %s217, %s220
      %p226 = scmp.eq.s32.totalorder %s25, 0
      %p227 = por %p225, %p226
      %p228 = scmp.ne.s32.totalorder %s217, %s220
      %p229 = scmp.eq.s32.totalorder %s30, 3
      %p230 = por %p228, %p229
      %p231 = scmp.ne.s32.totalorder %s220, %s221
      %p232 = scmp.eq.s32.totalorder %s30, 0
      %p233 = por %p231, %p232
      %p234 = scmp.ne.s32.totalorder %s220, %s221
      %p235 = scmp.eq.s32.totalorder %s31, 3
      %p236 = por %p234, %p235
      %p238 = scmp.ne.s32.totalorder %s221, %s237
      %p239 = scmp.eq.s32.totalorder %s31, 0
      %p240 = por %p238, %p239
      %p241 = scmp.le.s32.totalorder 1, %s25
      %p242 = scmp.lt.s32.totalorder %s25, 5
      %p243 = pnand %p241, %p242
      %p244 = pneg %p243
      // Predicated region
      $region9: #{tpu_custom_call.1} parent=5 // pred_check
        _
      $region10: #{tpu_custom_call.1} parent=5 // pred_check_branch
        %246 = sbr.rel (%p243) target = $region12
      $region11: #{tpu_custom_call.1} parent=5 // pred_region
        %s247 = ssub.s32 %s25, 1
        // Predicated region
        $region13: #{tpu_custom_call.1} parent=11 // pred_check
          %p248 = pneg %p86
        $region14: #{tpu_custom_call.1} parent=11 // pred_check_branch
          %250 = sbr.rel (%p248) target = $region16
        $region15: #{tpu_custom_call.1} parent=11 // pred_region
          %s252 = ssub.s32 256, 256
          %253 = vsyncadd [#allocation6], %s252
          %s255 = sshll.u32 [#allocation5], 4
          %s256 = int_to_ptr.vmem [resolvable:$true] %s255
          %258 = dma.hbm_to_vmem [thread:$0]  %s1, 256, %s256, [#allocation6]
        $region16: #{tpu_custom_call.1} parent=11 // pred_fallthru
          _
        // Predicated region
        $region17: #{tpu_custom_call.1} parent=11 // pred_check
          %p259 = pneg %p107
        $region18: #{tpu_custom_call.1} parent=11 // pred_check_branch
          %261 = sbr.rel (%p259) target = $region20
        $region19: #{tpu_custom_call.1} parent=11 // pred_region
          %s263 = ssub.s32 4096, 4096
          %264 = vsyncadd [#allocation6], %s263
          %s265 = sshll.u32 [#allocation7], 4
          %s266 = int_to_ptr.vmem [resolvable:$true] %s265
          %271 = dma.hbm_to_vmem [thread:$0]  %s2, 4096, %s266, [#allocation6], 128, 128, 8
        $region20: #{tpu_custom_call.1} parent=11 // pred_fallthru
          _
        // Predicated region
        $region21: #{tpu_custom_call.1} parent=11 // pred_check
          %p272 = pneg %p128
        $region22: #{tpu_custom_call.1} parent=11 // pred_check_branch
          %274 = sbr.rel (%p272) target = $region24
        $region23: #{tpu_custom_call.1} parent=11 // pred_region
          %s276 = ssub.s32 4096, 4096
          %277 = vsyncadd [#allocation9], %s276
          %s278 = sshll.u32 [#allocation8], 4
          %s279 = int_to_ptr.vmem [resolvable:$true] %s278
          %284 = dma.hbm_to_vmem [thread:$0]  %s3, 4096, %s279, [#allocation9], 128, 128, 8
        $region24: #{tpu_custom_call.1} parent=11 // pred_fallthru
          _
        // Predicated region
        $region25: #{tpu_custom_call.1} parent=11 // pred_check
          %p285 = pneg %p149
        $region26: #{tpu_custom_call.1} parent=11 // pred_check_branch
          %287 = sbr.rel (%p285) target = $region28
        $region27: #{tpu_custom_call.1} parent=11 // pred_region
          %s289 = ssub.s32 4096, 4096
          %290 = vsyncadd [#allocation9], %s289
          %s291 = sshll.u32 [#allocation10], 4
          %s292 = int_to_ptr.vmem [resolvable:$true] %s291
          %297 = dma.hbm_to_vmem [thread:$0]  %s4, 4096, %s292, [#allocation9], 128, 128, 8
        $region28: #{tpu_custom_call.1} parent=11 // pred_fallthru
          _
      $region12: #{tpu_custom_call.1} parent=5 // pred_fallthru
        _
      %p298 = scmp.lt.s32.totalorder %s25, 4
      // Predicated region
      $region29: #{tpu_custom_call.1} parent=5 // pred_check
        %p299 = pneg %p298
      $region30: #{tpu_custom_call.1} parent=5 // pred_check_branch
        %301 = sbr.rel (%p299) target = $region32
      $region31: #{tpu_custom_call.1} parent=5 // pred_region
        // Predicated region
        $region33: #{tpu_custom_call.1} parent=31 // pred_check
          %p302 = pneg %p59
        $region34: #{tpu_custom_call.1} parent=31 // pred_check_branch
          %304 = sbr.rel (%p302) target = $region36
        $region35: #{tpu_custom_call.1} parent=31 // pred_region
          %s305 = sand.u32 %s49, 1
          %s306 = scalar_lea.sflag [#allocation3], %s305
          %s307 = sand.u32 %s49, 1
          %s308 = smul.addr %s307, 256
          %s309 = scalar_lea.vmem [#allocation2], %s308
          %s310 = smul.u32 16, %s33
          %s312 = ssub.s32 4096, 4096
          %313 = vsyncadd %s306, %s312
          %s314 = smul.addr %s310, 2
          %s315 = smul.addr %s32, 64
          %s316 = sadd.s32 %s314, %s315
          %s317 = smul.addr %s316, 128
          %s318 = scalar_lea.hbm %s0, %s317
          %s319 = sshll.u32 %s309, 4
          %s320 = int_to_ptr.vmem [resolvable:$true] %s319
          %325 = dma.hbm_to_vmem [thread:$0]  %s318, 4096, %s320, %s306, 256, 256, 16
        $region36: #{tpu_custom_call.1} parent=31 // pred_fallthru
          _
      $region32: #{tpu_custom_call.1} parent=5 // pred_fallthru
        _
      %p326 = scmp.le.s32.totalorder 1, %s25
      %p327 = scmp.lt.s32.totalorder %s25, 5
      %p328 = pnand %p326, %p327
      %p329 = pneg %p328
      // Predicated region
      $region37: #{tpu_custom_call.1} parent=5 // pred_check
        _
      $region38: #{tpu_custom_call.1} parent=5 // pred_check_branch
        %331 = sbr.rel (%p328) target = $region40
      $region39: #{tpu_custom_call.1} parent=5 // pred_region
        %s332 = ssub.s32 %s25, 1
        %s333 = sand.u32 %s52, 1
        %s334 = scalar_lea.sflag [#allocation3], %s333
        %s335 = sand.u32 %s52, 1
        %s336 = smul.addr %s335, 256
        %s337 = scalar_lea.vmem [#allocation2], %s336
        // Predicated region
        $region41: #{tpu_custom_call.1} parent=39 // pred_check
          %p338 = pneg %p65
        $region42: #{tpu_custom_call.1} parent=39 // pred_check_branch
          %340 = sbr.rel (%p338) target = $region44
        $region43: #{tpu_custom_call.1} parent=39 // pred_region
          %341 = dma.done %s334, 4096
        $region44: #{tpu_custom_call.1} parent=39 // pred_fallthru
          _
        // Predicated region
        $region45: #{tpu_custom_call.1} parent=39 // pred_check
          %p342 = pneg %p86
        $region46: #{tpu_custom_call.1} parent=39 // pred_check_branch
          %344 = sbr.rel (%p342) target = $region48
        $region47: #{tpu_custom_call.1} parent=39 // pred_region
          %345 = dma.done [#allocation6], 256
        $region48: #{tpu_custom_call.1} parent=39 // pred_fallthru
          _
        // Predicated region
        $region49: #{tpu_custom_call.1} parent=39 // pred_check
          %p346 = pneg %p107
        $region50: #{tpu_custom_call.1} parent=39 // pred_check_branch
          %348 = sbr.rel (%p346) target = $region52
        $region51: #{tpu_custom_call.1} parent=39 // pred_region
          %349 = dma.done [#allocation6], 4096
        $region52: #{tpu_custom_call.1} parent=39 // pred_fallthru
          _
        // Predicated region
        $region53: #{tpu_custom_call.1} parent=39 // pred_check
          %p350 = pneg %p128
        $region54: #{tpu_custom_call.1} parent=39 // pred_check_branch
          %352 = sbr.rel (%p350) target = $region56
        $region55: #{tpu_custom_call.1} parent=39 // pred_region
          %353 = dma.done [#allocation9], 4096
        $region56: #{tpu_custom_call.1} parent=39 // pred_fallthru
          _
        // Predicated region
        $region57: #{tpu_custom_call.1} parent=39 // pred_check
          %p354 = pneg %p149
        $region58: #{tpu_custom_call.1} parent=39 // pred_check_branch
          %356 = sbr.rel (%p354) target = $region60
        $region59: #{tpu_custom_call.1} parent=39 // pred_region
          %357 = dma.done [#allocation9], 4096
        $region60: #{tpu_custom_call.1} parent=39 // pred_fallthru
          _
        %s358 = sand.u32 %s52, 1
        %s359 = scalar_lea.sflag [#allocation3], %s358
        %s360 = sand.u32 %s52, 1
        %s361 = smul.addr %s360, 256
        %s362 = scalar_lea.vmem [#allocation2], %s361
        %p363 = pneg %p65
        %p364 = pneg %p62
        %p365 = pneg %p86
        %p366 = pneg %p83
        %p367 = pneg %p107
        %p368 = pneg %p104
        %p369 = pneg %p128
        %p370 = pneg %p125
        %p371 = pneg %p149
        %p372 = pneg %p146
        %p373 = pneg %p177
        %p374 = pneg %p174
        %s375 = sand.u32 %s164, 1
        %s376 = scalar_lea.sflag [#allocation4], %s375
        %s377 = sand.u32 %s164, 1
        %s378 = smul.addr %s377, 128
        %s379 = scalar_lea.vmem [#allocation11], %s378
        %p380 = pneg %p205
        %p381 = pneg %p202
        %s382 = sand.u32 %s30, 1
        %s383 = scalar_lea.sflag [#allocation13], %s382
        %s384 = sand.u32 %s192, 1
        %s385 = smul.addr %s384, 128
        %s386 = scalar_lea.vmem [#allocation12], %s385
        %p387 = pneg %p233
        %p388 = pneg %p230
        %s389 = sand.u32 %s30, 1
        %s390 = scalar_lea.sflag [#allocation13], %s389
        %s391 = sand.u32 %s220, 1
        %s392 = smul.addr %s391, 128
        %s393 = scalar_lea.vmem [#allocation14], %s392
        %s394 = smul.u32 16, %s35
        %s395 = smul.u32 16, %s35
        %s396 = smul.u32 16, %s35
        %s397 = smul.u32 16, %s35
        %v398 = vld [vmem:[%s337] sm:$0xff]
        %v399 = vld [vmem:[%s337 + $0x8] sm:$0xff]
        %v400 = vld [vmem:[%s337 + $0x10] sm:$0xff]
        %v401 = vld [vmem:[%s337 + $0x18] sm:$0xff]
        %v402 = vld [vmem:[%s337 + $0x20] sm:$0xff]
        %v403 = vld [vmem:[%s337 + $0x28] sm:$0xff]
        %v404 = vld [vmem:[%s337 + $0x30] sm:$0xff]
        %v405 = vld [vmem:[%s337 + $0x38] sm:$0xff]
        %v406 = vld [vmem:[%s337 + $0x40] sm:$0xff]
        %v407 = vld [vmem:[%s337 + $0x48] sm:$0xff]
        %v408 = vld [vmem:[%s337 + $0x50] sm:$0xff]
        %v409 = vld [vmem:[%s337 + $0x58] sm:$0xff]
        %v410 = vld [vmem:[%s337 + $0x60] sm:$0xff]
        %v411 = vld [vmem:[%s337 + $0x68] sm:$0xff]
        %v412 = vld [vmem:[%s337 + $0x70] sm:$0xff]
        %v413 = vld [vmem:[%s337 + $0x78] sm:$0xff]
        %v414 = vld [vmem:[%s337 + $0x80] sm:$0xff]
        %v415 = vld [vmem:[%s337 + $0x88] sm:$0xff]
        %v416 = vld [vmem:[%s337 + $0x90] sm:$0xff]
        %v417 = vld [vmem:[%s337 + $0x98] sm:$0xff]
        %v418 = vld [vmem:[%s337 + $0xa0] sm:$0xff]
        %v419 = vld [vmem:[%s337 + $0xa8] sm:$0xff]
        %v420 = vld [vmem:[%s337 + $0xb0] sm:$0xff]
        %v421 = vld [vmem:[%s337 + $0xb8] sm:$0xff]
        %v422 = vld [vmem:[%s337 + $0xc0] sm:$0xff]
        %v423 = vld [vmem:[%s337 + $0xc8] sm:$0xff]
        %v424 = vld [vmem:[%s337 + $0xd0] sm:$0xff]
        %v425 = vld [vmem:[%s337 + $0xd8] sm:$0xff]
        %v426 = vld [vmem:[%s337 + $0xe0] sm:$0xff]
        %v427 = vld [vmem:[%s337 + $0xe8] sm:$0xff]
        %v428 = vld [vmem:[%s337 + $0xf0] sm:$0xff]
        %v429 = vld [vmem:[%s337 + $0xf8] sm:$0xff]
        %v430 = vld [vmem:[#allocation5] sm:$0x1f]
        %v431 = vld [vmem:[#allocation5 + $0x8] sm:$0x1f]
        %v432 = vadd.f32 %v398, %v399
        %433 = vadd.xlane.f32.xlu0 %v432
        %v434 = vpop.xlane.xlu0 %433
        %v435 = vadd.f32 %v400, %v401
        %436 = vadd.xlane.f32.xlu0 %v435
        %v437 = vpop.xlane.xlu0 %436
        %v438 = vadd.f32 %v402, %v403
        %439 = vadd.xlane.f32.xlu0 %v438
        %v440 = vpop.xlane.xlu0 %439
        %v441 = vadd.f32 %v404, %v405
        %442 = vadd.xlane.f32.xlu0 %v441
        %v443 = vpop.xlane.xlu0 %442
        %v444 = vadd.f32 %v406, %v407
        %445 = vadd.xlane.f32.xlu0 %v444
        %v446 = vpop.xlane.xlu0 %445
        %v447 = vadd.f32 %v408, %v409
        %448 = vadd.xlane.f32.xlu0 %v447
        %v449 = vpop.xlane.xlu0 %448
        %v450 = vadd.f32 %v410, %v411
        %451 = vadd.xlane.f32.xlu0 %v450
        %v452 = vpop.xlane.xlu0 %451
        %v453 = vadd.f32 %v412, %v413
        %454 = vadd.xlane.f32.xlu0 %v453
        %v455 = vpop.xlane.xlu0 %454
        %v456 = vadd.f32 %v414, %v415
        %457 = vadd.xlane.f32.xlu0 %v456
        %v458 = vpop.xlane.xlu0 %457
        %v459 = vadd.f32 %v416, %v417
        %460 = vadd.xlane.f32.xlu0 %v459
        %v461 = vpop.xlane.xlu0 %460
        %v462 = vadd.f32 %v418, %v419
        %463 = vadd.xlane.f32.xlu0 %v462
        %v464 = vpop.xlane.xlu0 %463
        %v465 = vadd.f32 %v420, %v421
        %466 = vadd.xlane.f32.xlu0 %v465
        %v467 = vpop.xlane.xlu0 %466
        %v468 = vadd.f32 %v422, %v423
        %469 = vadd.xlane.f32.xlu0 %v468
        %v470 = vpop.xlane.xlu0 %469
        %v471 = vadd.f32 %v424, %v425
        %472 = vadd.xlane.f32.xlu0 %v471
        %v473 = vpop.xlane.xlu0 %472
        %v474 = vadd.f32 %v426, %v427
        %475 = vadd.xlane.f32.xlu0 %v474
        %v476 = vpop.xlane.xlu0 %475
        %v477 = vadd.f32 %v428, %v429
        %478 = vadd.xlane.f32.xlu0 %v477
        %v479 = vpop.xlane.xlu0 %478
        %v480 = vrcp.pop 256.0
        %v481 = vmul.f32 %v434, %v480
        %v482 = vmul.f32 %v437, %v480
        %v483 = vmul.f32 %v440, %v480
        %v484 = vmul.f32 %v443, %v480
        %v485 = vmul.f32 %v446, %v480
        %v486 = vmul.f32 %v449, %v480
        %v487 = vmul.f32 %v452, %v480
        %v488 = vmul.f32 %v455, %v480
        %v489 = vmul.f32 %v458, %v480
        %v490 = vmul.f32 %v461, %v480
        %v491 = vmul.f32 %v464, %v480
        %v492 = vmul.f32 %v467, %v480
        %v493 = vmul.f32 %v470, %v480
        %v494 = vmul.f32 %v473, %v480
        %v495 = vmul.f32 %v476, %v480
        %v496 = vmul.f32 %v479, %v480
        %v497 = vsub.f32 %v398, %v481
        %v498 = vsub.f32 %v399, %v481
        %v499 = vsub.f32 %v400, %v482
        %v500 = vsub.f32 %v401, %v482
        %v501 = vsub.f32 %v402, %v483
        %v502 = vsub.f32 %v403, %v483
        %v503 = vsub.f32 %v404, %v484
        %v504 = vsub.f32 %v405, %v484
        %v505 = vsub.f32 %v406, %v485
        %v506 = vsub.f32 %v407, %v485
        %v507 = vsub.f32 %v408, %v486
        %v508 = vsub.f32 %v409, %v486
        %v509 = vsub.f32 %v410, %v487
        %v510 = vsub.f32 %v411, %v487
        %v511 = vsub.f32 %v412, %v488
        %v512 = vsub.f32 %v413, %v488
        %v513 = vsub.f32 %v414, %v489
        %v514 = vsub.f32 %v415, %v489
        %v515 = vsub.f32 %v416, %v490
        %v516 = vsub.f32 %v417, %v490
        %v517 = vsub.f32 %v418, %v491
        %v518 = vsub.f32 %v419, %v491
        %v519 = vsub.f32 %v420, %v492
        %v520 = vsub.f32 %v421, %v492
        %v521 = vsub.f32 %v422, %v493
        %v522 = vsub.f32 %v423, %v493
        %v523 = vsub.f32 %v424, %v494
        %v524 = vsub.f32 %v425, %v494
        %v525 = vsub.f32 %v426, %v495
        %v526 = vsub.f32 %v427, %v495
        %v527 = vsub.f32 %v428, %v496
        %v528 = vsub.f32 %v429, %v496
        %v529 = vmul.f32 %v497, %v497
        %v530 = vmul.f32 %v498, %v498
        %v531 = vmul.f32 %v499, %v499
        %v532 = vmul.f32 %v500, %v500
        %v533 = vmul.f32 %v501, %v501
        %v534 = vmul.f32 %v502, %v502
        %v535 = vmul.f32 %v503, %v503
        %v536 = vmul.f32 %v504, %v504
        %v537 = vmul.f32 %v505, %v505
        %v538 = vmul.f32 %v506, %v506
        %v539 = vmul.f32 %v507, %v507
        %v540 = vmul.f32 %v508, %v508
        %v541 = vmul.f32 %v509, %v509
        %v542 = vmul.f32 %v510, %v510
        %v543 = vmul.f32 %v511, %v511
        %v544 = vmul.f32 %v512, %v512
        %v545 = vmul.f32 %v513, %v513
        %v546 = vmul.f32 %v514, %v514
        %v547 = vmul.f32 %v515, %v515
        %v548 = vmul.f32 %v516, %v516
        %v549 = vmul.f32 %v517, %v517
        %v550 = vmul.f32 %v518, %v518
        %v551 = vmul.f32 %v519, %v519
        %v552 = vmul.f32 %v520, %v520
        %v553 = vmul.f32 %v521, %v521
        %v554 = vmul.f32 %v522, %v522
        %v555 = vmul.f32 %v523, %v523
        %v556 = vmul.f32 %v524, %v524
        %v557 = vmul.f32 %v525, %v525
        %v558 = vmul.f32 %v526, %v526
        %v559 = vmul.f32 %v527, %v527
        %v560 = vmul.f32 %v528, %v528
        %v561 = vadd.f32 %v529, %v530
        %562 = vadd.xlane.f32.xlu0 %v561
        %v563 = vpop.xlane.xlu0 %562
        %v564 = vadd.f32 %v531, %v532
        %565 = vadd.xlane.f32.xlu0 %v564
        %v566 = vpop.xlane.xlu0 %565
        %v567 = vadd.f32 %v533, %v534
        %568 = vadd.xlane.f32.xlu0 %v567
        %v569 = vpop.xlane.xlu0 %568
        %v570 = vadd.f32 %v535, %v536
        %571 = vadd.xlane.f32.xlu0 %v570
        %v572 = vpop.xlane.xlu0 %571
        %v573 = vadd.f32 %v537, %v538
        %574 = vadd.xlane.f32.xlu0 %v573
        %v575 = vpop.xlane.xlu0 %574
        %v576 = vadd.f32 %v539, %v540
        %577 = vadd.xlane.f32.xlu0 %v576
        %v578 = vpop.xlane.xlu0 %577
        %v579 = vadd.f32 %v541, %v542
        %580 = vadd.xlane.f32.xlu0 %v579
        %v581 = vpop.xlane.xlu0 %580
        %v582 = vadd.f32 %v543, %v544
        %583 = vadd.xlane.f32.xlu0 %v582
        %v584 = vpop.xlane.xlu0 %583
        %v585 = vadd.f32 %v545, %v546
        %586 = vadd.xlane.f32.xlu0 %v585
        %v587 = vpop.xlane.xlu0 %586
        %v588 = vadd.f32 %v547, %v548
        %589 = vadd.xlane.f32.xlu0 %v588
        %v590 = vpop.xlane.xlu0 %589
        %v591 = vadd.f32 %v549, %v550
        %592 = vadd.xlane.f32.xlu0 %v591
        %v593 = vpop.xlane.xlu0 %592
        %v594 = vadd.f32 %v551, %v552
        %595 = vadd.xlane.f32.xlu0 %v594
        %v596 = vpop.xlane.xlu0 %595
        %v597 = vadd.f32 %v553, %v554
        %598 = vadd.xlane.f32.xlu0 %v597
        %v599 = vpop.xlane.xlu0 %598
        %v600 = vadd.f32 %v555, %v556
        %601 = vadd.xlane.f32.xlu0 %v600
        %v602 = vpop.xlane.xlu0 %601
        %v603 = vadd.f32 %v557, %v558
        %604 = vadd.xlane.f32.xlu0 %v603
        %v605 = vpop.xlane.xlu0 %604
        %v606 = vadd.f32 %v559, %v560
        %607 = vadd.xlane.f32.xlu0 %v606
        %v608 = vpop.xlane.xlu0 %607
        %v609 = vmul.f32 %v563, %v480
        %v610 = vmul.f32 %v566, %v480
        %v611 = vmul.f32 %v569, %v480
        %v612 = vmul.f32 %v572, %v480
        %v613 = vmul.f32 %v575, %v480
        %v614 = vmul.f32 %v578, %v480
        %v615 = vmul.f32 %v581, %v480
        %v616 = vmul.f32 %v584, %v480
        %v617 = vmul.f32 %v587, %v480
        %v618 = vmul.f32 %v590, %v480
        %v619 = vmul.f32 %v593, %v480
        %v620 = vmul.f32 %v596, %v480
        %v621 = vmul.f32 %v599, %v480
        %v622 = vmul.f32 %v602, %v480
        %v623 = vmul.f32 %v605, %v480
        %v624 = vmul.f32 %v608, %v480
        %v625 = vadd.f32 %v609, 1e-05
        %v626 = vadd.f32 %v610, 1e-05
        %v627 = vadd.f32 %v611, 1e-05
        %v628 = vadd.f32 %v612, 1e-05
        %v629 = vadd.f32 %v613, 1e-05
        %v630 = vadd.f32 %v614, 1e-05
        %v631 = vadd.f32 %v615, 1e-05
        %v632 = vadd.f32 %v616, 1e-05
        %v633 = vadd.f32 %v617, 1e-05
        %v634 = vadd.f32 %v618, 1e-05
        %v635 = vadd.f32 %v619, 1e-05
        %v636 = vadd.f32 %v620, 1e-05
        %v637 = vadd.f32 %v621, 1e-05
        %v638 = vadd.f32 %v622, 1e-05
        %v639 = vadd.f32 %v623, 1e-05
        %v640 = vadd.f32 %v624, 1e-05
        %v641 = vrsqrt.pop %v625
        %v642 = vrsqrt.pop %v626
        %v643 = vrsqrt.pop %v627
        %v644 = vrsqrt.pop %v628
        %v645 = vrsqrt.pop %v629
        %v646 = vrsqrt.pop %v630
        %v647 = vrsqrt.pop %v631
        %v648 = vrsqrt.pop %v632
        %v649 = vrsqrt.pop %v633
        %v650 = vrsqrt.pop %v634
        %v651 = vrsqrt.pop %v635
        %v652 = vrsqrt.pop %v636
        %v653 = vrsqrt.pop %v637
        %v654 = vrsqrt.pop %v638
        %v655 = vrsqrt.pop %v639
        %v656 = vrsqrt.pop %v640
        %v657 = vmul.f32 %v497, %v641
        %v658 = vmul.f32 %v498, %v641
        %v659 = vmul.f32 %v499, %v642
        %v660 = vmul.f32 %v500, %v642
        %v661 = vmul.f32 %v501, %v643
        %v662 = vmul.f32 %v502, %v643
        %v663 = vmul.f32 %v503, %v644
        %v664 = vmul.f32 %v504, %v644
        %v665 = vmul.f32 %v505, %v645
        %v666 = vmul.f32 %v506, %v645
        %v667 = vmul.f32 %v507, %v646
        %v668 = vmul.f32 %v508, %v646
        %v669 = vmul.f32 %v509, %v647
        %v670 = vmul.f32 %v510, %v647
        %v671 = vmul.f32 %v511, %v648
        %v672 = vmul.f32 %v512, %v648
        %v673 = vmul.f32 %v513, %v649
        %v674 = vmul.f32 %v514, %v649
        %v675 = vmul.f32 %v515, %v650
        %v676 = vmul.f32 %v516, %v650
        %v677 = vmul.f32 %v517, %v651
        %v678 = vmul.f32 %v518, %v651
        %v679 = vmul.f32 %v519, %v652
        %v680 = vmul.f32 %v520, %v652
        %v681 = vmul.f32 %v521, %v653
        %v682 = vmul.f32 %v522, %v653
        %v683 = vmul.f32 %v523, %v654
        %v684 = vmul.f32 %v524, %v654
        %v685 = vmul.f32 %v525, %v655
        %v686 = vmul.f32 %v526, %v655
        %v687 = vmul.f32 %v527, %v656
        %v688 = vmul.f32 %v528, %v656
        %v689 = vlaneseq
        %v690 = vshrl.u32 %v689, 7
        %v691 = vsub.s32 0, %v690
        %v692 = vrot.slane %v430, %v691
        %v693 = vlaneseq
        %v694 = vshrl.u32 %v693, 7
        %v695 = vsub.s32 0, %v694
        %v696 = vrot.slane %v431, %v695
        %v697 = vmul.f32 %v657, %v692
        %v698 = vmul.f32 %v658, %v696
        %v699 = vmul.f32 %v659, %v692
        %v700 = vmul.f32 %v660, %v696
        %v701 = vmul.f32 %v661, %v692
        %v702 = vmul.f32 %v662, %v696
        %v703 = vmul.f32 %v663, %v692
        %v704 = vmul.f32 %v664, %v696
        %v705 = vmul.f32 %v665, %v692
        %v706 = vmul.f32 %v666, %v696
        %v707 = vmul.f32 %v667, %v692
        %v708 = vmul.f32 %v668, %v696
        %v709 = vmul.f32 %v669, %v692
        %v710 = vmul.f32 %v670, %v696
        %v711 = vmul.f32 %v671, %v692
        %v712 = vmul.f32 %v672, %v696
        %v713 = vmul.f32 %v673, %v692
        %v714 = vmul.f32 %v674, %v696
        %v715 = vmul.f32 %v675, %v692
        %v716 = vmul.f32 %v676, %v696
        %v717 = vmul.f32 %v677, %v692
        %v718 = vmul.f32 %v678, %v696
        %v719 = vmul.f32 %v679, %v692
        %v720 = vmul.f32 %v680, %v696
        %v721 = vmul.f32 %v681, %v692
        %v722 = vmul.f32 %v682, %v696
        %v723 = vmul.f32 %v683, %v692
        %v724 = vmul.f32 %v684, %v696
        %v725 = vmul.f32 %v685, %v692
        %v726 = vmul.f32 %v686, %v696
        %v727 = vmul.f32 %v687, %v692
        %v728 = vmul.f32 %v688, %v696
        %v729 = vlaneseq
        %v730 = vshrl.u32 %v729, 7
        %v731 = vsub.s32 1, %v730
        %v732 = vrot.slane %v430, %v731
        %v733 = vlaneseq
        %v734 = vshrl.u32 %v733, 7
        %v735 = vsub.s32 1, %v734
        %v736 = vrot.slane %v431, %v735
        %v737 = vadd.f32 %v697, %v732
        %v738 = vadd.f32 %v698, %v736
        %v739 = vadd.f32 %v699, %v732
        %v740 = vadd.f32 %v700, %v736
        %v741 = vadd.f32 %v701, %v732
        %v742 = vadd.f32 %v702, %v736
        %v743 = vadd.f32 %v703, %v732
        %v744 = vadd.f32 %v704, %v736
        %v745 = vadd.f32 %v705, %v732
        %v746 = vadd.f32 %v706, %v736
        %v747 = vadd.f32 %v707, %v732
        %v748 = vadd.f32 %v708, %v736
        %v749 = vadd.f32 %v709, %v732
        %v750 = vadd.f32 %v710, %v736
        %v751 = vadd.f32 %v711, %v732
        %v752 = vadd.f32 %v712, %v736
        %v753 = vadd.f32 %v713, %v732
        %v754 = vadd.f32 %v714, %v736
        %v755 = vadd.f32 %v715, %v732
        %v756 = vadd.f32 %v716, %v736
        %v757 = vadd.f32 %v717, %v732
        %v758 = vadd.f32 %v718, %v736
        %v759 = vadd.f32 %v719, %v732
        %v760 = vadd.f32 %v720, %v736
        %v761 = vadd.f32 %v721, %v732
        %v762 = vadd.f32 %v722, %v736
        %v763 = vadd.f32 %v723, %v732
        %v764 = vadd.f32 %v724, %v736
        %v765 = vadd.f32 %v725, %v732
        %v766 = vadd.f32 %v726, %v736
        %v767 = vadd.f32 %v727, %v732
        %v768 = vadd.f32 %v728, %v736
        %v769 = vpack.c.bf16 %v739, %v737
        %v770 = vpack.c.bf16 %v740, %v738
        %v771 = vpack.c.bf16 %v743, %v741
        %v772 = vpack.c.bf16 %v744, %v742
        %v773 = vpack.c.bf16 %v747, %v745
        %v774 = vpack.c.bf16 %v748, %v746
        %v775 = vpack.c.bf16 %v751, %v749
        %v776 = vpack.c.bf16 %v752, %v750
        %v777 = vpack.c.bf16 %v755, %v753
        %v778 = vpack.c.bf16 %v756, %v754
        %v779 = vpack.c.bf16 %v759, %v757
        %v780 = vpack.c.bf16 %v760, %v758
        %v781 = vpack.c.bf16 %v763, %v761
        %v782 = vpack.c.bf16 %v764, %v762
        %v783 = vpack.c.bf16 %v767, %v765
        %v784 = vpack.c.bf16 %v768, %v766
        %v785 = vld [vmem:[#allocation7] sm:$0xff]
        %v786 = vld [vmem:[#allocation7 + $0x8] sm:$0xff]
        %v787 = vld [vmem:[#allocation7 + $0x10] sm:$0xff]
        %v788 = vld [vmem:[#allocation7 + $0x18] sm:$0xff]
        %v789 = vld [vmem:[#allocation7 + $0x20] sm:$0xff]
        %v790 = vld [vmem:[#allocation7 + $0x28] sm:$0xff]
        %v791 = vld [vmem:[#allocation7 + $0x30] sm:$0xff]
        %v792 = vld [vmem:[#allocation7 + $0x38] sm:$0xff]
        %v793 = vld [vmem:[#allocation7 + $0x40] sm:$0xff]
        %v794 = vld [vmem:[#allocation7 + $0x48] sm:$0xff]
        %v795 = vld [vmem:[#allocation7 + $0x50] sm:$0xff]
        %v796 = vld [vmem:[#allocation7 + $0x58] sm:$0xff]
        %v797 = vld [vmem:[#allocation7 + $0x60] sm:$0xff]
        %v798 = vld [vmem:[#allocation7 + $0x68] sm:$0xff]
        %v799 = vld [vmem:[#allocation7 + $0x70] sm:$0xff]
        %v800 = vld [vmem:[#allocation7 + $0x78] sm:$0xff]
        %v801 = vld [vmem:[#allocation7 + $0x80] sm:$0xff]
        %v802 = vld [vmem:[#allocation7 + $0x88] sm:$0xff]
        %v803 = vld [vmem:[#allocation7 + $0x90] sm:$0xff]
        %v804 = vld [vmem:[#allocation7 + $0x98] sm:$0xff]
        %v805 = vld [vmem:[#allocation7 + $0xa0] sm:$0xff]
        %v806 = vld [vmem:[#allocation7 + $0xa8] sm:$0xff]
        %v807 = vld [vmem:[#allocation7 + $0xb0] sm:$0xff]
        %v808 = vld [vmem:[#allocation7 + $0xb8] sm:$0xff]
        %v809 = vld [vmem:[#allocation7 + $0xc0] sm:$0xff]
        %v810 = vld [vmem:[#allocation7 + $0xc8] sm:$0xff]
        %v811 = vld [vmem:[#allocation7 + $0xd0] sm:$0xff]
        %v812 = vld [vmem:[#allocation7 + $0xd8] sm:$0xff]
        %v813 = vld [vmem:[#allocation7 + $0xe0] sm:$0xff]
        %v814 = vld [vmem:[#allocation7 + $0xe8] sm:$0xff]
        %v815 = vld [vmem:[#allocation7 + $0xf0] sm:$0xff]
        %v816 = vld [vmem:[#allocation7 + $0xf8] sm:$0xff]
        %v817 = vlaneseq
        %v818 = vshrl.u32 %v817, 7
        %v819 = vsub.s32 2, %v818
        %v820 = vrot.slane %v430, %v819
        %v821 = vlaneseq
        %v822 = vshrl.u32 %v821, 7
        %v823 = vsub.s32 2, %v822
        %v824 = vrot.slane %v431, %v823
        %v857 = vunpack.c.l.b16 %v785
        %v858 = vunpack.c.h.b16 %v785
        %v859 = vunpack.c.l.b16 %v786
        %v860 = vunpack.c.h.b16 %v786
        %v861 = vunpack.c.l.b16 %v787
        %v862 = vunpack.c.h.b16 %v787
        %v863 = vunpack.c.l.b16 %v788
        %v864 = vunpack.c.h.b16 %v788
        %v865 = vunpack.c.l.b16 %v789
        %v866 = vunpack.c.h.b16 %v789
        %v867 = vunpack.c.l.b16 %v790
        %v868 = vunpack.c.h.b16 %v790
        %v869 = vunpack.c.l.b16 %v791
        %v870 = vunpack.c.h.b16 %v791
        %v871 = vunpack.c.l.b16 %v792
        %v872 = vunpack.c.h.b16 %v792
        %v873 = vunpack.c.l.b16 %v793
        %v874 = vunpack.c.h.b16 %v793
        %v875 = vunpack.c.l.b16 %v794
        %v876 = vunpack.c.h.b16 %v794
        %v877 = vunpack.c.l.b16 %v795
        %v878 = vunpack.c.h.b16 %v795
        %v879 = vunpack.c.l.b16 %v796
        %v880 = vunpack.c.h.b16 %v796
        %v881 = vunpack.c.l.b16 %v797
        %v882 = vunpack.c.h.b16 %v797
        %v883 = vunpack.c.l.b16 %v798
        %v884 = vunpack.c.h.b16 %v798
        %v885 = vunpack.c.l.b16 %v799
        %v886 = vunpack.c.h.b16 %v799
        %v887 = vunpack.c.l.b16 %v800
        %v888 = vunpack.c.h.b16 %v800
        %v889 = vunpack.c.l.b16 %v801
        %v890 = vunpack.c.h.b16 %v801
        %v891 = vunpack.c.l.b16 %v802
        %v892 = vunpack.c.h.b16 %v802
        %v893 = vunpack.c.l.b16 %v803
        %v894 = vunpack.c.h.b16 %v803
        %v895 = vunpack.c.l.b16 %v804
        %v896 = vunpack.c.h.b16 %v804
        %v897 = vunpack.c.l.b16 %v805
        %v898 = vunpack.c.h.b16 %v805
        %v899 = vunpack.c.l.b16 %v806
        %v900 = vunpack.c.h.b16 %v806
        %v901 = vunpack.c.l.b16 %v807
        %v902 = vunpack.c.h.b16 %v807
        %v903 = vunpack.c.l.b16 %v808
        %v904 = vunpack.c.h.b16 %v808
        %v905 = vunpack.c.l.b16 %v809
        %v906 = vunpack.c.h.b16 %v809
        %v907 = vunpack.c.l.b16 %v810
        %v908 = vunpack.c.h.b16 %v810
        %v909 = vunpack.c.l.b16 %v811
        %v910 = vunpack.c.h.b16 %v811
        %v911 = vunpack.c.l.b16 %v812
        %v912 = vunpack.c.h.b16 %v812
        %v913 = vunpack.c.l.b16 %v813
        %v914 = vunpack.c.h.b16 %v813
        %v915 = vunpack.c.l.b16 %v814
        %v916 = vunpack.c.h.b16 %v814
        %v917 = vunpack.c.l.b16 %v815
        %v918 = vunpack.c.h.b16 %v815
        %v919 = vunpack.c.l.b16 %v816
        %v920 = vunpack.c.h.b16 %v816
        %v921 = vpack.c.b16 %v859, %v857
        %v922 = vpack.c.b16 %v860, %v858
        %v923 = vpack.c.b16 %v863, %v861
        %v924 = vpack.c.b16 %v864, %v862
        %v925 = vpack.c.b16 %v867, %v865
        %v926 = vpack.c.b16 %v868, %v866
        %v927 = vpack.c.b16 %v871, %v869
        %v928 = vpack.c.b16 %v872, %v870
        %v929 = vpack.c.b16 %v875, %v873
        %v930 = vpack.c.b16 %v876, %v874
        %v931 = vpack.c.b16 %v879, %v877
        %v932 = vpack.c.b16 %v880, %v878
        %v933 = vpack.c.b16 %v883, %v881
        %v934 = vpack.c.b16 %v884, %v882
        %v935 = vpack.c.b16 %v887, %v885
        %v936 = vpack.c.b16 %v888, %v886
        %v937 = vpack.c.b16 %v891, %v889
        %v938 = vpack.c.b16 %v892, %v890
        %v939 = vpack.c.b16 %v895, %v893
        %v940 = vpack.c.b16 %v896, %v894
        %v941 = vpack.c.b16 %v899, %v897
        %v942 = vpack.c.b16 %v900, %v898
        %v943 = vpack.c.b16 %v903, %v901
        %v944 = vpack.c.b16 %v904, %v902
        %v945 = vpack.c.b16 %v907, %v905
        %v946 = vpack.c.b16 %v908, %v906
        %v947 = vpack.c.b16 %v911, %v909
        %v948 = vpack.c.b16 %v912, %v910
        %v949 = vpack.c.b16 %v915, %v913
        %v950 = vpack.c.b16 %v916, %v914
        %v951 = vpack.c.b16 %v919, %v917
        %v952 = vpack.c.b16 %v920, %v918
        %985 = vmatprep.subr.bf16.mxu0 %v922
        %986 = vmatpush1.bf16.msra.mxu0 %v921
        %987 = vmatprep.subr.bf16.mxu0 %v924
        %988 = vmatpush1.bf16.msra.mxu0 %v923
        %989 = vmatprep.subr.bf16.mxu0 %v926
        %990 = vmatpush1.bf16.msra.mxu0 %v925
        %991 = vmatprep.subr.bf16.mxu0 %v928
        %992 = vmatpush1.bf16.msra.mxu0 %v927
        %993 = vmatprep.subr.bf16.mxu0 %v930
        %994 = vmatpush1.bf16.msra.mxu0 %v929
        %995 = vmatprep.subr.bf16.mxu0 %v932
        %996 = vmatpush1.bf16.msra.mxu0 %v931
        %997 = vmatprep.subr.bf16.mxu0 %v934
        %998 = vmatpush1.bf16.msra.mxu0 %v933
        %999 = vmatprep.subr.bf16.mxu0 %v936
        %1000 = vmatpush1.bf16.msra.mxu0 %v935
        %1001 = vmatprep.subr.bf16.mxu0 %v938
        %1002 = vmatpush1.bf16.msra.mxu0 %v937
        %1003 = vmatprep.subr.bf16.mxu0 %v940
        %1004 = vmatpush1.bf16.msra.mxu0 %v939
        %1005 = vmatprep.subr.bf16.mxu0 %v942
        %1006 = vmatpush1.bf16.msra.mxu0 %v941
        %1007 = vmatprep.subr.bf16.mxu0 %v944
        %1008 = vmatpush1.bf16.msra.mxu0 %v943
        %1009 = vmatprep.subr.bf16.mxu0 %v946
        %1010 = vmatpush1.bf16.msra.mxu0 %v945
        %1011 = vmatprep.subr.bf16.mxu0 %v948
        %1012 = vmatpush1.bf16.msra.mxu0 %v947
        %1013 = vmatprep.subr.bf16.mxu0 %v950
        %1014 = vmatpush1.bf16.msra.mxu0 %v949
        %1015 = vmatprep.subr.bf16.mxu0 %v952
        %1016 = vmatpush1.bf16.msra.mxu0 %v951
        %1017 = vmatprep.mubr.bf16.mxu0 %v770
        %1018 = vmatmul.mubr.bf16.gmra.mrb[0].mxu0 %v769
        %v1019 = vpop.f32.mrb[0].mxu0
        %v1020 = vadd.f32 %v820, %v1019
        %v1021 = vpop.f32.mrb[0].mxu0
        %v1022 = vadd.f32 %v824, %v1021
        %v1023 = vpop.f32.mrb[0].mxu0
        %v1024 = vadd.f32 %v820, %v1023
        %v1025 = vpop.f32.mrb[0].mxu0
        %v1026 = vadd.f32 %v824, %v1025
        %1027 = vmatprep.mubr.bf16.mxu0 %v772
        %1028 = vmatmul.mubr.bf16.gmra.mrb[0].mxu0 %v771
        %v1029 = vpop.f32.mrb[0].mxu0
        %v1030 = vadd.f32 %v820, %v1029
        %v1031 = vpop.f32.mrb[0].mxu0
        %v1032 = vadd.f32 %v824, %v1031
        %v1033 = vpop.f32.mrb[0].mxu0
        %v1034 = vadd.f32 %v820, %v1033
        %v1035 = vpop.f32.mrb[0].mxu0
        %v1036 = vadd.f32 %v824, %v1035
        %1037 = vmatprep.mubr.bf16.mxu0 %v774
        %1038 = vmatmul.mubr.bf16.gmra.mrb[0].mxu0 %v773
        %v1039 = vpop.f32.mrb[0].mxu0
        %v1040 = vadd.f32 %v820, %v1039
        %v1041 = vpop.f32.mrb[0].mxu0
        %v1042 = vadd.f32 %v824, %v1041
        %v1043 = vpop.f32.mrb[0].mxu0
        %v1044 = vadd.f32 %v820, %v1043
        %v1045 = vpop.f32.mrb[0].mxu0
        %v1046 = vadd.f32 %v824, %v1045
        %1047 = vmatprep.mubr.bf16.mxu0 %v776
        %1048 = vmatmul.mubr.bf16.gmra.mrb[0].mxu0 %v775
        %v1049 = vpop.f32.mrb[0].mxu0
        %v1050 = vadd.f32 %v820, %v1049
        %v1051 = vpop.f32.mrb[0].mxu0
        %v1052 = vadd.f32 %v824, %v1051
        %v1053 = vpop.f32.mrb[0].mxu0
        %v1054 = vadd.f32 %v820, %v1053
        %v1055 = vpop.f32.mrb[0].mxu0
        %v1056 = vadd.f32 %v824, %v1055
        %1057 = vmatprep.mubr.bf16.mxu0 %v778
        %1058 = vmatmul.mubr.bf16.gmra.mrb[0].mxu0 %v777
        %v1059 = vpop.f32.mrb[0].mxu0
        %v1060 = vadd.f32 %v820, %v1059
        %v1061 = vpop.f32.mrb[0].mxu0
        %v1062 = vadd.f32 %v824, %v1061
        %v1063 = vpop.f32.mrb[0].mxu0
        %v1064 = vadd.f32 %v820, %v1063
        %v1065 = vpop.f32.mrb[0].mxu0
        %v1066 = vadd.f32 %v824, %v1065
        %1067 = vmatprep.mubr.bf16.mxu0 %v780
        %1068 = vmatmul.mubr.bf16.gmra.mrb[0].mxu0 %v779
        %v1069 = vpop.f32.mrb[0].mxu0
        %v1070 = vadd.f32 %v820, %v1069
        %v1071 = vpop.f32.mrb[0].mxu0
        %v1072 = vadd.f32 %v824, %v1071
        %v1073 = vpop.f32.mrb[0].mxu0
        %v1074 = vadd.f32 %v820, %v1073
        %v1075 = vpop.f32.mrb[0].mxu0
        %v1076 = vadd.f32 %v824, %v1075
        %1077 = vmatprep.mubr.bf16.mxu0 %v782
        %1078 = vmatmul.mubr.bf16.gmra.mrb[0].mxu0 %v781
        %v1079 = vpop.f32.mrb[0].mxu0
        %v1080 = vadd.f32 %v820, %v1079
        %v1081 = vpop.f32.mrb[0].mxu0
        %v1082 = vadd.f32 %v824, %v1081
        %v1083 = vpop.f32.mrb[0].mxu0
        %v1084 = vadd.f32 %v820, %v1083
        %v1085 = vpop.f32.mrb[0].mxu0
        %v1086 = vadd.f32 %v824, %v1085
        %1087 = vmatprep.mubr.bf16.mxu0 %v784
        %1088 = vmatmul.mubr.bf16.gmra.mrb[0].mxu0 %v783
        %v1089 = vpop.f32.mrb[0].mxu0
        %v1090 = vadd.f32 %v820, %v1089
        %v1091 = vpop.f32.mrb[0].mxu0
        %v1092 = vadd.f32 %v824, %v1091
        %v1093 = vpop.f32.mrb[0].mxu0
        %v1094 = vadd.f32 %v820, %v1093
        %v1095 = vpop.f32.mrb[0].mxu0
        %v1096 = vadd.f32 %v824, %v1095
        %1097 = vdwg.mxu0
        %v1098 = vld [vmem:[#allocation8] sm:$0xff]
        %v1099 = vld [vmem:[#allocation8 + $0x8] sm:$0xff]
        %v1100 = vld [vmem:[#allocation8 + $0x10] sm:$0xff]
        %v1101 = vld [vmem:[#allocation8 + $0x18] sm:$0xff]
        %v1102 = vld [vmem:[#allocation8 + $0x20] sm:$0xff]
        %v1103 = vld [vmem:[#allocation8 + $0x28] sm:$0xff]
        %v1104 = vld [vmem:[#allocation8 + $0x30] sm:$0xff]
        %v1105 = vld [vmem:[#allocation8 + $0x38] sm:$0xff]
        %v1106 = vld [vmem:[#allocation8 + $0x40] sm:$0xff]
        %v1107 = vld [vmem:[#allocation8 + $0x48] sm:$0xff]
        %v1108 = vld [vmem:[#allocation8 + $0x50] sm:$0xff]
        %v1109 = vld [vmem:[#allocation8 + $0x58] sm:$0xff]
        %v1110 = vld [vmem:[#allocation8 + $0x60] sm:$0xff]
        %v1111 = vld [vmem:[#allocation8 + $0x68] sm:$0xff]
        %v1112 = vld [vmem:[#allocation8 + $0x70] sm:$0xff]
        %v1113 = vld [vmem:[#allocation8 + $0x78] sm:$0xff]
        %v1114 = vld [vmem:[#allocation8 + $0x80] sm:$0xff]
        %v1115 = vld [vmem:[#allocation8 + $0x88] sm:$0xff]
        %v1116 = vld [vmem:[#allocation8 + $0x90] sm:$0xff]
        %v1117 = vld [vmem:[#allocation8 + $0x98] sm:$0xff]
        %v1118 = vld [vmem:[#allocation8 + $0xa0] sm:$0xff]
        %v1119 = vld [vmem:[#allocation8 + $0xa8] sm:$0xff]
        %v1120 = vld [vmem:[#allocation8 + $0xb0] sm:$0xff]
        %v1121 = vld [vmem:[#allocation8 + $0xb8] sm:$0xff]
        %v1122 = vld [vmem:[#allocation8 + $0xc0] sm:$0xff]
        %v1123 = vld [vmem:[#allocation8 + $0xc8] sm:$0xff]
        %v1124 = vld [vmem:[#allocation8 + $0xd0] sm:$0xff]
        %v1125 = vld [vmem:[#allocation8 + $0xd8] sm:$0xff]
        %v1126 = vld [vmem:[#allocation8 + $0xe0] sm:$0xff]
        %v1127 = vld [vmem:[#allocation8 + $0xe8] sm:$0xff]
        %v1128 = vld [vmem:[#allocation8 + $0xf0] sm:$0xff]
        %v1129 = vld [vmem:[#allocation8 + $0xf8] sm:$0xff]
        %v1130 = vlaneseq
        %v1131 = vshrl.u32 %v1130, 7
        %v1132 = vsub.s32 3, %v1131
        %v1133 = vrot.slane %v430, %v1132
        %v1134 = vlaneseq
        %v1135 = vshrl.u32 %v1134, 7
        %v1136 = vsub.s32 3, %v1135
        %v1137 = vrot.slane %v431, %v1136
        %v1170 = vunpack.c.l.b16 %v1098
        %v1171 = vunpack.c.h.b16 %v1098
        %v1172 = vunpack.c.l.b16 %v1099
        %v1173 = vunpack.c.h.b16 %v1099
        %v1174 = vunpack.c.l.b16 %v1100
        %v1175 = vunpack.c.h.b16 %v1100
        %v1176 = vunpack.c.l.b16 %v1101
        %v1177 = vunpack.c.h.b16 %v1101
        %v1178 = vunpack.c.l.b16 %v1102
        %v1179 = vunpack.c.h.b16 %v1102
        %v1180 = vunpack.c.l.b16 %v1103
        %v1181 = vunpack.c.h.b16 %v1103
        %v1182 = vunpack.c.l.b16 %v1104
        %v1183 = vunpack.c.h.b16 %v1104
        %v1184 = vunpack.c.l.b16 %v1105
        %v1185 = vunpack.c.h.b16 %v1105
        %v1186 = vunpack.c.l.b16 %v1106
        %v1187 = vunpack.c.h.b16 %v1106
        %v1188 = vunpack.c.l.b16 %v1107
        %v1189 = vunpack.c.h.b16 %v1107
        %v1190 = vunpack.c.l.b16 %v1108
        %v1191 = vunpack.c.h.b16 %v1108
        %v1192 = vunpack.c.l.b16 %v1109
        %v1193 = vunpack.c.h.b16 %v1109
        %v1194 = vunpack.c.l.b16 %v1110
        %v1195 = vunpack.c.h.b16 %v1110
        %v1196 = vunpack.c.l.b16 %v1111
        %v1197 = vunpack.c.h.b16 %v1111
        %v1198 = vunpack.c.l.b16 %v1112
        %v1199 = vunpack.c.h.b16 %v1112
        %v1200 = vunpack.c.l.b16 %v1113
        %v1201 = vunpack.c.h.b16 %v1113
        %v1202 = vunpack.c.l.b16 %v1114
        %v1203 = vunpack.c.h.b16 %v1114
        %v1204 = vunpack.c.l.b16 %v1115
        %v1205 = vunpack.c.h.b16 %v1115
        %v1206 = vunpack.c.l.b16 %v1116
        %v1207 = vunpack.c.h.b16 %v1116
        %v1208 = vunpack.c.l.b16 %v1117
        %v1209 = vunpack.c.h.b16 %v1117
        %v1210 = vunpack.c.l.b16 %v1118
        %v1211 = vunpack.c.h.b16 %v1118
        %v1212 = vunpack.c.l.b16 %v1119
        %v1213 = vunpack.c.h.b16 %v1119
        %v1214 = vunpack.c.l.b16 %v1120
        %v1215 = vunpack.c.h.b16 %v1120
        %v1216 = vunpack.c.l.b16 %v1121
        %v1217 = vunpack.c.h.b16 %v1121
        %v1218 = vunpack.c.l.b16 %v1122
        %v1219 = vunpack.c.h.b16 %v1122
        %v1220 = vunpack.c.l.b16 %v1123
        %v1221 = vunpack.c.h.b16 %v1123
        %v1222 = vunpack.c.l.b16 %v1124
        %v1223 = vunpack.c.h.b16 %v1124
        %v1224 = vunpack.c.l.b16 %v1125
        %v1225 = vunpack.c.h.b16 %v1125
        %v1226 = vunpack.c.l.b16 %v1126
        %v1227 = vunpack.c.h.b16 %v1126
        %v1228 = vunpack.c.l.b16 %v1127
        %v1229 = vunpack.c.h.b16 %v1127
        %v1230 = vunpack.c.l.b16 %v1128
        %v1231 = vunpack.c.h.b16 %v1128
        %v1232 = vunpack.c.l.b16 %v1129
        %v1233 = vunpack.c.h.b16 %v1129
        %v1234 = vpack.c.b16 %v1172, %v1170
        %v1235 = vpack.c.b16 %v1173, %v1171
        %v1236 = vpack.c.b16 %v1176, %v1174
        %v1237 = vpack.c.b16 %v1177, %v1175
        %v1238 = vpack.c.b16 %v1180, %v1178
        %v1239 = vpack.c.b16 %v1181, %v1179
        %v1240 = vpack.c.b16 %v1184, %v1182
        %v1241 = vpack.c.b16 %v1185, %v1183
        %v1242 = vpack.c.b16 %v1188, %v1186
        %v1243 = vpack.c.b16 %v1189, %v1187
        %v1244 = vpack.c.b16 %v1192, %v1190
        %v1245 = vpack.c.b16 %v1193, %v1191
        %v1246 = vpack.c.b16 %v1196, %v1194
        %v1247 = vpack.c.b16 %v1197, %v1195
        %v1248 = vpack.c.b16 %v1200, %v1198
        %v1249 = vpack.c.b16 %v1201, %v1199
        %v1250 = vpack.c.b16 %v1204, %v1202
        %v1251 = vpack.c.b16 %v1205, %v1203
        %v1252 = vpack.c.b16 %v1208, %v1206
        %v1253 = vpack.c.b16 %v1209, %v1207
        %v1254 = vpack.c.b16 %v1212, %v1210
        %v1255 = vpack.c.b16 %v1213, %v1211
        %v1256 = vpack.c.b16 %v1216, %v1214
        %v1257 = vpack.c.b16 %v1217, %v1215
        %v1258 = vpack.c.b16 %v1220, %v1218
        %v1259 = vpack.c.b16 %v1221, %v1219
        %v1260 = vpack.c.b16 %v1224, %v1222
        %v1261 = vpack.c.b16 %v1225, %v1223
        %v1262 = vpack.c.b16 %v1228, %v1226
        %v1263 = vpack.c.b16 %v1229, %v1227
        %v1264 = vpack.c.b16 %v1232, %v1230
        %v1265 = vpack.c.b16 %v1233, %v1231
        %1298 = vmatprep.subr.bf16.mxu0 %v1235
        %1299 = vmatpush1.bf16.msra.mxu0 %v1234
        %1300 = vmatprep.subr.bf16.mxu0 %v1237
        %1301 = vmatpush1.bf16.msra.mxu0 %v1236
        %1302 = vmatprep.subr.bf16.mxu0 %v1239
        %1303 = vmatpush1.bf16.msra.mxu0 %v1238
        %1304 = vmatprep.subr.bf16.mxu0 %v1241
        %1305 = vmatpush1.bf16.msra.mxu0 %v1240
        %1306 = vmatprep.subr.bf16.mxu0 %v1243
        %1307 = vmatpush1.bf16.msra.mxu0 %v1242
        %1308 = vmatprep.subr.bf16.mxu0 %v1245
        %1309 = vmatpush1.bf16.msra.mxu0 %v1244
        %1310 = vmatprep.subr.bf16.mxu0 %v1247
        %1311 = vmatpush1.bf16.msra.mxu0 %v1246
        %1312 = vmatprep.subr.bf16.mxu0 %v1249
        %1313 = vmatpush1.bf16.msra.mxu0 %v1248
        %1314 = vmatprep.subr.bf16.mxu0 %v1251
        %1315 = vmatpush1.bf16.msra.mxu0 %v1250
        %1316 = vmatprep.subr.bf16.mxu0 %v1253
        %1317 = vmatpush1.bf16.msra.mxu0 %v1252
        %1318 = vmatprep.subr.bf16.mxu0 %v1255
        %1319 = vmatpush1.bf16.msra.mxu0 %v1254
        %1320 = vmatprep.subr.bf16.mxu0 %v1257
        %1321 = vmatpush1.bf16.msra.mxu0 %v1256
        %1322 = vmatprep.subr.bf16.mxu0 %v1259
        %1323 = vmatpush1.bf16.msra.mxu0 %v1258
        %1324 = vmatprep.subr.bf16.mxu0 %v1261
        %1325 = vmatpush1.bf16.msra.mxu0 %v1260
        %1326 = vmatprep.subr.bf16.mxu0 %v1263
        %1327 = vmatpush1.bf16.msra.mxu0 %v1262
        %1328 = vmatprep.subr.bf16.mxu0 %v1265
        %1329 = vmatpush1.bf16.msra.mxu0 %v1264
        %1330 = vmatprep.mubr.bf16.mxu0 %v770
        %1331 = vmatmul.mubr.bf16.gmra.mrb[0].mxu0 %v769
        %v1332 = vpop.f32.mrb[0].mxu0
        %v1333 = vadd.f32 %v1133, %v1332
        %v1334 = vpop.f32.mrb[0].mxu0
        %v1335 = vadd.f32 %v1137, %v1334
        %v1336 = vpop.f32.mrb[0].mxu0
        %v1337 = vadd.f32 %v1133, %v1336
        %v1338 = vpop.f32.mrb[0].mxu0
        %v1339 = vadd.f32 %v1137, %v1338
        %1340 = vmatprep.mubr.bf16.mxu0 %v772
        %1341 = vmatmul.mubr.bf16.gmra.mrb[0].mxu0 %v771
        %v1342 = vpop.f32.mrb[0].mxu0
        %v1343 = vadd.f32 %v1133, %v1342
        %v1344 = vpop.f32.mrb[0].mxu0
        %v1345 = vadd.f32 %v1137, %v1344
        %v1346 = vpop.f32.mrb[0].mxu0
        %v1347 = vadd.f32 %v1133, %v1346
        %v1348 = vpop.f32.mrb[0].mxu0
        %v1349 = vadd.f32 %v1137, %v1348
        %1350 = vmatprep.mubr.bf16.mxu0 %v774
        %1351 = vmatmul.mubr.bf16.gmra.mrb[0].mxu0 %v773
        %v1352 = vpop.f32.mrb[0].mxu0
        %v1353 = vadd.f32 %v1133, %v1352
        %v1354 = vpop.f32.mrb[0].mxu0
        %v1355 = vadd.f32 %v1137, %v1354
        %v1356 = vpop.f32.mrb[0].mxu0
        %v1357 = vadd.f32 %v1133, %v1356
        %v1358 = vpop.f32.mrb[0].mxu0
        %v1359 = vadd.f32 %v1137, %v1358
        %1360 = vmatprep.mubr.bf16.mxu0 %v776
        %1361 = vmatmul.mubr.bf16.gmra.mrb[0].mxu0 %v775
        %v1362 = vpop.f32.mrb[0].mxu0
        %v1363 = vadd.f32 %v1133, %v1362
        %v1364 = vpop.f32.mrb[0].mxu0
        %v1365 = vadd.f32 %v1137, %v1364
        %v1366 = vpop.f32.mrb[0].mxu0
        %v1367 = vadd.f32 %v1133, %v1366
        %v1368 = vpop.f32.mrb[0].mxu0
        %v1369 = vadd.f32 %v1137, %v1368
        %1370 = vmatprep.mubr.bf16.mxu0 %v778
        %1371 = vmatmul.mubr.bf16.gmra.mrb[0].mxu0 %v777
        %v1372 = vpop.f32.mrb[0].mxu0
        %v1373 = vadd.f32 %v1133, %v1372
        %v1374 = vpop.f32.mrb[0].mxu0
        %v1375 = vadd.f32 %v1137, %v1374
        %v1376 = vpop.f32.mrb[0].mxu0
        %v1377 = vadd.f32 %v1133, %v1376
        %v1378 = vpop.f32.mrb[0].mxu0
        %v1379 = vadd.f32 %v1137, %v1378
        %1380 = vmatprep.mubr.bf16.mxu0 %v780
        %1381 = vmatmul.mubr.bf16.gmra.mrb[0].mxu0 %v779
        %v1382 = vpop.f32.mrb[0].mxu0
        %v1383 = vadd.f32 %v1133, %v1382
        %v1384 = vpop.f32.mrb[0].mxu0
        %v1385 = vadd.f32 %v1137, %v1384
        %v1386 = vpop.f32.mrb[0].mxu0
        %v1387 = vadd.f32 %v1133, %v1386
        %v1388 = vpop.f32.mrb[0].mxu0
        %v1389 = vadd.f32 %v1137, %v1388
        %1390 = vmatprep.mubr.bf16.mxu0 %v782
        %1391 = vmatmul.mubr.bf16.gmra.mrb[0].mxu0 %v781
        %v1392 = vpop.f32.mrb[0].mxu0
        %v1393 = vadd.f32 %v1133, %v1392
        %v1394 = vpop.f32.mrb[0].mxu0
        %v1395 = vadd.f32 %v1137, %v1394
        %v1396 = vpop.f32.mrb[0].mxu0
        %v1397 = vadd.f32 %v1133, %v1396
        %v1398 = vpop.f32.mrb[0].mxu0
        %v1399 = vadd.f32 %v1137, %v1398
        %1400 = vmatprep.mubr.bf16.mxu0 %v784
        %1401 = vmatmul.mubr.bf16.gmra.mrb[0].mxu0 %v783
        %v1402 = vpop.f32.mrb[0].mxu0
        %v1403 = vadd.f32 %v1133, %v1402
        %v1404 = vpop.f32.mrb[0].mxu0
        %v1405 = vadd.f32 %v1137, %v1404
        %v1406 = vpop.f32.mrb[0].mxu0
        %v1407 = vadd.f32 %v1133, %v1406
        %v1408 = vpop.f32.mrb[0].mxu0
        %v1409 = vadd.f32 %v1137, %v1408
        %1410 = vdwg.mxu0
        %v1411 = vld [vmem:[#allocation10] sm:$0xff]
        %v1412 = vld [vmem:[#allocation10 + $0x8] sm:$0xff]
        %v1413 = vld [vmem:[#allocation10 + $0x10] sm:$0xff]
        %v1414 = vld [vmem:[#allocation10 + $0x18] sm:$0xff]
        %v1415 = vld [vmem:[#allocation10 + $0x20] sm:$0xff]
        %v1416 = vld [vmem:[#allocation10 + $0x28] sm:$0xff]
        %v1417 = vld [vmem:[#allocation10 + $0x30] sm:$0xff]
        %v1418 = vld [vmem:[#allocation10 + $0x38] sm:$0xff]
        %v1419 = vld [vmem:[#allocation10 + $0x40] sm:$0xff]
        %v1420 = vld [vmem:[#allocation10 + $0x48] sm:$0xff]
        %v1421 = vld [vmem:[#allocation10 + $0x50] sm:$0xff]
        %v1422 = vld [vmem:[#allocation10 + $0x58] sm:$0xff]
        %v1423 = vld [vmem:[#allocation10 + $0x60] sm:$0xff]
        %v1424 = vld [vmem:[#allocation10 + $0x68] sm:$0xff]
        %v1425 = vld [vmem:[#allocation10 + $0x70] sm:$0xff]
        %v1426 = vld [vmem:[#allocation10 + $0x78] sm:$0xff]
        %v1427 = vld [vmem:[#allocation10 + $0x80] sm:$0xff]
        %v1428 = vld [vmem:[#allocation10 + $0x88] sm:$0xff]
        %v1429 = vld [vmem:[#allocation10 + $0x90] sm:$0xff]
        %v1430 = vld [vmem:[#allocation10 + $0x98] sm:$0xff]
        %v1431 = vld [vmem:[#allocation10 + $0xa0] sm:$0xff]
        %v1432 = vld [vmem:[#allocation10 + $0xa8] sm:$0xff]
        %v1433 = vld [vmem:[#allocation10 + $0xb0] sm:$0xff]
        %v1434 = vld [vmem:[#allocation10 + $0xb8] sm:$0xff]
        %v1435 = vld [vmem:[#allocation10 + $0xc0] sm:$0xff]
        %v1436 = vld [vmem:[#allocation10 + $0xc8] sm:$0xff]
        %v1437 = vld [vmem:[#allocation10 + $0xd0] sm:$0xff]
        %v1438 = vld [vmem:[#allocation10 + $0xd8] sm:$0xff]
        %v1439 = vld [vmem:[#allocation10 + $0xe0] sm:$0xff]
        %v1440 = vld [vmem:[#allocation10 + $0xe8] sm:$0xff]
        %v1441 = vld [vmem:[#allocation10 + $0xf0] sm:$0xff]
        %v1442 = vld [vmem:[#allocation10 + $0xf8] sm:$0xff]
        %v1443 = vlaneseq
        %v1444 = vshrl.u32 %v1443, 7
        %v1445 = vsub.s32 4, %v1444
        %v1446 = vrot.slane %v430, %v1445
        %v1447 = vlaneseq
        %v1448 = vshrl.u32 %v1447, 7
        %v1449 = vsub.s32 4, %v1448
        %v1450 = vrot.slane %v431, %v1449
        %v1483 = vunpack.c.l.b16 %v1411
        %v1484 = vunpack.c.h.b16 %v1411
        %v1485 = vunpack.c.l.b16 %v1412
        %v1486 = vunpack.c.h.b16 %v1412
        %v1487 = vunpack.c.l.b16 %v1413
        %v1488 = vunpack.c.h.b16 %v1413
        %v1489 = vunpack.c.l.b16 %v1414
        %v1490 = vunpack.c.h.b16 %v1414
        %v1491 = vunpack.c.l.b16 %v1415
        %v1492 = vunpack.c.h.b16 %v1415
        %v1493 = vunpack.c.l.b16 %v1416
        %v1494 = vunpack.c.h.b16 %v1416
        %v1495 = vunpack.c.l.b16 %v1417
        %v1496 = vunpack.c.h.b16 %v1417
        %v1497 = vunpack.c.l.b16 %v1418
        %v1498 = vunpack.c.h.b16 %v1418
        %v1499 = vunpack.c.l.b16 %v1419
        %v1500 = vunpack.c.h.b16 %v1419
        %v1501 = vunpack.c.l.b16 %v1420
        %v1502 = vunpack.c.h.b16 %v1420
        %v1503 = vunpack.c.l.b16 %v1421
        %v1504 = vunpack.c.h.b16 %v1421
        %v1505 = vunpack.c.l.b16 %v1422
        %v1506 = vunpack.c.h.b16 %v1422
        %v1507 = vunpack.c.l.b16 %v1423
        %v1508 = vunpack.c.h.b16 %v1423
        %v1509 = vunpack.c.l.b16 %v1424
        %v1510 = vunpack.c.h.b16 %v1424
        %v1511 = vunpack.c.l.b16 %v1425
        %v1512 = vunpack.c.h.b16 %v1425
        %v1513 = vunpack.c.l.b16 %v1426
        %v1514 = vunpack.c.h.b16 %v1426
        %v1515 = vunpack.c.l.b16 %v1427
        %v1516 = vunpack.c.h.b16 %v1427
        %v1517 = vunpack.c.l.b16 %v1428
        %v1518 = vunpack.c.h.b16 %v1428
        %v1519 = vunpack.c.l.b16 %v1429
        %v1520 = vunpack.c.h.b16 %v1429
        %v1521 = vunpack.c.l.b16 %v1430
        %v1522 = vunpack.c.h.b16 %v1430
        %v1523 = vunpack.c.l.b16 %v1431
        %v1524 = vunpack.c.h.b16 %v1431
        %v1525 = vunpack.c.l.b16 %v1432
        %v1526 = vunpack.c.h.b16 %v1432
        %v1527 = vunpack.c.l.b16 %v1433
        %v1528 = vunpack.c.h.b16 %v1433
        %v1529 = vunpack.c.l.b16 %v1434
        %v1530 = vunpack.c.h.b16 %v1434
        %v1531 = vunpack.c.l.b16 %v1435
        %v1532 = vunpack.c.h.b16 %v1435
        %v1533 = vunpack.c.l.b16 %v1436
        %v1534 = vunpack.c.h.b16 %v1436
        %v1535 = vunpack.c.l.b16 %v1437
        %v1536 = vunpack.c.h.b16 %v1437
        %v1537 = vunpack.c.l.b16 %v1438
        %v1538 = vunpack.c.h.b16 %v1438
        %v1539 = vunpack.c.l.b16 %v1439
        %v1540 = vunpack.c.h.b16 %v1439
        %v1541 = vunpack.c.l.b16 %v1440
        %v1542 = vunpack.c.h.b16 %v1440
        %v1543 = vunpack.c.l.b16 %v1441
        %v1544 = vunpack.c.h.b16 %v1441
        %v1545 = vunpack.c.l.b16 %v1442
        %v1546 = vunpack.c.h.b16 %v1442
        %v1547 = vpack.c.b16 %v1485, %v1483
        %v1548 = vpack.c.b16 %v1486, %v1484
        %v1549 = vpack.c.b16 %v1489, %v1487
        %v1550 = vpack.c.b16 %v1490, %v1488
        %v1551 = vpack.c.b16 %v1493, %v1491
        %v1552 = vpack.c.b16 %v1494, %v1492
        %v1553 = vpack.c.b16 %v1497, %v1495
        %v1554 = vpack.c.b16 %v1498, %v1496
        %v1555 = vpack.c.b16 %v1501, %v1499
        %v1556 = vpack.c.b16 %v1502, %v1500
        %v1557 = vpack.c.b16 %v1505, %v1503
        %v1558 = vpack.c.b16 %v1506, %v1504
        %v1559 = vpack.c.b16 %v1509, %v1507
        %v1560 = vpack.c.b16 %v1510, %v1508
        %v1561 = vpack.c.b16 %v1513, %v1511
        %v1562 = vpack.c.b16 %v1514, %v1512
        %v1563 = vpack.c.b16 %v1517, %v1515
        %v1564 = vpack.c.b16 %v1518, %v1516
        %v1565 = vpack.c.b16 %v1521, %v1519
        %v1566 = vpack.c.b16 %v1522, %v1520
        %v1567 = vpack.c.b16 %v1525, %v1523
        %v1568 = vpack.c.b16 %v1526, %v1524
        %v1569 = vpack.c.b16 %v1529, %v1527
        %v1570 = vpack.c.b16 %v1530, %v1528
        %v1571 = vpack.c.b16 %v1533, %v1531
        %v1572 = vpack.c.b16 %v1534, %v1532
        %v1573 = vpack.c.b16 %v1537, %v1535
        %v1574 = vpack.c.b16 %v1538, %v1536
        %v1575 = vpack.c.b16 %v1541, %v1539
        %v1576 = vpack.c.b16 %v1542, %v1540
        %v1577 = vpack.c.b16 %v1545, %v1543
        %v1578 = vpack.c.b16 %v1546, %v1544
        %1611 = vmatprep.subr.bf16.mxu0 %v1548
        %1612 = vmatpush1.bf16.msra.mxu0 %v1547
        %1613 = vmatprep.subr.bf16.mxu0 %v1550
        %1614 = vmatpush1.bf16.msra.mxu0 %v1549
        %1615 = vmatprep.subr.bf16.mxu0 %v1552
        %1616 = vmatpush1.bf16.msra.mxu0 %v1551
        %1617 = vmatprep.subr.bf16.mxu0 %v1554
        %1618 = vmatpush1.bf16.msra.mxu0 %v1553
        %1619 = vmatprep.subr.bf16.mxu0 %v1556
        %1620 = vmatpush1.bf16.msra.mxu0 %v1555
        %1621 = vmatprep.subr.bf16.mxu0 %v1558
        %1622 = vmatpush1.bf16.msra.mxu0 %v1557
        %1623 = vmatprep.subr.bf16.mxu0 %v1560
        %1624 = vmatpush1.bf16.msra.mxu0 %v1559
        %1625 = vmatprep.subr.bf16.mxu0 %v1562
        %1626 = vmatpush1.bf16.msra.mxu0 %v1561
        %1627 = vmatprep.subr.bf16.mxu0 %v1564
        %1628 = vmatpush1.bf16.msra.mxu0 %v1563
        %1629 = vmatprep.subr.bf16.mxu0 %v1566
        %1630 = vmatpush1.bf16.msra.mxu0 %v1565
        %1631 = vmatprep.subr.bf16.mxu0 %v1568
        %1632 = vmatpush1.bf16.msra.mxu0 %v1567
        %1633 = vmatprep.subr.bf16.mxu0 %v1570
        %1634 = vmatpush1.bf16.msra.mxu0 %v1569
        %1635 = vmatprep.subr.bf16.mxu0 %v1572
        %1636 = vmatpush1.bf16.msra.mxu0 %v1571
        %1637 = vmatprep.subr.bf16.mxu0 %v1574
        %1638 = vmatpush1.bf16.msra.mxu0 %v1573
        %1639 = vmatprep.subr.bf16.mxu0 %v1576
        %1640 = vmatpush1.bf16.msra.mxu0 %v1575
        %1641 = vmatprep.subr.bf16.mxu0 %v1578
        %1642 = vmatpush1.bf16.msra.mxu0 %v1577
        %1643 = vmatprep.mubr.bf16.mxu0 %v770
        %1644 = vmatmul.mubr.bf16.gmra.mrb[0].mxu0 %v769
        %v1645 = vpop.f32.mrb[0].mxu0
        %v1646 = vadd.f32 %v1446, %v1645
        %v1647 = vpop.f32.mrb[0].mxu0
        %v1648 = vadd.f32 %v1450, %v1647
        %v1649 = vpop.f32.mrb[0].mxu0
        %v1650 = vadd.f32 %v1446, %v1649
        %v1651 = vpop.f32.mrb[0].mxu0
        %v1652 = vadd.f32 %v1450, %v1651
        %1653 = vmatprep.mubr.bf16.mxu0 %v772
        %1654 = vmatmul.mubr.bf16.gmra.mrb[0].mxu0 %v771
        %v1655 = vpop.f32.mrb[0].mxu0
        %v1656 = vadd.f32 %v1446, %v1655
        %v1657 = vpop.f32.mrb[0].mxu0
        %v1658 = vadd.f32 %v1450, %v1657
        %v1659 = vpop.f32.mrb[0].mxu0
        %v1660 = vadd.f32 %v1446, %v1659
        %v1661 = vpop.f32.mrb[0].mxu0
        %v1662 = vadd.f32 %v1450, %v1661
        %1663 = vmatprep.mubr.bf16.mxu0 %v774
        %1664 = vmatmul.mubr.bf16.gmra.mrb[0].mxu0 %v773
        %v1665 = vpop.f32.mrb[0].mxu0
        %v1666 = vadd.f32 %v1446, %v1665
        %v1667 = vpop.f32.mrb[0].mxu0
        %v1668 = vadd.f32 %v1450, %v1667
        %v1669 = vpop.f32.mrb[0].mxu0
        %v1670 = vadd.f32 %v1446, %v1669
        %v1671 = vpop.f32.mrb[0].mxu0
        %v1672 = vadd.f32 %v1450, %v1671
        %1673 = vmatprep.mubr.bf16.mxu0 %v776
        %1674 = vmatmul.mubr.bf16.gmra.mrb[0].mxu0 %v775
        %v1675 = vpop.f32.mrb[0].mxu0
        %v1676 = vadd.f32 %v1446, %v1675
        %v1677 = vpop.f32.mrb[0].mxu0
        %v1678 = vadd.f32 %v1450, %v1677
        %v1679 = vpop.f32.mrb[0].mxu0
        %v1680 = vadd.f32 %v1446, %v1679
        %v1681 = vpop.f32.mrb[0].mxu0
        %v1682 = vadd.f32 %v1450, %v1681
        %1683 = vmatprep.mubr.bf16.mxu0 %v778
        %1684 = vmatmul.mubr.bf16.gmra.mrb[0].mxu0 %v777
        %v1685 = vpop.f32.mrb[0].mxu0
        %v1686 = vadd.f32 %v1446, %v1685
        %v1687 = vpop.f32.mrb[0].mxu0
        %v1688 = vadd.f32 %v1450, %v1687
        %v1689 = vpop.f32.mrb[0].mxu0
        %v1690 = vadd.f32 %v1446, %v1689
        %v1691 = vpop.f32.mrb[0].mxu0
        %v1692 = vadd.f32 %v1450, %v1691
        %1693 = vmatprep.mubr.bf16.mxu0 %v780
        %1694 = vmatmul.mubr.bf16.gmra.mrb[0].mxu0 %v779
        %v1695 = vpop.f32.mrb[0].mxu0
        %v1696 = vadd.f32 %v1446, %v1695
        %v1697 = vpop.f32.mrb[0].mxu0
        %v1698 = vadd.f32 %v1450, %v1697
        %v1699 = vpop.f32.mrb[0].mxu0
        %v1700 = vadd.f32 %v1446, %v1699
        %v1701 = vpop.f32.mrb[0].mxu0
        %v1702 = vadd.f32 %v1450, %v1701
        %1703 = vmatprep.mubr.bf16.mxu0 %v782
        %1704 = vmatmul.mubr.bf16.gmra.mrb[0].mxu0 %v781
        %v1705 = vpop.f32.mrb[0].mxu0
        %v1706 = vadd.f32 %v1446, %v1705
        %v1707 = vpop.f32.mrb[0].mxu0
        %v1708 = vadd.f32 %v1450, %v1707
        %v1709 = vpop.f32.mrb[0].mxu0
        %v1710 = vadd.f32 %v1446, %v1709
        %v1711 = vpop.f32.mrb[0].mxu0
        %v1712 = vadd.f32 %v1450, %v1711
        %1713 = vmatprep.mubr.bf16.mxu0 %v784
        %1714 = vmatmul.mubr.bf16.gmra.mrb[0].mxu0 %v783
        %v1715 = vpop.f32.mrb[0].mxu0
        %v1716 = vadd.f32 %v1446, %v1715
        %v1717 = vpop.f32.mrb[0].mxu0
        %v1718 = vadd.f32 %v1450, %v1717
        %v1719 = vpop.f32.mrb[0].mxu0
        %v1720 = vadd.f32 %v1446, %v1719
        %v1721 = vpop.f32.mrb[0].mxu0
        %v1722 = vadd.f32 %v1450, %v1721
        %1723 = vdwg.mxu0
        %v1724 = vmul.f32 %v1020, 0.088388346
        %v1725 = vmul.f32 %v1022, 0.088388346
        %v1726 = vmul.f32 %v1024, 0.088388346
        %v1727 = vmul.f32 %v1026, 0.088388346
        %v1728 = vmul.f32 %v1030, 0.088388346
        %v1729 = vmul.f32 %v1032, 0.088388346
        %v1730 = vmul.f32 %v1034, 0.088388346
        %v1731 = vmul.f32 %v1036, 0.088388346
        %v1732 = vmul.f32 %v1040, 0.088388346
        %v1733 = vmul.f32 %v1042, 0.088388346
        %v1734 = vmul.f32 %v1044, 0.088388346
        %v1735 = vmul.f32 %v1046, 0.088388346
        %v1736 = vmul.f32 %v1050, 0.088388346
        %v1737 = vmul.f32 %v1052, 0.088388346
        %v1738 = vmul.f32 %v1054, 0.088388346
        %v1739 = vmul.f32 %v1056, 0.088388346
        %v1740 = vmul.f32 %v1060, 0.088388346
        %v1741 = vmul.f32 %v1062, 0.088388346
        %v1742 = vmul.f32 %v1064, 0.088388346
        %v1743 = vmul.f32 %v1066, 0.088388346
        %v1744 = vmul.f32 %v1070, 0.088388346
        %v1745 = vmul.f32 %v1072, 0.088388346
        %v1746 = vmul.f32 %v1074, 0.088388346
        %v1747 = vmul.f32 %v1076, 0.088388346
        %v1748 = vmul.f32 %v1080, 0.088388346
        %v1749 = vmul.f32 %v1082, 0.088388346
        %v1750 = vmul.f32 %v1084, 0.088388346
        %v1751 = vmul.f32 %v1086, 0.088388346
        %v1752 = vmul.f32 %v1090, 0.088388346
        %v1753 = vmul.f32 %v1092, 0.088388346
        %v1754 = vmul.f32 %v1094, 0.088388346
        %v1755 = vmul.f32 %v1096, 0.088388346
        %v1756 = vcombine.high %v1724, 0.0
        %v1758 = vunpack.c.l.s4 1983009808
        %v1759 = vunpack.c.0.s8 %v1758
        %v1760 = vlaneseq
        %v1761 = vshrl.u32 %v1760, 7
        %v1762 = vsub.s32 %v1759, %v1761
        %v1763 = vrot.slane %v1724, %v1762
        %v1765 = vunpack.c.l.s4 1983009808
        %v1766 = vunpack.c.0.s8 %v1765
        %v1767 = vlaneseq
        %v1768 = vshrl.u32 %v1767, 7
        %v1769 = vsub.s32 %v1766, %v1768
        %v1770 = vrot.slane %v1756, %v1769
        %v1771 = vcombine.high %v1725, 0.0
        %v1773 = vunpack.c.l.s4 1983009808
        %v1774 = vunpack.c.0.s8 %v1773
        %v1775 = vlaneseq
        %v1776 = vshrl.u32 %v1775, 7
        %v1777 = vsub.s32 %v1774, %v1776
        %v1778 = vrot.slane %v1725, %v1777
        %v1780 = vunpack.c.l.s4 1983009808
        %v1781 = vunpack.c.0.s8 %v1780
        %v1782 = vlaneseq
        %v1783 = vshrl.u32 %v1782, 7
        %v1784 = vsub.s32 %v1781, %v1783
        %v1785 = vrot.slane %v1771, %v1784
        %v1786 = vcombine.low %v1763, %v1778
        %v1787 = vcombine.high %v1763, %v1778
        %v1789 = vunpack.c.l.s4 1934713408
        %v1790 = vunpack.c.0.s8 %v1789
        %v1791 = vlaneseq
        %v1792 = vshrl.u32 %v1791, 7
        %v1793 = vsub.s32 %v1790, %v1792
        %v1794 = vrot.slane %v1786, %v1793
        %v1796 = vunpack.c.l.s4 1934713408
        %v1797 = vunpack.c.0.s8 %v1796
        %v1798 = vlaneseq
        %v1799 = vshrl.u32 %v1798, 7
        %v1800 = vsub.s32 %v1797, %v1799
        %v1801 = vrot.slane %v1787, %v1800
        %v1802 = vcombine.low %v1770, %v1785
        %v1803 = vcombine.high %v1770, %v1785
        %v1805 = vunpack.c.l.s4 1934713408
        %v1806 = vunpack.c.0.s8 %v1805
        %v1807 = vlaneseq
        %v1808 = vshrl.u32 %v1807, 7
        %v1809 = vsub.s32 %v1806, %v1808
        %v1810 = vrot.slane %v1802, %v1809
        %v1812 = vunpack.c.l.s4 1934713408
        %v1813 = vunpack.c.0.s8 %v1812
        %v1814 = vlaneseq
        %v1815 = vshrl.u32 %v1814, 7
        %v1816 = vsub.s32 %v1813, %v1815
        %v1817 = vrot.slane %v1803, %v1816
        %v1818 = vcombine.high %v1794, 0.0
        %v1819 = vcombine.high %v1801, 0.0
        %v1820 = vcombine.high %v1810, 0.0
        %v1821 = vcombine.high %v1817, 0.0
        %v1822 = vcombine.high %v1726, 0.0
        %v1824 = vunpack.c.l.s4 1983009808
        %v1825 = vunpack.c.0.s8 %v1824
        %v1826 = vlaneseq
        %v1827 = vshrl.u32 %v1826, 7
        %v1828 = vsub.s32 %v1825, %v1827
        %v1829 = vrot.slane %v1726, %v1828
        %v1831 = vunpack.c.l.s4 1983009808
        %v1832 = vunpack.c.0.s8 %v1831
        %v1833 = vlaneseq
        %v1834 = vshrl.u32 %v1833, 7
        %v1835 = vsub.s32 %v1832, %v1834
        %v1836 = vrot.slane %v1822, %v1835
        %v1837 = vcombine.high %v1727, 0.0
        %v1839 = vunpack.c.l.s4 1983009808
        %v1840 = vunpack.c.0.s8 %v1839
        %v1841 = vlaneseq
        %v1842 = vshrl.u32 %v1841, 7
        %v1843 = vsub.s32 %v1840, %v1842
        %v1844 = vrot.slane %v1727, %v1843
        %v1846 = vunpack.c.l.s4 1983009808
        %v1847 = vunpack.c.0.s8 %v1846
        %v1848 = vlaneseq
        %v1849 = vshrl.u32 %v1848, 7
        %v1850 = vsub.s32 %v1847, %v1849
        %v1851 = vrot.slane %v1837, %v1850
        %v1852 = vcombine.low %v1829, %v1844
        %v1853 = vcombine.high %v1829, %v1844
        %v1855 = vunpack.c.l.s4 1934713408
        %v1856 = vunpack.c.0.s8 %v1855
        %v1857 = vlaneseq
        %v1858 = vshrl.u32 %v1857, 7
        %v1859 = vsub.s32 %v1856, %v1858
        %v1860 = vrot.slane %v1852, %v1859
        %v1862 = vunpack.c.l.s4 1934713408
        %v1863 = vunpack.c.0.s8 %v1862
        %v1864 = vlaneseq
        %v1865 = vshrl.u32 %v1864, 7
        %v1866 = vsub.s32 %v1863, %v1865
        %v1867 = vrot.slane %v1853, %v1866
        %v1868 = vcombine.low %v1836, %v1851
        %v1869 = vcombine.high %v1836, %v1851
        %v1871 = vunpack.c.l.s4 1934713408
        %v1872 = vunpack.c.0.s8 %v1871
        %v1873 = vlaneseq
        %v1874 = vshrl.u32 %v1873, 7
        %v1875 = vsub.s32 %v1872, %v1874
        %v1876 = vrot.slane %v1868, %v1875
        %v1878 = vunpack.c.l.s4 1934713408
        %v1879 = vunpack.c.0.s8 %v1878
        %v1880 = vlaneseq
        %v1881 = vshrl.u32 %v1880, 7
        %v1882 = vsub.s32 %v1879, %v1881
        %v1883 = vrot.slane %v1869, %v1882
        %v1884 = vcombine.high %v1860, 0.0
        %v1885 = vcombine.high %v1867, 0.0
        %v1886 = vcombine.high %v1876, 0.0
        %v1887 = vcombine.high %v1883, 0.0
        %v1888 = vcombine.high %v1728, 0.0
        %v1890 = vunpack.c.l.s4 1983009808
        %v1891 = vunpack.c.0.s8 %v1890
        %v1892 = vlaneseq
        %v1893 = vshrl.u32 %v1892, 7
        %v1894 = vsub.s32 %v1891, %v1893
        %v1895 = vrot.slane %v1728, %v1894
        %v1897 = vunpack.c.l.s4 1983009808
        %v1898 = vunpack.c.0.s8 %v1897
        %v1899 = vlaneseq
        %v1900 = vshrl.u32 %v1899, 7
        %v1901 = vsub.s32 %v1898, %v1900
        %v1902 = vrot.slane %v1888, %v1901
        %v1903 = vcombine.high %v1729, 0.0
        %v1905 = vunpack.c.l.s4 1983009808
        %v1906 = vunpack.c.0.s8 %v1905
        %v1907 = vlaneseq
        %v1908 = vshrl.u32 %v1907, 7
        %v1909 = vsub.s32 %v1906, %v1908
        %v1910 = vrot.slane %v1729, %v1909
        %v1912 = vunpack.c.l.s4 1983009808
        %v1913 = vunpack.c.0.s8 %v1912
        %v1914 = vlaneseq
        %v1915 = vshrl.u32 %v1914, 7
        %v1916 = vsub.s32 %v1913, %v1915
        %v1917 = vrot.slane %v1903, %v1916
        %v1918 = vcombine.low %v1895, %v1910
        %v1919 = vcombine.high %v1895, %v1910
        %v1921 = vunpack.c.l.s4 1934713408
        %v1922 = vunpack.c.0.s8 %v1921
        %v1923 = vlaneseq
        %v1924 = vshrl.u32 %v1923, 7
        %v1925 = vsub.s32 %v1922, %v1924
        %v1926 = vrot.slane %v1918, %v1925
        %v1928 = vunpack.c.l.s4 1934713408
        %v1929 = vunpack.c.0.s8 %v1928
        %v1930 = vlaneseq
        %v1931 = vshrl.u32 %v1930, 7
        %v1932 = vsub.s32 %v1929, %v1931
        %v1933 = vrot.slane %v1919, %v1932
        %v1934 = vcombine.low %v1902, %v1917
        %v1935 = vcombine.high %v1902, %v1917
        %v1937 = vunpack.c.l.s4 1934713408
        %v1938 = vunpack.c.0.s8 %v1937
        %v1939 = vlaneseq
        %v1940 = vshrl.u32 %v1939, 7
        %v1941 = vsub.s32 %v1938, %v1940
        %v1942 = vrot.slane %v1934, %v1941
        %v1944 = vunpack.c.l.s4 1934713408
        %v1945 = vunpack.c.0.s8 %v1944
        %v1946 = vlaneseq
        %v1947 = vshrl.u32 %v1946, 7
        %v1948 = vsub.s32 %v1945, %v1947
        %v1949 = vrot.slane %v1935, %v1948
        %v1950 = vcombine.high %v1926, 0.0
        %v1951 = vcombine.high %v1933, 0.0
        %v1952 = vcombine.high %v1942, 0.0
        %v1953 = vcombine.high %v1949, 0.0
        %v1954 = vcombine.high %v1730, 0.0
        %v1956 = vunpack.c.l.s4 1983009808
        %v1957 = vunpack.c.0.s8 %v1956
        %v1958 = vlaneseq
        %v1959 = vshrl.u32 %v1958, 7
        %v1960 = vsub.s32 %v1957, %v1959
        %v1961 = vrot.slane %v1730, %v1960
        %v1963 = vunpack.c.l.s4 1983009808
        %v1964 = vunpack.c.0.s8 %v1963
        %v1965 = vlaneseq
        %v1966 = vshrl.u32 %v1965, 7
        %v1967 = vsub.s32 %v1964, %v1966
        %v1968 = vrot.slane %v1954, %v1967
        %v1969 = vcombine.high %v1731, 0.0
        %v1971 = vunpack.c.l.s4 1983009808
        %v1972 = vunpack.c.0.s8 %v1971
        %v1973 = vlaneseq
        %v1974 = vshrl.u32 %v1973, 7
        %v1975 = vsub.s32 %v1972, %v1974
        %v1976 = vrot.slane %v1731, %v1975
        %v1978 = vunpack.c.l.s4 1983009808
        %v1979 = vunpack.c.0.s8 %v1978
        %v1980 = vlaneseq
        %v1981 = vshrl.u32 %v1980, 7
        %v1982 = vsub.s32 %v1979, %v1981
        %v1983 = vrot.slane %v1969, %v1982
        %v1984 = vcombine.low %v1961, %v1976
        %v1985 = vcombine.high %v1961, %v1976
        %v1987 = vunpack.c.l.s4 1934713408
        %v1988 = vunpack.c.0.s8 %v1987
        %v1989 = vlaneseq
        %v1990 = vshrl.u32 %v1989, 7
        %v1991 = vsub.s32 %v1988, %v1990
        %v1992 = vrot.slane %v1984, %v1991
        %v1994 = vunpack.c.l.s4 1934713408
        %v1995 = vunpack.c.0.s8 %v1994
        %v1996 = vlaneseq
        %v1997 = vshrl.u32 %v1996, 7
        %v1998 = vsub.s32 %v1995, %v1997
        %v1999 = vrot.slane %v1985, %v1998
        %v2000 = vcombine.low %v1968, %v1983
        %v2001 = vcombine.high %v1968, %v1983
        %v2003 = vunpack.c.l.s4 1934713408
        %v2004 = vunpack.c.0.s8 %v2003
        %v2005 = vlaneseq
        %v2006 = vshrl.u32 %v2005, 7
        %v2007 = vsub.s32 %v2004, %v2006
        %v2008 = vrot.slane %v2000, %v2007
        %v2010 = vunpack.c.l.s4 1934713408
        %v2011 = vunpack.c.0.s8 %v2010
        %v2012 = vlaneseq
        %v2013 = vshrl.u32 %v2012, 7
        %v2014 = vsub.s32 %v2011, %v2013
        %v2015 = vrot.slane %v2001, %v2014
        %v2016 = vcombine.high %v1992, 0.0
        %v2017 = vcombine.high %v1999, 0.0
        %v2018 = vcombine.high %v2008, 0.0
        %v2019 = vcombine.high %v2015, 0.0
        %v2020 = vcombine.high %v1732, 0.0
        %v2022 = vunpack.c.l.s4 1983009808
        %v2023 = vunpack.c.0.s8 %v2022
        %v2024 = vlaneseq
        %v2025 = vshrl.u32 %v2024, 7
        %v2026 = vsub.s32 %v2023, %v2025
        %v2027 = vrot.slane %v1732, %v2026
        %v2029 = vunpack.c.l.s4 1983009808
        %v2030 = vunpack.c.0.s8 %v2029
        %v2031 = vlaneseq
        %v2032 = vshrl.u32 %v2031, 7
        %v2033 = vsub.s32 %v2030, %v2032
        %v2034 = vrot.slane %v2020, %v2033
        %v2035 = vcombine.high %v1733, 0.0
        %v2037 = vunpack.c.l.s4 1983009808
        %v2038 = vunpack.c.0.s8 %v2037
        %v2039 = vlaneseq
        %v2040 = vshrl.u32 %v2039, 7
        %v2041 = vsub.s32 %v2038, %v2040
        %v2042 = vrot.slane %v1733, %v2041
        %v2044 = vunpack.c.l.s4 1983009808
        %v2045 = vunpack.c.0.s8 %v2044
        %v2046 = vlaneseq
        %v2047 = vshrl.u32 %v2046, 7
        %v2048 = vsub.s32 %v2045, %v2047
        %v2049 = vrot.slane %v2035, %v2048
        %v2050 = vcombine.low %v2027, %v2042
        %v2051 = vcombine.high %v2027, %v2042
        %v2053 = vunpack.c.l.s4 1934713408
        %v2054 = vunpack.c.0.s8 %v2053
        %v2055 = vlaneseq
        %v2056 = vshrl.u32 %v2055, 7
        %v2057 = vsub.s32 %v2054, %v2056
        %v2058 = vrot.slane %v2050, %v2057
        %v2060 = vunpack.c.l.s4 1934713408
        %v2061 = vunpack.c.0.s8 %v2060
        %v2062 = vlaneseq
        %v2063 = vshrl.u32 %v2062, 7
        %v2064 = vsub.s32 %v2061, %v2063
        %v2065 = vrot.slane %v2051, %v2064
        %v2066 = vcombine.low %v2034, %v2049
        %v2067 = vcombine.high %v2034, %v2049
        %v2069 = vunpack.c.l.s4 1934713408
        %v2070 = vunpack.c.0.s8 %v2069
        %v2071 = vlaneseq
        %v2072 = vshrl.u32 %v2071, 7
        %v2073 = vsub.s32 %v2070, %v2072
        %v2074 = vrot.slane %v2066, %v2073
        %v2076 = vunpack.c.l.s4 1934713408
        %v2077 = vunpack.c.0.s8 %v2076
        %v2078 = vlaneseq
        %v2079 = vshrl.u32 %v2078, 7
        %v2080 = vsub.s32 %v2077, %v2079
        %v2081 = vrot.slane %v2067, %v2080
        %v2082 = vcombine.high %v2058, 0.0
        %v2083 = vcombine.high %v2065, 0.0
        %v2084 = vcombine.high %v2074, 0.0
        %v2085 = vcombine.high %v2081, 0.0
        %v2086 = vcombine.high %v1734, 0.0
        %v2088 = vunpack.c.l.s4 1983009808
        %v2089 = vunpack.c.0.s8 %v2088
        %v2090 = vlaneseq
        %v2091 = vshrl.u32 %v2090, 7
        %v2092 = vsub.s32 %v2089, %v2091
        %v2093 = vrot.slane %v1734, %v2092
        %v2095 = vunpack.c.l.s4 1983009808
        %v2096 = vunpack.c.0.s8 %v2095
        %v2097 = vlaneseq
        %v2098 = vshrl.u32 %v2097, 7
        %v2099 = vsub.s32 %v2096, %v2098
        %v2100 = vrot.slane %v2086, %v2099
        %v2101 = vcombine.high %v1735, 0.0
        %v2103 = vunpack.c.l.s4 1983009808
        %v2104 = vunpack.c.0.s8 %v2103
        %v2105 = vlaneseq
        %v2106 = vshrl.u32 %v2105, 7
        %v2107 = vsub.s32 %v2104, %v2106
        %v2108 = vrot.slane %v1735, %v2107
        %v2110 = vunpack.c.l.s4 1983009808
        %v2111 = vunpack.c.0.s8 %v2110
        %v2112 = vlaneseq
        %v2113 = vshrl.u32 %v2112, 7
        %v2114 = vsub.s32 %v2111, %v2113
        %v2115 = vrot.slane %v2101, %v2114
        %v2116 = vcombine.low %v2093, %v2108
        %v2117 = vcombine.high %v2093, %v2108
        %v2119 = vunpack.c.l.s4 1934713408
        %v2120 = vunpack.c.0.s8 %v2119
        %v2121 = vlaneseq
        %v2122 = vshrl.u32 %v2121, 7
        %v2123 = vsub.s32 %v2120, %v2122
        %v2124 = vrot.slane %v2116, %v2123
        %v2126 = vunpack.c.l.s4 1934713408
        %v2127 = vunpack.c.0.s8 %v2126
        %v2128 = vlaneseq
        %v2129 = vshrl.u32 %v2128, 7
        %v2130 = vsub.s32 %v2127, %v2129
        %v2131 = vrot.slane %v2117, %v2130
        %v2132 = vcombine.low %v2100, %v2115
        %v2133 = vcombine.high %v2100, %v2115
        %v2135 = vunpack.c.l.s4 1934713408
        %v2136 = vunpack.c.0.s8 %v2135
        %v2137 = vlaneseq
        %v2138 = vshrl.u32 %v2137, 7
        %v2139 = vsub.s32 %v2136, %v2138
        %v2140 = vrot.slane %v2132, %v2139
        %v2142 = vunpack.c.l.s4 1934713408
        %v2143 = vunpack.c.0.s8 %v2142
        %v2144 = vlaneseq
        %v2145 = vshrl.u32 %v2144, 7
        %v2146 = vsub.s32 %v2143, %v2145
        %v2147 = vrot.slane %v2133, %v2146
        %v2148 = vcombine.high %v2124, 0.0
        %v2149 = vcombine.high %v2131, 0.0
        %v2150 = vcombine.high %v2140, 0.0
        %v2151 = vcombine.high %v2147, 0.0
        %v2152 = vcombine.high %v1736, 0.0
        %v2154 = vunpack.c.l.s4 1983009808
        %v2155 = vunpack.c.0.s8 %v2154
        %v2156 = vlaneseq
        %v2157 = vshrl.u32 %v2156, 7
        %v2158 = vsub.s32 %v2155, %v2157
        %v2159 = vrot.slane %v1736, %v2158
        %v2161 = vunpack.c.l.s4 1983009808
        %v2162 = vunpack.c.0.s8 %v2161
        %v2163 = vlaneseq
        %v2164 = vshrl.u32 %v2163, 7
        %v2165 = vsub.s32 %v2162, %v2164
        %v2166 = vrot.slane %v2152, %v2165
        %v2167 = vcombine.high %v1737, 0.0
        %v2169 = vunpack.c.l.s4 1983009808
        %v2170 = vunpack.c.0.s8 %v2169
        %v2171 = vlaneseq
        %v2172 = vshrl.u32 %v2171, 7
        %v2173 = vsub.s32 %v2170, %v2172
        %v2174 = vrot.slane %v1737, %v2173
        %v2176 = vunpack.c.l.s4 1983009808
        %v2177 = vunpack.c.0.s8 %v2176
        %v2178 = vlaneseq
        %v2179 = vshrl.u32 %v2178, 7
        %v2180 = vsub.s32 %v2177, %v2179
        %v2181 = vrot.slane %v2167, %v2180
        %v2182 = vcombine.low %v2159, %v2174
        %v2183 = vcombine.high %v2159, %v2174
        %v2185 = vunpack.c.l.s4 1934713408
        %v2186 = vunpack.c.0.s8 %v2185
        %v2187 = vlaneseq
        %v2188 = vshrl.u32 %v2187, 7
        %v2189 = vsub.s32 %v2186, %v2188
        %v2190 = vrot.slane %v2182, %v2189
        %v2192 = vunpack.c.l.s4 1934713408
        %v2193 = vunpack.c.0.s8 %v2192
        %v2194 = vlaneseq
        %v2195 = vshrl.u32 %v2194, 7
        %v2196 = vsub.s32 %v2193, %v2195
        %v2197 = vrot.slane %v2183, %v2196
        %v2198 = vcombine.low %v2166, %v2181
        %v2199 = vcombine.high %v2166, %v2181
        %v2201 = vunpack.c.l.s4 1934713408
        %v2202 = vunpack.c.0.s8 %v2201
        %v2203 = vlaneseq
        %v2204 = vshrl.u32 %v2203, 7
        %v2205 = vsub.s32 %v2202, %v2204
        %v2206 = vrot.slane %v2198, %v2205
        %v2208 = vunpack.c.l.s4 1934713408
        %v2209 = vunpack.c.0.s8 %v2208
        %v2210 = vlaneseq
        %v2211 = vshrl.u32 %v2210, 7
        %v2212 = vsub.s32 %v2209, %v2211
        %v2213 = vrot.slane %v2199, %v2212
        %v2214 = vcombine.high %v2190, 0.0
        %v2215 = vcombine.high %v2197, 0.0
        %v2216 = vcombine.high %v2206, 0.0
        %v2217 = vcombine.high %v2213, 0.0
        %v2218 = vcombine.high %v1738, 0.0
        %v2220 = vunpack.c.l.s4 1983009808
        %v2221 = vunpack.c.0.s8 %v2220
        %v2222 = vlaneseq
        %v2223 = vshrl.u32 %v2222, 7
        %v2224 = vsub.s32 %v2221, %v2223
        %v2225 = vrot.slane %v1738, %v2224
        %v2227 = vunpack.c.l.s4 1983009808
        %v2228 = vunpack.c.0.s8 %v2227
        %v2229 = vlaneseq
        %v2230 = vshrl.u32 %v2229, 7
        %v2231 = vsub.s32 %v2228, %v2230
        %v2232 = vrot.slane %v2218, %v2231
        %v2233 = vcombine.high %v1739, 0.0
        %v2235 = vunpack.c.l.s4 1983009808
        %v2236 = vunpack.c.0.s8 %v2235
        %v2237 = vlaneseq
        %v2238 = vshrl.u32 %v2237, 7
        %v2239 = vsub.s32 %v2236, %v2238
        %v2240 = vrot.slane %v1739, %v2239
        %v2242 = vunpack.c.l.s4 1983009808
        %v2243 = vunpack.c.0.s8 %v2242
        %v2244 = vlaneseq
        %v2245 = vshrl.u32 %v2244, 7
        %v2246 = vsub.s32 %v2243, %v2245
        %v2247 = vrot.slane %v2233, %v2246
        %v2248 = vcombine.low %v2225, %v2240
        %v2249 = vcombine.high %v2225, %v2240
        %v2251 = vunpack.c.l.s4 1934713408
        %v2252 = vunpack.c.0.s8 %v2251
        %v2253 = vlaneseq
        %v2254 = vshrl.u32 %v2253, 7
        %v2255 = vsub.s32 %v2252, %v2254
        %v2256 = vrot.slane %v2248, %v2255
        %v2258 = vunpack.c.l.s4 1934713408
        %v2259 = vunpack.c.0.s8 %v2258
        %v2260 = vlaneseq
        %v2261 = vshrl.u32 %v2260, 7
        %v2262 = vsub.s32 %v2259, %v2261
        %v2263 = vrot.slane %v2249, %v2262
        %v2264 = vcombine.low %v2232, %v2247
        %v2265 = vcombine.high %v2232, %v2247
        %v2267 = vunpack.c.l.s4 1934713408
        %v2268 = vunpack.c.0.s8 %v2267
        %v2269 = vlaneseq
        %v2270 = vshrl.u32 %v2269, 7
        %v2271 = vsub.s32 %v2268, %v2270
        %v2272 = vrot.slane %v2264, %v2271
        %v2274 = vunpack.c.l.s4 1934713408
        %v2275 = vunpack.c.0.s8 %v2274
        %v2276 = vlaneseq
        %v2277 = vshrl.u32 %v2276, 7
        %v2278 = vsub.s32 %v2275, %v2277
        %v2279 = vrot.slane %v2265, %v2278
        %v2280 = vcombine.high %v2256, 0.0
        %v2281 = vcombine.high %v2263, 0.0
        %v2282 = vcombine.high %v2272, 0.0
        %v2283 = vcombine.high %v2279, 0.0
        %v2284 = vcombine.high %v1740, 0.0
        %v2286 = vunpack.c.l.s4 1983009808
        %v2287 = vunpack.c.0.s8 %v2286
        %v2288 = vlaneseq
        %v2289 = vshrl.u32 %v2288, 7
        %v2290 = vsub.s32 %v2287, %v2289
        %v2291 = vrot.slane %v1740, %v2290
        %v2293 = vunpack.c.l.s4 1983009808
        %v2294 = vunpack.c.0.s8 %v2293
        %v2295 = vlaneseq
        %v2296 = vshrl.u32 %v2295, 7
        %v2297 = vsub.s32 %v2294, %v2296
        %v2298 = vrot.slane %v2284, %v2297
        %v2299 = vcombine.high %v1741, 0.0
        %v2301 = vunpack.c.l.s4 1983009808
        %v2302 = vunpack.c.0.s8 %v2301
        %v2303 = vlaneseq
        %v2304 = vshrl.u32 %v2303, 7
        %v2305 = vsub.s32 %v2302, %v2304
        %v2306 = vrot.slane %v1741, %v2305
        %v2308 = vunpack.c.l.s4 1983009808
        %v2309 = vunpack.c.0.s8 %v2308
        %v2310 = vlaneseq
        %v2311 = vshrl.u32 %v2310, 7
        %v2312 = vsub.s32 %v2309, %v2311
        %v2313 = vrot.slane %v2299, %v2312
        %v2314 = vcombine.low %v2291, %v2306
        %v2315 = vcombine.high %v2291, %v2306
        %v2317 = vunpack.c.l.s4 1934713408
        %v2318 = vunpack.c.0.s8 %v2317
        %v2319 = vlaneseq
        %v2320 = vshrl.u32 %v2319, 7
        %v2321 = vsub.s32 %v2318, %v2320
        %v2322 = vrot.slane %v2314, %v2321
        %v2324 = vunpack.c.l.s4 1934713408
        %v2325 = vunpack.c.0.s8 %v2324
        %v2326 = vlaneseq
        %v2327 = vshrl.u32 %v2326, 7
        %v2328 = vsub.s32 %v2325, %v2327
        %v2329 = vrot.slane %v2315, %v2328
        %v2330 = vcombine.low %v2298, %v2313
        %v2331 = vcombine.high %v2298, %v2313
        %v2333 = vunpack.c.l.s4 1934713408
        %v2334 = vunpack.c.0.s8 %v2333
        %v2335 = vlaneseq
        %v2336 = vshrl.u32 %v2335, 7
        %v2337 = vsub.s32 %v2334, %v2336
        %v2338 = vrot.slane %v2330, %v2337
        %v2340 = vunpack.c.l.s4 1934713408
        %v2341 = vunpack.c.0.s8 %v2340
        %v2342 = vlaneseq
        %v2343 = vshrl.u32 %v2342, 7
        %v2344 = vsub.s32 %v2341, %v2343
        %v2345 = vrot.slane %v2331, %v2344
        %v2346 = vcombine.high %v2322, 0.0
        %v2347 = vcombine.high %v2329, 0.0
        %v2348 = vcombine.high %v2338, 0.0
        %v2349 = vcombine.high %v2345, 0.0
        %v2350 = vcombine.high %v1742, 0.0
        %v2352 = vunpack.c.l.s4 1983009808
        %v2353 = vunpack.c.0.s8 %v2352
        %v2354 = vlaneseq
        %v2355 = vshrl.u32 %v2354, 7
        %v2356 = vsub.s32 %v2353, %v2355
        %v2357 = vrot.slane %v1742, %v2356
        %v2359 = vunpack.c.l.s4 1983009808
        %v2360 = vunpack.c.0.s8 %v2359
        %v2361 = vlaneseq
        %v2362 = vshrl.u32 %v2361, 7
        %v2363 = vsub.s32 %v2360, %v2362
        %v2364 = vrot.slane %v2350, %v2363
        %v2365 = vcombine.high %v1743, 0.0
        %v2367 = vunpack.c.l.s4 1983009808
        %v2368 = vunpack.c.0.s8 %v2367
        %v2369 = vlaneseq
        %v2370 = vshrl.u32 %v2369, 7
        %v2371 = vsub.s32 %v2368, %v2370
        %v2372 = vrot.slane %v1743, %v2371
        %v2374 = vunpack.c.l.s4 1983009808
        %v2375 = vunpack.c.0.s8 %v2374
        %v2376 = vlaneseq
        %v2377 = vshrl.u32 %v2376, 7
        %v2378 = vsub.s32 %v2375, %v2377
        %v2379 = vrot.slane %v2365, %v2378
        %v2380 = vcombine.low %v2357, %v2372
        %v2381 = vcombine.high %v2357, %v2372
        %v2383 = vunpack.c.l.s4 1934713408
        %v2384 = vunpack.c.0.s8 %v2383
        %v2385 = vlaneseq
        %v2386 = vshrl.u32 %v2385, 7
        %v2387 = vsub.s32 %v2384, %v2386
        %v2388 = vrot.slane %v2380, %v2387
        %v2390 = vunpack.c.l.s4 1934713408
        %v2391 = vunpack.c.0.s8 %v2390
        %v2392 = vlaneseq
        %v2393 = vshrl.u32 %v2392, 7
        %v2394 = vsub.s32 %v2391, %v2393
        %v2395 = vrot.slane %v2381, %v2394
        %v2396 = vcombine.low %v2364, %v2379
        %v2397 = vcombine.high %v2364, %v2379
        %v2399 = vunpack.c.l.s4 1934713408
        %v2400 = vunpack.c.0.s8 %v2399
        %v2401 = vlaneseq
        %v2402 = vshrl.u32 %v2401, 7
        %v2403 = vsub.s32 %v2400, %v2402
        %v2404 = vrot.slane %v2396, %v2403
        %v2406 = vunpack.c.l.s4 1934713408
        %v2407 = vunpack.c.0.s8 %v2406
        %v2408 = vlaneseq
        %v2409 = vshrl.u32 %v2408, 7
        %v2410 = vsub.s32 %v2407, %v2409
        %v2411 = vrot.slane %v2397, %v2410
        %v2412 = vcombine.high %v2388, 0.0
        %v2413 = vcombine.high %v2395, 0.0
        %v2414 = vcombine.high %v2404, 0.0
        %v2415 = vcombine.high %v2411, 0.0
        %v2416 = vcombine.high %v1744, 0.0
        %v2418 = vunpack.c.l.s4 1983009808
        %v2419 = vunpack.c.0.s8 %v2418
        %v2420 = vlaneseq
        %v2421 = vshrl.u32 %v2420, 7
        %v2422 = vsub.s32 %v2419, %v2421
        %v2423 = vrot.slane %v1744, %v2422
        %v2425 = vunpack.c.l.s4 1983009808
        %v2426 = vunpack.c.0.s8 %v2425
        %v2427 = vlaneseq
        %v2428 = vshrl.u32 %v2427, 7
        %v2429 = vsub.s32 %v2426, %v2428
        %v2430 = vrot.slane %v2416, %v2429
        %v2431 = vcombine.high %v1745, 0.0
        %v2433 = vunpack.c.l.s4 1983009808
        %v2434 = vunpack.c.0.s8 %v2433
        %v2435 = vlaneseq
        %v2436 = vshrl.u32 %v2435, 7
        %v2437 = vsub.s32 %v2434, %v2436
        %v2438 = vrot.slane %v1745, %v2437
        %v2440 = vunpack.c.l.s4 1983009808
        %v2441 = vunpack.c.0.s8 %v2440
        %v2442 = vlaneseq
        %v2443 = vshrl.u32 %v2442, 7
        %v2444 = vsub.s32 %v2441, %v2443
        %v2445 = vrot.slane %v2431, %v2444
        %v2446 = vcombine.low %v2423, %v2438
        %v2447 = vcombine.high %v2423, %v2438
        %v2449 = vunpack.c.l.s4 1934713408
        %v2450 = vunpack.c.0.s8 %v2449
        %v2451 = vlaneseq
        %v2452 = vshrl.u32 %v2451, 7
        %v2453 = vsub.s32 %v2450, %v2452
        %v2454 = vrot.slane %v2446, %v2453
        %v2456 = vunpack.c.l.s4 1934713408
        %v2457 = vunpack.c.0.s8 %v2456
        %v2458 = vlaneseq
        %v2459 = vshrl.u32 %v2458, 7
        %v2460 = vsub.s32 %v2457, %v2459
        %v2461 = vrot.slane %v2447, %v2460
        %v2462 = vcombine.low %v2430, %v2445
        %v2463 = vcombine.high %v2430, %v2445
        %v2465 = vunpack.c.l.s4 1934713408
        %v2466 = vunpack.c.0.s8 %v2465
        %v2467 = vlaneseq
        %v2468 = vshrl.u32 %v2467, 7
        %v2469 = vsub.s32 %v2466, %v2468
        %v2470 = vrot.slane %v2462, %v2469
        %v2472 = vunpack.c.l.s4 1934713408
        %v2473 = vunpack.c.0.s8 %v2472
        %v2474 = vlaneseq
        %v2475 = vshrl.u32 %v2474, 7
        %v2476 = vsub.s32 %v2473, %v2475
        %v2477 = vrot.slane %v2463, %v2476
        %v2478 = vcombine.high %v2454, 0.0
        %v2479 = vcombine.high %v2461, 0.0
        %v2480 = vcombine.high %v2470, 0.0
        %v2481 = vcombine.high %v2477, 0.0
        %v2482 = vcombine.high %v1746, 0.0
        %v2484 = vunpack.c.l.s4 1983009808
        %v2485 = vunpack.c.0.s8 %v2484
        %v2486 = vlaneseq
        %v2487 = vshrl.u32 %v2486, 7
        %v2488 = vsub.s32 %v2485, %v2487
        %v2489 = vrot.slane %v1746, %v2488
        %v2491 = vunpack.c.l.s4 1983009808
        %v2492 = vunpack.c.0.s8 %v2491
        %v2493 = vlaneseq
        %v2494 = vshrl.u32 %v2493, 7
        %v2495 = vsub.s32 %v2492, %v2494
        %v2496 = vrot.slane %v2482, %v2495
        %v2497 = vcombine.high %v1747, 0.0
        %v2499 = vunpack.c.l.s4 1983009808
        %v2500 = vunpack.c.0.s8 %v2499
        %v2501 = vlaneseq
        %v2502 = vshrl.u32 %v2501, 7
        %v2503 = vsub.s32 %v2500, %v2502
        %v2504 = vrot.slane %v1747, %v2503
        %v2506 = vunpack.c.l.s4 1983009808
        %v2507 = vunpack.c.0.s8 %v2506
        %v2508 = vlaneseq
        %v2509 = vshrl.u32 %v2508, 7
        %v2510 = vsub.s32 %v2507, %v2509
        %v2511 = vrot.slane %v2497, %v2510
        %v2512 = vcombine.low %v2489, %v2504
        %v2513 = vcombine.high %v2489, %v2504
        %v2515 = vunpack.c.l.s4 1934713408
        %v2516 = vunpack.c.0.s8 %v2515
        %v2517 = vlaneseq
        %v2518 = vshrl.u32 %v2517, 7
        %v2519 = vsub.s32 %v2516, %v2518
        %v2520 = vrot.slane %v2512, %v2519
        %v2522 = vunpack.c.l.s4 1934713408
        %v2523 = vunpack.c.0.s8 %v2522
        %v2524 = vlaneseq
        %v2525 = vshrl.u32 %v2524, 7
        %v2526 = vsub.s32 %v2523, %v2525
        %v2527 = vrot.slane %v2513, %v2526
        %v2528 = vcombine.low %v2496, %v2511
        %v2529 = vcombine.high %v2496, %v2511
        %v2531 = vunpack.c.l.s4 1934713408
        %v2532 = vunpack.c.0.s8 %v2531
        %v2533 = vlaneseq
        %v2534 = vshrl.u32 %v2533, 7
        %v2535 = vsub.s32 %v2532, %v2534
        %v2536 = vrot.slane %v2528, %v2535
        %v2538 = vunpack.c.l.s4 1934713408
        %v2539 = vunpack.c.0.s8 %v2538
        %v2540 = vlaneseq
        %v2541 = vshrl.u32 %v2540, 7
        %v2542 = vsub.s32 %v2539, %v2541
        %v2543 = vrot.slane %v2529, %v2542
        %v2544 = vcombine.high %v2520, 0.0
        %v2545 = vcombine.high %v2527, 0.0
        %v2546 = vcombine.high %v2536, 0.0
        %v2547 = vcombine.high %v2543, 0.0
        %v2548 = vcombine.high %v1748, 0.0
        %v2550 = vunpack.c.l.s4 1983009808
        %v2551 = vunpack.c.0.s8 %v2550
        %v2552 = vlaneseq
        %v2553 = vshrl.u32 %v2552, 7
        %v2554 = vsub.s32 %v2551, %v2553
        %v2555 = vrot.slane %v1748, %v2554
        %v2557 = vunpack.c.l.s4 1983009808
        %v2558 = vunpack.c.0.s8 %v2557
        %v2559 = vlaneseq
        %v2560 = vshrl.u32 %v2559, 7
        %v2561 = vsub.s32 %v2558, %v2560
        %v2562 = vrot.slane %v2548, %v2561
        %v2563 = vcombine.high %v1749, 0.0
        %v2565 = vunpack.c.l.s4 1983009808
        %v2566 = vunpack.c.0.s8 %v2565
        %v2567 = vlaneseq
        %v2568 = vshrl.u32 %v2567, 7
        %v2569 = vsub.s32 %v2566, %v2568
        %v2570 = vrot.slane %v1749, %v2569
        %v2572 = vunpack.c.l.s4 1983009808
        %v2573 = vunpack.c.0.s8 %v2572
        %v2574 = vlaneseq
        %v2575 = vshrl.u32 %v2574, 7
        %v2576 = vsub.s32 %v2573, %v2575
        %v2577 = vrot.slane %v2563, %v2576
        %v2578 = vcombine.low %v2555, %v2570
        %v2579 = vcombine.high %v2555, %v2570
        %v2581 = vunpack.c.l.s4 1934713408
        %v2582 = vunpack.c.0.s8 %v2581
        %v2583 = vlaneseq
        %v2584 = vshrl.u32 %v2583, 7
        %v2585 = vsub.s32 %v2582, %v2584
        %v2586 = vrot.slane %v2578, %v2585
        %v2588 = vunpack.c.l.s4 1934713408
        %v2589 = vunpack.c.0.s8 %v2588
        %v2590 = vlaneseq
        %v2591 = vshrl.u32 %v2590, 7
        %v2592 = vsub.s32 %v2589, %v2591
        %v2593 = vrot.slane %v2579, %v2592
        %v2594 = vcombine.low %v2562, %v2577
        %v2595 = vcombine.high %v2562, %v2577
        %v2597 = vunpack.c.l.s4 1934713408
        %v2598 = vunpack.c.0.s8 %v2597
        %v2599 = vlaneseq
        %v2600 = vshrl.u32 %v2599, 7
        %v2601 = vsub.s32 %v2598, %v2600
        %v2602 = vrot.slane %v2594, %v2601
        %v2604 = vunpack.c.l.s4 1934713408
        %v2605 = vunpack.c.0.s8 %v2604
        %v2606 = vlaneseq
        %v2607 = vshrl.u32 %v2606, 7
        %v2608 = vsub.s32 %v2605, %v2607
        %v2609 = vrot.slane %v2595, %v2608
        %v2610 = vcombine.high %v2586, 0.0
        %v2611 = vcombine.high %v2593, 0.0
        %v2612 = vcombine.high %v2602, 0.0
        %v2613 = vcombine.high %v2609, 0.0
        %v2614 = vcombine.high %v1750, 0.0
        %v2616 = vunpack.c.l.s4 1983009808
        %v2617 = vunpack.c.0.s8 %v2616
        %v2618 = vlaneseq
        %v2619 = vshrl.u32 %v2618, 7
        %v2620 = vsub.s32 %v2617, %v2619
        %v2621 = vrot.slane %v1750, %v2620
        %v2623 = vunpack.c.l.s4 1983009808
        %v2624 = vunpack.c.0.s8 %v2623
        %v2625 = vlaneseq
        %v2626 = vshrl.u32 %v2625, 7
        %v2627 = vsub.s32 %v2624, %v2626
        %v2628 = vrot.slane %v2614, %v2627
        %v2629 = vcombine.high %v1751, 0.0
        %v2631 = vunpack.c.l.s4 1983009808
        %v2632 = vunpack.c.0.s8 %v2631
        %v2633 = vlaneseq
        %v2634 = vshrl.u32 %v2633, 7
        %v2635 = vsub.s32 %v2632, %v2634
        %v2636 = vrot.slane %v1751, %v2635
        %v2638 = vunpack.c.l.s4 1983009808
        %v2639 = vunpack.c.0.s8 %v2638
        %v2640 = vlaneseq
        %v2641 = vshrl.u32 %v2640, 7
        %v2642 = vsub.s32 %v2639, %v2641
        %v2643 = vrot.slane %v2629, %v2642
        %v2644 = vcombine.low %v2621, %v2636
        %v2645 = vcombine.high %v2621, %v2636
        %v2647 = vunpack.c.l.s4 1934713408
        %v2648 = vunpack.c.0.s8 %v2647
        %v2649 = vlaneseq
        %v2650 = vshrl.u32 %v2649, 7
        %v2651 = vsub.s32 %v2648, %v2650
        %v2652 = vrot.slane %v2644, %v2651
        %v2654 = vunpack.c.l.s4 1934713408
        %v2655 = vunpack.c.0.s8 %v2654
        %v2656 = vlaneseq
        %v2657 = vshrl.u32 %v2656, 7
        %v2658 = vsub.s32 %v2655, %v2657
        %v2659 = vrot.slane %v2645, %v2658
        %v2660 = vcombine.low %v2628, %v2643
        %v2661 = vcombine.high %v2628, %v2643
        %v2663 = vunpack.c.l.s4 1934713408
        %v2664 = vunpack.c.0.s8 %v2663
        %v2665 = vlaneseq
        %v2666 = vshrl.u32 %v2665, 7
        %v2667 = vsub.s32 %v2664, %v2666
        %v2668 = vrot.slane %v2660, %v2667
        %v2670 = vunpack.c.l.s4 1934713408
        %v2671 = vunpack.c.0.s8 %v2670
        %v2672 = vlaneseq
        %v2673 = vshrl.u32 %v2672, 7
        %v2674 = vsub.s32 %v2671, %v2673
        %v2675 = vrot.slane %v2661, %v2674
        %v2676 = vcombine.high %v2652, 0.0
        %v2677 = vcombine.high %v2659, 0.0
        %v2678 = vcombine.high %v2668, 0.0
        %v2679 = vcombine.high %v2675, 0.0
        %v2680 = vcombine.high %v1752, 0.0
        %v2682 = vunpack.c.l.s4 1983009808
        %v2683 = vunpack.c.0.s8 %v2682
        %v2684 = vlaneseq
        %v2685 = vshrl.u32 %v2684, 7
        %v2686 = vsub.s32 %v2683, %v2685
        %v2687 = vrot.slane %v1752, %v2686
        %v2689 = vunpack.c.l.s4 1983009808
        %v2690 = vunpack.c.0.s8 %v2689
        %v2691 = vlaneseq
        %v2692 = vshrl.u32 %v2691, 7
        %v2693 = vsub.s32 %v2690, %v2692
        %v2694 = vrot.slane %v2680, %v2693
        %v2695 = vcombine.high %v1753, 0.0
        %v2697 = vunpack.c.l.s4 1983009808
        %v2698 = vunpack.c.0.s8 %v2697
        %v2699 = vlaneseq
        %v2700 = vshrl.u32 %v2699, 7
        %v2701 = vsub.s32 %v2698, %v2700
        %v2702 = vrot.slane %v1753, %v2701
        %v2704 = vunpack.c.l.s4 1983009808
        %v2705 = vunpack.c.0.s8 %v2704
        %v2706 = vlaneseq
        %v2707 = vshrl.u32 %v2706, 7
        %v2708 = vsub.s32 %v2705, %v2707
        %v2709 = vrot.slane %v2695, %v2708
        %v2710 = vcombine.low %v2687, %v2702
        %v2711 = vcombine.high %v2687, %v2702
        %v2713 = vunpack.c.l.s4 1934713408
        %v2714 = vunpack.c.0.s8 %v2713
        %v2715 = vlaneseq
        %v2716 = vshrl.u32 %v2715, 7
        %v2717 = vsub.s32 %v2714, %v2716
        %v2718 = vrot.slane %v2710, %v2717
        %v2720 = vunpack.c.l.s4 1934713408
        %v2721 = vunpack.c.0.s8 %v2720
        %v2722 = vlaneseq
        %v2723 = vshrl.u32 %v2722, 7
        %v2724 = vsub.s32 %v2721, %v2723
        %v2725 = vrot.slane %v2711, %v2724
        %v2726 = vcombine.low %v2694, %v2709
        %v2727 = vcombine.high %v2694, %v2709
        %v2729 = vunpack.c.l.s4 1934713408
        %v2730 = vunpack.c.0.s8 %v2729
        %v2731 = vlaneseq
        %v2732 = vshrl.u32 %v2731, 7
        %v2733 = vsub.s32 %v2730, %v2732
        %v2734 = vrot.slane %v2726, %v2733
        %v2736 = vunpack.c.l.s4 1934713408
        %v2737 = vunpack.c.0.s8 %v2736
        %v2738 = vlaneseq
        %v2739 = vshrl.u32 %v2738, 7
        %v2740 = vsub.s32 %v2737, %v2739
        %v2741 = vrot.slane %v2727, %v2740
        %v2742 = vcombine.high %v2718, 0.0
        %v2743 = vcombine.high %v2725, 0.0
        %v2744 = vcombine.high %v2734, 0.0
        %v2745 = vcombine.high %v2741, 0.0
        %v2746 = vcombine.high %v1754, 0.0
        %v2748 = vunpack.c.l.s4 1983009808
        %v2749 = vunpack.c.0.s8 %v2748
        %v2750 = vlaneseq
        %v2751 = vshrl.u32 %v2750, 7
        %v2752 = vsub.s32 %v2749, %v2751
        %v2753 = vrot.slane %v1754, %v2752
        %v2755 = vunpack.c.l.s4 1983009808
        %v2756 = vunpack.c.0.s8 %v2755
        %v2757 = vlaneseq
        %v2758 = vshrl.u32 %v2757, 7
        %v2759 = vsub.s32 %v2756, %v2758
        %v2760 = vrot.slane %v2746, %v2759
        %v2761 = vcombine.high %v1755, 0.0
        %v2763 = vunpack.c.l.s4 1983009808
        %v2764 = vunpack.c.0.s8 %v2763
        %v2765 = vlaneseq
        %v2766 = vshrl.u32 %v2765, 7
        %v2767 = vsub.s32 %v2764, %v2766
        %v2768 = vrot.slane %v1755, %v2767
        %v2770 = vunpack.c.l.s4 1983009808
        %v2771 = vunpack.c.0.s8 %v2770
        %v2772 = vlaneseq
        %v2773 = vshrl.u32 %v2772, 7
        %v2774 = vsub.s32 %v2771, %v2773
        %v2775 = vrot.slane %v2761, %v2774
        %v2776 = vcombine.low %v2753, %v2768
        %v2777 = vcombine.high %v2753, %v2768
        %v2779 = vunpack.c.l.s4 1934713408
        %v2780 = vunpack.c.0.s8 %v2779
        %v2781 = vlaneseq
        %v2782 = vshrl.u32 %v2781, 7
        %v2783 = vsub.s32 %v2780, %v2782
        %v2784 = vrot.slane %v2776, %v2783
        %v2786 = vunpack.c.l.s4 1934713408
        %v2787 = vunpack.c.0.s8 %v2786
        %v2788 = vlaneseq
        %v2789 = vshrl.u32 %v2788, 7
        %v2790 = vsub.s32 %v2787, %v2789
        %v2791 = vrot.slane %v2777, %v2790
        %v2792 = vcombine.low %v2760, %v2775
        %v2793 = vcombine.high %v2760, %v2775
        %v2795 = vunpack.c.l.s4 1934713408
        %v2796 = vunpack.c.0.s8 %v2795
        %v2797 = vlaneseq
        %v2798 = vshrl.u32 %v2797, 7
        %v2799 = vsub.s32 %v2796, %v2798
        %v2800 = vrot.slane %v2792, %v2799
        %v2802 = vunpack.c.l.s4 1934713408
        %v2803 = vunpack.c.0.s8 %v2802
        %v2804 = vlaneseq
        %v2805 = vshrl.u32 %v2804, 7
        %v2806 = vsub.s32 %v2803, %v2805
        %v2807 = vrot.slane %v2793, %v2806
        %v2808 = vcombine.high %v2784, 0.0
        %v2809 = vcombine.high %v2791, 0.0
        %v2810 = vcombine.high %v2800, 0.0
        %v2811 = vcombine.high %v2807, 0.0
        %v2812 = vcombine.low %v1794, %v1801
        %v2814 = vunpack.c.l.s4 1983009808
        %v2815 = vunpack.c.0.s8 %v2814
        %v2816 = vlaneseq
        %v2817 = vshrl.u32 %v2816, 7
        %v2818 = vsub.s32 %v2815, %v2817
        %v2819 = vrot.slane %v2812, %v2818
        %v2820 = vcombine.low %v1818, %v1819
        %v2822 = vunpack.c.l.s4 1983009808
        %v2823 = vunpack.c.0.s8 %v2822
        %v2824 = vlaneseq
        %v2825 = vshrl.u32 %v2824, 7
        %v2826 = vsub.s32 %v2823, %v2825
        %v2827 = vrot.slane %v2820, %v2826
        %v2828 = vcombine.low %v1810, %v1817
        %v2830 = vunpack.c.l.s4 1983009808
        %v2831 = vunpack.c.0.s8 %v2830
        %v2832 = vlaneseq
        %v2833 = vshrl.u32 %v2832, 7
        %v2834 = vsub.s32 %v2831, %v2833
        %v2835 = vrot.slane %v2828, %v2834
        %v2836 = vcombine.low %v1820, %v1821
        %v2838 = vunpack.c.l.s4 1983009808
        %v2839 = vunpack.c.0.s8 %v2838
        %v2840 = vlaneseq
        %v2841 = vshrl.u32 %v2840, 7
        %v2842 = vsub.s32 %v2839, %v2841
        %v2843 = vrot.slane %v2836, %v2842
        %v2844 = vcombine.low %v2819, %v2827
        %v2846 = vunpack.c.l.s4 1934713408
        %v2847 = vunpack.c.0.s8 %v2846
        %v2848 = vlaneseq
        %v2849 = vshrl.u32 %v2848, 7
        %v2850 = vsub.s32 %v2847, %v2849
        %v2851 = vrot.slane %v2844, %v2850
        %v2852 = vcombine.low %v2835, %v2843
        %v2854 = vunpack.c.l.s4 1934713408
        %v2855 = vunpack.c.0.s8 %v2854
        %v2856 = vlaneseq
        %v2857 = vshrl.u32 %v2856, 7
        %v2858 = vsub.s32 %v2855, %v2857
        %v2859 = vrot.slane %v2852, %v2858
        %v2860 = vcombine.low %v2851, %v2859
        %v2861 = vcombine.high %v2851, %v2859
        %v2862 = vcombine.low %v1860, %v1867
        %v2864 = vunpack.c.l.s4 1983009808
        %v2865 = vunpack.c.0.s8 %v2864
        %v2866 = vlaneseq
        %v2867 = vshrl.u32 %v2866, 7
        %v2868 = vsub.s32 %v2865, %v2867
        %v2869 = vrot.slane %v2862, %v2868
        %v2870 = vcombine.low %v1884, %v1885
        %v2872 = vunpack.c.l.s4 1983009808
        %v2873 = vunpack.c.0.s8 %v2872
        %v2874 = vlaneseq
        %v2875 = vshrl.u32 %v2874, 7
        %v2876 = vsub.s32 %v2873, %v2875
        %v2877 = vrot.slane %v2870, %v2876
        %v2878 = vcombine.low %v1876, %v1883
        %v2880 = vunpack.c.l.s4 1983009808
        %v2881 = vunpack.c.0.s8 %v2880
        %v2882 = vlaneseq
        %v2883 = vshrl.u32 %v2882, 7
        %v2884 = vsub.s32 %v2881, %v2883
        %v2885 = vrot.slane %v2878, %v2884
        %v2886 = vcombine.low %v1886, %v1887
        %v2888 = vunpack.c.l.s4 1983009808
        %v2889 = vunpack.c.0.s8 %v2888
        %v2890 = vlaneseq
        %v2891 = vshrl.u32 %v2890, 7
        %v2892 = vsub.s32 %v2889, %v2891
        %v2893 = vrot.slane %v2886, %v2892
        %v2894 = vcombine.low %v2869, %v2877
        %v2896 = vunpack.c.l.s4 1934713408
        %v2897 = vunpack.c.0.s8 %v2896
        %v2898 = vlaneseq
        %v2899 = vshrl.u32 %v2898, 7
        %v2900 = vsub.s32 %v2897, %v2899
        %v2901 = vrot.slane %v2894, %v2900
        %v2902 = vcombine.low %v2885, %v2893
        %v2904 = vunpack.c.l.s4 1934713408
        %v2905 = vunpack.c.0.s8 %v2904
        %v2906 = vlaneseq
        %v2907 = vshrl.u32 %v2906, 7
        %v2908 = vsub.s32 %v2905, %v2907
        %v2909 = vrot.slane %v2902, %v2908
        %v2910 = vcombine.low %v2901, %v2909
        %v2911 = vcombine.high %v2901, %v2909
        %v2912 = vcombine.low %v1926, %v1933
        %v2914 = vunpack.c.l.s4 1983009808
        %v2915 = vunpack.c.0.s8 %v2914
        %v2916 = vlaneseq
        %v2917 = vshrl.u32 %v2916, 7
        %v2918 = vsub.s32 %v2915, %v2917
        %v2919 = vrot.slane %v2912, %v2918
        %v2920 = vcombine.low %v1950, %v1951
        %v2922 = vunpack.c.l.s4 1983009808
        %v2923 = vunpack.c.0.s8 %v2922
        %v2924 = vlaneseq
        %v2925 = vshrl.u32 %v2924, 7
        %v2926 = vsub.s32 %v2923, %v2925
        %v2927 = vrot.slane %v2920, %v2926
        %v2928 = vcombine.low %v1942, %v1949
        %v2930 = vunpack.c.l.s4 1983009808
        %v2931 = vunpack.c.0.s8 %v2930
        %v2932 = vlaneseq
        %v2933 = vshrl.u32 %v2932, 7
        %v2934 = vsub.s32 %v2931, %v2933
        %v2935 = vrot.slane %v2928, %v2934
        %v2936 = vcombine.low %v1952, %v1953
        %v2938 = vunpack.c.l.s4 1983009808
        %v2939 = vunpack.c.0.s8 %v2938
        %v2940 = vlaneseq
        %v2941 = vshrl.u32 %v2940, 7
        %v2942 = vsub.s32 %v2939, %v2941
        %v2943 = vrot.slane %v2936, %v2942
        %v2944 = vcombine.low %v2919, %v2927
        %v2946 = vunpack.c.l.s4 1934713408
        %v2947 = vunpack.c.0.s8 %v2946
        %v2948 = vlaneseq
        %v2949 = vshrl.u32 %v2948, 7
        %v2950 = vsub.s32 %v2947, %v2949
        %v2951 = vrot.slane %v2944, %v2950
        %v2952 = vcombine.low %v2935, %v2943
        %v2954 = vunpack.c.l.s4 1934713408
        %v2955 = vunpack.c.0.s8 %v2954
        %v2956 = vlaneseq
        %v2957 = vshrl.u32 %v2956, 7
        %v2958 = vsub.s32 %v2955, %v2957
        %v2959 = vrot.slane %v2952, %v2958
        %v2960 = vcombine.low %v2951, %v2959
        %v2961 = vcombine.high %v2951, %v2959
        %v2962 = vcombine.low %v1992, %v1999
        %v2964 = vunpack.c.l.s4 1983009808
        %v2965 = vunpack.c.0.s8 %v2964
        %v2966 = vlaneseq
        %v2967 = vshrl.u32 %v2966, 7
        %v2968 = vsub.s32 %v2965, %v2967
        %v2969 = vrot.slane %v2962, %v2968
        %v2970 = vcombine.low %v2016, %v2017
        %v2972 = vunpack.c.l.s4 1983009808
        %v2973 = vunpack.c.0.s8 %v2972
        %v2974 = vlaneseq
        %v2975 = vshrl.u32 %v2974, 7
        %v2976 = vsub.s32 %v2973, %v2975
        %v2977 = vrot.slane %v2970, %v2976
        %v2978 = vcombine.low %v2008, %v2015
        %v2980 = vunpack.c.l.s4 1983009808
        %v2981 = vunpack.c.0.s8 %v2980
        %v2982 = vlaneseq
        %v2983 = vshrl.u32 %v2982, 7
        %v2984 = vsub.s32 %v2981, %v2983
        %v2985 = vrot.slane %v2978, %v2984
        %v2986 = vcombine.low %v2018, %v2019
        %v2988 = vunpack.c.l.s4 1983009808
        %v2989 = vunpack.c.0.s8 %v2988
        %v2990 = vlaneseq
        %v2991 = vshrl.u32 %v2990, 7
        %v2992 = vsub.s32 %v2989, %v2991
        %v2993 = vrot.slane %v2986, %v2992
        %v2994 = vcombine.low %v2969, %v2977
        %v2996 = vunpack.c.l.s4 1934713408
        %v2997 = vunpack.c.0.s8 %v2996
        %v2998 = vlaneseq
        %v2999 = vshrl.u32 %v2998, 7
        %v3000 = vsub.s32 %v2997, %v2999
        %v3001 = vrot.slane %v2994, %v3000
        %v3002 = vcombine.low %v2985, %v2993
        %v3004 = vunpack.c.l.s4 1934713408
        %v3005 = vunpack.c.0.s8 %v3004
        %v3006 = vlaneseq
        %v3007 = vshrl.u32 %v3006, 7
        %v3008 = vsub.s32 %v3005, %v3007
        %v3009 = vrot.slane %v3002, %v3008
        %v3010 = vcombine.low %v3001, %v3009
        %v3011 = vcombine.high %v3001, %v3009
        %v3012 = vcombine.low %v2058, %v2065
        %v3014 = vunpack.c.l.s4 1983009808
        %v3015 = vunpack.c.0.s8 %v3014
        %v3016 = vlaneseq
        %v3017 = vshrl.u32 %v3016, 7
        %v3018 = vsub.s32 %v3015, %v3017
        %v3019 = vrot.slane %v3012, %v3018
        %v3020 = vcombine.low %v2082, %v2083
        %v3022 = vunpack.c.l.s4 1983009808
        %v3023 = vunpack.c.0.s8 %v3022
        %v3024 = vlaneseq
        %v3025 = vshrl.u32 %v3024, 7
        %v3026 = vsub.s32 %v3023, %v3025
        %v3027 = vrot.slane %v3020, %v3026
        %v3028 = vcombine.low %v2074, %v2081
        %v3030 = vunpack.c.l.s4 1983009808
        %v3031 = vunpack.c.0.s8 %v3030
        %v3032 = vlaneseq
        %v3033 = vshrl.u32 %v3032, 7
        %v3034 = vsub.s32 %v3031, %v3033
        %v3035 = vrot.slane %v3028, %v3034
        %v3036 = vcombine.low %v2084, %v2085
        %v3038 = vunpack.c.l.s4 1983009808
        %v3039 = vunpack.c.0.s8 %v3038
        %v3040 = vlaneseq
        %v3041 = vshrl.u32 %v3040, 7
        %v3042 = vsub.s32 %v3039, %v3041
        %v3043 = vrot.slane %v3036, %v3042
        %v3044 = vcombine.low %v3019, %v3027
        %v3046 = vunpack.c.l.s4 1934713408
        %v3047 = vunpack.c.0.s8 %v3046
        %v3048 = vlaneseq
        %v3049 = vshrl.u32 %v3048, 7
        %v3050 = vsub.s32 %v3047, %v3049
        %v3051 = vrot.slane %v3044, %v3050
        %v3052 = vcombine.low %v3035, %v3043
        %v3054 = vunpack.c.l.s4 1934713408
        %v3055 = vunpack.c.0.s8 %v3054
        %v3056 = vlaneseq
        %v3057 = vshrl.u32 %v3056, 7
        %v3058 = vsub.s32 %v3055, %v3057
        %v3059 = vrot.slane %v3052, %v3058
        %v3060 = vcombine.low %v3051, %v3059
        %v3061 = vcombine.high %v3051, %v3059
        %v3062 = vcombine.low %v2124, %v2131
        %v3064 = vunpack.c.l.s4 1983009808
        %v3065 = vunpack.c.0.s8 %v3064
        %v3066 = vlaneseq
        %v3067 = vshrl.u32 %v3066, 7
        %v3068 = vsub.s32 %v3065, %v3067
        %v3069 = vrot.slane %v3062, %v3068
        %v3070 = vcombine.low %v2148, %v2149
        %v3072 = vunpack.c.l.s4 1983009808
        %v3073 = vunpack.c.0.s8 %v3072
        %v3074 = vlaneseq
        %v3075 = vshrl.u32 %v3074, 7
        %v3076 = vsub.s32 %v3073, %v3075
        %v3077 = vrot.slane %v3070, %v3076
        %v3078 = vcombine.low %v2140, %v2147
        %v3080 = vunpack.c.l.s4 1983009808
        %v3081 = vunpack.c.0.s8 %v3080
        %v3082 = vlaneseq
        %v3083 = vshrl.u32 %v3082, 7
        %v3084 = vsub.s32 %v3081, %v3083
        %v3085 = vrot.slane %v3078, %v3084
        %v3086 = vcombine.low %v2150, %v2151
        %v3088 = vunpack.c.l.s4 1983009808
        %v3089 = vunpack.c.0.s8 %v3088
        %v3090 = vlaneseq
        %v3091 = vshrl.u32 %v3090, 7
        %v3092 = vsub.s32 %v3089, %v3091
        %v3093 = vrot.slane %v3086, %v3092
        %v3094 = vcombine.low %v3069, %v3077
        %v3096 = vunpack.c.l.s4 1934713408
        %v3097 = vunpack.c.0.s8 %v3096
        %v3098 = vlaneseq
        %v3099 = vshrl.u32 %v3098, 7
        %v3100 = vsub.s32 %v3097, %v3099
        %v3101 = vrot.slane %v3094, %v3100
        %v3102 = vcombine.low %v3085, %v3093
        %v3104 = vunpack.c.l.s4 1934713408
        %v3105 = vunpack.c.0.s8 %v3104
        %v3106 = vlaneseq
        %v3107 = vshrl.u32 %v3106, 7
        %v3108 = vsub.s32 %v3105, %v3107
        %v3109 = vrot.slane %v3102, %v3108
        %v3110 = vcombine.low %v3101, %v3109
        %v3111 = vcombine.high %v3101, %v3109
        %v3112 = vcombine.low %v2190, %v2197
        %v3114 = vunpack.c.l.s4 1983009808
        %v3115 = vunpack.c.0.s8 %v3114
        %v3116 = vlaneseq
        %v3117 = vshrl.u32 %v3116, 7
        %v3118 = vsub.s32 %v3115, %v3117
        %v3119 = vrot.slane %v3112, %v3118
        %v3120 = vcombine.low %v2214, %v2215
        %v3122 = vunpack.c.l.s4 1983009808
        %v3123 = vunpack.c.0.s8 %v3122
        %v3124 = vlaneseq
        %v3125 = vshrl.u32 %v3124, 7
        %v3126 = vsub.s32 %v3123, %v3125
        %v3127 = vrot.slane %v3120, %v3126
        %v3128 = vcombine.low %v2206, %v2213
        %v3130 = vunpack.c.l.s4 1983009808
        %v3131 = vunpack.c.0.s8 %v3130
        %v3132 = vlaneseq
        %v3133 = vshrl.u32 %v3132, 7
        %v3134 = vsub.s32 %v3131, %v3133
        %v3135 = vrot.slane %v3128, %v3134
        %v3136 = vcombine.low %v2216, %v2217
        %v3138 = vunpack.c.l.s4 1983009808
        %v3139 = vunpack.c.0.s8 %v3138
        %v3140 = vlaneseq
        %v3141 = vshrl.u32 %v3140, 7
        %v3142 = vsub.s32 %v3139, %v3141
        %v3143 = vrot.slane %v3136, %v3142
        %v3144 = vcombine.low %v3119, %v3127
        %v3146 = vunpack.c.l.s4 1934713408
        %v3147 = vunpack.c.0.s8 %v3146
        %v3148 = vlaneseq
        %v3149 = vshrl.u32 %v3148, 7
        %v3150 = vsub.s32 %v3147, %v3149
        %v3151 = vrot.slane %v3144, %v3150
        %v3152 = vcombine.low %v3135, %v3143
        %v3154 = vunpack.c.l.s4 1934713408
        %v3155 = vunpack.c.0.s8 %v3154
        %v3156 = vlaneseq
        %v3157 = vshrl.u32 %v3156, 7
        %v3158 = vsub.s32 %v3155, %v3157
        %v3159 = vrot.slane %v3152, %v3158
        %v3160 = vcombine.low %v3151, %v3159
        %v3161 = vcombine.high %v3151, %v3159
        %v3162 = vcombine.low %v2256, %v2263
        %v3164 = vunpack.c.l.s4 1983009808
        %v3165 = vunpack.c.0.s8 %v3164
        %v3166 = vlaneseq
        %v3167 = vshrl.u32 %v3166, 7
        %v3168 = vsub.s32 %v3165, %v3167
        %v3169 = vrot.slane %v3162, %v3168
        %v3170 = vcombine.low %v2280, %v2281
        %v3172 = vunpack.c.l.s4 1983009808
        %v3173 = vunpack.c.0.s8 %v3172
        %v3174 = vlaneseq
        %v3175 = vshrl.u32 %v3174, 7
        %v3176 = vsub.s32 %v3173, %v3175
        %v3177 = vrot.slane %v3170, %v3176
        %v3178 = vcombine.low %v2272, %v2279
        %v3180 = vunpack.c.l.s4 1983009808
        %v3181 = vunpack.c.0.s8 %v3180
        %v3182 = vlaneseq
        %v3183 = vshrl.u32 %v3182, 7
        %v3184 = vsub.s32 %v3181, %v3183
        %v3185 = vrot.slane %v3178, %v3184
        %v3186 = vcombine.low %v2282, %v2283
        %v3188 = vunpack.c.l.s4 1983009808
        %v3189 = vunpack.c.0.s8 %v3188
        %v3190 = vlaneseq
        %v3191 = vshrl.u32 %v3190, 7
        %v3192 = vsub.s32 %v3189, %v3191
        %v3193 = vrot.slane %v3186, %v3192
        %v3194 = vcombine.low %v3169, %v3177
        %v3196 = vunpack.c.l.s4 1934713408
        %v3197 = vunpack.c.0.s8 %v3196
        %v3198 = vlaneseq
        %v3199 = vshrl.u32 %v3198, 7
        %v3200 = vsub.s32 %v3197, %v3199
        %v3201 = vrot.slane %v3194, %v3200
        %v3202 = vcombine.low %v3185, %v3193
        %v3204 = vunpack.c.l.s4 1934713408
        %v3205 = vunpack.c.0.s8 %v3204
        %v3206 = vlaneseq
        %v3207 = vshrl.u32 %v3206, 7
        %v3208 = vsub.s32 %v3205, %v3207
        %v3209 = vrot.slane %v3202, %v3208
        %v3210 = vcombine.low %v3201, %v3209
        %v3211 = vcombine.high %v3201, %v3209
        %v3212 = vcombine.low %v2322, %v2329
        %v3214 = vunpack.c.l.s4 1983009808
        %v3215 = vunpack.c.0.s8 %v3214
        %v3216 = vlaneseq
        %v3217 = vshrl.u32 %v3216, 7
        %v3218 = vsub.s32 %v3215, %v3217
        %v3219 = vrot.slane %v3212, %v3218
        %v3220 = vcombine.low %v2346, %v2347
        %v3222 = vunpack.c.l.s4 1983009808
        %v3223 = vunpack.c.0.s8 %v3222
        %v3224 = vlaneseq
        %v3225 = vshrl.u32 %v3224, 7
        %v3226 = vsub.s32 %v3223, %v3225
        %v3227 = vrot.slane %v3220, %v3226
        %v3228 = vcombine.low %v2338, %v2345
        %v3230 = vunpack.c.l.s4 1983009808
        %v3231 = vunpack.c.0.s8 %v3230
        %v3232 = vlaneseq
        %v3233 = vshrl.u32 %v3232, 7
        %v3234 = vsub.s32 %v3231, %v3233
        %v3235 = vrot.slane %v3228, %v3234
        %v3236 = vcombine.low %v2348, %v2349
        %v3238 = vunpack.c.l.s4 1983009808
        %v3239 = vunpack.c.0.s8 %v3238
        %v3240 = vlaneseq
        %v3241 = vshrl.u32 %v3240, 7
        %v3242 = vsub.s32 %v3239, %v3241
        %v3243 = vrot.slane %v3236, %v3242
        %v3244 = vcombine.low %v3219, %v3227
        %v3246 = vunpack.c.l.s4 1934713408
        %v3247 = vunpack.c.0.s8 %v3246
        %v3248 = vlaneseq
        %v3249 = vshrl.u32 %v3248, 7
        %v3250 = vsub.s32 %v3247, %v3249
        %v3251 = vrot.slane %v3244, %v3250
        %v3252 = vcombine.low %v3235, %v3243
        %v3254 = vunpack.c.l.s4 1934713408
        %v3255 = vunpack.c.0.s8 %v3254
        %v3256 = vlaneseq
        %v3257 = vshrl.u32 %v3256, 7
        %v3258 = vsub.s32 %v3255, %v3257
        %v3259 = vrot.slane %v3252, %v3258
        %v3260 = vcombine.low %v3251, %v3259
        %v3261 = vcombine.high %v3251, %v3259
        %v3262 = vcombine.low %v2388, %v2395
        %v3264 = vunpack.c.l.s4 1983009808
        %v3265 = vunpack.c.0.s8 %v3264
        %v3266 = vlaneseq
        %v3267 = vshrl.u32 %v3266, 7
        %v3268 = vsub.s32 %v3265, %v3267
        %v3269 = vrot.slane %v3262, %v3268
        %v3270 = vcombine.low %v2412, %v2413
        %v3272 = vunpack.c.l.s4 1983009808
        %v3273 = vunpack.c.0.s8 %v3272
        %v3274 = vlaneseq
        %v3275 = vshrl.u32 %v3274, 7
        %v3276 = vsub.s32 %v3273, %v3275
        %v3277 = vrot.slane %v3270, %v3276
        %v3278 = vcombine.low %v2404, %v2411
        %v3280 = vunpack.c.l.s4 1983009808
        %v3281 = vunpack.c.0.s8 %v3280
        %v3282 = vlaneseq
        %v3283 = vshrl.u32 %v3282, 7
        %v3284 = vsub.s32 %v3281, %v3283
        %v3285 = vrot.slane %v3278, %v3284
        %v3286 = vcombine.low %v2414, %v2415
        %v3288 = vunpack.c.l.s4 1983009808
        %v3289 = vunpack.c.0.s8 %v3288
        %v3290 = vlaneseq
        %v3291 = vshrl.u32 %v3290, 7
        %v3292 = vsub.s32 %v3289, %v3291
        %v3293 = vrot.slane %v3286, %v3292
        %v3294 = vcombine.low %v3269, %v3277
        %v3296 = vunpack.c.l.s4 1934713408
        %v3297 = vunpack.c.0.s8 %v3296
        %v3298 = vlaneseq
        %v3299 = vshrl.u32 %v3298, 7
        %v3300 = vsub.s32 %v3297, %v3299
        %v3301 = vrot.slane %v3294, %v3300
        %v3302 = vcombine.low %v3285, %v3293
        %v3304 = vunpack.c.l.s4 1934713408
        %v3305 = vunpack.c.0.s8 %v3304
        %v3306 = vlaneseq
        %v3307 = vshrl.u32 %v3306, 7
        %v3308 = vsub.s32 %v3305, %v3307
        %v3309 = vrot.slane %v3302, %v3308
        %v3310 = vcombine.low %v3301, %v3309
        %v3311 = vcombine.high %v3301, %v3309
        %v3312 = vcombine.low %v2454, %v2461
        %v3314 = vunpack.c.l.s4 1983009808
        %v3315 = vunpack.c.0.s8 %v3314
        %v3316 = vlaneseq
        %v3317 = vshrl.u32 %v3316, 7
        %v3318 = vsub.s32 %v3315, %v3317
        %v3319 = vrot.slane %v3312, %v3318
        %v3320 = vcombine.low %v2478, %v2479
        %v3322 = vunpack.c.l.s4 1983009808
        %v3323 = vunpack.c.0.s8 %v3322
        %v3324 = vlaneseq
        %v3325 = vshrl.u32 %v3324, 7
        %v3326 = vsub.s32 %v3323, %v3325
        %v3327 = vrot.slane %v3320, %v3326
        %v3328 = vcombine.low %v2470, %v2477
        %v3330 = vunpack.c.l.s4 1983009808
        %v3331 = vunpack.c.0.s8 %v3330
        %v3332 = vlaneseq
        %v3333 = vshrl.u32 %v3332, 7
        %v3334 = vsub.s32 %v3331, %v3333
        %v3335 = vrot.slane %v3328, %v3334
        %v3336 = vcombine.low %v2480, %v2481
        %v3338 = vunpack.c.l.s4 1983009808
        %v3339 = vunpack.c.0.s8 %v3338
        %v3340 = vlaneseq
        %v3341 = vshrl.u32 %v3340, 7
        %v3342 = vsub.s32 %v3339, %v3341
        %v3343 = vrot.slane %v3336, %v3342
        %v3344 = vcombine.low %v3319, %v3327
        %v3346 = vunpack.c.l.s4 1934713408
        %v3347 = vunpack.c.0.s8 %v3346
        %v3348 = vlaneseq
        %v3349 = vshrl.u32 %v3348, 7
        %v3350 = vsub.s32 %v3347, %v3349
        %v3351 = vrot.slane %v3344, %v3350
        %v3352 = vcombine.low %v3335, %v3343
        %v3354 = vunpack.c.l.s4 1934713408
        %v3355 = vunpack.c.0.s8 %v3354
        %v3356 = vlaneseq
        %v3357 = vshrl.u32 %v3356, 7
        %v3358 = vsub.s32 %v3355, %v3357
        %v3359 = vrot.slane %v3352, %v3358
        %v3360 = vcombine.low %v3351, %v3359
        %v3361 = vcombine.high %v3351, %v3359
        %v3362 = vcombine.low %v2520, %v2527
        %v3364 = vunpack.c.l.s4 1983009808
        %v3365 = vunpack.c.0.s8 %v3364
        %v3366 = vlaneseq
        %v3367 = vshrl.u32 %v3366, 7
        %v3368 = vsub.s32 %v3365, %v3367
        %v3369 = vrot.slane %v3362, %v3368
        %v3370 = vcombine.low %v2544, %v2545
        %v3372 = vunpack.c.l.s4 1983009808
        %v3373 = vunpack.c.0.s8 %v3372
        %v3374 = vlaneseq
        %v3375 = vshrl.u32 %v3374, 7
        %v3376 = vsub.s32 %v3373, %v3375
        %v3377 = vrot.slane %v3370, %v3376
        %v3378 = vcombine.low %v2536, %v2543
        %v3380 = vunpack.c.l.s4 1983009808
        %v3381 = vunpack.c.0.s8 %v3380
        %v3382 = vlaneseq
        %v3383 = vshrl.u32 %v3382, 7
        %v3384 = vsub.s32 %v3381, %v3383
        %v3385 = vrot.slane %v3378, %v3384
        %v3386 = vcombine.low %v2546, %v2547
        %v3388 = vunpack.c.l.s4 1983009808
        %v3389 = vunpack.c.0.s8 %v3388
        %v3390 = vlaneseq
        %v3391 = vshrl.u32 %v3390, 7
        %v3392 = vsub.s32 %v3389, %v3391
        %v3393 = vrot.slane %v3386, %v3392
        %v3394 = vcombine.low %v3369, %v3377
        %v3396 = vunpack.c.l.s4 1934713408
        %v3397 = vunpack.c.0.s8 %v3396
        %v3398 = vlaneseq
        %v3399 = vshrl.u32 %v3398, 7
        %v3400 = vsub.s32 %v3397, %v3399
        %v3401 = vrot.slane %v3394, %v3400
        %v3402 = vcombine.low %v3385, %v3393
        %v3404 = vunpack.c.l.s4 1934713408
        %v3405 = vunpack.c.0.s8 %v3404
        %v3406 = vlaneseq
        %v3407 = vshrl.u32 %v3406, 7
        %v3408 = vsub.s32 %v3405, %v3407
        %v3409 = vrot.slane %v3402, %v3408
        %v3410 = vcombine.low %v3401, %v3409
        %v3411 = vcombine.high %v3401, %v3409
        %v3412 = vcombine.low %v2586, %v2593
        %v3414 = vunpack.c.l.s4 1983009808
        %v3415 = vunpack.c.0.s8 %v3414
        %v3416 = vlaneseq
        %v3417 = vshrl.u32 %v3416, 7
        %v3418 = vsub.s32 %v3415, %v3417
        %v3419 = vrot.slane %v3412, %v3418
        %v3420 = vcombine.low %v2610, %v2611
        %v3422 = vunpack.c.l.s4 1983009808
        %v3423 = vunpack.c.0.s8 %v3422
        %v3424 = vlaneseq
        %v3425 = vshrl.u32 %v3424, 7
        %v3426 = vsub.s32 %v3423, %v3425
        %v3427 = vrot.slane %v3420, %v3426
        %v3428 = vcombine.low %v2602, %v2609
        %v3430 = vunpack.c.l.s4 1983009808
        %v3431 = vunpack.c.0.s8 %v3430
        %v3432 = vlaneseq
        %v3433 = vshrl.u32 %v3432, 7
        %v3434 = vsub.s32 %v3431, %v3433
        %v3435 = vrot.slane %v3428, %v3434
        %v3436 = vcombine.low %v2612, %v2613
        %v3438 = vunpack.c.l.s4 1983009808
        %v3439 = vunpack.c.0.s8 %v3438
        %v3440 = vlaneseq
        %v3441 = vshrl.u32 %v3440, 7
        %v3442 = vsub.s32 %v3439, %v3441
        %v3443 = vrot.slane %v3436, %v3442
        %v3444 = vcombine.low %v3419, %v3427
        %v3446 = vunpack.c.l.s4 1934713408
        %v3447 = vunpack.c.0.s8 %v3446
        %v3448 = vlaneseq
        %v3449 = vshrl.u32 %v3448, 7
        %v3450 = vsub.s32 %v3447, %v3449
        %v3451 = vrot.slane %v3444, %v3450
        %v3452 = vcombine.low %v3435, %v3443
        %v3454 = vunpack.c.l.s4 1934713408
        %v3455 = vunpack.c.0.s8 %v3454
        %v3456 = vlaneseq
        %v3457 = vshrl.u32 %v3456, 7
        %v3458 = vsub.s32 %v3455, %v3457
        %v3459 = vrot.slane %v3452, %v3458
        %v3460 = vcombine.low %v3451, %v3459
        %v3461 = vcombine.high %v3451, %v3459
        %v3462 = vcombine.low %v2652, %v2659
        %v3464 = vunpack.c.l.s4 1983009808
        %v3465 = vunpack.c.0.s8 %v3464
        %v3466 = vlaneseq
        %v3467 = vshrl.u32 %v3466, 7
        %v3468 = vsub.s32 %v3465, %v3467
        %v3469 = vrot.slane %v3462, %v3468
        %v3470 = vcombine.low %v2676, %v2677
        %v3472 = vunpack.c.l.s4 1983009808
        %v3473 = vunpack.c.0.s8 %v3472
        %v3474 = vlaneseq
        %v3475 = vshrl.u32 %v3474, 7
        %v3476 = vsub.s32 %v3473, %v3475
        %v3477 = vrot.slane %v3470, %v3476
        %v3478 = vcombine.low %v2668, %v2675
        %v3480 = vunpack.c.l.s4 1983009808
        %v3481 = vunpack.c.0.s8 %v3480
        %v3482 = vlaneseq
        %v3483 = vshrl.u32 %v3482, 7
        %v3484 = vsub.s32 %v3481, %v3483
        %v3485 = vrot.slane %v3478, %v3484
        %v3486 = vcombine.low %v2678, %v2679
        %v3488 = vunpack.c.l.s4 1983009808
        %v3489 = vunpack.c.0.s8 %v3488
        %v3490 = vlaneseq
        %v3491 = vshrl.u32 %v3490, 7
        %v3492 = vsub.s32 %v3489, %v3491
        %v3493 = vrot.slane %v3486, %v3492
        %v3494 = vcombine.low %v3469, %v3477
        %v3496 = vunpack.c.l.s4 1934713408
        %v3497 = vunpack.c.0.s8 %v3496
        %v3498 = vlaneseq
        %v3499 = vshrl.u32 %v3498, 7
        %v3500 = vsub.s32 %v3497, %v3499
        %v3501 = vrot.slane %v3494, %v3500
        %v3502 = vcombine.low %v3485, %v3493
        %v3504 = vunpack.c.l.s4 1934713408
        %v3505 = vunpack.c.0.s8 %v3504
        %v3506 = vlaneseq
        %v3507 = vshrl.u32 %v3506, 7
        %v3508 = vsub.s32 %v3505, %v3507
        %v3509 = vrot.slane %v3502, %v3508
        %v3510 = vcombine.low %v3501, %v3509
        %v3511 = vcombine.high %v3501, %v3509
        %v3512 = vcombine.low %v2718, %v2725
        %v3514 = vunpack.c.l.s4 1983009808
        %v3515 = vunpack.c.0.s8 %v3514
        %v3516 = vlaneseq
        %v3517 = vshrl.u32 %v3516, 7
        %v3518 = vsub.s32 %v3515, %v3517
        %v3519 = vrot.slane %v3512, %v3518
        %v3520 = vcombine.low %v2742, %v2743
        %v3522 = vunpack.c.l.s4 1983009808
        %v3523 = vunpack.c.0.s8 %v3522
        %v3524 = vlaneseq
        %v3525 = vshrl.u32 %v3524, 7
        %v3526 = vsub.s32 %v3523, %v3525
        %v3527 = vrot.slane %v3520, %v3526
        %v3528 = vcombine.low %v2734, %v2741
        %v3530 = vunpack.c.l.s4 1983009808
        %v3531 = vunpack.c.0.s8 %v3530
        %v3532 = vlaneseq
        %v3533 = vshrl.u32 %v3532, 7
        %v3534 = vsub.s32 %v3531, %v3533
        %v3535 = vrot.slane %v3528, %v3534
        %v3536 = vcombine.low %v2744, %v2745
        %v3538 = vunpack.c.l.s4 1983009808
        %v3539 = vunpack.c.0.s8 %v3538
        %v3540 = vlaneseq
        %v3541 = vshrl.u32 %v3540, 7
        %v3542 = vsub.s32 %v3539, %v3541
        %v3543 = vrot.slane %v3536, %v3542
        %v3544 = vcombine.low %v3519, %v3527
        %v3546 = vunpack.c.l.s4 1934713408
        %v3547 = vunpack.c.0.s8 %v3546
        %v3548 = vlaneseq
        %v3549 = vshrl.u32 %v3548, 7
        %v3550 = vsub.s32 %v3547, %v3549
        %v3551 = vrot.slane %v3544, %v3550
        %v3552 = vcombine.low %v3535, %v3543
        %v3554 = vunpack.c.l.s4 1934713408
        %v3555 = vunpack.c.0.s8 %v3554
        %v3556 = vlaneseq
        %v3557 = vshrl.u32 %v3556, 7
        %v3558 = vsub.s32 %v3555, %v3557
        %v3559 = vrot.slane %v3552, %v3558
        %v3560 = vcombine.low %v3551, %v3559
        %v3561 = vcombine.high %v3551, %v3559
        %v3562 = vcombine.low %v2784, %v2791
        %v3564 = vunpack.c.l.s4 1983009808
        %v3565 = vunpack.c.0.s8 %v3564
        %v3566 = vlaneseq
        %v3567 = vshrl.u32 %v3566, 7
        %v3568 = vsub.s32 %v3565, %v3567
        %v3569 = vrot.slane %v3562, %v3568
        %v3570 = vcombine.low %v2808, %v2809
        %v3572 = vunpack.c.l.s4 1983009808
        %v3573 = vunpack.c.0.s8 %v3572
        %v3574 = vlaneseq
        %v3575 = vshrl.u32 %v3574, 7
        %v3576 = vsub.s32 %v3573, %v3575
        %v3577 = vrot.slane %v3570, %v3576
        %v3578 = vcombine.low %v2800, %v2807
        %v3580 = vunpack.c.l.s4 1983009808
        %v3581 = vunpack.c.0.s8 %v3580
        %v3582 = vlaneseq
        %v3583 = vshrl.u32 %v3582, 7
        %v3584 = vsub.s32 %v3581, %v3583
        %v3585 = vrot.slane %v3578, %v3584
        %v3586 = vcombine.low %v2810, %v2811
        %v3588 = vunpack.c.l.s4 1983009808
        %v3589 = vunpack.c.0.s8 %v3588
        %v3590 = vlaneseq
        %v3591 = vshrl.u32 %v3590, 7
        %v3592 = vsub.s32 %v3589, %v3591
        %v3593 = vrot.slane %v3586, %v3592
        %v3594 = vcombine.low %v3569, %v3577
        %v3596 = vunpack.c.l.s4 1934713408
        %v3597 = vunpack.c.0.s8 %v3596
        %v3598 = vlaneseq
        %v3599 = vshrl.u32 %v3598, 7
        %v3600 = vsub.s32 %v3597, %v3599
        %v3601 = vrot.slane %v3594, %v3600
        %v3602 = vcombine.low %v3585, %v3593
        %v3604 = vunpack.c.l.s4 1934713408
        %v3605 = vunpack.c.0.s8 %v3604
        %v3606 = vlaneseq
        %v3607 = vshrl.u32 %v3606, 7
        %v3608 = vsub.s32 %v3605, %v3607
        %v3609 = vrot.slane %v3602, %v3608
        %v3610 = vcombine.low %v3601, %v3609
        %v3611 = vcombine.high %v3601, %v3609
        %v3612 = vpack.c.bf16 %v2910, %v2860
        %v3613 = vpack.c.bf16 %v3010, %v2960
        %v3614 = vpack.c.bf16 %v3110, %v3060
        %v3615 = vpack.c.bf16 %v3210, %v3160
        %v3616 = vpack.c.bf16 %v3310, %v3260
        %v3617 = vpack.c.bf16 %v3410, %v3360
        %v3618 = vpack.c.bf16 %v3510, %v3460
        %v3619 = vpack.c.bf16 %v3610, %v3560
        %v3620 = vpack.c.bf16 %v2911, %v2861
        %v3621 = vpack.c.bf16 %v3011, %v2961
        %v3622 = vpack.c.bf16 %v3111, %v3061
        %v3623 = vpack.c.bf16 %v3211, %v3161
        %v3624 = vpack.c.bf16 %v3311, %v3261
        %v3625 = vpack.c.bf16 %v3411, %v3361
        %v3626 = vpack.c.bf16 %v3511, %v3461
        %v3627 = vpack.c.bf16 %v3611, %v3561
        %v3644 = vunpack.c.l.b16 %v3612
        %v3645 = vunpack.c.h.b16 %v3612
        %v3646 = vunpack.c.l.b16 %v3613
        %v3647 = vunpack.c.h.b16 %v3613
        %v3648 = vunpack.c.l.b16 %v3614
        %v3649 = vunpack.c.h.b16 %v3614
        %v3650 = vunpack.c.l.b16 %v3615
        %v3651 = vunpack.c.h.b16 %v3615
        %v3652 = vunpack.c.l.b16 %v3616
        %v3653 = vunpack.c.h.b16 %v3616
        %v3654 = vunpack.c.l.b16 %v3617
        %v3655 = vunpack.c.h.b16 %v3617
        %v3656 = vunpack.c.l.b16 %v3618
        %v3657 = vunpack.c.h.b16 %v3618
        %v3658 = vunpack.c.l.b16 %v3619
        %v3659 = vunpack.c.h.b16 %v3619
        %v3660 = vunpack.c.l.b16 %v3620
        %v3661 = vunpack.c.h.b16 %v3620
        %v3662 = vunpack.c.l.b16 %v3621
        %v3663 = vunpack.c.h.b16 %v3621
        %v3664 = vunpack.c.l.b16 %v3622
        %v3665 = vunpack.c.h.b16 %v3622
        %v3666 = vunpack.c.l.b16 %v3623
        %v3667 = vunpack.c.h.b16 %v3623
        %v3668 = vunpack.c.l.b16 %v3624
        %v3669 = vunpack.c.h.b16 %v3624
        %v3670 = vunpack.c.l.b16 %v3625
        %v3671 = vunpack.c.h.b16 %v3625
        %v3672 = vunpack.c.l.b16 %v3626
        %v3673 = vunpack.c.h.b16 %v3626
        %v3674 = vunpack.c.l.b16 %v3627
        %v3675 = vunpack.c.h.b16 %v3627
        %v3676 = vpack.c.b16 %v3644, %v3644
        %v3677 = vpack.c.b16 %v3645, %v3645
        %v3678 = vpack.c.b16 %v3646, %v3646
        %v3679 = vpack.c.b16 %v3647, %v3647
        %v3680 = vpack.c.b16 %v3648, %v3648
        %v3681 = vpack.c.b16 %v3649, %v3649
        %v3682 = vpack.c.b16 %v3650, %v3650
        %v3683 = vpack.c.b16 %v3651, %v3651
        %v3684 = vpack.c.b16 %v3652, %v3652
        %v3685 = vpack.c.b16 %v3653, %v3653
        %v3686 = vpack.c.b16 %v3654, %v3654
        %v3687 = vpack.c.b16 %v3655, %v3655
        %v3688 = vpack.c.b16 %v3656, %v3656
        %v3689 = vpack.c.b16 %v3657, %v3657
        %v3690 = vpack.c.b16 %v3658, %v3658
        %v3691 = vpack.c.b16 %v3659, %v3659
        %v3692 = vpack.c.b16 %v3660, %v3660
        %v3693 = vpack.c.b16 %v3661, %v3661
        %v3694 = vpack.c.b16 %v3662, %v3662
        %v3695 = vpack.c.b16 %v3663, %v3663
        %v3696 = vpack.c.b16 %v3664, %v3664
        %v3697 = vpack.c.b16 %v3665, %v3665
        %v3698 = vpack.c.b16 %v3666, %v3666
        %v3699 = vpack.c.b16 %v3667, %v3667
        %v3700 = vpack.c.b16 %v3668, %v3668
        %v3701 = vpack.c.b16 %v3669, %v3669
        %v3702 = vpack.c.b16 %v3670, %v3670
        %v3703 = vpack.c.b16 %v3671, %v3671
        %v3704 = vpack.c.b16 %v3672, %v3672
        %v3705 = vpack.c.b16 %v3673, %v3673
        %v3706 = vpack.c.b16 %v3674, %v3674
        %v3707 = vpack.c.b16 %v3675, %v3675
        %3740 = vst [vmem:[%s379] sm:$0xf] %v3676
        %3741 = vst [vmem:[%s379 + $0x4] sm:$0xf] %v3677
        %3742 = vst [vmem:[%s379 + $0x8] sm:$0xf] %v3678
        %3743 = vst [vmem:[%s379 + $0xc] sm:$0xf] %v3679
        %3744 = vst [vmem:[%s379 + $0x10] sm:$0xf] %v3680
        %3745 = vst [vmem:[%s379 + $0x14] sm:$0xf] %v3681
        %3746 = vst [vmem:[%s379 + $0x18] sm:$0xf] %v3682
        %3747 = vst [vmem:[%s379 + $0x1c] sm:$0xf] %v3683
        %3748 = vst [vmem:[%s379 + $0x20] sm:$0xf] %v3684
        %3749 = vst [vmem:[%s379 + $0x24] sm:$0xf] %v3685
        %3750 = vst [vmem:[%s379 + $0x28] sm:$0xf] %v3686
        %3751 = vst [vmem:[%s379 + $0x2c] sm:$0xf] %v3687
        %3752 = vst [vmem:[%s379 + $0x30] sm:$0xf] %v3688
        %3753 = vst [vmem:[%s379 + $0x34] sm:$0xf] %v3689
        %3754 = vst [vmem:[%s379 + $0x38] sm:$0xf] %v3690
        %3755 = vst [vmem:[%s379 + $0x3c] sm:$0xf] %v3691
        %3756 = vst [vmem:[%s379 + $0x40] sm:$0xf] %v3692
        %3757 = vst [vmem:[%s379 + $0x44] sm:$0xf] %v3693
        %3758 = vst [vmem:[%s379 + $0x48] sm:$0xf] %v3694
        %3759 = vst [vmem:[%s379 + $0x4c] sm:$0xf] %v3695
        %3760 = vst [vmem:[%s379 + $0x50] sm:$0xf] %v3696
        %3761 = vst [vmem:[%s379 + $0x54] sm:$0xf] %v3697
        %3762 = vst [vmem:[%s379 + $0x58] sm:$0xf] %v3698
        %3763 = vst [vmem:[%s379 + $0x5c] sm:$0xf] %v3699
        %3764 = vst [vmem:[%s379 + $0x60] sm:$0xf] %v3700
        %3765 = vst [vmem:[%s379 + $0x64] sm:$0xf] %v3701
        %3766 = vst [vmem:[%s379 + $0x68] sm:$0xf] %v3702
        %3767 = vst [vmem:[%s379 + $0x6c] sm:$0xf] %v3703
        %3768 = vst [vmem:[%s379 + $0x70] sm:$0xf] %v3704
        %3769 = vst [vmem:[%s379 + $0x74] sm:$0xf] %v3705
        %3770 = vst [vmem:[%s379 + $0x78] sm:$0xf] %v3706
        %3771 = vst [vmem:[%s379 + $0x7c] sm:$0xf] %v3707
        %v3772 = vcombine.high %v1333, 0.0
        %v3774 = vunpack.c.l.s4 1983009808
        %v3775 = vunpack.c.0.s8 %v3774
        %v3776 = vlaneseq
        %v3777 = vshrl.u32 %v3776, 7
        %v3778 = vsub.s32 %v3775, %v3777
        %v3779 = vrot.slane %v1333, %v3778
        %v3781 = vunpack.c.l.s4 1983009808
        %v3782 = vunpack.c.0.s8 %v3781
        %v3783 = vlaneseq
        %v3784 = vshrl.u32 %v3783, 7
        %v3785 = vsub.s32 %v3782, %v3784
        %v3786 = vrot.slane %v3772, %v3785
        %v3787 = vcombine.high %v1335, 0.0
        %v3789 = vunpack.c.l.s4 1983009808
        %v3790 = vunpack.c.0.s8 %v3789
        %v3791 = vlaneseq
        %v3792 = vshrl.u32 %v3791, 7
        %v3793 = vsub.s32 %v3790, %v3792
        %v3794 = vrot.slane %v1335, %v3793
        %v3796 = vunpack.c.l.s4 1983009808
        %v3797 = vunpack.c.0.s8 %v3796
        %v3798 = vlaneseq
        %v3799 = vshrl.u32 %v3798, 7
        %v3800 = vsub.s32 %v3797, %v3799
        %v3801 = vrot.slane %v3787, %v3800
        %v3802 = vcombine.low %v3779, %v3794
        %v3803 = vcombine.high %v3779, %v3794
        %v3805 = vunpack.c.l.s4 1934713408
        %v3806 = vunpack.c.0.s8 %v3805
        %v3807 = vlaneseq
        %v3808 = vshrl.u32 %v3807, 7
        %v3809 = vsub.s32 %v3806, %v3808
        %v3810 = vrot.slane %v3802, %v3809
        %v3812 = vunpack.c.l.s4 1934713408
        %v3813 = vunpack.c.0.s8 %v3812
        %v3814 = vlaneseq
        %v3815 = vshrl.u32 %v3814, 7
        %v3816 = vsub.s32 %v3813, %v3815
        %v3817 = vrot.slane %v3803, %v3816
        %v3818 = vcombine.low %v3786, %v3801
        %v3819 = vcombine.high %v3786, %v3801
        %v3821 = vunpack.c.l.s4 1934713408
        %v3822 = vunpack.c.0.s8 %v3821
        %v3823 = vlaneseq
        %v3824 = vshrl.u32 %v3823, 7
        %v3825 = vsub.s32 %v3822, %v3824
        %v3826 = vrot.slane %v3818, %v3825
        %v3828 = vunpack.c.l.s4 1934713408
        %v3829 = vunpack.c.0.s8 %v3828
        %v3830 = vlaneseq
        %v3831 = vshrl.u32 %v3830, 7
        %v3832 = vsub.s32 %v3829, %v3831
        %v3833 = vrot.slane %v3819, %v3832
        %v3834 = vcombine.high %v3810, 0.0
        %v3835 = vcombine.high %v3817, 0.0
        %v3836 = vcombine.high %v3826, 0.0
        %v3837 = vcombine.high %v3833, 0.0
        %v3838 = vcombine.high %v1337, 0.0
        %v3840 = vunpack.c.l.s4 1983009808
        %v3841 = vunpack.c.0.s8 %v3840
        %v3842 = vlaneseq
        %v3843 = vshrl.u32 %v3842, 7
        %v3844 = vsub.s32 %v3841, %v3843
        %v3845 = vrot.slane %v1337, %v3844
        %v3847 = vunpack.c.l.s4 1983009808
        %v3848 = vunpack.c.0.s8 %v3847
        %v3849 = vlaneseq
        %v3850 = vshrl.u32 %v3849, 7
        %v3851 = vsub.s32 %v3848, %v3850
        %v3852 = vrot.slane %v3838, %v3851
        %v3853 = vcombine.high %v1339, 0.0
        %v3855 = vunpack.c.l.s4 1983009808
        %v3856 = vunpack.c.0.s8 %v3855
        %v3857 = vlaneseq
        %v3858 = vshrl.u32 %v3857, 7
        %v3859 = vsub.s32 %v3856, %v3858
        %v3860 = vrot.slane %v1339, %v3859
        %v3862 = vunpack.c.l.s4 1983009808
        %v3863 = vunpack.c.0.s8 %v3862
        %v3864 = vlaneseq
        %v3865 = vshrl.u32 %v3864, 7
        %v3866 = vsub.s32 %v3863, %v3865
        %v3867 = vrot.slane %v3853, %v3866
        %v3868 = vcombine.low %v3845, %v3860
        %v3869 = vcombine.high %v3845, %v3860
        %v3871 = vunpack.c.l.s4 1934713408
        %v3872 = vunpack.c.0.s8 %v3871
        %v3873 = vlaneseq
        %v3874 = vshrl.u32 %v3873, 7
        %v3875 = vsub.s32 %v3872, %v3874
        %v3876 = vrot.slane %v3868, %v3875
        %v3878 = vunpack.c.l.s4 1934713408
        %v3879 = vunpack.c.0.s8 %v3878
        %v3880 = vlaneseq
        %v3881 = vshrl.u32 %v3880, 7
        %v3882 = vsub.s32 %v3879, %v3881
        %v3883 = vrot.slane %v3869, %v3882
        %v3884 = vcombine.low %v3852, %v3867
        %v3885 = vcombine.high %v3852, %v3867
        %v3887 = vunpack.c.l.s4 1934713408
        %v3888 = vunpack.c.0.s8 %v3887
        %v3889 = vlaneseq
        %v3890 = vshrl.u32 %v3889, 7
        %v3891 = vsub.s32 %v3888, %v3890
        %v3892 = vrot.slane %v3884, %v3891
        %v3894 = vunpack.c.l.s4 1934713408
        %v3895 = vunpack.c.0.s8 %v3894
        %v3896 = vlaneseq
        %v3897 = vshrl.u32 %v3896, 7
        %v3898 = vsub.s32 %v3895, %v3897
        %v3899 = vrot.slane %v3885, %v3898
        %v3900 = vcombine.high %v3876, 0.0
        %v3901 = vcombine.high %v3883, 0.0
        %v3902 = vcombine.high %v3892, 0.0
        %v3903 = vcombine.high %v3899, 0.0
        %v3904 = vcombine.high %v1343, 0.0
        %v3906 = vunpack.c.l.s4 1983009808
        %v3907 = vunpack.c.0.s8 %v3906
        %v3908 = vlaneseq
        %v3909 = vshrl.u32 %v3908, 7
        %v3910 = vsub.s32 %v3907, %v3909
        %v3911 = vrot.slane %v1343, %v3910
        %v3913 = vunpack.c.l.s4 1983009808
        %v3914 = vunpack.c.0.s8 %v3913
        %v3915 = vlaneseq
        %v3916 = vshrl.u32 %v3915, 7
        %v3917 = vsub.s32 %v3914, %v3916
        %v3918 = vrot.slane %v3904, %v3917
        %v3919 = vcombine.high %v1345, 0.0
        %v3921 = vunpack.c.l.s4 1983009808
        %v3922 = vunpack.c.0.s8 %v3921
        %v3923 = vlaneseq
        %v3924 = vshrl.u32 %v3923, 7
        %v3925 = vsub.s32 %v3922, %v3924
        %v3926 = vrot.slane %v1345, %v3925
        %v3928 = vunpack.c.l.s4 1983009808
        %v3929 = vunpack.c.0.s8 %v3928
        %v3930 = vlaneseq
        %v3931 = vshrl.u32 %v3930, 7
        %v3932 = vsub.s32 %v3929, %v3931
        %v3933 = vrot.slane %v3919, %v3932
        %v3934 = vcombine.low %v3911, %v3926
        %v3935 = vcombine.high %v3911, %v3926
        %v3937 = vunpack.c.l.s4 1934713408
        %v3938 = vunpack.c.0.s8 %v3937
        %v3939 = vlaneseq
        %v3940 = vshrl.u32 %v3939, 7
        %v3941 = vsub.s32 %v3938, %v3940
        %v3942 = vrot.slane %v3934, %v3941
        %v3944 = vunpack.c.l.s4 1934713408
        %v3945 = vunpack.c.0.s8 %v3944
        %v3946 = vlaneseq
        %v3947 = vshrl.u32 %v3946, 7
        %v3948 = vsub.s32 %v3945, %v3947
        %v3949 = vrot.slane %v3935, %v3948
        %v3950 = vcombine.low %v3918, %v3933
        %v3951 = vcombine.high %v3918, %v3933
        %v3953 = vunpack.c.l.s4 1934713408
        %v3954 = vunpack.c.0.s8 %v3953
        %v3955 = vlaneseq
        %v3956 = vshrl.u32 %v3955, 7
        %v3957 = vsub.s32 %v3954, %v3956
        %v3958 = vrot.slane %v3950, %v3957
        %v3960 = vunpack.c.l.s4 1934713408
        %v3961 = vunpack.c.0.s8 %v3960
        %v3962 = vlaneseq
        %v3963 = vshrl.u32 %v3962, 7
        %v3964 = vsub.s32 %v3961, %v3963
        %v3965 = vrot.slane %v3951, %v3964
        %v3966 = vcombine.high %v3942, 0.0
        %v3967 = vcombine.high %v3949, 0.0
        %v3968 = vcombine.high %v3958, 0.0
        %v3969 = vcombine.high %v3965, 0.0
        %v3970 = vcombine.high %v1347, 0.0
        %v3972 = vunpack.c.l.s4 1983009808
        %v3973 = vunpack.c.0.s8 %v3972
        %v3974 = vlaneseq
        %v3975 = vshrl.u32 %v3974, 7
        %v3976 = vsub.s32 %v3973, %v3975
        %v3977 = vrot.slane %v1347, %v3976
        %v3979 = vunpack.c.l.s4 1983009808
        %v3980 = vunpack.c.0.s8 %v3979
        %v3981 = vlaneseq
        %v3982 = vshrl.u32 %v3981, 7
        %v3983 = vsub.s32 %v3980, %v3982
        %v3984 = vrot.slane %v3970, %v3983
        %v3985 = vcombine.high %v1349, 0.0
        %v3987 = vunpack.c.l.s4 1983009808
        %v3988 = vunpack.c.0.s8 %v3987
        %v3989 = vlaneseq
        %v3990 = vshrl.u32 %v3989, 7
        %v3991 = vsub.s32 %v3988, %v3990
        %v3992 = vrot.slane %v1349, %v3991
        %v3994 = vunpack.c.l.s4 1983009808
        %v3995 = vunpack.c.0.s8 %v3994
        %v3996 = vlaneseq
        %v3997 = vshrl.u32 %v3996, 7
        %v3998 = vsub.s32 %v3995, %v3997
        %v3999 = vrot.slane %v3985, %v3998
        %v4000 = vcombine.low %v3977, %v3992
        %v4001 = vcombine.high %v3977, %v3992
        %v4003 = vunpack.c.l.s4 1934713408
        %v4004 = vunpack.c.0.s8 %v4003
        %v4005 = vlaneseq
        %v4006 = vshrl.u32 %v4005, 7
        %v4007 = vsub.s32 %v4004, %v4006
        %v4008 = vrot.slane %v4000, %v4007
        %v4010 = vunpack.c.l.s4 1934713408
        %v4011 = vunpack.c.0.s8 %v4010
        %v4012 = vlaneseq
        %v4013 = vshrl.u32 %v4012, 7
        %v4014 = vsub.s32 %v4011, %v4013
        %v4015 = vrot.slane %v4001, %v4014
        %v4016 = vcombine.low %v3984, %v3999
        %v4017 = vcombine.high %v3984, %v3999
        %v4019 = vunpack.c.l.s4 1934713408
        %v4020 = vunpack.c.0.s8 %v4019
        %v4021 = vlaneseq
        %v4022 = vshrl.u32 %v4021, 7
        %v4023 = vsub.s32 %v4020, %v4022
        %v4024 = vrot.slane %v4016, %v4023
        %v4026 = vunpack.c.l.s4 1934713408
        %v4027 = vunpack.c.0.s8 %v4026
        %v4028 = vlaneseq
        %v4029 = vshrl.u32 %v4028, 7
        %v4030 = vsub.s32 %v4027, %v4029
        %v4031 = vrot.slane %v4017, %v4030
        %v4032 = vcombine.high %v4008, 0.0
        %v4033 = vcombine.high %v4015, 0.0
        %v4034 = vcombine.high %v4024, 0.0
        %v4035 = vcombine.high %v4031, 0.0
        %v4036 = vcombine.high %v1353, 0.0
        %v4038 = vunpack.c.l.s4 1983009808
        %v4039 = vunpack.c.0.s8 %v4038
        %v4040 = vlaneseq
        %v4041 = vshrl.u32 %v4040, 7
        %v4042 = vsub.s32 %v4039, %v4041
        %v4043 = vrot.slane %v1353, %v4042
        %v4045 = vunpack.c.l.s4 1983009808
        %v4046 = vunpack.c.0.s8 %v4045
        %v4047 = vlaneseq
        %v4048 = vshrl.u32 %v4047, 7
        %v4049 = vsub.s32 %v4046, %v4048
        %v4050 = vrot.slane %v4036, %v4049
        %v4051 = vcombine.high %v1355, 0.0
        %v4053 = vunpack.c.l.s4 1983009808
        %v4054 = vunpack.c.0.s8 %v4053
        %v4055 = vlaneseq
        %v4056 = vshrl.u32 %v4055, 7
        %v4057 = vsub.s32 %v4054, %v4056
        %v4058 = vrot.slane %v1355, %v4057
        %v4060 = vunpack.c.l.s4 1983009808
        %v4061 = vunpack.c.0.s8 %v4060
        %v4062 = vlaneseq
        %v4063 = vshrl.u32 %v4062, 7
        %v4064 = vsub.s32 %v4061, %v4063
        %v4065 = vrot.slane %v4051, %v4064
        %v4066 = vcombine.low %v4043, %v4058
        %v4067 = vcombine.high %v4043, %v4058
        %v4069 = vunpack.c.l.s4 1934713408
        %v4070 = vunpack.c.0.s8 %v4069
        %v4071 = vlaneseq
        %v4072 = vshrl.u32 %v4071, 7
        %v4073 = vsub.s32 %v4070, %v4072
        %v4074 = vrot.slane %v4066, %v4073
        %v4076 = vunpack.c.l.s4 1934713408
        %v4077 = vunpack.c.0.s8 %v4076
        %v4078 = vlaneseq
        %v4079 = vshrl.u32 %v4078, 7
        %v4080 = vsub.s32 %v4077, %v4079
        %v4081 = vrot.slane %v4067, %v4080
        %v4082 = vcombine.low %v4050, %v4065
        %v4083 = vcombine.high %v4050, %v4065
        %v4085 = vunpack.c.l.s4 1934713408
        %v4086 = vunpack.c.0.s8 %v4085
        %v4087 = vlaneseq
        %v4088 = vshrl.u32 %v4087, 7
        %v4089 = vsub.s32 %v4086, %v4088
        %v4090 = vrot.slane %v4082, %v4089
        %v4092 = vunpack.c.l.s4 1934713408
        %v4093 = vunpack.c.0.s8 %v4092
        %v4094 = vlaneseq
        %v4095 = vshrl.u32 %v4094, 7
        %v4096 = vsub.s32 %v4093, %v4095
        %v4097 = vrot.slane %v4083, %v4096
        %v4098 = vcombine.high %v4074, 0.0
        %v4099 = vcombine.high %v4081, 0.0
        %v4100 = vcombine.high %v4090, 0.0
        %v4101 = vcombine.high %v4097, 0.0
        %v4102 = vcombine.high %v1357, 0.0
        %v4104 = vunpack.c.l.s4 1983009808
        %v4105 = vunpack.c.0.s8 %v4104
        %v4106 = vlaneseq
        %v4107 = vshrl.u32 %v4106, 7
        %v4108 = vsub.s32 %v4105, %v4107
        %v4109 = vrot.slane %v1357, %v4108
        %v4111 = vunpack.c.l.s4 1983009808
        %v4112 = vunpack.c.0.s8 %v4111
        %v4113 = vlaneseq
        %v4114 = vshrl.u32 %v4113, 7
        %v4115 = vsub.s32 %v4112, %v4114
        %v4116 = vrot.slane %v4102, %v4115
        %v4117 = vcombine.high %v1359, 0.0
        %v4119 = vunpack.c.l.s4 1983009808
        %v4120 = vunpack.c.0.s8 %v4119
        %v4121 = vlaneseq
        %v4122 = vshrl.u32 %v4121, 7
        %v4123 = vsub.s32 %v4120, %v4122
        %v4124 = vrot.slane %v1359, %v4123
        %v4126 = vunpack.c.l.s4 1983009808
        %v4127 = vunpack.c.0.s8 %v4126
        %v4128 = vlaneseq
        %v4129 = vshrl.u32 %v4128, 7
        %v4130 = vsub.s32 %v4127, %v4129
        %v4131 = vrot.slane %v4117, %v4130
        %v4132 = vcombine.low %v4109, %v4124
        %v4133 = vcombine.high %v4109, %v4124
        %v4135 = vunpack.c.l.s4 1934713408
        %v4136 = vunpack.c.0.s8 %v4135
        %v4137 = vlaneseq
        %v4138 = vshrl.u32 %v4137, 7
        %v4139 = vsub.s32 %v4136, %v4138
        %v4140 = vrot.slane %v4132, %v4139
        %v4142 = vunpack.c.l.s4 1934713408
        %v4143 = vunpack.c.0.s8 %v4142
        %v4144 = vlaneseq
        %v4145 = vshrl.u32 %v4144, 7
        %v4146 = vsub.s32 %v4143, %v4145
        %v4147 = vrot.slane %v4133, %v4146
        %v4148 = vcombine.low %v4116, %v4131
        %v4149 = vcombine.high %v4116, %v4131
        %v4151 = vunpack.c.l.s4 1934713408
        %v4152 = vunpack.c.0.s8 %v4151
        %v4153 = vlaneseq
        %v4154 = vshrl.u32 %v4153, 7
        %v4155 = vsub.s32 %v4152, %v4154
        %v4156 = vrot.slane %v4148, %v4155
        %v4158 = vunpack.c.l.s4 1934713408
        %v4159 = vunpack.c.0.s8 %v4158
        %v4160 = vlaneseq
        %v4161 = vshrl.u32 %v4160, 7
        %v4162 = vsub.s32 %v4159, %v4161
        %v4163 = vrot.slane %v4149, %v4162
        %v4164 = vcombine.high %v4140, 0.0
        %v4165 = vcombine.high %v4147, 0.0
        %v4166 = vcombine.high %v4156, 0.0
        %v4167 = vcombine.high %v4163, 0.0
        %v4168 = vcombine.high %v1363, 0.0
        %v4170 = vunpack.c.l.s4 1983009808
        %v4171 = vunpack.c.0.s8 %v4170
        %v4172 = vlaneseq
        %v4173 = vshrl.u32 %v4172, 7
        %v4174 = vsub.s32 %v4171, %v4173
        %v4175 = vrot.slane %v1363, %v4174
        %v4177 = vunpack.c.l.s4 1983009808
        %v4178 = vunpack.c.0.s8 %v4177
        %v4179 = vlaneseq
        %v4180 = vshrl.u32 %v4179, 7
        %v4181 = vsub.s32 %v4178, %v4180
        %v4182 = vrot.slane %v4168, %v4181
        %v4183 = vcombine.high %v1365, 0.0
        %v4185 = vunpack.c.l.s4 1983009808
        %v4186 = vunpack.c.0.s8 %v4185
        %v4187 = vlaneseq
        %v4188 = vshrl.u32 %v4187, 7
        %v4189 = vsub.s32 %v4186, %v4188
        %v4190 = vrot.slane %v1365, %v4189
        %v4192 = vunpack.c.l.s4 1983009808
        %v4193 = vunpack.c.0.s8 %v4192
        %v4194 = vlaneseq
        %v4195 = vshrl.u32 %v4194, 7
        %v4196 = vsub.s32 %v4193, %v4195
        %v4197 = vrot.slane %v4183, %v4196
        %v4198 = vcombine.low %v4175, %v4190
        %v4199 = vcombine.high %v4175, %v4190
        %v4201 = vunpack.c.l.s4 1934713408
        %v4202 = vunpack.c.0.s8 %v4201
        %v4203 = vlaneseq
        %v4204 = vshrl.u32 %v4203, 7
        %v4205 = vsub.s32 %v4202, %v4204
        %v4206 = vrot.slane %v4198, %v4205
        %v4208 = vunpack.c.l.s4 1934713408
        %v4209 = vunpack.c.0.s8 %v4208
        %v4210 = vlaneseq
        %v4211 = vshrl.u32 %v4210, 7
        %v4212 = vsub.s32 %v4209, %v4211
        %v4213 = vrot.slane %v4199, %v4212
        %v4214 = vcombine.low %v4182, %v4197
        %v4215 = vcombine.high %v4182, %v4197
        %v4217 = vunpack.c.l.s4 1934713408
        %v4218 = vunpack.c.0.s8 %v4217
        %v4219 = vlaneseq
        %v4220 = vshrl.u32 %v4219, 7
        %v4221 = vsub.s32 %v4218, %v4220
        %v4222 = vrot.slane %v4214, %v4221
        %v4224 = vunpack.c.l.s4 1934713408
        %v4225 = vunpack.c.0.s8 %v4224
        %v4226 = vlaneseq
        %v4227 = vshrl.u32 %v4226, 7
        %v4228 = vsub.s32 %v4225, %v4227
        %v4229 = vrot.slane %v4215, %v4228
        %v4230 = vcombine.high %v4206, 0.0
        %v4231 = vcombine.high %v4213, 0.0
        %v4232 = vcombine.high %v4222, 0.0
        %v4233 = vcombine.high %v4229, 0.0
        %v4234 = vcombine.high %v1367, 0.0
        %v4236 = vunpack.c.l.s4 1983009808
        %v4237 = vunpack.c.0.s8 %v4236
        %v4238 = vlaneseq
        %v4239 = vshrl.u32 %v4238, 7
        %v4240 = vsub.s32 %v4237, %v4239
        %v4241 = vrot.slane %v1367, %v4240
        %v4243 = vunpack.c.l.s4 1983009808
        %v4244 = vunpack.c.0.s8 %v4243
        %v4245 = vlaneseq
        %v4246 = vshrl.u32 %v4245, 7
        %v4247 = vsub.s32 %v4244, %v4246
        %v4248 = vrot.slane %v4234, %v4247
        %v4249 = vcombine.high %v1369, 0.0
        %v4251 = vunpack.c.l.s4 1983009808
        %v4252 = vunpack.c.0.s8 %v4251
        %v4253 = vlaneseq
        %v4254 = vshrl.u32 %v4253, 7
        %v4255 = vsub.s32 %v4252, %v4254
        %v4256 = vrot.slane %v1369, %v4255
        %v4258 = vunpack.c.l.s4 1983009808
        %v4259 = vunpack.c.0.s8 %v4258
        %v4260 = vlaneseq
        %v4261 = vshrl.u32 %v4260, 7
        %v4262 = vsub.s32 %v4259, %v4261
        %v4263 = vrot.slane %v4249, %v4262
        %v4264 = vcombine.low %v4241, %v4256
        %v4265 = vcombine.high %v4241, %v4256
        %v4267 = vunpack.c.l.s4 1934713408
        %v4268 = vunpack.c.0.s8 %v4267
        %v4269 = vlaneseq
        %v4270 = vshrl.u32 %v4269, 7
        %v4271 = vsub.s32 %v4268, %v4270
        %v4272 = vrot.slane %v4264, %v4271
        %v4274 = vunpack.c.l.s4 1934713408
        %v4275 = vunpack.c.0.s8 %v4274
        %v4276 = vlaneseq
        %v4277 = vshrl.u32 %v4276, 7
        %v4278 = vsub.s32 %v4275, %v4277
        %v4279 = vrot.slane %v4265, %v4278
        %v4280 = vcombine.low %v4248, %v4263
        %v4281 = vcombine.high %v4248, %v4263
        %v4283 = vunpack.c.l.s4 1934713408
        %v4284 = vunpack.c.0.s8 %v4283
        %v4285 = vlaneseq
        %v4286 = vshrl.u32 %v4285, 7
        %v4287 = vsub.s32 %v4284, %v4286
        %v4288 = vrot.slane %v4280, %v4287
        %v4290 = vunpack.c.l.s4 1934713408
        %v4291 = vunpack.c.0.s8 %v4290
        %v4292 = vlaneseq
        %v4293 = vshrl.u32 %v4292, 7
        %v4294 = vsub.s32 %v4291, %v4293
        %v4295 = vrot.slane %v4281, %v4294
        %v4296 = vcombine.high %v4272, 0.0
        %v4297 = vcombine.high %v4279, 0.0
        %v4298 = vcombine.high %v4288, 0.0
        %v4299 = vcombine.high %v4295, 0.0
        %v4300 = vcombine.high %v1373, 0.0
        %v4302 = vunpack.c.l.s4 1983009808
        %v4303 = vunpack.c.0.s8 %v4302
        %v4304 = vlaneseq
        %v4305 = vshrl.u32 %v4304, 7
        %v4306 = vsub.s32 %v4303, %v4305
        %v4307 = vrot.slane %v1373, %v4306
        %v4309 = vunpack.c.l.s4 1983009808
        %v4310 = vunpack.c.0.s8 %v4309
        %v4311 = vlaneseq
        %v4312 = vshrl.u32 %v4311, 7
        %v4313 = vsub.s32 %v4310, %v4312
        %v4314 = vrot.slane %v4300, %v4313
        %v4315 = vcombine.high %v1375, 0.0
        %v4317 = vunpack.c.l.s4 1983009808
        %v4318 = vunpack.c.0.s8 %v4317
        %v4319 = vlaneseq
        %v4320 = vshrl.u32 %v4319, 7
        %v4321 = vsub.s32 %v4318, %v4320
        %v4322 = vrot.slane %v1375, %v4321
        %v4324 = vunpack.c.l.s4 1983009808
        %v4325 = vunpack.c.0.s8 %v4324
        %v4326 = vlaneseq
        %v4327 = vshrl.u32 %v4326, 7
        %v4328 = vsub.s32 %v4325, %v4327
        %v4329 = vrot.slane %v4315, %v4328
        %v4330 = vcombine.low %v4307, %v4322
        %v4331 = vcombine.high %v4307, %v4322
        %v4333 = vunpack.c.l.s4 1934713408
        %v4334 = vunpack.c.0.s8 %v4333
        %v4335 = vlaneseq
        %v4336 = vshrl.u32 %v4335, 7
        %v4337 = vsub.s32 %v4334, %v4336
        %v4338 = vrot.slane %v4330, %v4337
        %v4340 = vunpack.c.l.s4 1934713408
        %v4341 = vunpack.c.0.s8 %v4340
        %v4342 = vlaneseq
        %v4343 = vshrl.u32 %v4342, 7
        %v4344 = vsub.s32 %v4341, %v4343
        %v4345 = vrot.slane %v4331, %v4344
        %v4346 = vcombine.low %v4314, %v4329
        %v4347 = vcombine.high %v4314, %v4329
        %v4349 = vunpack.c.l.s4 1934713408
        %v4350 = vunpack.c.0.s8 %v4349
        %v4351 = vlaneseq
        %v4352 = vshrl.u32 %v4351, 7
        %v4353 = vsub.s32 %v4350, %v4352
        %v4354 = vrot.slane %v4346, %v4353
        %v4356 = vunpack.c.l.s4 1934713408
        %v4357 = vunpack.c.0.s8 %v4356
        %v4358 = vlaneseq
        %v4359 = vshrl.u32 %v4358, 7
        %v4360 = vsub.s32 %v4357, %v4359
        %v4361 = vrot.slane %v4347, %v4360
        %v4362 = vcombine.high %v4338, 0.0
        %v4363 = vcombine.high %v4345, 0.0
        %v4364 = vcombine.high %v4354, 0.0
        %v4365 = vcombine.high %v4361, 0.0
        %v4366 = vcombine.high %v1377, 0.0
        %v4368 = vunpack.c.l.s4 1983009808
        %v4369 = vunpack.c.0.s8 %v4368
        %v4370 = vlaneseq
        %v4371 = vshrl.u32 %v4370, 7
        %v4372 = vsub.s32 %v4369, %v4371
        %v4373 = vrot.slane %v1377, %v4372
        %v4375 = vunpack.c.l.s4 1983009808
        %v4376 = vunpack.c.0.s8 %v4375
        %v4377 = vlaneseq
        %v4378 = vshrl.u32 %v4377, 7
        %v4379 = vsub.s32 %v4376, %v4378
        %v4380 = vrot.slane %v4366, %v4379
        %v4381 = vcombine.high %v1379, 0.0
        %v4383 = vunpack.c.l.s4 1983009808
        %v4384 = vunpack.c.0.s8 %v4383
        %v4385 = vlaneseq
        %v4386 = vshrl.u32 %v4385, 7
        %v4387 = vsub.s32 %v4384, %v4386
        %v4388 = vrot.slane %v1379, %v4387
        %v4390 = vunpack.c.l.s4 1983009808
        %v4391 = vunpack.c.0.s8 %v4390
        %v4392 = vlaneseq
        %v4393 = vshrl.u32 %v4392, 7
        %v4394 = vsub.s32 %v4391, %v4393
        %v4395 = vrot.slane %v4381, %v4394
        %v4396 = vcombine.low %v4373, %v4388
        %v4397 = vcombine.high %v4373, %v4388
        %v4399 = vunpack.c.l.s4 1934713408
        %v4400 = vunpack.c.0.s8 %v4399
        %v4401 = vlaneseq
        %v4402 = vshrl.u32 %v4401, 7
        %v4403 = vsub.s32 %v4400, %v4402
        %v4404 = vrot.slane %v4396, %v4403
        %v4406 = vunpack.c.l.s4 1934713408
        %v4407 = vunpack.c.0.s8 %v4406
        %v4408 = vlaneseq
        %v4409 = vshrl.u32 %v4408, 7
        %v4410 = vsub.s32 %v4407, %v4409
        %v4411 = vrot.slane %v4397, %v4410
        %v4412 = vcombine.low %v4380, %v4395
        %v4413 = vcombine.high %v4380, %v4395
        %v4415 = vunpack.c.l.s4 1934713408
        %v4416 = vunpack.c.0.s8 %v4415
        %v4417 = vlaneseq
        %v4418 = vshrl.u32 %v4417, 7
        %v4419 = vsub.s32 %v4416, %v4418
        %v4420 = vrot.slane %v4412, %v4419
        %v4422 = vunpack.c.l.s4 1934713408
        %v4423 = vunpack.c.0.s8 %v4422
        %v4424 = vlaneseq
        %v4425 = vshrl.u32 %v4424, 7
        %v4426 = vsub.s32 %v4423, %v4425
        %v4427 = vrot.slane %v4413, %v4426
        %v4428 = vcombine.high %v4404, 0.0
        %v4429 = vcombine.high %v4411, 0.0
        %v4430 = vcombine.high %v4420, 0.0
        %v4431 = vcombine.high %v4427, 0.0
        %v4432 = vcombine.high %v1383, 0.0
        %v4434 = vunpack.c.l.s4 1983009808
        %v4435 = vunpack.c.0.s8 %v4434
        %v4436 = vlaneseq
        %v4437 = vshrl.u32 %v4436, 7
        %v4438 = vsub.s32 %v4435, %v4437
        %v4439 = vrot.slane %v1383, %v4438
        %v4441 = vunpack.c.l.s4 1983009808
        %v4442 = vunpack.c.0.s8 %v4441
        %v4443 = vlaneseq
        %v4444 = vshrl.u32 %v4443, 7
        %v4445 = vsub.s32 %v4442, %v4444
        %v4446 = vrot.slane %v4432, %v4445
        %v4447 = vcombine.high %v1385, 0.0
        %v4449 = vunpack.c.l.s4 1983009808
        %v4450 = vunpack.c.0.s8 %v4449
        %v4451 = vlaneseq
        %v4452 = vshrl.u32 %v4451, 7
        %v4453 = vsub.s32 %v4450, %v4452
        %v4454 = vrot.slane %v1385, %v4453
        %v4456 = vunpack.c.l.s4 1983009808
        %v4457 = vunpack.c.0.s8 %v4456
        %v4458 = vlaneseq
        %v4459 = vshrl.u32 %v4458, 7
        %v4460 = vsub.s32 %v4457, %v4459
        %v4461 = vrot.slane %v4447, %v4460
        %v4462 = vcombine.low %v4439, %v4454
        %v4463 = vcombine.high %v4439, %v4454
        %v4465 = vunpack.c.l.s4 1934713408
        %v4466 = vunpack.c.0.s8 %v4465
        %v4467 = vlaneseq
        %v4468 = vshrl.u32 %v4467, 7
        %v4469 = vsub.s32 %v4466, %v4468
        %v4470 = vrot.slane %v4462, %v4469
        %v4472 = vunpack.c.l.s4 1934713408
        %v4473 = vunpack.c.0.s8 %v4472
        %v4474 = vlaneseq
        %v4475 = vshrl.u32 %v4474, 7
        %v4476 = vsub.s32 %v4473, %v4475
        %v4477 = vrot.slane %v4463, %v4476
        %v4478 = vcombine.low %v4446, %v4461
        %v4479 = vcombine.high %v4446, %v4461
        %v4481 = vunpack.c.l.s4 1934713408
        %v4482 = vunpack.c.0.s8 %v4481
        %v4483 = vlaneseq
        %v4484 = vshrl.u32 %v4483, 7
        %v4485 = vsub.s32 %v4482, %v4484
        %v4486 = vrot.slane %v4478, %v4485
        %v4488 = vunpack.c.l.s4 1934713408
        %v4489 = vunpack.c.0.s8 %v4488
        %v4490 = vlaneseq
        %v4491 = vshrl.u32 %v4490, 7
        %v4492 = vsub.s32 %v4489, %v4491
        %v4493 = vrot.slane %v4479, %v4492
        %v4494 = vcombine.high %v4470, 0.0
        %v4495 = vcombine.high %v4477, 0.0
        %v4496 = vcombine.high %v4486, 0.0
        %v4497 = vcombine.high %v4493, 0.0
        %v4498 = vcombine.high %v1387, 0.0
        %v4500 = vunpack.c.l.s4 1983009808
        %v4501 = vunpack.c.0.s8 %v4500
        %v4502 = vlaneseq
        %v4503 = vshrl.u32 %v4502, 7
        %v4504 = vsub.s32 %v4501, %v4503
        %v4505 = vrot.slane %v1387, %v4504
        %v4507 = vunpack.c.l.s4 1983009808
        %v4508 = vunpack.c.0.s8 %v4507
        %v4509 = vlaneseq
        %v4510 = vshrl.u32 %v4509, 7
        %v4511 = vsub.s32 %v4508, %v4510
        %v4512 = vrot.slane %v4498, %v4511
        %v4513 = vcombine.high %v1389, 0.0
        %v4515 = vunpack.c.l.s4 1983009808
        %v4516 = vunpack.c.0.s8 %v4515
        %v4517 = vlaneseq
        %v4518 = vshrl.u32 %v4517, 7
        %v4519 = vsub.s32 %v4516, %v4518
        %v4520 = vrot.slane %v1389, %v4519
        %v4522 = vunpack.c.l.s4 1983009808
        %v4523 = vunpack.c.0.s8 %v4522
        %v4524 = vlaneseq
        %v4525 = vshrl.u32 %v4524, 7
        %v4526 = vsub.s32 %v4523, %v4525
        %v4527 = vrot.slane %v4513, %v4526
        %v4528 = vcombine.low %v4505, %v4520
        %v4529 = vcombine.high %v4505, %v4520
        %v4531 = vunpack.c.l.s4 1934713408
        %v4532 = vunpack.c.0.s8 %v4531
        %v4533 = vlaneseq
        %v4534 = vshrl.u32 %v4533, 7
        %v4535 = vsub.s32 %v4532, %v4534
        %v4536 = vrot.slane %v4528, %v4535
        %v4538 = vunpack.c.l.s4 1934713408
        %v4539 = vunpack.c.0.s8 %v4538
        %v4540 = vlaneseq
        %v4541 = vshrl.u32 %v4540, 7
        %v4542 = vsub.s32 %v4539, %v4541
        %v4543 = vrot.slane %v4529, %v4542
        %v4544 = vcombine.low %v4512, %v4527
        %v4545 = vcombine.high %v4512, %v4527
        %v4547 = vunpack.c.l.s4 1934713408
        %v4548 = vunpack.c.0.s8 %v4547
        %v4549 = vlaneseq
        %v4550 = vshrl.u32 %v4549, 7
        %v4551 = vsub.s32 %v4548, %v4550
        %v4552 = vrot.slane %v4544, %v4551
        %v4554 = vunpack.c.l.s4 1934713408
        %v4555 = vunpack.c.0.s8 %v4554
        %v4556 = vlaneseq
        %v4557 = vshrl.u32 %v4556, 7
        %v4558 = vsub.s32 %v4555, %v4557
        %v4559 = vrot.slane %v4545, %v4558
        %v4560 = vcombine.high %v4536, 0.0
        %v4561 = vcombine.high %v4543, 0.0
        %v4562 = vcombine.high %v4552, 0.0
        %v4563 = vcombine.high %v4559, 0.0
        %v4564 = vcombine.high %v1393, 0.0
        %v4566 = vunpack.c.l.s4 1983009808
        %v4567 = vunpack.c.0.s8 %v4566
        %v4568 = vlaneseq
        %v4569 = vshrl.u32 %v4568, 7
        %v4570 = vsub.s32 %v4567, %v4569
        %v4571 = vrot.slane %v1393, %v4570
        %v4573 = vunpack.c.l.s4 1983009808
        %v4574 = vunpack.c.0.s8 %v4573
        %v4575 = vlaneseq
        %v4576 = vshrl.u32 %v4575, 7
        %v4577 = vsub.s32 %v4574, %v4576
        %v4578 = vrot.slane %v4564, %v4577
        %v4579 = vcombine.high %v1395, 0.0
        %v4581 = vunpack.c.l.s4 1983009808
        %v4582 = vunpack.c.0.s8 %v4581
        %v4583 = vlaneseq
        %v4584 = vshrl.u32 %v4583, 7
        %v4585 = vsub.s32 %v4582, %v4584
        %v4586 = vrot.slane %v1395, %v4585
        %v4588 = vunpack.c.l.s4 1983009808
        %v4589 = vunpack.c.0.s8 %v4588
        %v4590 = vlaneseq
        %v4591 = vshrl.u32 %v4590, 7
        %v4592 = vsub.s32 %v4589, %v4591
        %v4593 = vrot.slane %v4579, %v4592
        %v4594 = vcombine.low %v4571, %v4586
        %v4595 = vcombine.high %v4571, %v4586
        %v4597 = vunpack.c.l.s4 1934713408
        %v4598 = vunpack.c.0.s8 %v4597
        %v4599 = vlaneseq
        %v4600 = vshrl.u32 %v4599, 7
        %v4601 = vsub.s32 %v4598, %v4600
        %v4602 = vrot.slane %v4594, %v4601
        %v4604 = vunpack.c.l.s4 1934713408
        %v4605 = vunpack.c.0.s8 %v4604
        %v4606 = vlaneseq
        %v4607 = vshrl.u32 %v4606, 7
        %v4608 = vsub.s32 %v4605, %v4607
        %v4609 = vrot.slane %v4595, %v4608
        %v4610 = vcombine.low %v4578, %v4593
        %v4611 = vcombine.high %v4578, %v4593
        %v4613 = vunpack.c.l.s4 1934713408
        %v4614 = vunpack.c.0.s8 %v4613
        %v4615 = vlaneseq
        %v4616 = vshrl.u32 %v4615, 7
        %v4617 = vsub.s32 %v4614, %v4616
        %v4618 = vrot.slane %v4610, %v4617
        %v4620 = vunpack.c.l.s4 1934713408
        %v4621 = vunpack.c.0.s8 %v4620
        %v4622 = vlaneseq
        %v4623 = vshrl.u32 %v4622, 7
        %v4624 = vsub.s32 %v4621, %v4623
        %v4625 = vrot.slane %v4611, %v4624
        %v4626 = vcombine.high %v4602, 0.0
        %v4627 = vcombine.high %v4609, 0.0
        %v4628 = vcombine.high %v4618, 0.0
        %v4629 = vcombine.high %v4625, 0.0
        %v4630 = vcombine.high %v1397, 0.0
        %v4632 = vunpack.c.l.s4 1983009808
        %v4633 = vunpack.c.0.s8 %v4632
        %v4634 = vlaneseq
        %v4635 = vshrl.u32 %v4634, 7
        %v4636 = vsub.s32 %v4633, %v4635
        %v4637 = vrot.slane %v1397, %v4636
        %v4639 = vunpack.c.l.s4 1983009808
        %v4640 = vunpack.c.0.s8 %v4639
        %v4641 = vlaneseq
        %v4642 = vshrl.u32 %v4641, 7
        %v4643 = vsub.s32 %v4640, %v4642
        %v4644 = vrot.slane %v4630, %v4643
        %v4645 = vcombine.high %v1399, 0.0
        %v4647 = vunpack.c.l.s4 1983009808
        %v4648 = vunpack.c.0.s8 %v4647
        %v4649 = vlaneseq
        %v4650 = vshrl.u32 %v4649, 7
        %v4651 = vsub.s32 %v4648, %v4650
        %v4652 = vrot.slane %v1399, %v4651
        %v4654 = vunpack.c.l.s4 1983009808
        %v4655 = vunpack.c.0.s8 %v4654
        %v4656 = vlaneseq
        %v4657 = vshrl.u32 %v4656, 7
        %v4658 = vsub.s32 %v4655, %v4657
        %v4659 = vrot.slane %v4645, %v4658
        %v4660 = vcombine.low %v4637, %v4652
        %v4661 = vcombine.high %v4637, %v4652
        %v4663 = vunpack.c.l.s4 1934713408
        %v4664 = vunpack.c.0.s8 %v4663
        %v4665 = vlaneseq
        %v4666 = vshrl.u32 %v4665, 7
        %v4667 = vsub.s32 %v4664, %v4666
        %v4668 = vrot.slane %v4660, %v4667
        %v4670 = vunpack.c.l.s4 1934713408
        %v4671 = vunpack.c.0.s8 %v4670
        %v4672 = vlaneseq
        %v4673 = vshrl.u32 %v4672, 7
        %v4674 = vsub.s32 %v4671, %v4673
        %v4675 = vrot.slane %v4661, %v4674
        %v4676 = vcombine.low %v4644, %v4659
        %v4677 = vcombine.high %v4644, %v4659
        %v4679 = vunpack.c.l.s4 1934713408
        %v4680 = vunpack.c.0.s8 %v4679
        %v4681 = vlaneseq
        %v4682 = vshrl.u32 %v4681, 7
        %v4683 = vsub.s32 %v4680, %v4682
        %v4684 = vrot.slane %v4676, %v4683
        %v4686 = vunpack.c.l.s4 1934713408
        %v4687 = vunpack.c.0.s8 %v4686
        %v4688 = vlaneseq
        %v4689 = vshrl.u32 %v4688, 7
        %v4690 = vsub.s32 %v4687, %v4689
        %v4691 = vrot.slane %v4677, %v4690
        %v4692 = vcombine.high %v4668, 0.0
        %v4693 = vcombine.high %v4675, 0.0
        %v4694 = vcombine.high %v4684, 0.0
        %v4695 = vcombine.high %v4691, 0.0
        %v4696 = vcombine.high %v1403, 0.0
        %v4698 = vunpack.c.l.s4 1983009808
        %v4699 = vunpack.c.0.s8 %v4698
        %v4700 = vlaneseq
        %v4701 = vshrl.u32 %v4700, 7
        %v4702 = vsub.s32 %v4699, %v4701
        %v4703 = vrot.slane %v1403, %v4702
        %v4705 = vunpack.c.l.s4 1983009808
        %v4706 = vunpack.c.0.s8 %v4705
        %v4707 = vlaneseq
        %v4708 = vshrl.u32 %v4707, 7
        %v4709 = vsub.s32 %v4706, %v4708
        %v4710 = vrot.slane %v4696, %v4709
        %v4711 = vcombine.high %v1405, 0.0
        %v4713 = vunpack.c.l.s4 1983009808
        %v4714 = vunpack.c.0.s8 %v4713
        %v4715 = vlaneseq
        %v4716 = vshrl.u32 %v4715, 7
        %v4717 = vsub.s32 %v4714, %v4716
        %v4718 = vrot.slane %v1405, %v4717
        %v4720 = vunpack.c.l.s4 1983009808
        %v4721 = vunpack.c.0.s8 %v4720
        %v4722 = vlaneseq
        %v4723 = vshrl.u32 %v4722, 7
        %v4724 = vsub.s32 %v4721, %v4723
        %v4725 = vrot.slane %v4711, %v4724
        %v4726 = vcombine.low %v4703, %v4718
        %v4727 = vcombine.high %v4703, %v4718
        %v4729 = vunpack.c.l.s4 1934713408
        %v4730 = vunpack.c.0.s8 %v4729
        %v4731 = vlaneseq
        %v4732 = vshrl.u32 %v4731, 7
        %v4733 = vsub.s32 %v4730, %v4732
        %v4734 = vrot.slane %v4726, %v4733
        %v4736 = vunpack.c.l.s4 1934713408
        %v4737 = vunpack.c.0.s8 %v4736
        %v4738 = vlaneseq
        %v4739 = vshrl.u32 %v4738, 7
        %v4740 = vsub.s32 %v4737, %v4739
        %v4741 = vrot.slane %v4727, %v4740
        %v4742 = vcombine.low %v4710, %v4725
        %v4743 = vcombine.high %v4710, %v4725
        %v4745 = vunpack.c.l.s4 1934713408
        %v4746 = vunpack.c.0.s8 %v4745
        %v4747 = vlaneseq
        %v4748 = vshrl.u32 %v4747, 7
        %v4749 = vsub.s32 %v4746, %v4748
        %v4750 = vrot.slane %v4742, %v4749
        %v4752 = vunpack.c.l.s4 1934713408
        %v4753 = vunpack.c.0.s8 %v4752
        %v4754 = vlaneseq
        %v4755 = vshrl.u32 %v4754, 7
        %v4756 = vsub.s32 %v4753, %v4755
        %v4757 = vrot.slane %v4743, %v4756
        %v4758 = vcombine.high %v4734, 0.0
        %v4759 = vcombine.high %v4741, 0.0
        %v4760 = vcombine.high %v4750, 0.0
        %v4761 = vcombine.high %v4757, 0.0
        %v4762 = vcombine.high %v1407, 0.0
        %v4764 = vunpack.c.l.s4 1983009808
        %v4765 = vunpack.c.0.s8 %v4764
        %v4766 = vlaneseq
        %v4767 = vshrl.u32 %v4766, 7
        %v4768 = vsub.s32 %v4765, %v4767
        %v4769 = vrot.slane %v1407, %v4768
        %v4771 = vunpack.c.l.s4 1983009808
        %v4772 = vunpack.c.0.s8 %v4771
        %v4773 = vlaneseq
        %v4774 = vshrl.u32 %v4773, 7
        %v4775 = vsub.s32 %v4772, %v4774
        %v4776 = vrot.slane %v4762, %v4775
        %v4777 = vcombine.high %v1409, 0.0
        %v4779 = vunpack.c.l.s4 1983009808
        %v4780 = vunpack.c.0.s8 %v4779
        %v4781 = vlaneseq
        %v4782 = vshrl.u32 %v4781, 7
        %v4783 = vsub.s32 %v4780, %v4782
        %v4784 = vrot.slane %v1409, %v4783
        %v4786 = vunpack.c.l.s4 1983009808
        %v4787 = vunpack.c.0.s8 %v4786
        %v4788 = vlaneseq
        %v4789 = vshrl.u32 %v4788, 7
        %v4790 = vsub.s32 %v4787, %v4789
        %v4791 = vrot.slane %v4777, %v4790
        %v4792 = vcombine.low %v4769, %v4784
        %v4793 = vcombine.high %v4769, %v4784
        %v4795 = vunpack.c.l.s4 1934713408
        %v4796 = vunpack.c.0.s8 %v4795
        %v4797 = vlaneseq
        %v4798 = vshrl.u32 %v4797, 7
        %v4799 = vsub.s32 %v4796, %v4798
        %v4800 = vrot.slane %v4792, %v4799
        %v4802 = vunpack.c.l.s4 1934713408
        %v4803 = vunpack.c.0.s8 %v4802
        %v4804 = vlaneseq
        %v4805 = vshrl.u32 %v4804, 7
        %v4806 = vsub.s32 %v4803, %v4805
        %v4807 = vrot.slane %v4793, %v4806
        %v4808 = vcombine.low %v4776, %v4791
        %v4809 = vcombine.high %v4776, %v4791
        %v4811 = vunpack.c.l.s4 1934713408
        %v4812 = vunpack.c.0.s8 %v4811
        %v4813 = vlaneseq
        %v4814 = vshrl.u32 %v4813, 7
        %v4815 = vsub.s32 %v4812, %v4814
        %v4816 = vrot.slane %v4808, %v4815
        %v4818 = vunpack.c.l.s4 1934713408
        %v4819 = vunpack.c.0.s8 %v4818
        %v4820 = vlaneseq
        %v4821 = vshrl.u32 %v4820, 7
        %v4822 = vsub.s32 %v4819, %v4821
        %v4823 = vrot.slane %v4809, %v4822
        %v4824 = vcombine.high %v4800, 0.0
        %v4825 = vcombine.high %v4807, 0.0
        %v4826 = vcombine.high %v4816, 0.0
        %v4827 = vcombine.high %v4823, 0.0
        %v4828 = vcombine.low %v3810, %v3817
        %v4830 = vunpack.c.l.s4 1983009808
        %v4831 = vunpack.c.0.s8 %v4830
        %v4832 = vlaneseq
        %v4833 = vshrl.u32 %v4832, 7
        %v4834 = vsub.s32 %v4831, %v4833
        %v4835 = vrot.slane %v4828, %v4834
        %v4836 = vcombine.low %v3834, %v3835
        %v4838 = vunpack.c.l.s4 1983009808
        %v4839 = vunpack.c.0.s8 %v4838
        %v4840 = vlaneseq
        %v4841 = vshrl.u32 %v4840, 7
        %v4842 = vsub.s32 %v4839, %v4841
        %v4843 = vrot.slane %v4836, %v4842
        %v4844 = vcombine.low %v3826, %v3833
        %v4846 = vunpack.c.l.s4 1983009808
        %v4847 = vunpack.c.0.s8 %v4846
        %v4848 = vlaneseq
        %v4849 = vshrl.u32 %v4848, 7
        %v4850 = vsub.s32 %v4847, %v4849
        %v4851 = vrot.slane %v4844, %v4850
        %v4852 = vcombine.low %v3836, %v3837
        %v4854 = vunpack.c.l.s4 1983009808
        %v4855 = vunpack.c.0.s8 %v4854
        %v4856 = vlaneseq
        %v4857 = vshrl.u32 %v4856, 7
        %v4858 = vsub.s32 %v4855, %v4857
        %v4859 = vrot.slane %v4852, %v4858
        %v4860 = vcombine.low %v4835, %v4843
        %v4862 = vunpack.c.l.s4 1934713408
        %v4863 = vunpack.c.0.s8 %v4862
        %v4864 = vlaneseq
        %v4865 = vshrl.u32 %v4864, 7
        %v4866 = vsub.s32 %v4863, %v4865
        %v4867 = vrot.slane %v4860, %v4866
        %v4868 = vcombine.low %v4851, %v4859
        %v4870 = vunpack.c.l.s4 1934713408
        %v4871 = vunpack.c.0.s8 %v4870
        %v4872 = vlaneseq
        %v4873 = vshrl.u32 %v4872, 7
        %v4874 = vsub.s32 %v4871, %v4873
        %v4875 = vrot.slane %v4868, %v4874
        %v4876 = vcombine.low %v4867, %v4875
        %v4877 = vcombine.high %v4867, %v4875
        %v4878 = vcombine.low %v3876, %v3883
        %v4880 = vunpack.c.l.s4 1983009808
        %v4881 = vunpack.c.0.s8 %v4880
        %v4882 = vlaneseq
        %v4883 = vshrl.u32 %v4882, 7
        %v4884 = vsub.s32 %v4881, %v4883
        %v4885 = vrot.slane %v4878, %v4884
        %v4886 = vcombine.low %v3900, %v3901
        %v4888 = vunpack.c.l.s4 1983009808
        %v4889 = vunpack.c.0.s8 %v4888
        %v4890 = vlaneseq
        %v4891 = vshrl.u32 %v4890, 7
        %v4892 = vsub.s32 %v4889, %v4891
        %v4893 = vrot.slane %v4886, %v4892
        %v4894 = vcombine.low %v3892, %v3899
        %v4896 = vunpack.c.l.s4 1983009808
        %v4897 = vunpack.c.0.s8 %v4896
        %v4898 = vlaneseq
        %v4899 = vshrl.u32 %v4898, 7
        %v4900 = vsub.s32 %v4897, %v4899
        %v4901 = vrot.slane %v4894, %v4900
        %v4902 = vcombine.low %v3902, %v3903
        %v4904 = vunpack.c.l.s4 1983009808
        %v4905 = vunpack.c.0.s8 %v4904
        %v4906 = vlaneseq
        %v4907 = vshrl.u32 %v4906, 7
        %v4908 = vsub.s32 %v4905, %v4907
        %v4909 = vrot.slane %v4902, %v4908
        %v4910 = vcombine.low %v4885, %v4893
        %v4912 = vunpack.c.l.s4 1934713408
        %v4913 = vunpack.c.0.s8 %v4912
        %v4914 = vlaneseq
        %v4915 = vshrl.u32 %v4914, 7
        %v4916 = vsub.s32 %v4913, %v4915
        %v4917 = vrot.slane %v4910, %v4916
        %v4918 = vcombine.low %v4901, %v4909
        %v4920 = vunpack.c.l.s4 1934713408
        %v4921 = vunpack.c.0.s8 %v4920
        %v4922 = vlaneseq
        %v4923 = vshrl.u32 %v4922, 7
        %v4924 = vsub.s32 %v4921, %v4923
        %v4925 = vrot.slane %v4918, %v4924
        %v4926 = vcombine.low %v4917, %v4925
        %v4927 = vcombine.high %v4917, %v4925
        %v4928 = vcombine.low %v3942, %v3949
        %v4930 = vunpack.c.l.s4 1983009808
        %v4931 = vunpack.c.0.s8 %v4930
        %v4932 = vlaneseq
        %v4933 = vshrl.u32 %v4932, 7
        %v4934 = vsub.s32 %v4931, %v4933
        %v4935 = vrot.slane %v4928, %v4934
        %v4936 = vcombine.low %v3966, %v3967
        %v4938 = vunpack.c.l.s4 1983009808
        %v4939 = vunpack.c.0.s8 %v4938
        %v4940 = vlaneseq
        %v4941 = vshrl.u32 %v4940, 7
        %v4942 = vsub.s32 %v4939, %v4941
        %v4943 = vrot.slane %v4936, %v4942
        %v4944 = vcombine.low %v3958, %v3965
        %v4946 = vunpack.c.l.s4 1983009808
        %v4947 = vunpack.c.0.s8 %v4946
        %v4948 = vlaneseq
        %v4949 = vshrl.u32 %v4948, 7
        %v4950 = vsub.s32 %v4947, %v4949
        %v4951 = vrot.slane %v4944, %v4950
        %v4952 = vcombine.low %v3968, %v3969
        %v4954 = vunpack.c.l.s4 1983009808
        %v4955 = vunpack.c.0.s8 %v4954
        %v4956 = vlaneseq
        %v4957 = vshrl.u32 %v4956, 7
        %v4958 = vsub.s32 %v4955, %v4957
        %v4959 = vrot.slane %v4952, %v4958
        %v4960 = vcombine.low %v4935, %v4943
        %v4962 = vunpack.c.l.s4 1934713408
        %v4963 = vunpack.c.0.s8 %v4962
        %v4964 = vlaneseq
        %v4965 = vshrl.u32 %v4964, 7
        %v4966 = vsub.s32 %v4963, %v4965
        %v4967 = vrot.slane %v4960, %v4966
        %v4968 = vcombine.low %v4951, %v4959
        %v4970 = vunpack.c.l.s4 1934713408
        %v4971 = vunpack.c.0.s8 %v4970
        %v4972 = vlaneseq
        %v4973 = vshrl.u32 %v4972, 7
        %v4974 = vsub.s32 %v4971, %v4973
        %v4975 = vrot.slane %v4968, %v4974
        %v4976 = vcombine.low %v4967, %v4975
        %v4977 = vcombine.high %v4967, %v4975
        %v4978 = vcombine.low %v4008, %v4015
        %v4980 = vunpack.c.l.s4 1983009808
        %v4981 = vunpack.c.0.s8 %v4980
        %v4982 = vlaneseq
        %v4983 = vshrl.u32 %v4982, 7
        %v4984 = vsub.s32 %v4981, %v4983
        %v4985 = vrot.slane %v4978, %v4984
        %v4986 = vcombine.low %v4032, %v4033
        %v4988 = vunpack.c.l.s4 1983009808
        %v4989 = vunpack.c.0.s8 %v4988
        %v4990 = vlaneseq
        %v4991 = vshrl.u32 %v4990, 7
        %v4992 = vsub.s32 %v4989, %v4991
        %v4993 = vrot.slane %v4986, %v4992
        %v4994 = vcombine.low %v4024, %v4031
        %v4996 = vunpack.c.l.s4 1983009808
        %v4997 = vunpack.c.0.s8 %v4996
        %v4998 = vlaneseq
        %v4999 = vshrl.u32 %v4998, 7
        %v5000 = vsub.s32 %v4997, %v4999
        %v5001 = vrot.slane %v4994, %v5000
        %v5002 = vcombine.low %v4034, %v4035
        %v5004 = vunpack.c.l.s4 1983009808
        %v5005 = vunpack.c.0.s8 %v5004
        %v5006 = vlaneseq
        %v5007 = vshrl.u32 %v5006, 7
        %v5008 = vsub.s32 %v5005, %v5007
        %v5009 = vrot.slane %v5002, %v5008
        %v5010 = vcombine.low %v4985, %v4993
        %v5012 = vunpack.c.l.s4 1934713408
        %v5013 = vunpack.c.0.s8 %v5012
        %v5014 = vlaneseq
        %v5015 = vshrl.u32 %v5014, 7
        %v5016 = vsub.s32 %v5013, %v5015
        %v5017 = vrot.slane %v5010, %v5016
        %v5018 = vcombine.low %v5001, %v5009
        %v5020 = vunpack.c.l.s4 1934713408
        %v5021 = vunpack.c.0.s8 %v5020
        %v5022 = vlaneseq
        %v5023 = vshrl.u32 %v5022, 7
        %v5024 = vsub.s32 %v5021, %v5023
        %v5025 = vrot.slane %v5018, %v5024
        %v5026 = vcombine.low %v5017, %v5025
        %v5027 = vcombine.high %v5017, %v5025
        %v5028 = vcombine.low %v4074, %v4081
        %v5030 = vunpack.c.l.s4 1983009808
        %v5031 = vunpack.c.0.s8 %v5030
        %v5032 = vlaneseq
        %v5033 = vshrl.u32 %v5032, 7
        %v5034 = vsub.s32 %v5031, %v5033
        %v5035 = vrot.slane %v5028, %v5034
        %v5036 = vcombine.low %v4098, %v4099
        %v5038 = vunpack.c.l.s4 1983009808
        %v5039 = vunpack.c.0.s8 %v5038
        %v5040 = vlaneseq
        %v5041 = vshrl.u32 %v5040, 7
        %v5042 = vsub.s32 %v5039, %v5041
        %v5043 = vrot.slane %v5036, %v5042
        %v5044 = vcombine.low %v4090, %v4097
        %v5046 = vunpack.c.l.s4 1983009808
        %v5047 = vunpack.c.0.s8 %v5046
        %v5048 = vlaneseq
        %v5049 = vshrl.u32 %v5048, 7
        %v5050 = vsub.s32 %v5047, %v5049
        %v5051 = vrot.slane %v5044, %v5050
        %v5052 = vcombine.low %v4100, %v4101
        %v5054 = vunpack.c.l.s4 1983009808
        %v5055 = vunpack.c.0.s8 %v5054
        %v5056 = vlaneseq
        %v5057 = vshrl.u32 %v5056, 7
        %v5058 = vsub.s32 %v5055, %v5057
        %v5059 = vrot.slane %v5052, %v5058
        %v5060 = vcombine.low %v5035, %v5043
        %v5062 = vunpack.c.l.s4 1934713408
        %v5063 = vunpack.c.0.s8 %v5062
        %v5064 = vlaneseq
        %v5065 = vshrl.u32 %v5064, 7
        %v5066 = vsub.s32 %v5063, %v5065
        %v5067 = vrot.slane %v5060, %v5066
        %v5068 = vcombine.low %v5051, %v5059
        %v5070 = vunpack.c.l.s4 1934713408
        %v5071 = vunpack.c.0.s8 %v5070
        %v5072 = vlaneseq
        %v5073 = vshrl.u32 %v5072, 7
        %v5074 = vsub.s32 %v5071, %v5073
        %v5075 = vrot.slane %v5068, %v5074
        %v5076 = vcombine.low %v5067, %v5075
        %v5077 = vcombine.high %v5067, %v5075
        %v5078 = vcombine.low %v4140, %v4147
        %v5080 = vunpack.c.l.s4 1983009808
        %v5081 = vunpack.c.0.s8 %v5080
        %v5082 = vlaneseq
        %v5083 = vshrl.u32 %v5082, 7
        %v5084 = vsub.s32 %v5081, %v5083
        %v5085 = vrot.slane %v5078, %v5084
        %v5086 = vcombine.low %v4164, %v4165
        %v5088 = vunpack.c.l.s4 1983009808
        %v5089 = vunpack.c.0.s8 %v5088
        %v5090 = vlaneseq
        %v5091 = vshrl.u32 %v5090, 7
        %v5092 = vsub.s32 %v5089, %v5091
        %v5093 = vrot.slane %v5086, %v5092
        %v5094 = vcombine.low %v4156, %v4163
        %v5096 = vunpack.c.l.s4 1983009808
        %v5097 = vunpack.c.0.s8 %v5096
        %v5098 = vlaneseq
        %v5099 = vshrl.u32 %v5098, 7
        %v5100 = vsub.s32 %v5097, %v5099
        %v5101 = vrot.slane %v5094, %v5100
        %v5102 = vcombine.low %v4166, %v4167
        %v5104 = vunpack.c.l.s4 1983009808
        %v5105 = vunpack.c.0.s8 %v5104
        %v5106 = vlaneseq
        %v5107 = vshrl.u32 %v5106, 7
        %v5108 = vsub.s32 %v5105, %v5107
        %v5109 = vrot.slane %v5102, %v5108
        %v5110 = vcombine.low %v5085, %v5093
        %v5112 = vunpack.c.l.s4 1934713408
        %v5113 = vunpack.c.0.s8 %v5112
        %v5114 = vlaneseq
        %v5115 = vshrl.u32 %v5114, 7
        %v5116 = vsub.s32 %v5113, %v5115
        %v5117 = vrot.slane %v5110, %v5116
        %v5118 = vcombine.low %v5101, %v5109
        %v5120 = vunpack.c.l.s4 1934713408
        %v5121 = vunpack.c.0.s8 %v5120
        %v5122 = vlaneseq
        %v5123 = vshrl.u32 %v5122, 7
        %v5124 = vsub.s32 %v5121, %v5123
        %v5125 = vrot.slane %v5118, %v5124
        %v5126 = vcombine.low %v5117, %v5125
        %v5127 = vcombine.high %v5117, %v5125
        %v5128 = vcombine.low %v4206, %v4213
        %v5130 = vunpack.c.l.s4 1983009808
        %v5131 = vunpack.c.0.s8 %v5130
        %v5132 = vlaneseq
        %v5133 = vshrl.u32 %v5132, 7
        %v5134 = vsub.s32 %v5131, %v5133
        %v5135 = vrot.slane %v5128, %v5134
        %v5136 = vcombine.low %v4230, %v4231
        %v5138 = vunpack.c.l.s4 1983009808
        %v5139 = vunpack.c.0.s8 %v5138
        %v5140 = vlaneseq
        %v5141 = vshrl.u32 %v5140, 7
        %v5142 = vsub.s32 %v5139, %v5141
        %v5143 = vrot.slane %v5136, %v5142
        %v5144 = vcombine.low %v4222, %v4229
        %v5146 = vunpack.c.l.s4 1983009808
        %v5147 = vunpack.c.0.s8 %v5146
        %v5148 = vlaneseq
        %v5149 = vshrl.u32 %v5148, 7
        %v5150 = vsub.s32 %v5147, %v5149
        %v5151 = vrot.slane %v5144, %v5150
        %v5152 = vcombine.low %v4232, %v4233
        %v5154 = vunpack.c.l.s4 1983009808
        %v5155 = vunpack.c.0.s8 %v5154
        %v5156 = vlaneseq
        %v5157 = vshrl.u32 %v5156, 7
        %v5158 = vsub.s32 %v5155, %v5157
        %v5159 = vrot.slane %v5152, %v5158
        %v5160 = vcombine.low %v5135, %v5143
        %v5162 = vunpack.c.l.s4 1934713408
        %v5163 = vunpack.c.0.s8 %v5162
        %v5164 = vlaneseq
        %v5165 = vshrl.u32 %v5164, 7
        %v5166 = vsub.s32 %v5163, %v5165
        %v5167 = vrot.slane %v5160, %v5166
        %v5168 = vcombine.low %v5151, %v5159
        %v5170 = vunpack.c.l.s4 1934713408
        %v5171 = vunpack.c.0.s8 %v5170
        %v5172 = vlaneseq
        %v5173 = vshrl.u32 %v5172, 7
        %v5174 = vsub.s32 %v5171, %v5173
        %v5175 = vrot.slane %v5168, %v5174
        %v5176 = vcombine.low %v5167, %v5175
        %v5177 = vcombine.high %v5167, %v5175
        %v5178 = vcombine.low %v4272, %v4279
        %v5180 = vunpack.c.l.s4 1983009808
        %v5181 = vunpack.c.0.s8 %v5180
        %v5182 = vlaneseq
        %v5183 = vshrl.u32 %v5182, 7
        %v5184 = vsub.s32 %v5181, %v5183
        %v5185 = vrot.slane %v5178, %v5184
        %v5186 = vcombine.low %v4296, %v4297
        %v5188 = vunpack.c.l.s4 1983009808
        %v5189 = vunpack.c.0.s8 %v5188
        %v5190 = vlaneseq
        %v5191 = vshrl.u32 %v5190, 7
        %v5192 = vsub.s32 %v5189, %v5191
        %v5193 = vrot.slane %v5186, %v5192
        %v5194 = vcombine.low %v4288, %v4295
        %v5196 = vunpack.c.l.s4 1983009808
        %v5197 = vunpack.c.0.s8 %v5196
        %v5198 = vlaneseq
        %v5199 = vshrl.u32 %v5198, 7
        %v5200 = vsub.s32 %v5197, %v5199
        %v5201 = vrot.slane %v5194, %v5200
        %v5202 = vcombine.low %v4298, %v4299
        %v5204 = vunpack.c.l.s4 1983009808
        %v5205 = vunpack.c.0.s8 %v5204
        %v5206 = vlaneseq
        %v5207 = vshrl.u32 %v5206, 7
        %v5208 = vsub.s32 %v5205, %v5207
        %v5209 = vrot.slane %v5202, %v5208
        %v5210 = vcombine.low %v5185, %v5193
        %v5212 = vunpack.c.l.s4 1934713408
        %v5213 = vunpack.c.0.s8 %v5212
        %v5214 = vlaneseq
        %v5215 = vshrl.u32 %v5214, 7
        %v5216 = vsub.s32 %v5213, %v5215
        %v5217 = vrot.slane %v5210, %v5216
        %v5218 = vcombine.low %v5201, %v5209
        %v5220 = vunpack.c.l.s4 1934713408
        %v5221 = vunpack.c.0.s8 %v5220
        %v5222 = vlaneseq
        %v5223 = vshrl.u32 %v5222, 7
        %v5224 = vsub.s32 %v5221, %v5223
        %v5225 = vrot.slane %v5218, %v5224
        %v5226 = vcombine.low %v5217, %v5225
        %v5227 = vcombine.high %v5217, %v5225
        %v5228 = vcombine.low %v4338, %v4345
        %v5230 = vunpack.c.l.s4 1983009808
        %v5231 = vunpack.c.0.s8 %v5230
        %v5232 = vlaneseq
        %v5233 = vshrl.u32 %v5232, 7
        %v5234 = vsub.s32 %v5231, %v5233
        %v5235 = vrot.slane %v5228, %v5234
        %v5236 = vcombine.low %v4362, %v4363
        %v5238 = vunpack.c.l.s4 1983009808
        %v5239 = vunpack.c.0.s8 %v5238
        %v5240 = vlaneseq
        %v5241 = vshrl.u32 %v5240, 7
        %v5242 = vsub.s32 %v5239, %v5241
        %v5243 = vrot.slane %v5236, %v5242
        %v5244 = vcombine.low %v4354, %v4361
        %v5246 = vunpack.c.l.s4 1983009808
        %v5247 = vunpack.c.0.s8 %v5246
        %v5248 = vlaneseq
        %v5249 = vshrl.u32 %v5248, 7
        %v5250 = vsub.s32 %v5247, %v5249
        %v5251 = vrot.slane %v5244, %v5250
        %v5252 = vcombine.low %v4364, %v4365
        %v5254 = vunpack.c.l.s4 1983009808
        %v5255 = vunpack.c.0.s8 %v5254
        %v5256 = vlaneseq
        %v5257 = vshrl.u32 %v5256, 7
        %v5258 = vsub.s32 %v5255, %v5257
        %v5259 = vrot.slane %v5252, %v5258
        %v5260 = vcombine.low %v5235, %v5243
        %v5262 = vunpack.c.l.s4 1934713408
        %v5263 = vunpack.c.0.s8 %v5262
        %v5264 = vlaneseq
        %v5265 = vshrl.u32 %v5264, 7
        %v5266 = vsub.s32 %v5263, %v5265
        %v5267 = vrot.slane %v5260, %v5266
        %v5268 = vcombine.low %v5251, %v5259
        %v5270 = vunpack.c.l.s4 1934713408
        %v5271 = vunpack.c.0.s8 %v5270
        %v5272 = vlaneseq
        %v5273 = vshrl.u32 %v5272, 7
        %v5274 = vsub.s32 %v5271, %v5273
        %v5275 = vrot.slane %v5268, %v5274
        %v5276 = vcombine.low %v5267, %v5275
        %v5277 = vcombine.high %v5267, %v5275
        %v5278 = vcombine.low %v4404, %v4411
        %v5280 = vunpack.c.l.s4 1983009808
        %v5281 = vunpack.c.0.s8 %v5280
        %v5282 = vlaneseq
        %v5283 = vshrl.u32 %v5282, 7
        %v5284 = vsub.s32 %v5281, %v5283
        %v5285 = vrot.slane %v5278, %v5284
        %v5286 = vcombine.low %v4428, %v4429
        %v5288 = vunpack.c.l.s4 1983009808
        %v5289 = vunpack.c.0.s8 %v5288
        %v5290 = vlaneseq
        %v5291 = vshrl.u32 %v5290, 7
        %v5292 = vsub.s32 %v5289, %v5291
        %v5293 = vrot.slane %v5286, %v5292
        %v5294 = vcombine.low %v4420, %v4427
        %v5296 = vunpack.c.l.s4 1983009808
        %v5297 = vunpack.c.0.s8 %v5296
        %v5298 = vlaneseq
        %v5299 = vshrl.u32 %v5298, 7
        %v5300 = vsub.s32 %v5297, %v5299
        %v5301 = vrot.slane %v5294, %v5300
        %v5302 = vcombine.low %v4430, %v4431
        %v5304 = vunpack.c.l.s4 1983009808
        %v5305 = vunpack.c.0.s8 %v5304
        %v5306 = vlaneseq
        %v5307 = vshrl.u32 %v5306, 7
        %v5308 = vsub.s32 %v5305, %v5307
        %v5309 = vrot.slane %v5302, %v5308
        %v5310 = vcombine.low %v5285, %v5293
        %v5312 = vunpack.c.l.s4 1934713408
        %v5313 = vunpack.c.0.s8 %v5312
        %v5314 = vlaneseq
        %v5315 = vshrl.u32 %v5314, 7
        %v5316 = vsub.s32 %v5313, %v5315
        %v5317 = vrot.slane %v5310, %v5316
        %v5318 = vcombine.low %v5301, %v5309
        %v5320 = vunpack.c.l.s4 1934713408
        %v5321 = vunpack.c.0.s8 %v5320
        %v5322 = vlaneseq
        %v5323 = vshrl.u32 %v5322, 7
        %v5324 = vsub.s32 %v5321, %v5323
        %v5325 = vrot.slane %v5318, %v5324
        %v5326 = vcombine.low %v5317, %v5325
        %v5327 = vcombine.high %v5317, %v5325
        %v5328 = vcombine.low %v4470, %v4477
        %v5330 = vunpack.c.l.s4 1983009808
        %v5331 = vunpack.c.0.s8 %v5330
        %v5332 = vlaneseq
        %v5333 = vshrl.u32 %v5332, 7
        %v5334 = vsub.s32 %v5331, %v5333
        %v5335 = vrot.slane %v5328, %v5334
        %v5336 = vcombine.low %v4494, %v4495
        %v5338 = vunpack.c.l.s4 1983009808
        %v5339 = vunpack.c.0.s8 %v5338
        %v5340 = vlaneseq
        %v5341 = vshrl.u32 %v5340, 7
        %v5342 = vsub.s32 %v5339, %v5341
        %v5343 = vrot.slane %v5336, %v5342
        %v5344 = vcombine.low %v4486, %v4493
        %v5346 = vunpack.c.l.s4 1983009808
        %v5347 = vunpack.c.0.s8 %v5346
        %v5348 = vlaneseq
        %v5349 = vshrl.u32 %v5348, 7
        %v5350 = vsub.s32 %v5347, %v5349
        %v5351 = vrot.slane %v5344, %v5350
        %v5352 = vcombine.low %v4496, %v4497
        %v5354 = vunpack.c.l.s4 1983009808
        %v5355 = vunpack.c.0.s8 %v5354
        %v5356 = vlaneseq
        %v5357 = vshrl.u32 %v5356, 7
        %v5358 = vsub.s32 %v5355, %v5357
        %v5359 = vrot.slane %v5352, %v5358
        %v5360 = vcombine.low %v5335, %v5343
        %v5362 = vunpack.c.l.s4 1934713408
        %v5363 = vunpack.c.0.s8 %v5362
        %v5364 = vlaneseq
        %v5365 = vshrl.u32 %v5364, 7
        %v5366 = vsub.s32 %v5363, %v5365
        %v5367 = vrot.slane %v5360, %v5366
        %v5368 = vcombine.low %v5351, %v5359
        %v5370 = vunpack.c.l.s4 1934713408
        %v5371 = vunpack.c.0.s8 %v5370
        %v5372 = vlaneseq
        %v5373 = vshrl.u32 %v5372, 7
        %v5374 = vsub.s32 %v5371, %v5373
        %v5375 = vrot.slane %v5368, %v5374
        %v5376 = vcombine.low %v5367, %v5375
        %v5377 = vcombine.high %v5367, %v5375
        %v5378 = vcombine.low %v4536, %v4543
        %v5380 = vunpack.c.l.s4 1983009808
        %v5381 = vunpack.c.0.s8 %v5380
        %v5382 = vlaneseq
        %v5383 = vshrl.u32 %v5382, 7
        %v5384 = vsub.s32 %v5381, %v5383
        %v5385 = vrot.slane %v5378, %v5384
        %v5386 = vcombine.low %v4560, %v4561
        %v5388 = vunpack.c.l.s4 1983009808
        %v5389 = vunpack.c.0.s8 %v5388
        %v5390 = vlaneseq
        %v5391 = vshrl.u32 %v5390, 7
        %v5392 = vsub.s32 %v5389, %v5391
        %v5393 = vrot.slane %v5386, %v5392
        %v5394 = vcombine.low %v4552, %v4559
        %v5396 = vunpack.c.l.s4 1983009808
        %v5397 = vunpack.c.0.s8 %v5396
        %v5398 = vlaneseq
        %v5399 = vshrl.u32 %v5398, 7
        %v5400 = vsub.s32 %v5397, %v5399
        %v5401 = vrot.slane %v5394, %v5400
        %v5402 = vcombine.low %v4562, %v4563
        %v5404 = vunpack.c.l.s4 1983009808
        %v5405 = vunpack.c.0.s8 %v5404
        %v5406 = vlaneseq
        %v5407 = vshrl.u32 %v5406, 7
        %v5408 = vsub.s32 %v5405, %v5407
        %v5409 = vrot.slane %v5402, %v5408
        %v5410 = vcombine.low %v5385, %v5393
        %v5412 = vunpack.c.l.s4 1934713408
        %v5413 = vunpack.c.0.s8 %v5412
        %v5414 = vlaneseq
        %v5415 = vshrl.u32 %v5414, 7
        %v5416 = vsub.s32 %v5413, %v5415
        %v5417 = vrot.slane %v5410, %v5416
        %v5418 = vcombine.low %v5401, %v5409
        %v5420 = vunpack.c.l.s4 1934713408
        %v5421 = vunpack.c.0.s8 %v5420
        %v5422 = vlaneseq
        %v5423 = vshrl.u32 %v5422, 7
        %v5424 = vsub.s32 %v5421, %v5423
        %v5425 = vrot.slane %v5418, %v5424
        %v5426 = vcombine.low %v5417, %v5425
        %v5427 = vcombine.high %v5417, %v5425
        %v5428 = vcombine.low %v4602, %v4609
        %v5430 = vunpack.c.l.s4 1983009808
        %v5431 = vunpack.c.0.s8 %v5430
        %v5432 = vlaneseq
        %v5433 = vshrl.u32 %v5432, 7
        %v5434 = vsub.s32 %v5431, %v5433
        %v5435 = vrot.slane %v5428, %v5434
        %v5436 = vcombine.low %v4626, %v4627
        %v5438 = vunpack.c.l.s4 1983009808
        %v5439 = vunpack.c.0.s8 %v5438
        %v5440 = vlaneseq
        %v5441 = vshrl.u32 %v5440, 7
        %v5442 = vsub.s32 %v5439, %v5441
        %v5443 = vrot.slane %v5436, %v5442
        %v5444 = vcombine.low %v4618, %v4625
        %v5446 = vunpack.c.l.s4 1983009808
        %v5447 = vunpack.c.0.s8 %v5446
        %v5448 = vlaneseq
        %v5449 = vshrl.u32 %v5448, 7
        %v5450 = vsub.s32 %v5447, %v5449
        %v5451 = vrot.slane %v5444, %v5450
        %v5452 = vcombine.low %v4628, %v4629
        %v5454 = vunpack.c.l.s4 1983009808
        %v5455 = vunpack.c.0.s8 %v5454
        %v5456 = vlaneseq
        %v5457 = vshrl.u32 %v5456, 7
        %v5458 = vsub.s32 %v5455, %v5457
        %v5459 = vrot.slane %v5452, %v5458
        %v5460 = vcombine.low %v5435, %v5443
        %v5462 = vunpack.c.l.s4 1934713408
        %v5463 = vunpack.c.0.s8 %v5462
        %v5464 = vlaneseq
        %v5465 = vshrl.u32 %v5464, 7
        %v5466 = vsub.s32 %v5463, %v5465
        %v5467 = vrot.slane %v5460, %v5466
        %v5468 = vcombine.low %v5451, %v5459
        %v5470 = vunpack.c.l.s4 1934713408
        %v5471 = vunpack.c.0.s8 %v5470
        %v5472 = vlaneseq
        %v5473 = vshrl.u32 %v5472, 7
        %v5474 = vsub.s32 %v5471, %v5473
        %v5475 = vrot.slane %v5468, %v5474
        %v5476 = vcombine.low %v5467, %v5475
        %v5477 = vcombine.high %v5467, %v5475
        %v5478 = vcombine.low %v4668, %v4675
        %v5480 = vunpack.c.l.s4 1983009808
        %v5481 = vunpack.c.0.s8 %v5480
        %v5482 = vlaneseq
        %v5483 = vshrl.u32 %v5482, 7
        %v5484 = vsub.s32 %v5481, %v5483
        %v5485 = vrot.slane %v5478, %v5484
        %v5486 = vcombine.low %v4692, %v4693
        %v5488 = vunpack.c.l.s4 1983009808
        %v5489 = vunpack.c.0.s8 %v5488
        %v5490 = vlaneseq
        %v5491 = vshrl.u32 %v5490, 7
        %v5492 = vsub.s32 %v5489, %v5491
        %v5493 = vrot.slane %v5486, %v5492
        %v5494 = vcombine.low %v4684, %v4691
        %v5496 = vunpack.c.l.s4 1983009808
        %v5497 = vunpack.c.0.s8 %v5496
        %v5498 = vlaneseq
        %v5499 = vshrl.u32 %v5498, 7
        %v5500 = vsub.s32 %v5497, %v5499
        %v5501 = vrot.slane %v5494, %v5500
        %v5502 = vcombine.low %v4694, %v4695
        %v5504 = vunpack.c.l.s4 1983009808
        %v5505 = vunpack.c.0.s8 %v5504
        %v5506 = vlaneseq
        %v5507 = vshrl.u32 %v5506, 7
        %v5508 = vsub.s32 %v5505, %v5507
        %v5509 = vrot.slane %v5502, %v5508
        %v5510 = vcombine.low %v5485, %v5493
        %v5512 = vunpack.c.l.s4 1934713408
        %v5513 = vunpack.c.0.s8 %v5512
        %v5514 = vlaneseq
        %v5515 = vshrl.u32 %v5514, 7
        %v5516 = vsub.s32 %v5513, %v5515
        %v5517 = vrot.slane %v5510, %v5516
        %v5518 = vcombine.low %v5501, %v5509
        %v5520 = vunpack.c.l.s4 1934713408
        %v5521 = vunpack.c.0.s8 %v5520
        %v5522 = vlaneseq
        %v5523 = vshrl.u32 %v5522, 7
        %v5524 = vsub.s32 %v5521, %v5523
        %v5525 = vrot.slane %v5518, %v5524
        %v5526 = vcombine.low %v5517, %v5525
        %v5527 = vcombine.high %v5517, %v5525
        %v5528 = vcombine.low %v4734, %v4741
        %v5530 = vunpack.c.l.s4 1983009808
        %v5531 = vunpack.c.0.s8 %v5530
        %v5532 = vlaneseq
        %v5533 = vshrl.u32 %v5532, 7
        %v5534 = vsub.s32 %v5531, %v5533
        %v5535 = vrot.slane %v5528, %v5534
        %v5536 = vcombine.low %v4758, %v4759
        %v5538 = vunpack.c.l.s4 1983009808
        %v5539 = vunpack.c.0.s8 %v5538
        %v5540 = vlaneseq
        %v5541 = vshrl.u32 %v5540, 7
        %v5542 = vsub.s32 %v5539, %v5541
        %v5543 = vrot.slane %v5536, %v5542
        %v5544 = vcombine.low %v4750, %v4757
        %v5546 = vunpack.c.l.s4 1983009808
        %v5547 = vunpack.c.0.s8 %v5546
        %v5548 = vlaneseq
        %v5549 = vshrl.u32 %v5548, 7
        %v5550 = vsub.s32 %v5547, %v5549
        %v5551 = vrot.slane %v5544, %v5550
        %v5552 = vcombine.low %v4760, %v4761
        %v5554 = vunpack.c.l.s4 1983009808
        %v5555 = vunpack.c.0.s8 %v5554
        %v5556 = vlaneseq
        %v5557 = vshrl.u32 %v5556, 7
        %v5558 = vsub.s32 %v5555, %v5557
        %v5559 = vrot.slane %v5552, %v5558
        %v5560 = vcombine.low %v5535, %v5543
        %v5562 = vunpack.c.l.s4 1934713408
        %v5563 = vunpack.c.0.s8 %v5562
        %v5564 = vlaneseq
        %v5565 = vshrl.u32 %v5564, 7
        %v5566 = vsub.s32 %v5563, %v5565
        %v5567 = vrot.slane %v5560, %v5566
        %v5568 = vcombine.low %v5551, %v5559
        %v5570 = vunpack.c.l.s4 1934713408
        %v5571 = vunpack.c.0.s8 %v5570
        %v5572 = vlaneseq
        %v5573 = vshrl.u32 %v5572, 7
        %v5574 = vsub.s32 %v5571, %v5573
        %v5575 = vrot.slane %v5568, %v5574
        %v5576 = vcombine.low %v5567, %v5575
        %v5577 = vcombine.high %v5567, %v5575
        %v5578 = vcombine.low %v4800, %v4807
        %v5580 = vunpack.c.l.s4 1983009808
        %v5581 = vunpack.c.0.s8 %v5580
        %v5582 = vlaneseq
        %v5583 = vshrl.u32 %v5582, 7
        %v5584 = vsub.s32 %v5581, %v5583
        %v5585 = vrot.slane %v5578, %v5584
        %v5586 = vcombine.low %v4824, %v4825
        %v5588 = vunpack.c.l.s4 1983009808
        %v5589 = vunpack.c.0.s8 %v5588
        %v5590 = vlaneseq
        %v5591 = vshrl.u32 %v5590, 7
        %v5592 = vsub.s32 %v5589, %v5591
        %v5593 = vrot.slane %v5586, %v5592
        %v5594 = vcombine.low %v4816, %v4823
        %v5596 = vunpack.c.l.s4 1983009808
        %v5597 = vunpack.c.0.s8 %v5596
        %v5598 = vlaneseq
        %v5599 = vshrl.u32 %v5598, 7
        %v5600 = vsub.s32 %v5597, %v5599
        %v5601 = vrot.slane %v5594, %v5600
        %v5602 = vcombine.low %v4826, %v4827
        %v5604 = vunpack.c.l.s4 1983009808
        %v5605 = vunpack.c.0.s8 %v5604
        %v5606 = vlaneseq
        %v5607 = vshrl.u32 %v5606, 7
        %v5608 = vsub.s32 %v5605, %v5607
        %v5609 = vrot.slane %v5602, %v5608
        %v5610 = vcombine.low %v5585, %v5593
        %v5612 = vunpack.c.l.s4 1934713408
        %v5613 = vunpack.c.0.s8 %v5612
        %v5614 = vlaneseq
        %v5615 = vshrl.u32 %v5614, 7
        %v5616 = vsub.s32 %v5613, %v5615
        %v5617 = vrot.slane %v5610, %v5616
        %v5618 = vcombine.low %v5601, %v5609
        %v5620 = vunpack.c.l.s4 1934713408
        %v5621 = vunpack.c.0.s8 %v5620
        %v5622 = vlaneseq
        %v5623 = vshrl.u32 %v5622, 7
        %v5624 = vsub.s32 %v5621, %v5623
        %v5625 = vrot.slane %v5618, %v5624
        %v5626 = vcombine.low %v5617, %v5625
        %v5627 = vcombine.high %v5617, %v5625
        %v5628 = vpack.c.bf16 %v4926, %v4876
        %v5629 = vpack.c.bf16 %v5026, %v4976
        %v5630 = vpack.c.bf16 %v5126, %v5076
        %v5631 = vpack.c.bf16 %v5226, %v5176
        %v5632 = vpack.c.bf16 %v5326, %v5276
        %v5633 = vpack.c.bf16 %v5426, %v5376
        %v5634 = vpack.c.bf16 %v5526, %v5476
        %v5635 = vpack.c.bf16 %v5626, %v5576
        %v5636 = vpack.c.bf16 %v4927, %v4877
        %v5637 = vpack.c.bf16 %v5027, %v4977
        %v5638 = vpack.c.bf16 %v5127, %v5077
        %v5639 = vpack.c.bf16 %v5227, %v5177
        %v5640 = vpack.c.bf16 %v5327, %v5277
        %v5641 = vpack.c.bf16 %v5427, %v5377
        %v5642 = vpack.c.bf16 %v5527, %v5477
        %v5643 = vpack.c.bf16 %v5627, %v5577
        %v5660 = vunpack.c.l.b16 %v5628
        %v5661 = vunpack.c.h.b16 %v5628
        %v5662 = vunpack.c.l.b16 %v5629
        %v5663 = vunpack.c.h.b16 %v5629
        %v5664 = vunpack.c.l.b16 %v5630
        %v5665 = vunpack.c.h.b16 %v5630
        %v5666 = vunpack.c.l.b16 %v5631
        %v5667 = vunpack.c.h.b16 %v5631
        %v5668 = vunpack.c.l.b16 %v5632
        %v5669 = vunpack.c.h.b16 %v5632
        %v5670 = vunpack.c.l.b16 %v5633
        %v5671 = vunpack.c.h.b16 %v5633
        %v5672 = vunpack.c.l.b16 %v5634
        %v5673 = vunpack.c.h.b16 %v5634
        %v5674 = vunpack.c.l.b16 %v5635
        %v5675 = vunpack.c.h.b16 %v5635
        %v5676 = vunpack.c.l.b16 %v5636
        %v5677 = vunpack.c.h.b16 %v5636
        %v5678 = vunpack.c.l.b16 %v5637
        %v5679 = vunpack.c.h.b16 %v5637
        %v5680 = vunpack.c.l.b16 %v5638
        %v5681 = vunpack.c.h.b16 %v5638
        %v5682 = vunpack.c.l.b16 %v5639
        %v5683 = vunpack.c.h.b16 %v5639
        %v5684 = vunpack.c.l.b16 %v5640
        %v5685 = vunpack.c.h.b16 %v5640
        %v5686 = vunpack.c.l.b16 %v5641
        %v5687 = vunpack.c.h.b16 %v5641
        %v5688 = vunpack.c.l.b16 %v5642
        %v5689 = vunpack.c.h.b16 %v5642
        %v5690 = vunpack.c.l.b16 %v5643
        %v5691 = vunpack.c.h.b16 %v5643
        %v5692 = vpack.c.b16 %v5660, %v5660
        %v5693 = vpack.c.b16 %v5661, %v5661
        %v5694 = vpack.c.b16 %v5662, %v5662
        %v5695 = vpack.c.b16 %v5663, %v5663
        %v5696 = vpack.c.b16 %v5664, %v5664
        %v5697 = vpack.c.b16 %v5665, %v5665
        %v5698 = vpack.c.b16 %v5666, %v5666
        %v5699 = vpack.c.b16 %v5667, %v5667
        %v5700 = vpack.c.b16 %v5668, %v5668
        %v5701 = vpack.c.b16 %v5669, %v5669
        %v5702 = vpack.c.b16 %v5670, %v5670
        %v5703 = vpack.c.b16 %v5671, %v5671
        %v5704 = vpack.c.b16 %v5672, %v5672
        %v5705 = vpack.c.b16 %v5673, %v5673
        %v5706 = vpack.c.b16 %v5674, %v5674
        %v5707 = vpack.c.b16 %v5675, %v5675
        %v5708 = vpack.c.b16 %v5676, %v5676
        %v5709 = vpack.c.b16 %v5677, %v5677
        %v5710 = vpack.c.b16 %v5678, %v5678
        %v5711 = vpack.c.b16 %v5679, %v5679
        %v5712 = vpack.c.b16 %v5680, %v5680
        %v5713 = vpack.c.b16 %v5681, %v5681
        %v5714 = vpack.c.b16 %v5682, %v5682
        %v5715 = vpack.c.b16 %v5683, %v5683
        %v5716 = vpack.c.b16 %v5684, %v5684
        %v5717 = vpack.c.b16 %v5685, %v5685
        %v5718 = vpack.c.b16 %v5686, %v5686
        %v5719 = vpack.c.b16 %v5687, %v5687
        %v5720 = vpack.c.b16 %v5688, %v5688
        %v5721 = vpack.c.b16 %v5689, %v5689
        %v5722 = vpack.c.b16 %v5690, %v5690
        %v5723 = vpack.c.b16 %v5691, %v5691
        %5756 = vst [vmem:[%s386] sm:$0xf] %v5692
        %5757 = vst [vmem:[%s386 + $0x4] sm:$0xf] %v5693
        %5758 = vst [vmem:[%s386 + $0x8] sm:$0xf] %v5694
        %5759 = vst [vmem:[%s386 + $0xc] sm:$0xf] %v5695
        %5760 = vst [vmem:[%s386 + $0x10] sm:$0xf] %v5696
        %5761 = vst [vmem:[%s386 + $0x14] sm:$0xf] %v5697
        %5762 = vst [vmem:[%s386 + $0x18] sm:$0xf] %v5698
        %5763 = vst [vmem:[%s386 + $0x1c] sm:$0xf] %v5699
        %5764 = vst [vmem:[%s386 + $0x20] sm:$0xf] %v5700
        %5765 = vst [vmem:[%s386 + $0x24] sm:$0xf] %v5701
        %5766 = vst [vmem:[%s386 + $0x28] sm:$0xf] %v5702
        %5767 = vst [vmem:[%s386 + $0x2c] sm:$0xf] %v5703
        %5768 = vst [vmem:[%s386 + $0x30] sm:$0xf] %v5704
        %5769 = vst [vmem:[%s386 + $0x34] sm:$0xf] %v5705
        %5770 = vst [vmem:[%s386 + $0x38] sm:$0xf] %v5706
        %5771 = vst [vmem:[%s386 + $0x3c] sm:$0xf] %v5707
        %5772 = vst [vmem:[%s386 + $0x40] sm:$0xf] %v5708
        %5773 = vst [vmem:[%s386 + $0x44] sm:$0xf] %v5709
        %5774 = vst [vmem:[%s386 + $0x48] sm:$0xf] %v5710
        %5775 = vst [vmem:[%s386 + $0x4c] sm:$0xf] %v5711
        %5776 = vst [vmem:[%s386 + $0x50] sm:$0xf] %v5712
        %5777 = vst [vmem:[%s386 + $0x54] sm:$0xf] %v5713
        %5778 = vst [vmem:[%s386 + $0x58] sm:$0xf] %v5714
        %5779 = vst [vmem:[%s386 + $0x5c] sm:$0xf] %v5715
        %5780 = vst [vmem:[%s386 + $0x60] sm:$0xf] %v5716
        %5781 = vst [vmem:[%s386 + $0x64] sm:$0xf] %v5717
        %5782 = vst [vmem:[%s386 + $0x68] sm:$0xf] %v5718
        %5783 = vst [vmem:[%s386 + $0x6c] sm:$0xf] %v5719
        %5784 = vst [vmem:[%s386 + $0x70] sm:$0xf] %v5720
        %5785 = vst [vmem:[%s386 + $0x74] sm:$0xf] %v5721
        %5786 = vst [vmem:[%s386 + $0x78] sm:$0xf] %v5722
        %5787 = vst [vmem:[%s386 + $0x7c] sm:$0xf] %v5723
        %v5788 = vcombine.high %v1646, 0.0
        %v5790 = vunpack.c.l.s4 1983009808
        %v5791 = vunpack.c.0.s8 %v5790
        %v5792 = vlaneseq
        %v5793 = vshrl.u32 %v5792, 7
        %v5794 = vsub.s32 %v5791, %v5793
        %v5795 = vrot.slane %v1646, %v5794
        %v5797 = vunpack.c.l.s4 1983009808
        %v5798 = vunpack.c.0.s8 %v5797
        %v5799 = vlaneseq
        %v5800 = vshrl.u32 %v5799, 7
        %v5801 = vsub.s32 %v5798, %v5800
        %v5802 = vrot.slane %v5788, %v5801
        %v5803 = vcombine.high %v1648, 0.0
        %v5805 = vunpack.c.l.s4 1983009808
        %v5806 = vunpack.c.0.s8 %v5805
        %v5807 = vlaneseq
        %v5808 = vshrl.u32 %v5807, 7
        %v5809 = vsub.s32 %v5806, %v5808
        %v5810 = vrot.slane %v1648, %v5809
        %v5812 = vunpack.c.l.s4 1983009808
        %v5813 = vunpack.c.0.s8 %v5812
        %v5814 = vlaneseq
        %v5815 = vshrl.u32 %v5814, 7
        %v5816 = vsub.s32 %v5813, %v5815
        %v5817 = vrot.slane %v5803, %v5816
        %v5818 = vcombine.low %v5795, %v5810
        %v5819 = vcombine.high %v5795, %v5810
        %v5821 = vunpack.c.l.s4 1934713408
        %v5822 = vunpack.c.0.s8 %v5821
        %v5823 = vlaneseq
        %v5824 = vshrl.u32 %v5823, 7
        %v5825 = vsub.s32 %v5822, %v5824
        %v5826 = vrot.slane %v5818, %v5825
        %v5828 = vunpack.c.l.s4 1934713408
        %v5829 = vunpack.c.0.s8 %v5828
        %v5830 = vlaneseq
        %v5831 = vshrl.u32 %v5830, 7
        %v5832 = vsub.s32 %v5829, %v5831
        %v5833 = vrot.slane %v5819, %v5832
        %v5834 = vcombine.low %v5802, %v5817
        %v5835 = vcombine.high %v5802, %v5817
        %v5837 = vunpack.c.l.s4 1934713408
        %v5838 = vunpack.c.0.s8 %v5837
        %v5839 = vlaneseq
        %v5840 = vshrl.u32 %v5839, 7
        %v5841 = vsub.s32 %v5838, %v5840
        %v5842 = vrot.slane %v5834, %v5841
        %v5844 = vunpack.c.l.s4 1934713408
        %v5845 = vunpack.c.0.s8 %v5844
        %v5846 = vlaneseq
        %v5847 = vshrl.u32 %v5846, 7
        %v5848 = vsub.s32 %v5845, %v5847
        %v5849 = vrot.slane %v5835, %v5848
        %v5850 = vcombine.high %v5826, 0.0
        %v5851 = vcombine.high %v5833, 0.0
        %v5852 = vcombine.high %v5842, 0.0
        %v5853 = vcombine.high %v5849, 0.0
        %v5854 = vcombine.high %v1650, 0.0
        %v5856 = vunpack.c.l.s4 1983009808
        %v5857 = vunpack.c.0.s8 %v5856
        %v5858 = vlaneseq
        %v5859 = vshrl.u32 %v5858, 7
        %v5860 = vsub.s32 %v5857, %v5859
        %v5861 = vrot.slane %v1650, %v5860
        %v5863 = vunpack.c.l.s4 1983009808
        %v5864 = vunpack.c.0.s8 %v5863
        %v5865 = vlaneseq
        %v5866 = vshrl.u32 %v5865, 7
        %v5867 = vsub.s32 %v5864, %v5866
        %v5868 = vrot.slane %v5854, %v5867
        %v5869 = vcombine.high %v1652, 0.0
        %v5871 = vunpack.c.l.s4 1983009808
        %v5872 = vunpack.c.0.s8 %v5871
        %v5873 = vlaneseq
        %v5874 = vshrl.u32 %v5873, 7
        %v5875 = vsub.s32 %v5872, %v5874
        %v5876 = vrot.slane %v1652, %v5875
        %v5878 = vunpack.c.l.s4 1983009808
        %v5879 = vunpack.c.0.s8 %v5878
        %v5880 = vlaneseq
        %v5881 = vshrl.u32 %v5880, 7
        %v5882 = vsub.s32 %v5879, %v5881
        %v5883 = vrot.slane %v5869, %v5882
        %v5884 = vcombine.low %v5861, %v5876
        %v5885 = vcombine.high %v5861, %v5876
        %v5887 = vunpack.c.l.s4 1934713408
        %v5888 = vunpack.c.0.s8 %v5887
        %v5889 = vlaneseq
        %v5890 = vshrl.u32 %v5889, 7
        %v5891 = vsub.s32 %v5888, %v5890
        %v5892 = vrot.slane %v5884, %v5891
        %v5894 = vunpack.c.l.s4 1934713408
        %v5895 = vunpack.c.0.s8 %v5894
        %v5896 = vlaneseq
        %v5897 = vshrl.u32 %v5896, 7
        %v5898 = vsub.s32 %v5895, %v5897
        %v5899 = vrot.slane %v5885, %v5898
        %v5900 = vcombine.low %v5868, %v5883
        %v5901 = vcombine.high %v5868, %v5883
        %v5903 = vunpack.c.l.s4 1934713408
        %v5904 = vunpack.c.0.s8 %v5903
        %v5905 = vlaneseq
        %v5906 = vshrl.u32 %v5905, 7
        %v5907 = vsub.s32 %v5904, %v5906
        %v5908 = vrot.slane %v5900, %v5907
        %v5910 = vunpack.c.l.s4 1934713408
        %v5911 = vunpack.c.0.s8 %v5910
        %v5912 = vlaneseq
        %v5913 = vshrl.u32 %v5912, 7
        %v5914 = vsub.s32 %v5911, %v5913
        %v5915 = vrot.slane %v5901, %v5914
        %v5916 = vcombine.high %v5892, 0.0
        %v5917 = vcombine.high %v5899, 0.0
        %v5918 = vcombine.high %v5908, 0.0
        %v5919 = vcombine.high %v5915, 0.0
        %v5920 = vcombine.high %v1656, 0.0
        %v5922 = vunpack.c.l.s4 1983009808
        %v5923 = vunpack.c.0.s8 %v5922
        %v5924 = vlaneseq
        %v5925 = vshrl.u32 %v5924, 7
        %v5926 = vsub.s32 %v5923, %v5925
        %v5927 = vrot.slane %v1656, %v5926
        %v5929 = vunpack.c.l.s4 1983009808
        %v5930 = vunpack.c.0.s8 %v5929
        %v5931 = vlaneseq
        %v5932 = vshrl.u32 %v5931, 7
        %v5933 = vsub.s32 %v5930, %v5932
        %v5934 = vrot.slane %v5920, %v5933
        %v5935 = vcombine.high %v1658, 0.0
        %v5937 = vunpack.c.l.s4 1983009808
        %v5938 = vunpack.c.0.s8 %v5937
        %v5939 = vlaneseq
        %v5940 = vshrl.u32 %v5939, 7
        %v5941 = vsub.s32 %v5938, %v5940
        %v5942 = vrot.slane %v1658, %v5941
        %v5944 = vunpack.c.l.s4 1983009808
        %v5945 = vunpack.c.0.s8 %v5944
        %v5946 = vlaneseq
        %v5947 = vshrl.u32 %v5946, 7
        %v5948 = vsub.s32 %v5945, %v5947
        %v5949 = vrot.slane %v5935, %v5948
        %v5950 = vcombine.low %v5927, %v5942
        %v5951 = vcombine.high %v5927, %v5942
        %v5953 = vunpack.c.l.s4 1934713408
        %v5954 = vunpack.c.0.s8 %v5953
        %v5955 = vlaneseq
        %v5956 = vshrl.u32 %v5955, 7
        %v5957 = vsub.s32 %v5954, %v5956
        %v5958 = vrot.slane %v5950, %v5957
        %v5960 = vunpack.c.l.s4 1934713408
        %v5961 = vunpack.c.0.s8 %v5960
        %v5962 = vlaneseq
        %v5963 = vshrl.u32 %v5962, 7
        %v5964 = vsub.s32 %v5961, %v5963
        %v5965 = vrot.slane %v5951, %v5964
        %v5966 = vcombine.low %v5934, %v5949
        %v5967 = vcombine.high %v5934, %v5949
        %v5969 = vunpack.c.l.s4 1934713408
        %v5970 = vunpack.c.0.s8 %v5969
        %v5971 = vlaneseq
        %v5972 = vshrl.u32 %v5971, 7
        %v5973 = vsub.s32 %v5970, %v5972
        %v5974 = vrot.slane %v5966, %v5973
        %v5976 = vunpack.c.l.s4 1934713408
        %v5977 = vunpack.c.0.s8 %v5976
        %v5978 = vlaneseq
        %v5979 = vshrl.u32 %v5978, 7
        %v5980 = vsub.s32 %v5977, %v5979
        %v5981 = vrot.slane %v5967, %v5980
        %v5982 = vcombine.high %v5958, 0.0
        %v5983 = vcombine.high %v5965, 0.0
        %v5984 = vcombine.high %v5974, 0.0
        %v5985 = vcombine.high %v5981, 0.0
        %v5986 = vcombine.high %v1660, 0.0
        %v5988 = vunpack.c.l.s4 1983009808
        %v5989 = vunpack.c.0.s8 %v5988
        %v5990 = vlaneseq
        %v5991 = vshrl.u32 %v5990, 7
        %v5992 = vsub.s32 %v5989, %v5991
        %v5993 = vrot.slane %v1660, %v5992
        %v5995 = vunpack.c.l.s4 1983009808
        %v5996 = vunpack.c.0.s8 %v5995
        %v5997 = vlaneseq
        %v5998 = vshrl.u32 %v5997, 7
        %v5999 = vsub.s32 %v5996, %v5998
        %v6000 = vrot.slane %v5986, %v5999
        %v6001 = vcombine.high %v1662, 0.0
        %v6003 = vunpack.c.l.s4 1983009808
        %v6004 = vunpack.c.0.s8 %v6003
        %v6005 = vlaneseq
        %v6006 = vshrl.u32 %v6005, 7
        %v6007 = vsub.s32 %v6004, %v6006
        %v6008 = vrot.slane %v1662, %v6007
        %v6010 = vunpack.c.l.s4 1983009808
        %v6011 = vunpack.c.0.s8 %v6010
        %v6012 = vlaneseq
        %v6013 = vshrl.u32 %v6012, 7
        %v6014 = vsub.s32 %v6011, %v6013
        %v6015 = vrot.slane %v6001, %v6014
        %v6016 = vcombine.low %v5993, %v6008
        %v6017 = vcombine.high %v5993, %v6008
        %v6019 = vunpack.c.l.s4 1934713408
        %v6020 = vunpack.c.0.s8 %v6019
        %v6021 = vlaneseq
        %v6022 = vshrl.u32 %v6021, 7
        %v6023 = vsub.s32 %v6020, %v6022
        %v6024 = vrot.slane %v6016, %v6023
        %v6026 = vunpack.c.l.s4 1934713408
        %v6027 = vunpack.c.0.s8 %v6026
        %v6028 = vlaneseq
        %v6029 = vshrl.u32 %v6028, 7
        %v6030 = vsub.s32 %v6027, %v6029
        %v6031 = vrot.slane %v6017, %v6030
        %v6032 = vcombine.low %v6000, %v6015
        %v6033 = vcombine.high %v6000, %v6015
        %v6035 = vunpack.c.l.s4 1934713408
        %v6036 = vunpack.c.0.s8 %v6035
        %v6037 = vlaneseq
        %v6038 = vshrl.u32 %v6037, 7
        %v6039 = vsub.s32 %v6036, %v6038
        %v6040 = vrot.slane %v6032, %v6039
        %v6042 = vunpack.c.l.s4 1934713408
        %v6043 = vunpack.c.0.s8 %v6042
        %v6044 = vlaneseq
        %v6045 = vshrl.u32 %v6044, 7
        %v6046 = vsub.s32 %v6043, %v6045
        %v6047 = vrot.slane %v6033, %v6046
        %v6048 = vcombine.high %v6024, 0.0
        %v6049 = vcombine.high %v6031, 0.0
        %v6050 = vcombine.high %v6040, 0.0
        %v6051 = vcombine.high %v6047, 0.0
        %v6052 = vcombine.high %v1666, 0.0
        %v6054 = vunpack.c.l.s4 1983009808
        %v6055 = vunpack.c.0.s8 %v6054
        %v6056 = vlaneseq
        %v6057 = vshrl.u32 %v6056, 7
        %v6058 = vsub.s32 %v6055, %v6057
        %v6059 = vrot.slane %v1666, %v6058
        %v6061 = vunpack.c.l.s4 1983009808
        %v6062 = vunpack.c.0.s8 %v6061
        %v6063 = vlaneseq
        %v6064 = vshrl.u32 %v6063, 7
        %v6065 = vsub.s32 %v6062, %v6064
        %v6066 = vrot.slane %v6052, %v6065
        %v6067 = vcombine.high %v1668, 0.0
        %v6069 = vunpack.c.l.s4 1983009808
        %v6070 = vunpack.c.0.s8 %v6069
        %v6071 = vlaneseq
        %v6072 = vshrl.u32 %v6071, 7
        %v6073 = vsub.s32 %v6070, %v6072
        %v6074 = vrot.slane %v1668, %v6073
        %v6076 = vunpack.c.l.s4 1983009808
        %v6077 = vunpack.c.0.s8 %v6076
        %v6078 = vlaneseq
        %v6079 = vshrl.u32 %v6078, 7
        %v6080 = vsub.s32 %v6077, %v6079
        %v6081 = vrot.slane %v6067, %v6080
        %v6082 = vcombine.low %v6059, %v6074
        %v6083 = vcombine.high %v6059, %v6074
        %v6085 = vunpack.c.l.s4 1934713408
        %v6086 = vunpack.c.0.s8 %v6085
        %v6087 = vlaneseq
        %v6088 = vshrl.u32 %v6087, 7
        %v6089 = vsub.s32 %v6086, %v6088
        %v6090 = vrot.slane %v6082, %v6089
        %v6092 = vunpack.c.l.s4 1934713408
        %v6093 = vunpack.c.0.s8 %v6092
        %v6094 = vlaneseq
        %v6095 = vshrl.u32 %v6094, 7
        %v6096 = vsub.s32 %v6093, %v6095
        %v6097 = vrot.slane %v6083, %v6096
        %v6098 = vcombine.low %v6066, %v6081
        %v6099 = vcombine.high %v6066, %v6081
        %v6101 = vunpack.c.l.s4 1934713408
        %v6102 = vunpack.c.0.s8 %v6101
        %v6103 = vlaneseq
        %v6104 = vshrl.u32 %v6103, 7
        %v6105 = vsub.s32 %v6102, %v6104
        %v6106 = vrot.slane %v6098, %v6105
        %v6108 = vunpack.c.l.s4 1934713408
        %v6109 = vunpack.c.0.s8 %v6108
        %v6110 = vlaneseq
        %v6111 = vshrl.u32 %v6110, 7
        %v6112 = vsub.s32 %v6109, %v6111
        %v6113 = vrot.slane %v6099, %v6112
        %v6114 = vcombine.high %v6090, 0.0
        %v6115 = vcombine.high %v6097, 0.0
        %v6116 = vcombine.high %v6106, 0.0
        %v6117 = vcombine.high %v6113, 0.0
        %v6118 = vcombine.high %v1670, 0.0
        %v6120 = vunpack.c.l.s4 1983009808
        %v6121 = vunpack.c.0.s8 %v6120
        %v6122 = vlaneseq
        %v6123 = vshrl.u32 %v6122, 7
        %v6124 = vsub.s32 %v6121, %v6123
        %v6125 = vrot.slane %v1670, %v6124
        %v6127 = vunpack.c.l.s4 1983009808
        %v6128 = vunpack.c.0.s8 %v6127
        %v6129 = vlaneseq
        %v6130 = vshrl.u32 %v6129, 7
        %v6131 = vsub.s32 %v6128, %v6130
        %v6132 = vrot.slane %v6118, %v6131
        %v6133 = vcombine.high %v1672, 0.0
        %v6135 = vunpack.c.l.s4 1983009808
        %v6136 = vunpack.c.0.s8 %v6135
        %v6137 = vlaneseq
        %v6138 = vshrl.u32 %v6137, 7
        %v6139 = vsub.s32 %v6136, %v6138
        %v6140 = vrot.slane %v1672, %v6139
        %v6142 = vunpack.c.l.s4 1983009808
        %v6143 = vunpack.c.0.s8 %v6142
        %v6144 = vlaneseq
        %v6145 = vshrl.u32 %v6144, 7
        %v6146 = vsub.s32 %v6143, %v6145
        %v6147 = vrot.slane %v6133, %v6146
        %v6148 = vcombine.low %v6125, %v6140
        %v6149 = vcombine.high %v6125, %v6140
        %v6151 = vunpack.c.l.s4 1934713408
        %v6152 = vunpack.c.0.s8 %v6151
        %v6153 = vlaneseq
        %v6154 = vshrl.u32 %v6153, 7
        %v6155 = vsub.s32 %v6152, %v6154
        %v6156 = vrot.slane %v6148, %v6155
        %v6158 = vunpack.c.l.s4 1934713408
        %v6159 = vunpack.c.0.s8 %v6158
        %v6160 = vlaneseq
        %v6161 = vshrl.u32 %v6160, 7
        %v6162 = vsub.s32 %v6159, %v6161
        %v6163 = vrot.slane %v6149, %v6162
        %v6164 = vcombine.low %v6132, %v6147
        %v6165 = vcombine.high %v6132, %v6147
        %v6167 = vunpack.c.l.s4 1934713408
        %v6168 = vunpack.c.0.s8 %v6167
        %v6169 = vlaneseq
        %v6170 = vshrl.u32 %v6169, 7
        %v6171 = vsub.s32 %v6168, %v6170
        %v6172 = vrot.slane %v6164, %v6171
        %v6174 = vunpack.c.l.s4 1934713408
        %v6175 = vunpack.c.0.s8 %v6174
        %v6176 = vlaneseq
        %v6177 = vshrl.u32 %v6176, 7
        %v6178 = vsub.s32 %v6175, %v6177
        %v6179 = vrot.slane %v6165, %v6178
        %v6180 = vcombine.high %v6156, 0.0
        %v6181 = vcombine.high %v6163, 0.0
        %v6182 = vcombine.high %v6172, 0.0
        %v6183 = vcombine.high %v6179, 0.0
        %v6184 = vcombine.high %v1676, 0.0
        %v6186 = vunpack.c.l.s4 1983009808
        %v6187 = vunpack.c.0.s8 %v6186
        %v6188 = vlaneseq
        %v6189 = vshrl.u32 %v6188, 7
        %v6190 = vsub.s32 %v6187, %v6189
        %v6191 = vrot.slane %v1676, %v6190
        %v6193 = vunpack.c.l.s4 1983009808
        %v6194 = vunpack.c.0.s8 %v6193
        %v6195 = vlaneseq
        %v6196 = vshrl.u32 %v6195, 7
        %v6197 = vsub.s32 %v6194, %v6196
        %v6198 = vrot.slane %v6184, %v6197
        %v6199 = vcombine.high %v1678, 0.0
        %v6201 = vunpack.c.l.s4 1983009808
        %v6202 = vunpack.c.0.s8 %v6201
        %v6203 = vlaneseq
        %v6204 = vshrl.u32 %v6203, 7
        %v6205 = vsub.s32 %v6202, %v6204
        %v6206 = vrot.slane %v1678, %v6205
        %v6208 = vunpack.c.l.s4 1983009808
        %v6209 = vunpack.c.0.s8 %v6208
        %v6210 = vlaneseq
        %v6211 = vshrl.u32 %v6210, 7
        %v6212 = vsub.s32 %v6209, %v6211
        %v6213 = vrot.slane %v6199, %v6212
        %v6214 = vcombine.low %v6191, %v6206
        %v6215 = vcombine.high %v6191, %v6206
        %v6217 = vunpack.c.l.s4 1934713408
        %v6218 = vunpack.c.0.s8 %v6217
        %v6219 = vlaneseq
        %v6220 = vshrl.u32 %v6219, 7
        %v6221 = vsub.s32 %v6218, %v6220
        %v6222 = vrot.slane %v6214, %v6221
        %v6224 = vunpack.c.l.s4 1934713408
        %v6225 = vunpack.c.0.s8 %v6224
        %v6226 = vlaneseq
        %v6227 = vshrl.u32 %v6226, 7
        %v6228 = vsub.s32 %v6225, %v6227
        %v6229 = vrot.slane %v6215, %v6228
        %v6230 = vcombine.low %v6198, %v6213
        %v6231 = vcombine.high %v6198, %v6213
        %v6233 = vunpack.c.l.s4 1934713408
        %v6234 = vunpack.c.0.s8 %v6233
        %v6235 = vlaneseq
        %v6236 = vshrl.u32 %v6235, 7
        %v6237 = vsub.s32 %v6234, %v6236
        %v6238 = vrot.slane %v6230, %v6237
        %v6240 = vunpack.c.l.s4 1934713408
        %v6241 = vunpack.c.0.s8 %v6240
        %v6242 = vlaneseq
        %v6243 = vshrl.u32 %v6242, 7
        %v6244 = vsub.s32 %v6241, %v6243
        %v6245 = vrot.slane %v6231, %v6244
        %v6246 = vcombine.high %v6222, 0.0
        %v6247 = vcombine.high %v6229, 0.0
        %v6248 = vcombine.high %v6238, 0.0
        %v6249 = vcombine.high %v6245, 0.0
        %v6250 = vcombine.high %v1680, 0.0
        %v6252 = vunpack.c.l.s4 1983009808
        %v6253 = vunpack.c.0.s8 %v6252
        %v6254 = vlaneseq
        %v6255 = vshrl.u32 %v6254, 7
        %v6256 = vsub.s32 %v6253, %v6255
        %v6257 = vrot.slane %v1680, %v6256
        %v6259 = vunpack.c.l.s4 1983009808
        %v6260 = vunpack.c.0.s8 %v6259
        %v6261 = vlaneseq
        %v6262 = vshrl.u32 %v6261, 7
        %v6263 = vsub.s32 %v6260, %v6262
        %v6264 = vrot.slane %v6250, %v6263
        %v6265 = vcombine.high %v1682, 0.0
        %v6267 = vunpack.c.l.s4 1983009808
        %v6268 = vunpack.c.0.s8 %v6267
        %v6269 = vlaneseq
        %v6270 = vshrl.u32 %v6269, 7
        %v6271 = vsub.s32 %v6268, %v6270
        %v6272 = vrot.slane %v1682, %v6271
        %v6274 = vunpack.c.l.s4 1983009808
        %v6275 = vunpack.c.0.s8 %v6274
        %v6276 = vlaneseq
        %v6277 = vshrl.u32 %v6276, 7
        %v6278 = vsub.s32 %v6275, %v6277
        %v6279 = vrot.slane %v6265, %v6278
        %v6280 = vcombine.low %v6257, %v6272
        %v6281 = vcombine.high %v6257, %v6272
        %v6283 = vunpack.c.l.s4 1934713408
        %v6284 = vunpack.c.0.s8 %v6283
        %v6285 = vlaneseq
        %v6286 = vshrl.u32 %v6285, 7
        %v6287 = vsub.s32 %v6284, %v6286
        %v6288 = vrot.slane %v6280, %v6287
        %v6290 = vunpack.c.l.s4 1934713408
        %v6291 = vunpack.c.0.s8 %v6290
        %v6292 = vlaneseq
        %v6293 = vshrl.u32 %v6292, 7
        %v6294 = vsub.s32 %v6291, %v6293
        %v6295 = vrot.slane %v6281, %v6294
        %v6296 = vcombine.low %v6264, %v6279
        %v6297 = vcombine.high %v6264, %v6279
        %v6299 = vunpack.c.l.s4 1934713408
        %v6300 = vunpack.c.0.s8 %v6299
        %v6301 = vlaneseq
        %v6302 = vshrl.u32 %v6301, 7
        %v6303 = vsub.s32 %v6300, %v6302
        %v6304 = vrot.slane %v6296, %v6303
        %v6306 = vunpack.c.l.s4 1934713408
        %v6307 = vunpack.c.0.s8 %v6306
        %v6308 = vlaneseq
        %v6309 = vshrl.u32 %v6308, 7
        %v6310 = vsub.s32 %v6307, %v6309
        %v6311 = vrot.slane %v6297, %v6310
        %v6312 = vcombine.high %v6288, 0.0
        %v6313 = vcombine.high %v6295, 0.0
        %v6314 = vcombine.high %v6304, 0.0
        %v6315 = vcombine.high %v6311, 0.0
        %v6316 = vcombine.high %v1686, 0.0
        %v6318 = vunpack.c.l.s4 1983009808
        %v6319 = vunpack.c.0.s8 %v6318
        %v6320 = vlaneseq
        %v6321 = vshrl.u32 %v6320, 7
        %v6322 = vsub.s32 %v6319, %v6321
        %v6323 = vrot.slane %v1686, %v6322
        %v6325 = vunpack.c.l.s4 1983009808
        %v6326 = vunpack.c.0.s8 %v6325
        %v6327 = vlaneseq
        %v6328 = vshrl.u32 %v6327, 7
        %v6329 = vsub.s32 %v6326, %v6328
        %v6330 = vrot.slane %v6316, %v6329
        %v6331 = vcombine.high %v1688, 0.0
        %v6333 = vunpack.c.l.s4 1983009808
        %v6334 = vunpack.c.0.s8 %v6333
        %v6335 = vlaneseq
        %v6336 = vshrl.u32 %v6335, 7
        %v6337 = vsub.s32 %v6334, %v6336
        %v6338 = vrot.slane %v1688, %v6337
        %v6340 = vunpack.c.l.s4 1983009808
        %v6341 = vunpack.c.0.s8 %v6340
        %v6342 = vlaneseq
        %v6343 = vshrl.u32 %v6342, 7
        %v6344 = vsub.s32 %v6341, %v6343
        %v6345 = vrot.slane %v6331, %v6344
        %v6346 = vcombine.low %v6323, %v6338
        %v6347 = vcombine.high %v6323, %v6338
        %v6349 = vunpack.c.l.s4 1934713408
        %v6350 = vunpack.c.0.s8 %v6349
        %v6351 = vlaneseq
        %v6352 = vshrl.u32 %v6351, 7
        %v6353 = vsub.s32 %v6350, %v6352
        %v6354 = vrot.slane %v6346, %v6353
        %v6356 = vunpack.c.l.s4 1934713408
        %v6357 = vunpack.c.0.s8 %v6356
        %v6358 = vlaneseq
        %v6359 = vshrl.u32 %v6358, 7
        %v6360 = vsub.s32 %v6357, %v6359
        %v6361 = vrot.slane %v6347, %v6360
        %v6362 = vcombine.low %v6330, %v6345
        %v6363 = vcombine.high %v6330, %v6345
        %v6365 = vunpack.c.l.s4 1934713408
        %v6366 = vunpack.c.0.s8 %v6365
        %v6367 = vlaneseq
        %v6368 = vshrl.u32 %v6367, 7
        %v6369 = vsub.s32 %v6366, %v6368
        %v6370 = vrot.slane %v6362, %v6369
        %v6372 = vunpack.c.l.s4 1934713408
        %v6373 = vunpack.c.0.s8 %v6372
        %v6374 = vlaneseq
        %v6375 = vshrl.u32 %v6374, 7
        %v6376 = vsub.s32 %v6373, %v6375
        %v6377 = vrot.slane %v6363, %v6376
        %v6378 = vcombine.high %v6354, 0.0
        %v6379 = vcombine.high %v6361, 0.0
        %v6380 = vcombine.high %v6370, 0.0
        %v6381 = vcombine.high %v6377, 0.0
        %v6382 = vcombine.high %v1690, 0.0
        %v6384 = vunpack.c.l.s4 1983009808
        %v6385 = vunpack.c.0.s8 %v6384
        %v6386 = vlaneseq
        %v6387 = vshrl.u32 %v6386, 7
        %v6388 = vsub.s32 %v6385, %v6387
        %v6389 = vrot.slane %v1690, %v6388
        %v6391 = vunpack.c.l.s4 1983009808
        %v6392 = vunpack.c.0.s8 %v6391
        %v6393 = vlaneseq
        %v6394 = vshrl.u32 %v6393, 7
        %v6395 = vsub.s32 %v6392, %v6394
        %v6396 = vrot.slane %v6382, %v6395
        %v6397 = vcombine.high %v1692, 0.0
        %v6399 = vunpack.c.l.s4 1983009808
        %v6400 = vunpack.c.0.s8 %v6399
        %v6401 = vlaneseq
        %v6402 = vshrl.u32 %v6401, 7
        %v6403 = vsub.s32 %v6400, %v6402
        %v6404 = vrot.slane %v1692, %v6403
        %v6406 = vunpack.c.l.s4 1983009808
        %v6407 = vunpack.c.0.s8 %v6406
        %v6408 = vlaneseq
        %v6409 = vshrl.u32 %v6408, 7
        %v6410 = vsub.s32 %v6407, %v6409
        %v6411 = vrot.slane %v6397, %v6410
        %v6412 = vcombine.low %v6389, %v6404
        %v6413 = vcombine.high %v6389, %v6404
        %v6415 = vunpack.c.l.s4 1934713408
        %v6416 = vunpack.c.0.s8 %v6415
        %v6417 = vlaneseq
        %v6418 = vshrl.u32 %v6417, 7
        %v6419 = vsub.s32 %v6416, %v6418
        %v6420 = vrot.slane %v6412, %v6419
        %v6422 = vunpack.c.l.s4 1934713408
        %v6423 = vunpack.c.0.s8 %v6422
        %v6424 = vlaneseq
        %v6425 = vshrl.u32 %v6424, 7
        %v6426 = vsub.s32 %v6423, %v6425
        %v6427 = vrot.slane %v6413, %v6426
        %v6428 = vcombine.low %v6396, %v6411
        %v6429 = vcombine.high %v6396, %v6411
        %v6431 = vunpack.c.l.s4 1934713408
        %v6432 = vunpack.c.0.s8 %v6431
        %v6433 = vlaneseq
        %v6434 = vshrl.u32 %v6433, 7
        %v6435 = vsub.s32 %v6432, %v6434
        %v6436 = vrot.slane %v6428, %v6435
        %v6438 = vunpack.c.l.s4 1934713408
        %v6439 = vunpack.c.0.s8 %v6438
        %v6440 = vlaneseq
        %v6441 = vshrl.u32 %v6440, 7
        %v6442 = vsub.s32 %v6439, %v6441
        %v6443 = vrot.slane %v6429, %v6442
        %v6444 = vcombine.high %v6420, 0.0
        %v6445 = vcombine.high %v6427, 0.0
        %v6446 = vcombine.high %v6436, 0.0
        %v6447 = vcombine.high %v6443, 0.0
        %v6448 = vcombine.high %v1696, 0.0
        %v6450 = vunpack.c.l.s4 1983009808
        %v6451 = vunpack.c.0.s8 %v6450
        %v6452 = vlaneseq
        %v6453 = vshrl.u32 %v6452, 7
        %v6454 = vsub.s32 %v6451, %v6453
        %v6455 = vrot.slane %v1696, %v6454
        %v6457 = vunpack.c.l.s4 1983009808
        %v6458 = vunpack.c.0.s8 %v6457
        %v6459 = vlaneseq
        %v6460 = vshrl.u32 %v6459, 7
        %v6461 = vsub.s32 %v6458, %v6460
        %v6462 = vrot.slane %v6448, %v6461
        %v6463 = vcombine.high %v1698, 0.0
        %v6465 = vunpack.c.l.s4 1983009808
        %v6466 = vunpack.c.0.s8 %v6465
        %v6467 = vlaneseq
        %v6468 = vshrl.u32 %v6467, 7
        %v6469 = vsub.s32 %v6466, %v6468
        %v6470 = vrot.slane %v1698, %v6469
        %v6472 = vunpack.c.l.s4 1983009808
        %v6473 = vunpack.c.0.s8 %v6472
        %v6474 = vlaneseq
        %v6475 = vshrl.u32 %v6474, 7
        %v6476 = vsub.s32 %v6473, %v6475
        %v6477 = vrot.slane %v6463, %v6476
        %v6478 = vcombine.low %v6455, %v6470
        %v6479 = vcombine.high %v6455, %v6470
        %v6481 = vunpack.c.l.s4 1934713408
        %v6482 = vunpack.c.0.s8 %v6481
        %v6483 = vlaneseq
        %v6484 = vshrl.u32 %v6483, 7
        %v6485 = vsub.s32 %v6482, %v6484
        %v6486 = vrot.slane %v6478, %v6485
        %v6488 = vunpack.c.l.s4 1934713408
        %v6489 = vunpack.c.0.s8 %v6488
        %v6490 = vlaneseq
        %v6491 = vshrl.u32 %v6490, 7
        %v6492 = vsub.s32 %v6489, %v6491
        %v6493 = vrot.slane %v6479, %v6492
        %v6494 = vcombine.low %v6462, %v6477
        %v6495 = vcombine.high %v6462, %v6477
        %v6497 = vunpack.c.l.s4 1934713408
        %v6498 = vunpack.c.0.s8 %v6497
        %v6499 = vlaneseq
        %v6500 = vshrl.u32 %v6499, 7
        %v6501 = vsub.s32 %v6498, %v6500
        %v6502 = vrot.slane %v6494, %v6501
        %v6504 = vunpack.c.l.s4 1934713408
        %v6505 = vunpack.c.0.s8 %v6504
        %v6506 = vlaneseq
        %v6507 = vshrl.u32 %v6506, 7
        %v6508 = vsub.s32 %v6505, %v6507
        %v6509 = vrot.slane %v6495, %v6508
        %v6510 = vcombine.high %v6486, 0.0
        %v6511 = vcombine.high %v6493, 0.0
        %v6512 = vcombine.high %v6502, 0.0
        %v6513 = vcombine.high %v6509, 0.0
        %v6514 = vcombine.high %v1700, 0.0
        %v6516 = vunpack.c.l.s4 1983009808
        %v6517 = vunpack.c.0.s8 %v6516
        %v6518 = vlaneseq
        %v6519 = vshrl.u32 %v6518, 7
        %v6520 = vsub.s32 %v6517, %v6519
        %v6521 = vrot.slane %v1700, %v6520
        %v6523 = vunpack.c.l.s4 1983009808
        %v6524 = vunpack.c.0.s8 %v6523
        %v6525 = vlaneseq
        %v6526 = vshrl.u32 %v6525, 7
        %v6527 = vsub.s32 %v6524, %v6526
        %v6528 = vrot.slane %v6514, %v6527
        %v6529 = vcombine.high %v1702, 0.0
        %v6531 = vunpack.c.l.s4 1983009808
        %v6532 = vunpack.c.0.s8 %v6531
        %v6533 = vlaneseq
        %v6534 = vshrl.u32 %v6533, 7
        %v6535 = vsub.s32 %v6532, %v6534
        %v6536 = vrot.slane %v1702, %v6535
        %v6538 = vunpack.c.l.s4 1983009808
        %v6539 = vunpack.c.0.s8 %v6538
        %v6540 = vlaneseq
        %v6541 = vshrl.u32 %v6540, 7
        %v6542 = vsub.s32 %v6539, %v6541
        %v6543 = vrot.slane %v6529, %v6542
        %v6544 = vcombine.low %v6521, %v6536
        %v6545 = vcombine.high %v6521, %v6536
        %v6547 = vunpack.c.l.s4 1934713408
        %v6548 = vunpack.c.0.s8 %v6547
        %v6549 = vlaneseq
        %v6550 = vshrl.u32 %v6549, 7
        %v6551 = vsub.s32 %v6548, %v6550
        %v6552 = vrot.slane %v6544, %v6551
        %v6554 = vunpack.c.l.s4 1934713408
        %v6555 = vunpack.c.0.s8 %v6554
        %v6556 = vlaneseq
        %v6557 = vshrl.u32 %v6556, 7
        %v6558 = vsub.s32 %v6555, %v6557
        %v6559 = vrot.slane %v6545, %v6558
        %v6560 = vcombine.low %v6528, %v6543
        %v6561 = vcombine.high %v6528, %v6543
        %v6563 = vunpack.c.l.s4 1934713408
        %v6564 = vunpack.c.0.s8 %v6563
        %v6565 = vlaneseq
        %v6566 = vshrl.u32 %v6565, 7
        %v6567 = vsub.s32 %v6564, %v6566
        %v6568 = vrot.slane %v6560, %v6567
        %v6570 = vunpack.c.l.s4 1934713408
        %v6571 = vunpack.c.0.s8 %v6570
        %v6572 = vlaneseq
        %v6573 = vshrl.u32 %v6572, 7
        %v6574 = vsub.s32 %v6571, %v6573
        %v6575 = vrot.slane %v6561, %v6574
        %v6576 = vcombine.high %v6552, 0.0
        %v6577 = vcombine.high %v6559, 0.0
        %v6578 = vcombine.high %v6568, 0.0
        %v6579 = vcombine.high %v6575, 0.0
        %v6580 = vcombine.high %v1706, 0.0
        %v6582 = vunpack.c.l.s4 1983009808
        %v6583 = vunpack.c.0.s8 %v6582
        %v6584 = vlaneseq
        %v6585 = vshrl.u32 %v6584, 7
        %v6586 = vsub.s32 %v6583, %v6585
        %v6587 = vrot.slane %v1706, %v6586
        %v6589 = vunpack.c.l.s4 1983009808
        %v6590 = vunpack.c.0.s8 %v6589
        %v6591 = vlaneseq
        %v6592 = vshrl.u32 %v6591, 7
        %v6593 = vsub.s32 %v6590, %v6592
        %v6594 = vrot.slane %v6580, %v6593
        %v6595 = vcombine.high %v1708, 0.0
        %v6597 = vunpack.c.l.s4 1983009808
        %v6598 = vunpack.c.0.s8 %v6597
        %v6599 = vlaneseq
        %v6600 = vshrl.u32 %v6599, 7
        %v6601 = vsub.s32 %v6598, %v6600
        %v6602 = vrot.slane %v1708, %v6601
        %v6604 = vunpack.c.l.s4 1983009808
        %v6605 = vunpack.c.0.s8 %v6604
        %v6606 = vlaneseq
        %v6607 = vshrl.u32 %v6606, 7
        %v6608 = vsub.s32 %v6605, %v6607
        %v6609 = vrot.slane %v6595, %v6608
        %v6610 = vcombine.low %v6587, %v6602
        %v6611 = vcombine.high %v6587, %v6602
        %v6613 = vunpack.c.l.s4 1934713408
        %v6614 = vunpack.c.0.s8 %v6613
        %v6615 = vlaneseq
        %v6616 = vshrl.u32 %v6615, 7
        %v6617 = vsub.s32 %v6614, %v6616
        %v6618 = vrot.slane %v6610, %v6617
        %v6620 = vunpack.c.l.s4 1934713408
        %v6621 = vunpack.c.0.s8 %v6620
        %v6622 = vlaneseq
        %v6623 = vshrl.u32 %v6622, 7
        %v6624 = vsub.s32 %v6621, %v6623
        %v6625 = vrot.slane %v6611, %v6624
        %v6626 = vcombine.low %v6594, %v6609
        %v6627 = vcombine.high %v6594, %v6609
        %v6629 = vunpack.c.l.s4 1934713408
        %v6630 = vunpack.c.0.s8 %v6629
        %v6631 = vlaneseq
        %v6632 = vshrl.u32 %v6631, 7
        %v6633 = vsub.s32 %v6630, %v6632
        %v6634 = vrot.slane %v6626, %v6633
        %v6636 = vunpack.c.l.s4 1934713408
        %v6637 = vunpack.c.0.s8 %v6636
        %v6638 = vlaneseq
        %v6639 = vshrl.u32 %v6638, 7
        %v6640 = vsub.s32 %v6637, %v6639
        %v6641 = vrot.slane %v6627, %v6640
        %v6642 = vcombine.high %v6618, 0.0
        %v6643 = vcombine.high %v6625, 0.0
        %v6644 = vcombine.high %v6634, 0.0
        %v6645 = vcombine.high %v6641, 0.0
        %v6646 = vcombine.high %v1710, 0.0
        %v6648 = vunpack.c.l.s4 1983009808
        %v6649 = vunpack.c.0.s8 %v6648
        %v6650 = vlaneseq
        %v6651 = vshrl.u32 %v6650, 7
        %v6652 = vsub.s32 %v6649, %v6651
        %v6653 = vrot.slane %v1710, %v6652
        %v6655 = vunpack.c.l.s4 1983009808
        %v6656 = vunpack.c.0.s8 %v6655
        %v6657 = vlaneseq
        %v6658 = vshrl.u32 %v6657, 7
        %v6659 = vsub.s32 %v6656, %v6658
        %v6660 = vrot.slane %v6646, %v6659
        %v6661 = vcombine.high %v1712, 0.0
        %v6663 = vunpack.c.l.s4 1983009808
        %v6664 = vunpack.c.0.s8 %v6663
        %v6665 = vlaneseq
        %v6666 = vshrl.u32 %v6665, 7
        %v6667 = vsub.s32 %v6664, %v6666
        %v6668 = vrot.slane %v1712, %v6667
        %v6670 = vunpack.c.l.s4 1983009808
        %v6671 = vunpack.c.0.s8 %v6670
        %v6672 = vlaneseq
        %v6673 = vshrl.u32 %v6672, 7
        %v6674 = vsub.s32 %v6671, %v6673
        %v6675 = vrot.slane %v6661, %v6674
        %v6676 = vcombine.low %v6653, %v6668
        %v6677 = vcombine.high %v6653, %v6668
        %v6679 = vunpack.c.l.s4 1934713408
        %v6680 = vunpack.c.0.s8 %v6679
        %v6681 = vlaneseq
        %v6682 = vshrl.u32 %v6681, 7
        %v6683 = vsub.s32 %v6680, %v6682
        %v6684 = vrot.slane %v6676, %v6683
        %v6686 = vunpack.c.l.s4 1934713408
        %v6687 = vunpack.c.0.s8 %v6686
        %v6688 = vlaneseq
        %v6689 = vshrl.u32 %v6688, 7
        %v6690 = vsub.s32 %v6687, %v6689
        %v6691 = vrot.slane %v6677, %v6690
        %v6692 = vcombine.low %v6660, %v6675
        %v6693 = vcombine.high %v6660, %v6675
        %v6695 = vunpack.c.l.s4 1934713408
        %v6696 = vunpack.c.0.s8 %v6695
        %v6697 = vlaneseq
        %v6698 = vshrl.u32 %v6697, 7
        %v6699 = vsub.s32 %v6696, %v6698
        %v6700 = vrot.slane %v6692, %v6699
        %v6702 = vunpack.c.l.s4 1934713408
        %v6703 = vunpack.c.0.s8 %v6702
        %v6704 = vlaneseq
        %v6705 = vshrl.u32 %v6704, 7
        %v6706 = vsub.s32 %v6703, %v6705
        %v6707 = vrot.slane %v6693, %v6706
        %v6708 = vcombine.high %v6684, 0.0
        %v6709 = vcombine.high %v6691, 0.0
        %v6710 = vcombine.high %v6700, 0.0
        %v6711 = vcombine.high %v6707, 0.0
        %v6712 = vcombine.high %v1716, 0.0
        %v6714 = vunpack.c.l.s4 1983009808
        %v6715 = vunpack.c.0.s8 %v6714
        %v6716 = vlaneseq
        %v6717 = vshrl.u32 %v6716, 7
        %v6718 = vsub.s32 %v6715, %v6717
        %v6719 = vrot.slane %v1716, %v6718
        %v6721 = vunpack.c.l.s4 1983009808
        %v6722 = vunpack.c.0.s8 %v6721
        %v6723 = vlaneseq
        %v6724 = vshrl.u32 %v6723, 7
        %v6725 = vsub.s32 %v6722, %v6724
        %v6726 = vrot.slane %v6712, %v6725
        %v6727 = vcombine.high %v1718, 0.0
        %v6729 = vunpack.c.l.s4 1983009808
        %v6730 = vunpack.c.0.s8 %v6729
        %v6731 = vlaneseq
        %v6732 = vshrl.u32 %v6731, 7
        %v6733 = vsub.s32 %v6730, %v6732
        %v6734 = vrot.slane %v1718, %v6733
        %v6736 = vunpack.c.l.s4 1983009808
        %v6737 = vunpack.c.0.s8 %v6736
        %v6738 = vlaneseq
        %v6739 = vshrl.u32 %v6738, 7
        %v6740 = vsub.s32 %v6737, %v6739
        %v6741 = vrot.slane %v6727, %v6740
        %v6742 = vcombine.low %v6719, %v6734
        %v6743 = vcombine.high %v6719, %v6734
        %v6745 = vunpack.c.l.s4 1934713408
        %v6746 = vunpack.c.0.s8 %v6745
        %v6747 = vlaneseq
        %v6748 = vshrl.u32 %v6747, 7
        %v6749 = vsub.s32 %v6746, %v6748
        %v6750 = vrot.slane %v6742, %v6749
        %v6752 = vunpack.c.l.s4 1934713408
        %v6753 = vunpack.c.0.s8 %v6752
        %v6754 = vlaneseq
        %v6755 = vshrl.u32 %v6754, 7
        %v6756 = vsub.s32 %v6753, %v6755
        %v6757 = vrot.slane %v6743, %v6756
        %v6758 = vcombine.low %v6726, %v6741
        %v6759 = vcombine.high %v6726, %v6741
        %v6761 = vunpack.c.l.s4 1934713408
        %v6762 = vunpack.c.0.s8 %v6761
        %v6763 = vlaneseq
        %v6764 = vshrl.u32 %v6763, 7
        %v6765 = vsub.s32 %v6762, %v6764
        %v6766 = vrot.slane %v6758, %v6765
        %v6768 = vunpack.c.l.s4 1934713408
        %v6769 = vunpack.c.0.s8 %v6768
        %v6770 = vlaneseq
        %v6771 = vshrl.u32 %v6770, 7
        %v6772 = vsub.s32 %v6769, %v6771
        %v6773 = vrot.slane %v6759, %v6772
        %v6774 = vcombine.high %v6750, 0.0
        %v6775 = vcombine.high %v6757, 0.0
        %v6776 = vcombine.high %v6766, 0.0
        %v6777 = vcombine.high %v6773, 0.0
        %v6778 = vcombine.high %v1720, 0.0
        %v6780 = vunpack.c.l.s4 1983009808
        %v6781 = vunpack.c.0.s8 %v6780
        %v6782 = vlaneseq
        %v6783 = vshrl.u32 %v6782, 7
        %v6784 = vsub.s32 %v6781, %v6783
        %v6785 = vrot.slane %v1720, %v6784
        %v6787 = vunpack.c.l.s4 1983009808
        %v6788 = vunpack.c.0.s8 %v6787
        %v6789 = vlaneseq
        %v6790 = vshrl.u32 %v6789, 7
        %v6791 = vsub.s32 %v6788, %v6790
        %v6792 = vrot.slane %v6778, %v6791
        %v6793 = vcombine.high %v1722, 0.0
        %v6795 = vunpack.c.l.s4 1983009808
        %v6796 = vunpack.c.0.s8 %v6795
        %v6797 = vlaneseq
        %v6798 = vshrl.u32 %v6797, 7
        %v6799 = vsub.s32 %v6796, %v6798
        %v6800 = vrot.slane %v1722, %v6799
        %v6802 = vunpack.c.l.s4 1983009808
        %v6803 = vunpack.c.0.s8 %v6802
        %v6804 = vlaneseq
        %v6805 = vshrl.u32 %v6804, 7
        %v6806 = vsub.s32 %v6803, %v6805
        %v6807 = vrot.slane %v6793, %v6806
        %v6808 = vcombine.low %v6785, %v6800
        %v6809 = vcombine.high %v6785, %v6800
        %v6811 = vunpack.c.l.s4 1934713408
        %v6812 = vunpack.c.0.s8 %v6811
        %v6813 = vlaneseq
        %v6814 = vshrl.u32 %v6813, 7
        %v6815 = vsub.s32 %v6812, %v6814
        %v6816 = vrot.slane %v6808, %v6815
        %v6818 = vunpack.c.l.s4 1934713408
        %v6819 = vunpack.c.0.s8 %v6818
        %v6820 = vlaneseq
        %v6821 = vshrl.u32 %v6820, 7
        %v6822 = vsub.s32 %v6819, %v6821
        %v6823 = vrot.slane %v6809, %v6822
        %v6824 = vcombine.low %v6792, %v6807
        %v6825 = vcombine.high %v6792, %v6807
        %v6827 = vunpack.c.l.s4 1934713408
        %v6828 = vunpack.c.0.s8 %v6827
        %v6829 = vlaneseq
        %v6830 = vshrl.u32 %v6829, 7
        %v6831 = vsub.s32 %v6828, %v6830
        %v6832 = vrot.slane %v6824, %v6831
        %v6834 = vunpack.c.l.s4 1934713408
        %v6835 = vunpack.c.0.s8 %v6834
        %v6836 = vlaneseq
        %v6837 = vshrl.u32 %v6836, 7
        %v6838 = vsub.s32 %v6835, %v6837
        %v6839 = vrot.slane %v6825, %v6838
        %v6840 = vcombine.high %v6816, 0.0
        %v6841 = vcombine.high %v6823, 0.0
        %v6842 = vcombine.high %v6832, 0.0
        %v6843 = vcombine.high %v6839, 0.0
        %v6844 = vcombine.low %v5826, %v5833
        %v6846 = vunpack.c.l.s4 1983009808
        %v6847 = vunpack.c.0.s8 %v6846
        %v6848 = vlaneseq
        %v6849 = vshrl.u32 %v6848, 7
        %v6850 = vsub.s32 %v6847, %v6849
        %v6851 = vrot.slane %v6844, %v6850
        %v6852 = vcombine.low %v5850, %v5851
        %v6854 = vunpack.c.l.s4 1983009808
        %v6855 = vunpack.c.0.s8 %v6854
        %v6856 = vlaneseq
        %v6857 = vshrl.u32 %v6856, 7
        %v6858 = vsub.s32 %v6855, %v6857
        %v6859 = vrot.slane %v6852, %v6858
        %v6860 = vcombine.low %v5842, %v5849
        %v6862 = vunpack.c.l.s4 1983009808
        %v6863 = vunpack.c.0.s8 %v6862
        %v6864 = vlaneseq
        %v6865 = vshrl.u32 %v6864, 7
        %v6866 = vsub.s32 %v6863, %v6865
        %v6867 = vrot.slane %v6860, %v6866
        %v6868 = vcombine.low %v5852, %v5853
        %v6870 = vunpack.c.l.s4 1983009808
        %v6871 = vunpack.c.0.s8 %v6870
        %v6872 = vlaneseq
        %v6873 = vshrl.u32 %v6872, 7
        %v6874 = vsub.s32 %v6871, %v6873
        %v6875 = vrot.slane %v6868, %v6874
        %v6876 = vcombine.low %v6851, %v6859
        %v6878 = vunpack.c.l.s4 1934713408
        %v6879 = vunpack.c.0.s8 %v6878
        %v6880 = vlaneseq
        %v6881 = vshrl.u32 %v6880, 7
        %v6882 = vsub.s32 %v6879, %v6881
        %v6883 = vrot.slane %v6876, %v6882
        %v6884 = vcombine.low %v6867, %v6875
        %v6886 = vunpack.c.l.s4 1934713408
        %v6887 = vunpack.c.0.s8 %v6886
        %v6888 = vlaneseq
        %v6889 = vshrl.u32 %v6888, 7
        %v6890 = vsub.s32 %v6887, %v6889
        %v6891 = vrot.slane %v6884, %v6890
        %v6892 = vcombine.low %v6883, %v6891
        %v6893 = vcombine.high %v6883, %v6891
        %v6894 = vcombine.low %v5892, %v5899
        %v6896 = vunpack.c.l.s4 1983009808
        %v6897 = vunpack.c.0.s8 %v6896
        %v6898 = vlaneseq
        %v6899 = vshrl.u32 %v6898, 7
        %v6900 = vsub.s32 %v6897, %v6899
        %v6901 = vrot.slane %v6894, %v6900
        %v6902 = vcombine.low %v5916, %v5917
        %v6904 = vunpack.c.l.s4 1983009808
        %v6905 = vunpack.c.0.s8 %v6904
        %v6906 = vlaneseq
        %v6907 = vshrl.u32 %v6906, 7
        %v6908 = vsub.s32 %v6905, %v6907
        %v6909 = vrot.slane %v6902, %v6908
        %v6910 = vcombine.low %v5908, %v5915
        %v6912 = vunpack.c.l.s4 1983009808
        %v6913 = vunpack.c.0.s8 %v6912
        %v6914 = vlaneseq
        %v6915 = vshrl.u32 %v6914, 7
        %v6916 = vsub.s32 %v6913, %v6915
        %v6917 = vrot.slane %v6910, %v6916
        %v6918 = vcombine.low %v5918, %v5919
        %v6920 = vunpack.c.l.s4 1983009808
        %v6921 = vunpack.c.0.s8 %v6920
        %v6922 = vlaneseq
        %v6923 = vshrl.u32 %v6922, 7
        %v6924 = vsub.s32 %v6921, %v6923
        %v6925 = vrot.slane %v6918, %v6924
        %v6926 = vcombine.low %v6901, %v6909
        %v6928 = vunpack.c.l.s4 1934713408
        %v6929 = vunpack.c.0.s8 %v6928
        %v6930 = vlaneseq
        %v6931 = vshrl.u32 %v6930, 7
        %v6932 = vsub.s32 %v6929, %v6931
        %v6933 = vrot.slane %v6926, %v6932
        %v6934 = vcombine.low %v6917, %v6925
        %v6936 = vunpack.c.l.s4 1934713408
        %v6937 = vunpack.c.0.s8 %v6936
        %v6938 = vlaneseq
        %v6939 = vshrl.u32 %v6938, 7
        %v6940 = vsub.s32 %v6937, %v6939
        %v6941 = vrot.slane %v6934, %v6940
        %v6942 = vcombine.low %v6933, %v6941
        %v6943 = vcombine.high %v6933, %v6941
        %v6944 = vcombine.low %v5958, %v5965
        %v6946 = vunpack.c.l.s4 1983009808
        %v6947 = vunpack.c.0.s8 %v6946
        %v6948 = vlaneseq
        %v6949 = vshrl.u32 %v6948, 7
        %v6950 = vsub.s32 %v6947, %v6949
        %v6951 = vrot.slane %v6944, %v6950
        %v6952 = vcombine.low %v5982, %v5983
        %v6954 = vunpack.c.l.s4 1983009808
        %v6955 = vunpack.c.0.s8 %v6954
        %v6956 = vlaneseq
        %v6957 = vshrl.u32 %v6956, 7
        %v6958 = vsub.s32 %v6955, %v6957
        %v6959 = vrot.slane %v6952, %v6958
        %v6960 = vcombine.low %v5974, %v5981
        %v6962 = vunpack.c.l.s4 1983009808
        %v6963 = vunpack.c.0.s8 %v6962
        %v6964 = vlaneseq
        %v6965 = vshrl.u32 %v6964, 7
        %v6966 = vsub.s32 %v6963, %v6965
        %v6967 = vrot.slane %v6960, %v6966
        %v6968 = vcombine.low %v5984, %v5985
        %v6970 = vunpack.c.l.s4 1983009808
        %v6971 = vunpack.c.0.s8 %v6970
        %v6972 = vlaneseq
        %v6973 = vshrl.u32 %v6972, 7
        %v6974 = vsub.s32 %v6971, %v6973
        %v6975 = vrot.slane %v6968, %v6974
        %v6976 = vcombine.low %v6951, %v6959
        %v6978 = vunpack.c.l.s4 1934713408
        %v6979 = vunpack.c.0.s8 %v6978
        %v6980 = vlaneseq
        %v6981 = vshrl.u32 %v6980, 7
        %v6982 = vsub.s32 %v6979, %v6981
        %v6983 = vrot.slane %v6976, %v6982
        %v6984 = vcombine.low %v6967, %v6975
        %v6986 = vunpack.c.l.s4 1934713408
        %v6987 = vunpack.c.0.s8 %v6986
        %v6988 = vlaneseq
        %v6989 = vshrl.u32 %v6988, 7
        %v6990 = vsub.s32 %v6987, %v6989
        %v6991 = vrot.slane %v6984, %v6990
        %v6992 = vcombine.low %v6983, %v6991
        %v6993 = vcombine.high %v6983, %v6991
        %v6994 = vcombine.low %v6024, %v6031
        %v6996 = vunpack.c.l.s4 1983009808
        %v6997 = vunpack.c.0.s8 %v6996
        %v6998 = vlaneseq
        %v6999 = vshrl.u32 %v6998, 7
        %v7000 = vsub.s32 %v6997, %v6999
        %v7001 = vrot.slane %v6994, %v7000
        %v7002 = vcombine.low %v6048, %v6049
        %v7004 = vunpack.c.l.s4 1983009808
        %v7005 = vunpack.c.0.s8 %v7004
        %v7006 = vlaneseq
        %v7007 = vshrl.u32 %v7006, 7
        %v7008 = vsub.s32 %v7005, %v7007
        %v7009 = vrot.slane %v7002, %v7008
        %v7010 = vcombine.low %v6040, %v6047
        %v7012 = vunpack.c.l.s4 1983009808
        %v7013 = vunpack.c.0.s8 %v7012
        %v7014 = vlaneseq
        %v7015 = vshrl.u32 %v7014, 7
        %v7016 = vsub.s32 %v7013, %v7015
        %v7017 = vrot.slane %v7010, %v7016
        %v7018 = vcombine.low %v6050, %v6051
        %v7020 = vunpack.c.l.s4 1983009808
        %v7021 = vunpack.c.0.s8 %v7020
        %v7022 = vlaneseq
        %v7023 = vshrl.u32 %v7022, 7
        %v7024 = vsub.s32 %v7021, %v7023
        %v7025 = vrot.slane %v7018, %v7024
        %v7026 = vcombine.low %v7001, %v7009
        %v7028 = vunpack.c.l.s4 1934713408
        %v7029 = vunpack.c.0.s8 %v7028
        %v7030 = vlaneseq
        %v7031 = vshrl.u32 %v7030, 7
        %v7032 = vsub.s32 %v7029, %v7031
        %v7033 = vrot.slane %v7026, %v7032
        %v7034 = vcombine.low %v7017, %v7025
        %v7036 = vunpack.c.l.s4 1934713408
        %v7037 = vunpack.c.0.s8 %v7036
        %v7038 = vlaneseq
        %v7039 = vshrl.u32 %v7038, 7
        %v7040 = vsub.s32 %v7037, %v7039
        %v7041 = vrot.slane %v7034, %v7040
        %v7042 = vcombine.low %v7033, %v7041
        %v7043 = vcombine.high %v7033, %v7041
        %v7044 = vcombine.low %v6090, %v6097
        %v7046 = vunpack.c.l.s4 1983009808
        %v7047 = vunpack.c.0.s8 %v7046
        %v7048 = vlaneseq
        %v7049 = vshrl.u32 %v7048, 7
        %v7050 = vsub.s32 %v7047, %v7049
        %v7051 = vrot.slane %v7044, %v7050
        %v7052 = vcombine.low %v6114, %v6115
        %v7054 = vunpack.c.l.s4 1983009808
        %v7055 = vunpack.c.0.s8 %v7054
        %v7056 = vlaneseq
        %v7057 = vshrl.u32 %v7056, 7
        %v7058 = vsub.s32 %v7055, %v7057
        %v7059 = vrot.slane %v7052, %v7058
        %v7060 = vcombine.low %v6106, %v6113
        %v7062 = vunpack.c.l.s4 1983009808
        %v7063 = vunpack.c.0.s8 %v7062
        %v7064 = vlaneseq
        %v7065 = vshrl.u32 %v7064, 7
        %v7066 = vsub.s32 %v7063, %v7065
        %v7067 = vrot.slane %v7060, %v7066
        %v7068 = vcombine.low %v6116, %v6117
        %v7070 = vunpack.c.l.s4 1983009808
        %v7071 = vunpack.c.0.s8 %v7070
        %v7072 = vlaneseq
        %v7073 = vshrl.u32 %v7072, 7
        %v7074 = vsub.s32 %v7071, %v7073
        %v7075 = vrot.slane %v7068, %v7074
        %v7076 = vcombine.low %v7051, %v7059
        %v7078 = vunpack.c.l.s4 1934713408
        %v7079 = vunpack.c.0.s8 %v7078
        %v7080 = vlaneseq
        %v7081 = vshrl.u32 %v7080, 7
        %v7082 = vsub.s32 %v7079, %v7081
        %v7083 = vrot.slane %v7076, %v7082
        %v7084 = vcombine.low %v7067, %v7075
        %v7086 = vunpack.c.l.s4 1934713408
        %v7087 = vunpack.c.0.s8 %v7086
        %v7088 = vlaneseq
        %v7089 = vshrl.u32 %v7088, 7
        %v7090 = vsub.s32 %v7087, %v7089
        %v7091 = vrot.slane %v7084, %v7090
        %v7092 = vcombine.low %v7083, %v7091
        %v7093 = vcombine.high %v7083, %v7091
        %v7094 = vcombine.low %v6156, %v6163
        %v7096 = vunpack.c.l.s4 1983009808
        %v7097 = vunpack.c.0.s8 %v7096
        %v7098 = vlaneseq
        %v7099 = vshrl.u32 %v7098, 7
        %v7100 = vsub.s32 %v7097, %v7099
        %v7101 = vrot.slane %v7094, %v7100
        %v7102 = vcombine.low %v6180, %v6181
        %v7104 = vunpack.c.l.s4 1983009808
        %v7105 = vunpack.c.0.s8 %v7104
        %v7106 = vlaneseq
        %v7107 = vshrl.u32 %v7106, 7
        %v7108 = vsub.s32 %v7105, %v7107
        %v7109 = vrot.slane %v7102, %v7108
        %v7110 = vcombine.low %v6172, %v6179
        %v7112 = vunpack.c.l.s4 1983009808
        %v7113 = vunpack.c.0.s8 %v7112
        %v7114 = vlaneseq
        %v7115 = vshrl.u32 %v7114, 7
        %v7116 = vsub.s32 %v7113, %v7115
        %v7117 = vrot.slane %v7110, %v7116
        %v7118 = vcombine.low %v6182, %v6183
        %v7120 = vunpack.c.l.s4 1983009808
        %v7121 = vunpack.c.0.s8 %v7120
        %v7122 = vlaneseq
        %v7123 = vshrl.u32 %v7122, 7
        %v7124 = vsub.s32 %v7121, %v7123
        %v7125 = vrot.slane %v7118, %v7124
        %v7126 = vcombine.low %v7101, %v7109
        %v7128 = vunpack.c.l.s4 1934713408
        %v7129 = vunpack.c.0.s8 %v7128
        %v7130 = vlaneseq
        %v7131 = vshrl.u32 %v7130, 7
        %v7132 = vsub.s32 %v7129, %v7131
        %v7133 = vrot.slane %v7126, %v7132
        %v7134 = vcombine.low %v7117, %v7125
        %v7136 = vunpack.c.l.s4 1934713408
        %v7137 = vunpack.c.0.s8 %v7136
        %v7138 = vlaneseq
        %v7139 = vshrl.u32 %v7138, 7
        %v7140 = vsub.s32 %v7137, %v7139
        %v7141 = vrot.slane %v7134, %v7140
        %v7142 = vcombine.low %v7133, %v7141
        %v7143 = vcombine.high %v7133, %v7141
        %v7144 = vcombine.low %v6222, %v6229
        %v7146 = vunpack.c.l.s4 1983009808
        %v7147 = vunpack.c.0.s8 %v7146
        %v7148 = vlaneseq
        %v7149 = vshrl.u32 %v7148, 7
        %v7150 = vsub.s32 %v7147, %v7149
        %v7151 = vrot.slane %v7144, %v7150
        %v7152 = vcombine.low %v6246, %v6247
        %v7154 = vunpack.c.l.s4 1983009808
        %v7155 = vunpack.c.0.s8 %v7154
        %v7156 = vlaneseq
        %v7157 = vshrl.u32 %v7156, 7
        %v7158 = vsub.s32 %v7155, %v7157
        %v7159 = vrot.slane %v7152, %v7158
        %v7160 = vcombine.low %v6238, %v6245
        %v7162 = vunpack.c.l.s4 1983009808
        %v7163 = vunpack.c.0.s8 %v7162
        %v7164 = vlaneseq
        %v7165 = vshrl.u32 %v7164, 7
        %v7166 = vsub.s32 %v7163, %v7165
        %v7167 = vrot.slane %v7160, %v7166
        %v7168 = vcombine.low %v6248, %v6249
        %v7170 = vunpack.c.l.s4 1983009808
        %v7171 = vunpack.c.0.s8 %v7170
        %v7172 = vlaneseq
        %v7173 = vshrl.u32 %v7172, 7
        %v7174 = vsub.s32 %v7171, %v7173
        %v7175 = vrot.slane %v7168, %v7174
        %v7176 = vcombine.low %v7151, %v7159
        %v7178 = vunpack.c.l.s4 1934713408
        %v7179 = vunpack.c.0.s8 %v7178
        %v7180 = vlaneseq
        %v7181 = vshrl.u32 %v7180, 7
        %v7182 = vsub.s32 %v7179, %v7181
        %v7183 = vrot.slane %v7176, %v7182
        %v7184 = vcombine.low %v7167, %v7175
        %v7186 = vunpack.c.l.s4 1934713408
        %v7187 = vunpack.c.0.s8 %v7186
        %v7188 = vlaneseq
        %v7189 = vshrl.u32 %v7188, 7
        %v7190 = vsub.s32 %v7187, %v7189
        %v7191 = vrot.slane %v7184, %v7190
        %v7192 = vcombine.low %v7183, %v7191
        %v7193 = vcombine.high %v7183, %v7191
        %v7194 = vcombine.low %v6288, %v6295
        %v7196 = vunpack.c.l.s4 1983009808
        %v7197 = vunpack.c.0.s8 %v7196
        %v7198 = vlaneseq
        %v7199 = vshrl.u32 %v7198, 7
        %v7200 = vsub.s32 %v7197, %v7199
        %v7201 = vrot.slane %v7194, %v7200
        %v7202 = vcombine.low %v6312, %v6313
        %v7204 = vunpack.c.l.s4 1983009808
        %v7205 = vunpack.c.0.s8 %v7204
        %v7206 = vlaneseq
        %v7207 = vshrl.u32 %v7206, 7
        %v7208 = vsub.s32 %v7205, %v7207
        %v7209 = vrot.slane %v7202, %v7208
        %v7210 = vcombine.low %v6304, %v6311
        %v7212 = vunpack.c.l.s4 1983009808
        %v7213 = vunpack.c.0.s8 %v7212
        %v7214 = vlaneseq
        %v7215 = vshrl.u32 %v7214, 7
        %v7216 = vsub.s32 %v7213, %v7215
        %v7217 = vrot.slane %v7210, %v7216
        %v7218 = vcombine.low %v6314, %v6315
        %v7220 = vunpack.c.l.s4 1983009808
        %v7221 = vunpack.c.0.s8 %v7220
        %v7222 = vlaneseq
        %v7223 = vshrl.u32 %v7222, 7
        %v7224 = vsub.s32 %v7221, %v7223
        %v7225 = vrot.slane %v7218, %v7224
        %v7226 = vcombine.low %v7201, %v7209
        %v7228 = vunpack.c.l.s4 1934713408
        %v7229 = vunpack.c.0.s8 %v7228
        %v7230 = vlaneseq
        %v7231 = vshrl.u32 %v7230, 7
        %v7232 = vsub.s32 %v7229, %v7231
        %v7233 = vrot.slane %v7226, %v7232
        %v7234 = vcombine.low %v7217, %v7225
        %v7236 = vunpack.c.l.s4 1934713408
        %v7237 = vunpack.c.0.s8 %v7236
        %v7238 = vlaneseq
        %v7239 = vshrl.u32 %v7238, 7
        %v7240 = vsub.s32 %v7237, %v7239
        %v7241 = vrot.slane %v7234, %v7240
        %v7242 = vcombine.low %v7233, %v7241
        %v7243 = vcombine.high %v7233, %v7241
        %v7244 = vcombine.low %v6354, %v6361
        %v7246 = vunpack.c.l.s4 1983009808
        %v7247 = vunpack.c.0.s8 %v7246
        %v7248 = vlaneseq
        %v7249 = vshrl.u32 %v7248, 7
        %v7250 = vsub.s32 %v7247, %v7249
        %v7251 = vrot.slane %v7244, %v7250
        %v7252 = vcombine.low %v6378, %v6379
        %v7254 = vunpack.c.l.s4 1983009808
        %v7255 = vunpack.c.0.s8 %v7254
        %v7256 = vlaneseq
        %v7257 = vshrl.u32 %v7256, 7
        %v7258 = vsub.s32 %v7255, %v7257
        %v7259 = vrot.slane %v7252, %v7258
        %v7260 = vcombine.low %v6370, %v6377
        %v7262 = vunpack.c.l.s4 1983009808
        %v7263 = vunpack.c.0.s8 %v7262
        %v7264 = vlaneseq
        %v7265 = vshrl.u32 %v7264, 7
        %v7266 = vsub.s32 %v7263, %v7265
        %v7267 = vrot.slane %v7260, %v7266
        %v7268 = vcombine.low %v6380, %v6381
        %v7270 = vunpack.c.l.s4 1983009808
        %v7271 = vunpack.c.0.s8 %v7270
        %v7272 = vlaneseq
        %v7273 = vshrl.u32 %v7272, 7
        %v7274 = vsub.s32 %v7271, %v7273
        %v7275 = vrot.slane %v7268, %v7274
        %v7276 = vcombine.low %v7251, %v7259
        %v7278 = vunpack.c.l.s4 1934713408
        %v7279 = vunpack.c.0.s8 %v7278
        %v7280 = vlaneseq
        %v7281 = vshrl.u32 %v7280, 7
        %v7282 = vsub.s32 %v7279, %v7281
        %v7283 = vrot.slane %v7276, %v7282
        %v7284 = vcombine.low %v7267, %v7275
        %v7286 = vunpack.c.l.s4 1934713408
        %v7287 = vunpack.c.0.s8 %v7286
        %v7288 = vlaneseq
        %v7289 = vshrl.u32 %v7288, 7
        %v7290 = vsub.s32 %v7287, %v7289
        %v7291 = vrot.slane %v7284, %v7290
        %v7292 = vcombine.low %v7283, %v7291
        %v7293 = vcombine.high %v7283, %v7291
        %v7294 = vcombine.low %v6420, %v6427
        %v7296 = vunpack.c.l.s4 1983009808
        %v7297 = vunpack.c.0.s8 %v7296
        %v7298 = vlaneseq
        %v7299 = vshrl.u32 %v7298, 7
        %v7300 = vsub.s32 %v7297, %v7299
        %v7301 = vrot.slane %v7294, %v7300
        %v7302 = vcombine.low %v6444, %v6445
        %v7304 = vunpack.c.l.s4 1983009808
        %v7305 = vunpack.c.0.s8 %v7304
        %v7306 = vlaneseq
        %v7307 = vshrl.u32 %v7306, 7
        %v7308 = vsub.s32 %v7305, %v7307
        %v7309 = vrot.slane %v7302, %v7308
        %v7310 = vcombine.low %v6436, %v6443
        %v7312 = vunpack.c.l.s4 1983009808
        %v7313 = vunpack.c.0.s8 %v7312
        %v7314 = vlaneseq
        %v7315 = vshrl.u32 %v7314, 7
        %v7316 = vsub.s32 %v7313, %v7315
        %v7317 = vrot.slane %v7310, %v7316
        %v7318 = vcombine.low %v6446, %v6447
        %v7320 = vunpack.c.l.s4 1983009808
        %v7321 = vunpack.c.0.s8 %v7320
        %v7322 = vlaneseq
        %v7323 = vshrl.u32 %v7322, 7
        %v7324 = vsub.s32 %v7321, %v7323
        %v7325 = vrot.slane %v7318, %v7324
        %v7326 = vcombine.low %v7301, %v7309
        %v7328 = vunpack.c.l.s4 1934713408
        %v7329 = vunpack.c.0.s8 %v7328
        %v7330 = vlaneseq
        %v7331 = vshrl.u32 %v7330, 7
        %v7332 = vsub.s32 %v7329, %v7331
        %v7333 = vrot.slane %v7326, %v7332
        %v7334 = vcombine.low %v7317, %v7325
        %v7336 = vunpack.c.l.s4 1934713408
        %v7337 = vunpack.c.0.s8 %v7336
        %v7338 = vlaneseq
        %v7339 = vshrl.u32 %v7338, 7
        %v7340 = vsub.s32 %v7337, %v7339
        %v7341 = vrot.slane %v7334, %v7340
        %v7342 = vcombine.low %v7333, %v7341
        %v7343 = vcombine.high %v7333, %v7341
        %v7344 = vcombine.low %v6486, %v6493
        %v7346 = vunpack.c.l.s4 1983009808
        %v7347 = vunpack.c.0.s8 %v7346
        %v7348 = vlaneseq
        %v7349 = vshrl.u32 %v7348, 7
        %v7350 = vsub.s32 %v7347, %v7349
        %v7351 = vrot.slane %v7344, %v7350
        %v7352 = vcombine.low %v6510, %v6511
        %v7354 = vunpack.c.l.s4 1983009808
        %v7355 = vunpack.c.0.s8 %v7354
        %v7356 = vlaneseq
        %v7357 = vshrl.u32 %v7356, 7
        %v7358 = vsub.s32 %v7355, %v7357
        %v7359 = vrot.slane %v7352, %v7358
        %v7360 = vcombine.low %v6502, %v6509
        %v7362 = vunpack.c.l.s4 1983009808
        %v7363 = vunpack.c.0.s8 %v7362
        %v7364 = vlaneseq
        %v7365 = vshrl.u32 %v7364, 7
        %v7366 = vsub.s32 %v7363, %v7365
        %v7367 = vrot.slane %v7360, %v7366
        %v7368 = vcombine.low %v6512, %v6513
        %v7370 = vunpack.c.l.s4 1983009808
        %v7371 = vunpack.c.0.s8 %v7370
        %v7372 = vlaneseq
        %v7373 = vshrl.u32 %v7372, 7
        %v7374 = vsub.s32 %v7371, %v7373
        %v7375 = vrot.slane %v7368, %v7374
        %v7376 = vcombine.low %v7351, %v7359
        %v7378 = vunpack.c.l.s4 1934713408
        %v7379 = vunpack.c.0.s8 %v7378
        %v7380 = vlaneseq
        %v7381 = vshrl.u32 %v7380, 7
        %v7382 = vsub.s32 %v7379, %v7381
        %v7383 = vrot.slane %v7376, %v7382
        %v7384 = vcombine.low %v7367, %v7375
        %v7386 = vunpack.c.l.s4 1934713408
        %v7387 = vunpack.c.0.s8 %v7386
        %v7388 = vlaneseq
        %v7389 = vshrl.u32 %v7388, 7
        %v7390 = vsub.s32 %v7387, %v7389
        %v7391 = vrot.slane %v7384, %v7390
        %v7392 = vcombine.low %v7383, %v7391
        %v7393 = vcombine.high %v7383, %v7391
        %v7394 = vcombine.low %v6552, %v6559
        %v7396 = vunpack.c.l.s4 1983009808
        %v7397 = vunpack.c.0.s8 %v7396
        %v7398 = vlaneseq
        %v7399 = vshrl.u32 %v7398, 7
        %v7400 = vsub.s32 %v7397, %v7399
        %v7401 = vrot.slane %v7394, %v7400
        %v7402 = vcombine.low %v6576, %v6577
        %v7404 = vunpack.c.l.s4 1983009808
        %v7405 = vunpack.c.0.s8 %v7404
        %v7406 = vlaneseq
        %v7407 = vshrl.u32 %v7406, 7
        %v7408 = vsub.s32 %v7405, %v7407
        %v7409 = vrot.slane %v7402, %v7408
        %v7410 = vcombine.low %v6568, %v6575
        %v7412 = vunpack.c.l.s4 1983009808
        %v7413 = vunpack.c.0.s8 %v7412
        %v7414 = vlaneseq
        %v7415 = vshrl.u32 %v7414, 7
        %v7416 = vsub.s32 %v7413, %v7415
        %v7417 = vrot.slane %v7410, %v7416
        %v7418 = vcombine.low %v6578, %v6579
        %v7420 = vunpack.c.l.s4 1983009808
        %v7421 = vunpack.c.0.s8 %v7420
        %v7422 = vlaneseq
        %v7423 = vshrl.u32 %v7422, 7
        %v7424 = vsub.s32 %v7421, %v7423
        %v7425 = vrot.slane %v7418, %v7424
        %v7426 = vcombine.low %v7401, %v7409
        %v7428 = vunpack.c.l.s4 1934713408
        %v7429 = vunpack.c.0.s8 %v7428
        %v7430 = vlaneseq
        %v7431 = vshrl.u32 %v7430, 7
        %v7432 = vsub.s32 %v7429, %v7431
        %v7433 = vrot.slane %v7426, %v7432
        %v7434 = vcombine.low %v7417, %v7425
        %v7436 = vunpack.c.l.s4 1934713408
        %v7437 = vunpack.c.0.s8 %v7436
        %v7438 = vlaneseq
        %v7439 = vshrl.u32 %v7438, 7
        %v7440 = vsub.s32 %v7437, %v7439
        %v7441 = vrot.slane %v7434, %v7440
        %v7442 = vcombine.low %v7433, %v7441
        %v7443 = vcombine.high %v7433, %v7441
        %v7444 = vcombine.low %v6618, %v6625
        %v7446 = vunpack.c.l.s4 1983009808
        %v7447 = vunpack.c.0.s8 %v7446
        %v7448 = vlaneseq
        %v7449 = vshrl.u32 %v7448, 7
        %v7450 = vsub.s32 %v7447, %v7449
        %v7451 = vrot.slane %v7444, %v7450
        %v7452 = vcombine.low %v6642, %v6643
        %v7454 = vunpack.c.l.s4 1983009808
        %v7455 = vunpack.c.0.s8 %v7454
        %v7456 = vlaneseq
        %v7457 = vshrl.u32 %v7456, 7
        %v7458 = vsub.s32 %v7455, %v7457
        %v7459 = vrot.slane %v7452, %v7458
        %v7460 = vcombine.low %v6634, %v6641
        %v7462 = vunpack.c.l.s4 1983009808
        %v7463 = vunpack.c.0.s8 %v7462
        %v7464 = vlaneseq
        %v7465 = vshrl.u32 %v7464, 7
        %v7466 = vsub.s32 %v7463, %v7465
        %v7467 = vrot.slane %v7460, %v7466
        %v7468 = vcombine.low %v6644, %v6645
        %v7470 = vunpack.c.l.s4 1983009808
        %v7471 = vunpack.c.0.s8 %v7470
        %v7472 = vlaneseq
        %v7473 = vshrl.u32 %v7472, 7
        %v7474 = vsub.s32 %v7471, %v7473
        %v7475 = vrot.slane %v7468, %v7474
        %v7476 = vcombine.low %v7451, %v7459
        %v7478 = vunpack.c.l.s4 1934713408
        %v7479 = vunpack.c.0.s8 %v7478
        %v7480 = vlaneseq
        %v7481 = vshrl.u32 %v7480, 7
        %v7482 = vsub.s32 %v7479, %v7481
        %v7483 = vrot.slane %v7476, %v7482
        %v7484 = vcombine.low %v7467, %v7475
        %v7486 = vunpack.c.l.s4 1934713408
        %v7487 = vunpack.c.0.s8 %v7486
        %v7488 = vlaneseq
        %v7489 = vshrl.u32 %v7488, 7
        %v7490 = vsub.s32 %v7487, %v7489
        %v7491 = vrot.slane %v7484, %v7490
        %v7492 = vcombine.low %v7483, %v7491
        %v7493 = vcombine.high %v7483, %v7491
        %v7494 = vcombine.low %v6684, %v6691
        %v7496 = vunpack.c.l.s4 1983009808
        %v7497 = vunpack.c.0.s8 %v7496
        %v7498 = vlaneseq
        %v7499 = vshrl.u32 %v7498, 7
        %v7500 = vsub.s32 %v7497, %v7499
        %v7501 = vrot.slane %v7494, %v7500
        %v7502 = vcombine.low %v6708, %v6709
        %v7504 = vunpack.c.l.s4 1983009808
        %v7505 = vunpack.c.0.s8 %v7504
        %v7506 = vlaneseq
        %v7507 = vshrl.u32 %v7506, 7
        %v7508 = vsub.s32 %v7505, %v7507
        %v7509 = vrot.slane %v7502, %v7508
        %v7510 = vcombine.low %v6700, %v6707
        %v7512 = vunpack.c.l.s4 1983009808
        %v7513 = vunpack.c.0.s8 %v7512
        %v7514 = vlaneseq
        %v7515 = vshrl.u32 %v7514, 7
        %v7516 = vsub.s32 %v7513, %v7515
        %v7517 = vrot.slane %v7510, %v7516
        %v7518 = vcombine.low %v6710, %v6711
        %v7520 = vunpack.c.l.s4 1983009808
        %v7521 = vunpack.c.0.s8 %v7520
        %v7522 = vlaneseq
        %v7523 = vshrl.u32 %v7522, 7
        %v7524 = vsub.s32 %v7521, %v7523
        %v7525 = vrot.slane %v7518, %v7524
        %v7526 = vcombine.low %v7501, %v7509
        %v7528 = vunpack.c.l.s4 1934713408
        %v7529 = vunpack.c.0.s8 %v7528
        %v7530 = vlaneseq
        %v7531 = vshrl.u32 %v7530, 7
        %v7532 = vsub.s32 %v7529, %v7531
        %v7533 = vrot.slane %v7526, %v7532
        %v7534 = vcombine.low %v7517, %v7525
        %v7536 = vunpack.c.l.s4 1934713408
        %v7537 = vunpack.c.0.s8 %v7536
        %v7538 = vlaneseq
        %v7539 = vshrl.u32 %v7538, 7
        %v7540 = vsub.s32 %v7537, %v7539
        %v7541 = vrot.slane %v7534, %v7540
        %v7542 = vcombine.low %v7533, %v7541
        %v7543 = vcombine.high %v7533, %v7541
        %v7544 = vcombine.low %v6750, %v6757
        %v7546 = vunpack.c.l.s4 1983009808
        %v7547 = vunpack.c.0.s8 %v7546
        %v7548 = vlaneseq
        %v7549 = vshrl.u32 %v7548, 7
        %v7550 = vsub.s32 %v7547, %v7549
        %v7551 = vrot.slane %v7544, %v7550
        %v7552 = vcombine.low %v6774, %v6775
        %v7554 = vunpack.c.l.s4 1983009808
        %v7555 = vunpack.c.0.s8 %v7554
        %v7556 = vlaneseq
        %v7557 = vshrl.u32 %v7556, 7
        %v7558 = vsub.s32 %v7555, %v7557
        %v7559 = vrot.slane %v7552, %v7558
        %v7560 = vcombine.low %v6766, %v6773
        %v7562 = vunpack.c.l.s4 1983009808
        %v7563 = vunpack.c.0.s8 %v7562
        %v7564 = vlaneseq
        %v7565 = vshrl.u32 %v7564, 7
        %v7566 = vsub.s32 %v7563, %v7565
        %v7567 = vrot.slane %v7560, %v7566
        %v7568 = vcombine.low %v6776, %v6777
        %v7570 = vunpack.c.l.s4 1983009808
        %v7571 = vunpack.c.0.s8 %v7570
        %v7572 = vlaneseq
        %v7573 = vshrl.u32 %v7572, 7
        %v7574 = vsub.s32 %v7571, %v7573
        %v7575 = vrot.slane %v7568, %v7574
        %v7576 = vcombine.low %v7551, %v7559
        %v7578 = vunpack.c.l.s4 1934713408
        %v7579 = vunpack.c.0.s8 %v7578
        %v7580 = vlaneseq
        %v7581 = vshrl.u32 %v7580, 7
        %v7582 = vsub.s32 %v7579, %v7581
        %v7583 = vrot.slane %v7576, %v7582
        %v7584 = vcombine.low %v7567, %v7575
        %v7586 = vunpack.c.l.s4 1934713408
        %v7587 = vunpack.c.0.s8 %v7586
        %v7588 = vlaneseq
        %v7589 = vshrl.u32 %v7588, 7
        %v7590 = vsub.s32 %v7587, %v7589
        %v7591 = vrot.slane %v7584, %v7590
        %v7592 = vcombine.low %v7583, %v7591
        %v7593 = vcombine.high %v7583, %v7591
        %v7594 = vcombine.low %v6816, %v6823
        %v7596 = vunpack.c.l.s4 1983009808
        %v7597 = vunpack.c.0.s8 %v7596
        %v7598 = vlaneseq
        %v7599 = vshrl.u32 %v7598, 7
        %v7600 = vsub.s32 %v7597, %v7599
        %v7601 = vrot.slane %v7594, %v7600
        %v7602 = vcombine.low %v6840, %v6841
        %v7604 = vunpack.c.l.s4 1983009808
        %v7605 = vunpack.c.0.s8 %v7604
        %v7606 = vlaneseq
        %v7607 = vshrl.u32 %v7606, 7
        %v7608 = vsub.s32 %v7605, %v7607
        %v7609 = vrot.slane %v7602, %v7608
        %v7610 = vcombine.low %v6832, %v6839
        %v7612 = vunpack.c.l.s4 1983009808
        %v7613 = vunpack.c.0.s8 %v7612
        %v7614 = vlaneseq
        %v7615 = vshrl.u32 %v7614, 7
        %v7616 = vsub.s32 %v7613, %v7615
        %v7617 = vrot.slane %v7610, %v7616
        %v7618 = vcombine.low %v6842, %v6843
        %v7620 = vunpack.c.l.s4 1983009808
        %v7621 = vunpack.c.0.s8 %v7620
        %v7622 = vlaneseq
        %v7623 = vshrl.u32 %v7622, 7
        %v7624 = vsub.s32 %v7621, %v7623
        %v7625 = vrot.slane %v7618, %v7624
        %v7626 = vcombine.low %v7601, %v7609
        %v7628 = vunpack.c.l.s4 1934713408
        %v7629 = vunpack.c.0.s8 %v7628
        %v7630 = vlaneseq
        %v7631 = vshrl.u32 %v7630, 7
        %v7632 = vsub.s32 %v7629, %v7631
        %v7633 = vrot.slane %v7626, %v7632
        %v7634 = vcombine.low %v7617, %v7625
        %v7636 = vunpack.c.l.s4 1934713408
        %v7637 = vunpack.c.0.s8 %v7636
        %v7638 = vlaneseq
        %v7639 = vshrl.u32 %v7638, 7
        %v7640 = vsub.s32 %v7637, %v7639
        %v7641 = vrot.slane %v7634, %v7640
        %v7642 = vcombine.low %v7633, %v7641
        %v7643 = vcombine.high %v7633, %v7641
        %v7644 = vpack.c.bf16 %v6942, %v6892
        %v7645 = vpack.c.bf16 %v7042, %v6992
        %v7646 = vpack.c.bf16 %v7142, %v7092
        %v7647 = vpack.c.bf16 %v7242, %v7192
        %v7648 = vpack.c.bf16 %v7342, %v7292
        %v7649 = vpack.c.bf16 %v7442, %v7392
        %v7650 = vpack.c.bf16 %v7542, %v7492
        %v7651 = vpack.c.bf16 %v7642, %v7592
        %v7652 = vpack.c.bf16 %v6943, %v6893
        %v7653 = vpack.c.bf16 %v7043, %v6993
        %v7654 = vpack.c.bf16 %v7143, %v7093
        %v7655 = vpack.c.bf16 %v7243, %v7193
        %v7656 = vpack.c.bf16 %v7343, %v7293
        %v7657 = vpack.c.bf16 %v7443, %v7393
        %v7658 = vpack.c.bf16 %v7543, %v7493
        %v7659 = vpack.c.bf16 %v7643, %v7593
        %v7676 = vunpack.c.l.b16 %v7644
        %v7677 = vunpack.c.h.b16 %v7644
        %v7678 = vunpack.c.l.b16 %v7645
        %v7679 = vunpack.c.h.b16 %v7645
        %v7680 = vunpack.c.l.b16 %v7646
        %v7681 = vunpack.c.h.b16 %v7646
        %v7682 = vunpack.c.l.b16 %v7647
        %v7683 = vunpack.c.h.b16 %v7647
        %v7684 = vunpack.c.l.b16 %v7648
        %v7685 = vunpack.c.h.b16 %v7648
        %v7686 = vunpack.c.l.b16 %v7649
        %v7687 = vunpack.c.h.b16 %v7649
        %v7688 = vunpack.c.l.b16 %v7650
        %v7689 = vunpack.c.h.b16 %v7650
        %v7690 = vunpack.c.l.b16 %v7651
        %v7691 = vunpack.c.h.b16 %v7651
        %v7692 = vunpack.c.l.b16 %v7652
        %v7693 = vunpack.c.h.b16 %v7652
        %v7694 = vunpack.c.l.b16 %v7653
        %v7695 = vunpack.c.h.b16 %v7653
        %v7696 = vunpack.c.l.b16 %v7654
        %v7697 = vunpack.c.h.b16 %v7654
        %v7698 = vunpack.c.l.b16 %v7655
        %v7699 = vunpack.c.h.b16 %v7655
        %v7700 = vunpack.c.l.b16 %v7656
        %v7701 = vunpack.c.h.b16 %v7656
        %v7702 = vunpack.c.l.b16 %v7657
        %v7703 = vunpack.c.h.b16 %v7657
        %v7704 = vunpack.c.l.b16 %v7658
        %v7705 = vunpack.c.h.b16 %v7658
        %v7706 = vunpack.c.l.b16 %v7659
        %v7707 = vunpack.c.h.b16 %v7659
        %v7708 = vpack.c.b16 %v7676, %v7676
        %v7709 = vpack.c.b16 %v7677, %v7677
        %v7710 = vpack.c.b16 %v7678, %v7678
        %v7711 = vpack.c.b16 %v7679, %v7679
        %v7712 = vpack.c.b16 %v7680, %v7680
        %v7713 = vpack.c.b16 %v7681, %v7681
        %v7714 = vpack.c.b16 %v7682, %v7682
        %v7715 = vpack.c.b16 %v7683, %v7683
        %v7716 = vpack.c.b16 %v7684, %v7684
        %v7717 = vpack.c.b16 %v7685, %v7685
        %v7718 = vpack.c.b16 %v7686, %v7686
        %v7719 = vpack.c.b16 %v7687, %v7687
        %v7720 = vpack.c.b16 %v7688, %v7688
        %v7721 = vpack.c.b16 %v7689, %v7689
        %v7722 = vpack.c.b16 %v7690, %v7690
        %v7723 = vpack.c.b16 %v7691, %v7691
        %v7724 = vpack.c.b16 %v7692, %v7692
        %v7725 = vpack.c.b16 %v7693, %v7693
        %v7726 = vpack.c.b16 %v7694, %v7694
        %v7727 = vpack.c.b16 %v7695, %v7695
        %v7728 = vpack.c.b16 %v7696, %v7696
        %v7729 = vpack.c.b16 %v7697, %v7697
        %v7730 = vpack.c.b16 %v7698, %v7698
        %v7731 = vpack.c.b16 %v7699, %v7699
        %v7732 = vpack.c.b16 %v7700, %v7700
        %v7733 = vpack.c.b16 %v7701, %v7701
        %v7734 = vpack.c.b16 %v7702, %v7702
        %v7735 = vpack.c.b16 %v7703, %v7703
        %v7736 = vpack.c.b16 %v7704, %v7704
        %v7737 = vpack.c.b16 %v7705, %v7705
        %v7738 = vpack.c.b16 %v7706, %v7706
        %v7739 = vpack.c.b16 %v7707, %v7707
        %7772 = vst [vmem:[%s393] sm:$0xf] %v7708
        %7773 = vst [vmem:[%s393 + $0x4] sm:$0xf] %v7709
        %7774 = vst [vmem:[%s393 + $0x8] sm:$0xf] %v7710
        %7775 = vst [vmem:[%s393 + $0xc] sm:$0xf] %v7711
        %7776 = vst [vmem:[%s393 + $0x10] sm:$0xf] %v7712
        %7777 = vst [vmem:[%s393 + $0x14] sm:$0xf] %v7713
        %7778 = vst [vmem:[%s393 + $0x18] sm:$0xf] %v7714
        %7779 = vst [vmem:[%s393 + $0x1c] sm:$0xf] %v7715
        %7780 = vst [vmem:[%s393 + $0x20] sm:$0xf] %v7716
        %7781 = vst [vmem:[%s393 + $0x24] sm:$0xf] %v7717
        %7782 = vst [vmem:[%s393 + $0x28] sm:$0xf] %v7718
        %7783 = vst [vmem:[%s393 + $0x2c] sm:$0xf] %v7719
        %7784 = vst [vmem:[%s393 + $0x30] sm:$0xf] %v7720
        %7785 = vst [vmem:[%s393 + $0x34] sm:$0xf] %v7721
        %7786 = vst [vmem:[%s393 + $0x38] sm:$0xf] %v7722
        %7787 = vst [vmem:[%s393 + $0x3c] sm:$0xf] %v7723
        %7788 = vst [vmem:[%s393 + $0x40] sm:$0xf] %v7724
        %7789 = vst [vmem:[%s393 + $0x44] sm:$0xf] %v7725
        %7790 = vst [vmem:[%s393 + $0x48] sm:$0xf] %v7726
        %7791 = vst [vmem:[%s393 + $0x4c] sm:$0xf] %v7727
        %7792 = vst [vmem:[%s393 + $0x50] sm:$0xf] %v7728
        %7793 = vst [vmem:[%s393 + $0x54] sm:$0xf] %v7729
        %7794 = vst [vmem:[%s393 + $0x58] sm:$0xf] %v7730
        %7795 = vst [vmem:[%s393 + $0x5c] sm:$0xf] %v7731
        %7796 = vst [vmem:[%s393 + $0x60] sm:$0xf] %v7732
        %7797 = vst [vmem:[%s393 + $0x64] sm:$0xf] %v7733
        %7798 = vst [vmem:[%s393 + $0x68] sm:$0xf] %v7734
        %7799 = vst [vmem:[%s393 + $0x6c] sm:$0xf] %v7735
        %7800 = vst [vmem:[%s393 + $0x70] sm:$0xf] %v7736
        %7801 = vst [vmem:[%s393 + $0x74] sm:$0xf] %v7737
        %7802 = vst [vmem:[%s393 + $0x78] sm:$0xf] %v7738
        %7803 = vst [vmem:[%s393 + $0x7c] sm:$0xf] %v7739
        %s7804 = sand.u32 %s164, 1
        %s7805 = scalar_lea.sflag [#allocation4], %s7804
        %s7806 = sand.u32 %s164, 1
        %s7807 = smul.addr %s7806, 128
        %s7808 = scalar_lea.vmem [#allocation11], %s7807
        %s7809 = sand.u32 %s30, 1
        %s7810 = scalar_lea.sflag [#allocation13], %s7809
        %s7811 = sand.u32 %s192, 1
        %s7812 = smul.addr %s7811, 128
        %s7813 = scalar_lea.vmem [#allocation12], %s7812
        %s7814 = sand.u32 %s30, 1
        %s7815 = scalar_lea.sflag [#allocation13], %s7814
        %s7816 = sand.u32 %s220, 1
        %s7817 = smul.addr %s7816, 128
        %s7818 = scalar_lea.vmem [#allocation14], %s7817
        // Predicated region
        $region61: #{tpu_custom_call.1} parent=39 // pred_check
          %p7819 = pneg %p174
        $region62: #{tpu_custom_call.1} parent=39 // pred_check_branch
          %7821 = sbr.rel (%p7819) target = $region64
        $region63: #{tpu_custom_call.1} parent=39 // pred_region
          #allocation16 [shape = 'u32[6]{0}', space=smem, size = 0x18, scoped, tag = 'DMA stride descriptor']
          %s7822 = smul.u32 16, %s35
          %s7824 = ssub.s32 2048, 2048
          %7825 = vsyncadd %s7805, %s7824
          %s7826 = smul.addr %s34, 64
          %s7827 = sadd.s32 %s7822, %s7826
          %s7828 = smul.addr %s7827, 64
          %s7829 = scalar_lea.hbm %s5, %s7828
          %s7831 = sshll.u32 1, 14
          %s7832 = sxor.u32 4294967295, %s7831
          %s7835 = sshll.u32 7, 18
          %s7836 = sxor.u32 4294967295, %s7835
          %s7837 = sand.u32 0, %s7836
          %s7839 = sor.u32 %s7837, 0
          %s7841 = sshll.u32 3, 24
          %s7842 = sxor.u32 4294967295, %s7841
          %s7843 = sand.u32 %s7839, %s7842
          %s7845 = sor.u32 %s7843, 0
          %s7846 = sshll.u32 %s7808, 4
          %s7847 = int_to_ptr.vmem [resolvable:$true] %s7846
          %7853 = sst [smem:[#allocation16]] 1024
          %s7854 = scalar_lea.smem [#allocation16], 1
          %7855 = sst [smem:[%s7854]] 2048
          %s7856 = scalar_lea.smem [#allocation16], 2
          %7857 = sst [smem:[%s7856]] 16
          %s7858 = scalar_lea.smem [#allocation16], 3
          %7859 = sst [smem:[%s7858]] 64
          %s7860 = scalar_lea.smem [#allocation16], 4
          %7861 = sst [smem:[%s7860]] 64
          %s7862 = scalar_lea.smem [#allocation16], 5
          %7863 = sst [smem:[%s7862]] 4
          %7865 = dma.general %s7847, 2048, %s7829, %s7805, [#allocation15], [#allocation16], %s7845, 0
        $region64: #{tpu_custom_call.1} parent=39 // pred_fallthru
          _
        // Predicated region
        $region65: #{tpu_custom_call.1} parent=39 // pred_check
          %p7866 = pneg %p202
        $region66: #{tpu_custom_call.1} parent=39 // pred_check_branch
          %7868 = sbr.rel (%p7866) target = $region68
        $region67: #{tpu_custom_call.1} parent=39 // pred_region
          #allocation18 [shape = 'u32[6]{0}', space=smem, size = 0x18, scoped, tag = 'DMA stride descriptor']
          %s7869 = smul.u32 16, %s35
          %s7871 = ssub.s32 2048, 2048
          %7872 = vsyncadd %s7810, %s7871
          %s7873 = smul.addr %s34, 64
          %s7874 = sadd.s32 %s7869, %s7873
          %s7875 = smul.addr %s7874, 64
          %s7876 = scalar_lea.hbm %s6, %s7875
          %s7878 = sshll.u32 1, 14
          %s7879 = sxor.u32 4294967295, %s7878
          %s7882 = sshll.u32 7, 18
          %s7883 = sxor.u32 4294967295, %s7882
          %s7884 = sand.u32 0, %s7883
          %s7886 = sor.u32 %s7884, 0
          %s7888 = sshll.u32 3, 24
          %s7889 = sxor.u32 4294967295, %s7888
          %s7890 = sand.u32 %s7886, %s7889
          %s7892 = sor.u32 %s7890, 0
          %s7893 = sshll.u32 %s7813, 4
          %s7894 = int_to_ptr.vmem [resolvable:$true] %s7893
          %7900 = sst [smem:[#allocation18]] 1024
          %s7901 = scalar_lea.smem [#allocation18], 1
          %7902 = sst [smem:[%s7901]] 2048
          %s7903 = scalar_lea.smem [#allocation18], 2
          %7904 = sst [smem:[%s7903]] 16
          %s7905 = scalar_lea.smem [#allocation18], 3
          %7906 = sst [smem:[%s7905]] 64
          %s7907 = scalar_lea.smem [#allocation18], 4
          %7908 = sst [smem:[%s7907]] 64
          %s7909 = scalar_lea.smem [#allocation18], 5
          %7910 = sst [smem:[%s7909]] 4
          %7912 = dma.general %s7894, 2048, %s7876, %s7810, [#allocation17], [#allocation18], %s7892, 0
        $region68: #{tpu_custom_call.1} parent=39 // pred_fallthru
          _
        // Predicated region
        $region69: #{tpu_custom_call.1} parent=39 // pred_check
          %p7913 = pneg %p230
        $region70: #{tpu_custom_call.1} parent=39 // pred_check_branch
          %7915 = sbr.rel (%p7913) target = $region72
        $region71: #{tpu_custom_call.1} parent=39 // pred_region
          #allocation20 [shape = 'u32[6]{0}', space=smem, size = 0x18, scoped, tag = 'DMA stride descriptor']
          %s7916 = smul.u32 16, %s35
          %s7918 = ssub.s32 2048, 2048
          %7919 = vsyncadd %s7815, %s7918
          %s7920 = smul.addr %s34, 64
          %s7921 = sadd.s32 %s7916, %s7920
          %s7922 = smul.addr %s7921, 64
          %s7923 = scalar_lea.hbm %s7, %s7922
          %s7925 = sshll.u32 1, 14
          %s7926 = sxor.u32 4294967295, %s7925
          %s7929 = sshll.u32 7, 18
          %s7930 = sxor.u32 4294967295, %s7929
          %s7931 = sand.u32 0, %s7930
          %s7933 = sor.u32 %s7931, 0
          %s7935 = sshll.u32 3, 24
          %s7936 = sxor.u32 4294967295, %s7935
          %s7937 = sand.u32 %s7933, %s7936
          %s7939 = sor.u32 %s7937, 0
          %s7940 = sshll.u32 %s7818, 4
          %s7941 = int_to_ptr.vmem [resolvable:$true] %s7940
          %7947 = sst [smem:[#allocation20]] 1024
          %s7948 = scalar_lea.smem [#allocation20], 1
          %7949 = sst [smem:[%s7948]] 2048
          %s7950 = scalar_lea.smem [#allocation20], 2
          %7951 = sst [smem:[%s7950]] 16
          %s7952 = scalar_lea.smem [#allocation20], 3
          %7953 = sst [smem:[%s7952]] 64
          %s7954 = scalar_lea.smem [#allocation20], 4
          %7955 = sst [smem:[%s7954]] 64
          %s7956 = scalar_lea.smem [#allocation20], 5
          %7957 = sst [smem:[%s7956]] 4
          %7959 = dma.general %s7941, 2048, %s7923, %s7815, [#allocation19], [#allocation20], %s7939, 0
        $region72: #{tpu_custom_call.1} parent=39 // pred_fallthru
          _
      $region40: #{tpu_custom_call.1} parent=5 // pred_fallthru
        _
      %p7960 = scmp.le.s32.totalorder 2, %s25
      // Predicated region
      $region73: #{tpu_custom_call.1} parent=5 // pred_check
        %p7961 = pneg %p7960
      $region74: #{tpu_custom_call.1} parent=5 // pred_check_branch
        %7963 = sbr.rel (%p7961) target = $region76
      $region75: #{tpu_custom_call.1} parent=5 // pred_region
        %s7964 = ssub.s32 %s25, 2
        // Predicated region
        $region77: #{tpu_custom_call.1} parent=75 // pred_check
          %p7965 = pneg %p180
        $region78: #{tpu_custom_call.1} parent=75 // pred_check_branch
          %7967 = sbr.rel (%p7965) target = $region80
        $region79: #{tpu_custom_call.1} parent=75 // pred_region
          %s7968 = sand.u32 %s165, 1
          %s7969 = scalar_lea.sflag [#allocation4], %s7968
          %s7970 = sand.u32 %s165, 1
          %s7971 = smul.addr %s7970, 128
          %s7972 = scalar_lea.vmem [#allocation11], %s7971
          %7973 = dma.done %s7969, 2048
        $region80: #{tpu_custom_call.1} parent=75 // pred_fallthru
          _
        // Predicated region
        $region81: #{tpu_custom_call.1} parent=75 // pred_check
          %p7974 = pneg %p208
        $region82: #{tpu_custom_call.1} parent=75 // pred_check_branch
          %7976 = sbr.rel (%p7974) target = $region84
        $region83: #{tpu_custom_call.1} parent=75 // pred_region
          %s7977 = sand.u32 %s31, 1
          %s7978 = scalar_lea.sflag [#allocation13], %s7977
          %s7979 = sand.u32 %s193, 1
          %s7980 = smul.addr %s7979, 128
          %s7981 = scalar_lea.vmem [#allocation12], %s7980
          %7982 = dma.done %s7978, 2048
        $region84: #{tpu_custom_call.1} parent=75 // pred_fallthru
          _
        // Predicated region
        $region85: #{tpu_custom_call.1} parent=75 // pred_check
          %p7983 = pneg %p236
        $region86: #{tpu_custom_call.1} parent=75 // pred_check_branch
          %7985 = sbr.rel (%p7983) target = $region88
        $region87: #{tpu_custom_call.1} parent=75 // pred_region
          %s7986 = sand.u32 %s31, 1
          %s7987 = scalar_lea.sflag [#allocation13], %s7986
          %s7988 = sand.u32 %s221, 1
          %s7989 = smul.addr %s7988, 128
          %s7990 = scalar_lea.vmem [#allocation14], %s7989
          %7991 = dma.done %s7987, 2048
        $region88: #{tpu_custom_call.1} parent=75 // pred_fallthru
          _
      $region76: #{tpu_custom_call.1} parent=5 // pred_fallthru
        _
    $region6: #{tpu_custom_call.1} parent=1 // loop_footer
      %s29 = sadd.s32 1, %s25
    $region7: #{tpu_custom_call.1} parent=1 // loop_footer_branch
      %24 = sbr.rel target = $region3
    $region8: #{tpu_custom_call.1} parent=1 // loop_exit
      _
    %7992 = vsyncpa [#allocation3], 1
    %s7993 = scalar_lea.sflag [#allocation3], 1
    %7994 = vsyncpa %s7993, 1
    %7995 = vsyncpa [#allocation6], 1
    %7996 = vsyncpa [#allocation9], 1
    %7997 = vsyncpa [#allocation4], 1
    %s7998 = scalar_lea.sflag [#allocation4], 1
    %7999 = vsyncpa %s7998, 1
    %8000 = vsyncpa [#allocation13], 1
    %s8001 = scalar_lea.sflag [#allocation13], 1
    %8002 = vsyncpa %s8001, 1

</llo_original>
